<compile_context>
chip_gen: v6e
topology: v6e:2x2x1
jax: 0.10.0
libtpu: 0.0.40
codegen_flags: <defaults>
</compile_context>

<pallas_src>
import numpy as np

import jax
import jax.numpy as jnp
from jax.experimental import pallas as pl
from jax.experimental.pallas import tpu as pltpu


def _elu(z):
    # ELU(alpha=1): z if z > 0 else exp(z) - 1.  min() keeps exp finite on the
    # unselected branch.  TODO(synk): use jnp.expm1 if/when it lowers in Mosaic.
    return jnp.where(z > 0.0, z, jnp.exp(jnp.minimum(z, 0.0)) - 1.0)


# --------------------------------------------------------------------------
# Weight packing
# --------------------------------------------------------------------------
def pack_params(params, conv_dtype=jnp.float32):
    """Pack torch-layout parameters into the fused kernel's operand form.

    Per conv layer we build a single row-stacked channel-mix matrix M so that
    with the activation layout A[c*H + i, col]:
        Z  = M @ A + b                      # q-blocks stacked along rows
        A' = [ELU(Z_0) | ... | ELU(Z_{k-1})]  (column concatenation)
    Height interleaving is baked into M (kron with I_H).  The width interleave
    is deferred; `m_to_j` tracks the column -> true-width mapping so the last
    layer's scatter R can undo it (built in forward_packed, it depends on TB).
    """
    lin_w = jnp.asarray(params["lin_w"], jnp.float32)            # (out, in)
    lin_b = jnp.asarray(params["lin_b"], jnp.float32).reshape(-1, 1)

    layers = []
    m_to_j = [0]          # deferred width-permutation tracker (per batch elem)
    h = 1                 # spatial size going INTO the current conv
    convs = params["convs"]
    for li, (w, bias, k) in enumerate(convs):
        w = jnp.asarray(w, jnp.float32)                          # (Cin, Cout, k, k)
        bias = jnp.asarray(bias, jnp.float32)                    # (Cout,)
        cin, cout = int(w.shape[0]), int(w.shape[1])
        h_out = h * k
        eye = jnp.eye(h, dtype=jnp.float32)
        ms = []
        for q in range(k):
            msmall = jnp.transpose(w[:, :, :, q], (1, 2, 0))     # (co, p, ci)
            mq = jnp.einsum("opc,ij->oipcj", msmall, eye)        # kron with I_h
            ms.append(mq.reshape(cout * h_out, cin * h))
        m_stacked = jnp.concatenate(ms, axis=0)                  # (k*Cout*h_out, Cin*h)
        b_stacked = jnp.tile(jnp.repeat(bias, h_out), k).reshape(-1, 1)
        dtype = jnp.float32 if li == 0 else conv_dtype           # layer 1 is VPU-only
        layers.append({"k": k, "m": m_stacked.astype(dtype), "b": b_stacked})
        if li < len(convs) - 1:
            # column update: col' = q*len + col  ;  j' = j*k + q
            m_to_j = [m_to_j[m] * k + q for q in range(k) for m in range(len(m_to_j))]
        h = h_out

    return {"lin_w": lin_w, "lin_b": lin_b, "layers": layers,
            "m_to_j": tuple(m_to_j)}


def _build_last_scatter(m_to_j, k_last, tb, out_w):
    """0/1 scatter folding the deferred width permutation + batch de-interleave.

    Columns entering the last layer are col = b + TB*m; the scatter sends the
    ELU'd last-layer block q to column b*out_w + (m_to_j[m]*k_last + q), so the
    kernel can emit lane-dense (128,128) per-sample slabs.
    """
    n_m = len(m_to_j)
    r = np.zeros((k_last, tb * n_m, tb * out_w), dtype=np.float32)
    for q in range(k_last):
        for m, j_prev in enumerate(m_to_j):
            j = j_prev * k_last + q
            for b in range(tb):
                r[q, b + tb * m, b * out_w + j] = 1.0
    return jnp.asarray(r)                                        # keep f32 (exact)


# --------------------------------------------------------------------------
# Fused kernel
# --------------------------------------------------------------------------
def _make_kernel(nl, in_dim, tb, ks, out_w):
    """Build the fused kernel for one batch tile (closure over static config)."""

    def kernel(*refs):
        xt_ref, lw_ref, lb_ref = refs[0], refs[1], refs[2]
        m_refs = [refs[3 + 2 * i] for i in range(nl)]
        b_refs = [refs[4 + 2 * i] for i in range(nl)]
        r_ref = refs[3 + 2 * nl]
        out_ref = refs[4 + 2 * nl]
        bufs = (refs[5 + 2 * nl], refs[6 + 2 * nl])

        # ---- Linear + Tanh (in_dim is tiny -> outer products on the VPU) ----
        xt = xt_ref[0]                                   # (in_dim, TB)
        lw = lw_ref[...]                                 # (in_dim, in_dim)
        zl = jnp.zeros((lw.shape[0], tb), jnp.float32)
        for d in range(in_dim):
            zl = zl + lw[:, d:d + 1] * xt[d:d + 1, :]
        a0 = jnp.tanh(zl + lb_ref[...])                  # (in_dim, TB)

        # ---- conv 1 (1x1 spatial input -> outer-product channel mix) ----
        m1 = m_refs[0][...].astype(jnp.float32)          # (k0*Cout0, in_dim)
        z = jnp.zeros((m1.shape[0], tb), jnp.float32)
        for d in range(in_dim):
            z = z + m1[:, d:d + 1] * a0[d:d + 1, :]
        z = _elu(z + b_refs[0][...])
        k = ks[0]
        rows = m1.shape[0] // k
        nc = tb
        cur = bufs[0]
        for q in range(k):                               # column concat == stores
            cur[0:rows, q * nc:(q + 1) * nc] = z[q * rows:(q + 1) * rows, :]
        nc = nc * k

        # ---- conv 2 .. conv nl-1: one row-stacked MXU matmul per layer ----
        for li in range(1, nl - 1):
            m_ref, b_ref = m_refs[li], b_refs[li]
            zrows, in_rows = m_ref.shape
            a_in = cur[0:in_rows, 0:nc].astype(m_ref.dtype)
            z = jnp.dot(m_ref[...], a_in, preferred_element_type=jnp.float32)
            z = _elu(z + b_ref[...])
            k = ks[li]
            rows = zrows // k
            nxt = bufs[li % 2]                           # ping-pong VMEM scratch
            for q in range(k):
                nxt[0:rows, q * nc:(q + 1) * nc] = z[q * rows:(q + 1) * rows, :]
            cur = nxt
            nc = nc * k

        # ---- last conv: stacked matmul, then fold the deferred column
        #      permutation + batch de-interleave with the 0/1 scatter R ----
        m_ref, b_ref = m_refs[nl - 1], b_refs[nl - 1]
        zrows, in_rows = m_ref.shape
        a_in = cur[0:in_rows, 0:nc].astype(m_ref.dtype)
        z = jnp.dot(m_ref[...], a_in, preferred_element_type=jnp.float32)
        z = _elu(z + b_ref[...])                         # (k_last*128, TB*64), f32
        k = ks[nl - 1]
        rows = zrows // k                                # = 128 image rows
        f = jnp.zeros((rows, tb * out_w), jnp.float32)
        for q in range(k):
            f = f + jnp.dot(z[q * rows:(q + 1) * rows, :], r_ref[q],
                            preferred_element_type=jnp.float32)
        for b in range(tb):                              # lane-dense 128-wide stores
            out_ref[b] = f[:, b * out_w:(b + 1) * out_w].astype(out_ref.dtype)

    return kernel


# --------------------------------------------------------------------------
# Wrapper
# --------------------------------------------------------------------------
def forward_packed(packed, x, *, batch_tile=None, vmem_limit_mb=32):
    """Forward pass from packed params.

    x: (B, in_dim) or (in_dim,).  `packed` must be closed over (a Python-side
    constant), not passed as a traced jit argument, because its permutation
    table is used for host-side packing.

    batch_tile: batch elements per grid step.  None -> all of B in one step
    (best on single-TC v5e/v6e).  On v7x pass ceil(B/2) so grid >= 2 and both
    TensorCores are used via the "parallel" batch axis.
    """
    squeeze = x.ndim == 1
    if squeeze:
        x = x[None, :]
    x = x.astype(jnp.float32)
    bsz, in_dim = int(x.shape[0]), int(x.shape[1])

    layers = packed["layers"]
    nl = len(layers)
    ks = [int(l["k"]) for l in layers]
    out_h = layers[-1]["m"].shape[0] // ks[-1]           # 128 image rows
    out_w = 1
    for k in ks:
        out_w *= k                                       # 128 image cols

    tb = bsz if batch_tile is None else max(1, min(int(batch_tile), bsz))
    num_tiles = -(-bsz // tb)
    b_pad = num_tiles * tb
    if b_pad != bsz:                                     # pad a ragged final tile
        x = jnp.concatenate(
            [x, jnp.zeros((b_pad - bsz, in_dim), jnp.float32)], axis=0)
    xt = x.reshape(num_tiles, tb, in_dim).transpose(0, 2, 1)     # (nt, in_dim, TB)

    r_last = _build_last_scatter(packed["m_to_j"], ks[-1], tb, out_w)

    buf_rows = max(l["m"].shape[0] // l["k"] for l in layers[:-1])   # 256
    buf_cols = tb
    for k in ks[:-1]:
        buf_cols *= k                                    # TB * 64

    flat = [xt, packed["lin_w"], packed["lin_b"]]
    for l in layers:
        flat += [l["m"], l["b"]]
    flat.append(r_last)

    def _const_spec(a):
        nd = a.ndim
        return pl.BlockSpec(a.shape, lambda t, _nd=nd: (0,) * _nd)

    in_specs = [pl.BlockSpec((1, in_dim, tb), lambda t: (t, 0, 0))]
    in_specs += [_const_spec(a) for a in flat[1:]]

    out = pl.pallas_call(
        _make_kernel(nl=nl, in_dim=in_dim, tb=tb, ks=ks, out_w=out_w),
        out_shape=jax.ShapeDtypeStruct((b_pad, out_h, out_w), jnp.float32),
        grid=(num_tiles,),
        in_specs=in_specs,
        out_specs=pl.BlockSpec((tb, out_h, out_w), lambda t: (t, 0, 0)),
        scratch_shapes=[pltpu.VMEM((buf_rows, buf_cols), jnp.float32),
                        pltpu.VMEM((buf_rows, buf_cols), jnp.float32)],
        compiler_params=pltpu.CompilerParams(
            dimension_semantics=("parallel",),
            vmem_limit_bytes=vmem_limit_mb * 1024 * 1024),
    )(*flat)

    out = out[:bsz]
    if squeeze:
        out = out[0]
    return out


def image_net_2d_128_forward(params, x, **kwargs):
    return forward_packed(pack_params(params), x, **kwargs)


# --------------------------------------------------------------------------
# Deterministic init + pure-JAX reference (torch semantics)
# --------------------------------------------------------------------------
def init_params(key, in_dimension=2):
    ngf = 2
    keys = jax.random.split(key, 14)
    params = {}
    params["lin_w"] = jax.random.normal(keys[0], (in_dimension, in_dimension),
                                        jnp.float32) * 0.5
    params["lin_b"] = jax.random.normal(keys[1], (in_dimension,),
                                        jnp.float32) * 0.1
    conv_defs = [
        (in_dimension, 32 * ngf, 4),
        (32 * ngf, 16 * ngf, 2),
        (16 * ngf, 8 * ngf, 2),
        (8 * ngf, 4 * ngf, 2),
        (4 * ngf, 2 * ngf, 2),
        (2 * ngf, 1, 2),
    ]
    convs = []
    for idx, (cin, cout, k) in enumerate(conv_defs):
        wkey, bkey = keys[2 + 2 * idx], keys[3 + 2 * idx]
        scale = 1.0 / float(cin * k * k) ** 0.5
        w = jax.random.normal(wkey, (cin, cout, k, k), jnp.float32) * scale
        bb = jax.random.normal(bkey, (cout,), jnp.float32) * scale
        convs.append((w, bb, k))
    params["convs"] = convs
    return params


def _reference_forward(params, x):
    """Pure-JAX reference matching the torch module."""
    h = jnp.tanh(x @ params["lin_w"].T + params["lin_b"])
    h = h[:, :, None, None]
    for w, bias, k in params["convs"]:
        n, cin, hh, ww = h.shape
        cout = w.shape[1]
        y = jnp.einsum("ncij,copq->noipjq", h, w)
        y = y.reshape(n, cout, hh * k, ww * k) + bias[None, :, None, None]
        h = jnp.where(y > 0, y, jnp.expm1(y))
    return h[:, 0]


# --------------------------------------------------------------------------
# Demo / self-check
# --------------------------------------------------------------------------
if __name__ == "__main__":
    key = jax.random.PRNGKey(0)
    pkey, xkey = jax.random.split(key)
    params = init_params(pkey, in_dimension=2)
    x = jax.random.normal(xkey, (2, 2), jnp.float32)     # batch=2, in_dimension=2

    y_ref = _reference_forward(params, x)

    # 1) f32 weights, TB = B (grid = 1, best for v5e/v6e): strict check.
    packed_f32 = pack_params(params, conv_dtype=jnp.float32)
    fwd_f32 = jax.jit(lambda xx: forward_packed(packed_f32, xx))
    y32 = jax.block_until_ready(fwd_f32(x))
    assert y32.shape == (2, 128, 128), y32.shape
    assert bool(jnp.all(jnp.isfinite(y32)))
    err32 = float(jnp.max(jnp.abs(y32 - y_ref)))
    assert err32 < 5e-3, f"f32 max abs error vs reference: {err32}"

    # 2) bf16 matmul operands + batch_tile=1 (grid=2: exercises the batch-tiled
    #    path / both TensorCores on v7x): looser tolerance for bf16 rounding.
    packed_bf16 = pack_params(params, conv_dtype=jnp.bfloat16)
    fwd_bf16 = jax.jit(lambda xx: forward_packed(packed_bf16, xx, batch_tile=1))
    y16 = jax.block_until_ready(fwd_bf16(x))
    assert y16.shape == (2, 128, 128), y16.shape
    assert bool(jnp.all(jnp.isfinite(y16)))
    err16 = float(jnp.max(jnp.abs(y16 - y_ref)))
    assert err16 < 1.5e-2, f"bf16 max abs error vs reference: {err16}"

    print("KERNEL_OK")
</pallas_src>

<mosaic_0001>
module attributes {stable_mosaic.version = 11 : i64} {
  func.func @kernel(%arg0: i32, %arg1: memref<1x2x2xf32, #tpu.memory_space<vmem>>, %arg2: memref<2x2xf32, #tpu.memory_space<vmem>>, %arg3: memref<2x1xf32, #tpu.memory_space<vmem>>, %arg4: memref<1024x2xf32, #tpu.memory_space<vmem>>, %arg5: memref<1024x1xf32, #tpu.memory_space<vmem>>, %arg6: memref<512x256xf32, #tpu.memory_space<vmem>>, %arg7: memref<512x1xf32, #tpu.memory_space<vmem>>, %arg8: memref<512x256xf32, #tpu.memory_space<vmem>>, %arg9: memref<512x1xf32, #tpu.memory_space<vmem>>, %arg10: memref<512x256xf32, #tpu.memory_space<vmem>>, %arg11: memref<512x1xf32, #tpu.memory_space<vmem>>, %arg12: memref<512x256xf32, #tpu.memory_space<vmem>>, %arg13: memref<512x1xf32, #tpu.memory_space<vmem>>, %arg14: memref<256x256xf32, #tpu.memory_space<vmem>>, %arg15: memref<256x1xf32, #tpu.memory_space<vmem>>, %arg16: memref<2x128x256xf32, #tpu.memory_space<vmem>>, %arg17: memref<2x128x128xf32, #tpu.memory_space<vmem>>, %arg18: memref<256x128xf32, #tpu.memory_space<vmem>>, %arg19: memref<256x128xf32, #tpu.memory_space<vmem>>) attributes {dimension_semantics = [#tpu.dimension_semantics<parallel>], iteration_bounds = array<i64: 1>, scalar_prefetch = 0 : i64, scratch_operands = 2 : i64, tpu.core_type = #tpu.core_type<tc>, window_params = [{transform_indices = @transform_0, window_bounds = array<i64: 1, 2, 2>}, {pipeline_mode = #tpu.pipeline_mode<synchronous>, transform_indices = @transform_1, window_bounds = array<i64: 2, 2>}, {pipeline_mode = #tpu.pipeline_mode<synchronous>, transform_indices = @transform_2, window_bounds = array<i64: 2, 1>}, {pipeline_mode = #tpu.pipeline_mode<synchronous>, transform_indices = @transform_3, window_bounds = array<i64: 1024, 2>}, {pipeline_mode = #tpu.pipeline_mode<synchronous>, transform_indices = @transform_4, window_bounds = array<i64: 1024, 1>}, {pipeline_mode = #tpu.pipeline_mode<synchronous>, transform_indices = @transform_5, window_bounds = array<i64: 512, 256>}, {pipeline_mode = #tpu.pipeline_mode<synchronous>, transform_indices = @transform_6, window_bounds = array<i64: 512, 1>}, {pipeline_mode = #tpu.pipeline_mode<synchronous>, transform_indices = @transform_7, window_bounds = array<i64: 512, 256>}, {pipeline_mode = #tpu.pipeline_mode<synchronous>, transform_indices = @transform_8, window_bounds = array<i64: 512, 1>}, {pipeline_mode = #tpu.pipeline_mode<synchronous>, transform_indices = @transform_9, window_bounds = array<i64: 512, 256>}, {pipeline_mode = #tpu.pipeline_mode<synchronous>, transform_indices = @transform_10, window_bounds = array<i64: 512, 1>}, {pipeline_mode = #tpu.pipeline_mode<synchronous>, transform_indices = @transform_11, window_bounds = array<i64: 512, 256>}, {pipeline_mode = #tpu.pipeline_mode<synchronous>, transform_indices = @transform_12, window_bounds = array<i64: 512, 1>}, {pipeline_mode = #tpu.pipeline_mode<synchronous>, transform_indices = @transform_13, window_bounds = array<i64: 256, 256>}, {pipeline_mode = #tpu.pipeline_mode<synchronous>, transform_indices = @transform_14, window_bounds = array<i64: 256, 1>}, {pipeline_mode = #tpu.pipeline_mode<synchronous>, transform_indices = @transform_15, window_bounds = array<i64: 2, 128, 256>}, {transform_indices = @transform_16, window_bounds = array<i64: 2, 128, 128>}]} {
    %c0 = arith.constant 0 : index
    %c0_0 = arith.constant 0 : index
    %c0_1 = arith.constant 0 : index
    %0 = vector.load %arg1[%c0, %c0_0, %c0_1] : memref<1x2x2xf32, #tpu.memory_space<vmem>>, vector<1x2x2xf32>
    %1 = vector.shape_cast %0 : vector<1x2x2xf32> to vector<2x2xf32>
    %c0_2 = arith.constant 0 : index
    %c0_3 = arith.constant 0 : index
    %2 = vector.load %arg2[%c0_2, %c0_3] : memref<2x2xf32, #tpu.memory_space<vmem>>, vector<2x2xf32>
    %cst = arith.constant 0.000000e+00 : f32
    %3 = vector.broadcast %cst : f32 to vector<2x2xf32>
    %4 = vector.extract_strided_slice %2 {offsets = [0, 0], sizes = [2, 1], strides = [1, 1]} : vector<2x2xf32> to vector<2x1xf32>
    %5 = vector.extract_strided_slice %1 {offsets = [0, 0], sizes = [1, 2], strides = [1, 1]} : vector<2x2xf32> to vector<1x2xf32>
    %6 = vector.broadcast %4 : vector<2x1xf32> to vector<2x2xf32>
    %7 = vector.broadcast %5 : vector<1x2xf32> to vector<2x2xf32>
    %8 = arith.mulf %6, %7 : vector<2x2xf32>
    %9 = arith.addf %3, %8 : vector<2x2xf32>
    %10 = vector.extract_strided_slice %2 {offsets = [0, 1], sizes = [2, 1], strides = [1, 1]} : vector<2x2xf32> to vector<2x1xf32>
    %11 = vector.extract_strided_slice %1 {offsets = [1, 0], sizes = [1, 2], strides = [1, 1]} : vector<2x2xf32> to vector<1x2xf32>
    %12 = vector.broadcast %10 : vector<2x1xf32> to vector<2x2xf32>
    %13 = vector.broadcast %11 : vector<1x2xf32> to vector<2x2xf32>
    %14 = arith.mulf %12, %13 : vector<2x2xf32>
    %15 = arith.addf %9, %14 : vector<2x2xf32>
    %c0_4 = arith.constant 0 : index
    %c0_5 = arith.constant 0 : index
    %16 = vector.load %arg3[%c0_4, %c0_5] : memref<2x1xf32, #tpu.memory_space<vmem>>, vector<2x1xf32>
    %17 = vector.broadcast %16 : vector<2x1xf32> to vector<2x2xf32>
    %18 = arith.addf %15, %17 : vector<2x2xf32>
    %19 = math.tanh %18 : vector<2x2xf32>
    %c0_6 = arith.constant 0 : index
    %c0_7 = arith.constant 0 : index
    %20 = vector.load %arg4[%c0_6, %c0_7] : memref<1024x2xf32, #tpu.memory_space<vmem>>, vector<1024x2xf32>
    %cst_8 = arith.constant 0.000000e+00 : f32
    %21 = vector.broadcast %cst_8 : f32 to vector<1024x2xf32>
    %22 = vector.extract_strided_slice %20 {offsets = [0, 0], sizes = [1024, 1], strides = [1, 1]} : vector<1024x2xf32> to vector<1024x1xf32>
    %23 = vector.extract_strided_slice %19 {offsets = [0, 0], sizes = [1, 2], strides = [1, 1]} : vector<2x2xf32> to vector<1x2xf32>
    %24 = vector.broadcast %22 : vector<1024x1xf32> to vector<1024x2xf32>
    %25 = vector.broadcast %23 : vector<1x2xf32> to vector<1024x2xf32>
    %26 = arith.mulf %24, %25 : vector<1024x2xf32>
    %27 = arith.addf %21, %26 : vector<1024x2xf32>
    %28 = vector.extract_strided_slice %20 {offsets = [0, 1], sizes = [1024, 1], strides = [1, 1]} : vector<1024x2xf32> to vector<1024x1xf32>
    %29 = vector.extract_strided_slice %19 {offsets = [1, 0], sizes = [1, 2], strides = [1, 1]} : vector<2x2xf32> to vector<1x2xf32>
    %30 = vector.broadcast %28 : vector<1024x1xf32> to vector<1024x2xf32>
    %31 = vector.broadcast %29 : vector<1x2xf32> to vector<1024x2xf32>
    %32 = arith.mulf %30, %31 : vector<1024x2xf32>
    %33 = arith.addf %27, %32 : vector<1024x2xf32>
    %c0_9 = arith.constant 0 : index
    %c0_10 = arith.constant 0 : index
    %34 = vector.load %arg5[%c0_9, %c0_10] : memref<1024x1xf32, #tpu.memory_space<vmem>>, vector<1024x1xf32>
    %35 = vector.broadcast %34 : vector<1024x1xf32> to vector<1024x2xf32>
    %36 = arith.addf %33, %35 : vector<1024x2xf32>
    %cst_11 = arith.constant 0.000000e+00 : f32
    %37 = vector.broadcast %cst_11 : f32 to vector<1024x2xf32>
    %38 = arith.cmpf ogt, %36, %37 : vector<1024x2xf32>
    %cst_12 = arith.constant 0.000000e+00 : f32
    %39 = vector.broadcast %cst_12 : f32 to vector<1024x2xf32>
    %40 = arith.minimumf %36, %39 : vector<1024x2xf32>
    %41 = math.exp %40 : vector<1024x2xf32>
    %cst_13 = arith.constant 1.000000e+00 : f32
    %42 = vector.broadcast %cst_13 : f32 to vector<1024x2xf32>
    %43 = arith.subf %41, %42 : vector<1024x2xf32>
    %44 = arith.select %38, %36, %43 : vector<1024x2xi1>, vector<1024x2xf32>
    %45 = vector.extract_strided_slice %44 {offsets = [0, 0], sizes = [256, 2], strides = [1, 1]} : vector<1024x2xf32> to vector<256x2xf32>
    %c0_14 = arith.constant 0 : index
    %c0_15 = arith.constant 0 : index
    %46 = vector.load %arg18[%c0_14, %c0_15] : memref<256x128xf32, #tpu.memory_space<vmem>>, vector<256x2xf32>
    tpu.vector_store %arg18[%c0_14, %c0_15], %45 {strides = array<i32>} : memref<256x128xf32, #tpu.memory_space<vmem>>, vector<256x2xf32>,
    %47 = vector.extract_strided_slice %44 {offsets = [256, 0], sizes = [256, 2], strides = [1, 1]} : vector<1024x2xf32> to vector<256x2xf32>
    %c0_16 = arith.constant 0 : index
    %c2 = arith.constant 2 : index
    %48 = vector.load %arg18[%c0_16, %c2] : memref<256x128xf32, #tpu.memory_space<vmem>>, vector<256x2xf32>
    tpu.vector_store %arg18[%c0_16, %c2], %47 {strides = array<i32>} : memref<256x128xf32, #tpu.memory_space<vmem>>, vector<256x2xf32>,
    %49 = vector.extract_strided_slice %44 {offsets = [512, 0], sizes = [256, 2], strides = [1, 1]} : vector<1024x2xf32> to vector<256x2xf32>
    %c0_17 = arith.constant 0 : index
    %c4 = arith.constant 4 : index
    %50 = vector.load %arg18[%c0_17, %c4] : memref<256x128xf32, #tpu.memory_space<vmem>>, vector<256x2xf32>
    tpu.vector_store %arg18[%c0_17, %c4], %49 {strides = array<i32>} : memref<256x128xf32, #tpu.memory_space<vmem>>, vector<256x2xf32>,
    %51 = vector.extract_strided_slice %44 {offsets = [768, 0], sizes = [256, 2], strides = [1, 1]} : vector<1024x2xf32> to vector<256x2xf32>
    %c0_18 = arith.constant 0 : index
    %c6 = arith.constant 6 : index
    %52 = vector.load %arg18[%c0_18, %c6] : memref<256x128xf32, #tpu.memory_space<vmem>>, vector<256x2xf32>
    tpu.vector_store %arg18[%c0_18, %c6], %51 {strides = array<i32>} : memref<256x128xf32, #tpu.memory_space<vmem>>, vector<256x2xf32>,
    %c0_19 = arith.constant 0 : index
    %c0_20 = arith.constant 0 : index
    %53 = vector.load %arg18[%c0_19, %c0_20] : memref<256x128xf32, #tpu.memory_space<vmem>>, vector<256x8xf32>
    %c0_21 = arith.constant 0 : index
    %c0_22 = arith.constant 0 : index
    %54 = vector.load %arg6[%c0_21, %c0_22] : memref<512x256xf32, #tpu.memory_space<vmem>>, vector<512x256xf32>
    %cst_23 = arith.constant dense<0.000000e+00> : vector<512x8xf32>
    %55 = tpu.matmul %54, %53, %cst_23 {dimension_numbers = #tpu.dot_dimension_numbers<[1], [0], [0], [1], [0, 0, 1, 1], [], []>} : vector<512x256xf32>, vector<256x8xf32>, vector<512x8xf32> -> vector<512x8xf32>
    %c0_24 = arith.constant 0 : index
    %c0_25 = arith.constant 0 : index
    %56 = vector.load %arg7[%c0_24, %c0_25] : memref<512x1xf32, #tpu.memory_space<vmem>>, vector<512x1xf32>
    %57 = vector.broadcast %56 : vector<512x1xf32> to vector<512x8xf32>
    %58 = arith.addf %55, %57 : vector<512x8xf32>
    %cst_26 = arith.constant 0.000000e+00 : f32
    %59 = vector.broadcast %cst_26 : f32 to vector<512x8xf32>
    %60 = arith.cmpf ogt, %58, %59 : vector<512x8xf32>
    %cst_27 = arith.constant 0.000000e+00 : f32
    %61 = vector.broadcast %cst_27 : f32 to vector<512x8xf32>
    %62 = arith.minimumf %58, %61 : vector<512x8xf32>
    %63 = math.exp %62 : vector<512x8xf32>
    %cst_28 = arith.constant 1.000000e+00 : f32
    %64 = vector.broadcast %cst_28 : f32 to vector<512x8xf32>
    %65 = arith.subf %63, %64 : vector<512x8xf32>
    %66 = arith.select %60, %58, %65 : vector<512x8xi1>, vector<512x8xf32>
    %67 = vector.extract_strided_slice %66 {offsets = [0, 0], sizes = [256, 8], strides = [1, 1]} : vector<512x8xf32> to vector<256x8xf32>
    %c0_29 = arith.constant 0 : index
    %c0_30 = arith.constant 0 : index
    %68 = vector.load %arg19[%c0_29, %c0_30] : memref<256x128xf32, #tpu.memory_space<vmem>>, vector<256x8xf32>
    tpu.vector_store %arg19[%c0_29, %c0_30], %67 {strides = array<i32>} : memref<256x128xf32, #tpu.memory_space<vmem>>, vector<256x8xf32>,
    %69 = vector.extract_strided_slice %66 {offsets = [256, 0], sizes = [256, 8], strides = [1, 1]} : vector<512x8xf32> to vector<256x8xf32>
    %c0_31 = arith.constant 0 : index
    %c8 = arith.constant 8 : index
    %70 = vector.load %arg19[%c0_31, %c8] : memref<256x128xf32, #tpu.memory_space<vmem>>, vector<256x8xf32>
    tpu.vector_store %arg19[%c0_31, %c8], %69 {strides = array<i32>} : memref<256x128xf32, #tpu.memory_space<vmem>>, vector<256x8xf32>,
    %c0_32 = arith.constant 0 : index
    %c0_33 = arith.constant 0 : index
    %71 = vector.load %arg19[%c0_32, %c0_33] : memref<256x128xf32, #tpu.memory_space<vmem>>, vector<256x16xf32>
    %c0_34 = arith.constant 0 : index
    %c0_35 = arith.constant 0 : index
    %72 = vector.load %arg8[%c0_34, %c0_35] : memref<512x256xf32, #tpu.memory_space<vmem>>, vector<512x256xf32>
    %cst_36 = arith.constant dense<0.000000e+00> : vector<512x16xf32>
    %73 = tpu.matmul %72, %71, %cst_36 {dimension_numbers = #tpu.dot_dimension_numbers<[1], [0], [0], [1], [0, 0, 1, 1], [], []>} : vector<512x256xf32>, vector<256x16xf32>, vector<512x16xf32> -> vector<512x16xf32>
    %c0_37 = arith.constant 0 : index
    %c0_38 = arith.constant 0 : index
    %74 = vector.load %arg9[%c0_37, %c0_38] : memref<512x1xf32, #tpu.memory_space<vmem>>, vector<512x1xf32>
    %75 = vector.broadcast %74 : vector<512x1xf32> to vector<512x16xf32>
    %76 = arith.addf %73, %75 : vector<512x16xf32>
    %cst_39 = arith.constant 0.000000e+00 : f32
    %77 = vector.broadcast %cst_39 : f32 to vector<512x16xf32>
    %78 = arith.cmpf ogt, %76, %77 : vector<512x16xf32>
    %cst_40 = arith.constant 0.000000e+00 : f32
    %79 = vector.broadcast %cst_40 : f32 to vector<512x16xf32>
    %80 = arith.minimumf %76, %79 : vector<512x16xf32>
    %81 = math.exp %80 : vector<512x16xf32>
    %cst_41 = arith.constant 1.000000e+00 : f32
    %82 = vector.broadcast %cst_41 : f32 to vector<512x16xf32>
    %83 = arith.subf %81, %82 : vector<512x16xf32>
    %84 = arith.select %78, %76, %83 : vector<512x16xi1>, vector<512x16xf32>
    %85 = vector.extract_strided_slice %84 {offsets = [0, 0], sizes = [256, 16], strides = [1, 1]} : vector<512x16xf32> to vector<256x16xf32>
    %c0_42 = arith.constant 0 : index
    %c0_43 = arith.constant 0 : index
    %86 = vector.load %arg18[%c0_42, %c0_43] : memref<256x128xf32, #tpu.memory_space<vmem>>, vector<256x16xf32>
    tpu.vector_store %arg18[%c0_42, %c0_43], %85 {strides = array<i32>} : memref<256x128xf32, #tpu.memory_space<vmem>>, vector<256x16xf32>,
    %87 = vector.extract_strided_slice %84 {offsets = [256, 0], sizes = [256, 16], strides = [1, 1]} : vector<512x16xf32> to vector<256x16xf32>
    %c0_44 = arith.constant 0 : index
    %c16 = arith.constant 16 : index
    %88 = vector.load %arg18[%c0_44, %c16] : memref<256x128xf32, #tpu.memory_space<vmem>>, vector<256x16xf32>
    tpu.vector_store %arg18[%c0_44, %c16], %87 {strides = array<i32>} : memref<256x128xf32, #tpu.memory_space<vmem>>, vector<256x16xf32>,
    %c0_45 = arith.constant 0 : index
    %c0_46 = arith.constant 0 : index
    %89 = vector.load %arg18[%c0_45, %c0_46] : memref<256x128xf32, #tpu.memory_space<vmem>>, vector<256x32xf32>
    %c0_47 = arith.constant 0 : index
    %c0_48 = arith.constant 0 : index
    %90 = vector.load %arg10[%c0_47, %c0_48] : memref<512x256xf32, #tpu.memory_space<vmem>>, vector<512x256xf32>
    %cst_49 = arith.constant dense<0.000000e+00> : vector<512x32xf32>
    %91 = tpu.matmul %90, %89, %cst_49 {dimension_numbers = #tpu.dot_dimension_numbers<[1], [0], [0], [1], [0, 0, 1, 1], [], []>} : vector<512x256xf32>, vector<256x32xf32>, vector<512x32xf32> -> vector<512x32xf32>
    %c0_50 = arith.constant 0 : index
    %c0_51 = arith.constant 0 : index
    %92 = vector.load %arg11[%c0_50, %c0_51] : memref<512x1xf32, #tpu.memory_space<vmem>>, vector<512x1xf32>
    %93 = vector.broadcast %92 : vector<512x1xf32> to vector<512x32xf32>
    %94 = arith.addf %91, %93 : vector<512x32xf32>
    %cst_52 = arith.constant 0.000000e+00 : f32
    %95 = vector.broadcast %cst_52 : f32 to vector<512x32xf32>
    %96 = arith.cmpf ogt, %94, %95 : vector<512x32xf32>
    %cst_53 = arith.constant 0.000000e+00 : f32
    %97 = vector.broadcast %cst_53 : f32 to vector<512x32xf32>
    %98 = arith.minimumf %94, %97 : vector<512x32xf32>
    %99 = math.exp %98 : vector<512x32xf32>
    %cst_54 = arith.constant 1.000000e+00 : f32
    %100 = vector.broadcast %cst_54 : f32 to vector<512x32xf32>
    %101 = arith.subf %99, %100 : vector<512x32xf32>
    %102 = arith.select %96, %94, %101 : vector<512x32xi1>, vector<512x32xf32>
    %103 = vector.extract_strided_slice %102 {offsets = [0, 0], sizes = [256, 32], strides = [1, 1]} : vector<512x32xf32> to vector<256x32xf32>
    %c0_55 = arith.constant 0 : index
    %c0_56 = arith.constant 0 : index
    %104 = vector.load %arg19[%c0_55, %c0_56] : memref<256x128xf32, #tpu.memory_space<vmem>>, vector<256x32xf32>
    tpu.vector_store %arg19[%c0_55, %c0_56], %103 {strides = array<i32>} : memref<256x128xf32, #tpu.memory_space<vmem>>, vector<256x32xf32>,
    %105 = vector.extract_strided_slice %102 {offsets = [256, 0], sizes = [256, 32], strides = [1, 1]} : vector<512x32xf32> to vector<256x32xf32>
    %c0_57 = arith.constant 0 : index
    %c32 = arith.constant 32 : index
    %106 = vector.load %arg19[%c0_57, %c32] : memref<256x128xf32, #tpu.memory_space<vmem>>, vector<256x32xf32>
    tpu.vector_store %arg19[%c0_57, %c32], %105 {strides = array<i32>} : memref<256x128xf32, #tpu.memory_space<vmem>>, vector<256x32xf32>,
    %c0_58 = arith.constant 0 : index
    %c0_59 = arith.constant 0 : index
    %107 = vector.load %arg19[%c0_58, %c0_59] : memref<256x128xf32, #tpu.memory_space<vmem>>, vector<256x64xf32>
    %c0_60 = arith.constant 0 : index
    %c0_61 = arith.constant 0 : index
    %108 = vector.load %arg12[%c0_60, %c0_61] : memref<512x256xf32, #tpu.memory_space<vmem>>, vector<512x256xf32>
    %cst_62 = arith.constant dense<0.000000e+00> : vector<512x64xf32>
    %109 = tpu.matmul %108, %107, %cst_62 {dimension_numbers = #tpu.dot_dimension_numbers<[1], [0], [0], [1], [0, 0, 1, 1], [], []>} : vector<512x256xf32>, vector<256x64xf32>, vector<512x64xf32> -> vector<512x64xf32>
    %c0_63 = arith.constant 0 : index
    %c0_64 = arith.constant 0 : index
    %110 = vector.load %arg13[%c0_63, %c0_64] : memref<512x1xf32, #tpu.memory_space<vmem>>, vector<512x1xf32>
    %111 = vector.broadcast %110 : vector<512x1xf32> to vector<512x64xf32>
    %112 = arith.addf %109, %111 : vector<512x64xf32>
    %cst_65 = arith.constant 0.000000e+00 : f32
    %113 = vector.broadcast %cst_65 : f32 to vector<512x64xf32>
    %114 = arith.cmpf ogt, %112, %113 : vector<512x64xf32>
    %cst_66 = arith.constant 0.000000e+00 : f32
    %115 = vector.broadcast %cst_66 : f32 to vector<512x64xf32>
    %116 = arith.minimumf %112, %115 : vector<512x64xf32>
    %117 = math.exp %116 : vector<512x64xf32>
    %cst_67 = arith.constant 1.000000e+00 : f32
    %118 = vector.broadcast %cst_67 : f32 to vector<512x64xf32>
    %119 = arith.subf %117, %118 : vector<512x64xf32>
    %120 = arith.select %114, %112, %119 : vector<512x64xi1>, vector<512x64xf32>
    %121 = vector.extract_strided_slice %120 {offsets = [0, 0], sizes = [256, 64], strides = [1, 1]} : vector<512x64xf32> to vector<256x64xf32>
    %c0_68 = arith.constant 0 : index
    %c0_69 = arith.constant 0 : index
    %122 = vector.load %arg18[%c0_68, %c0_69] : memref<256x128xf32, #tpu.memory_space<vmem>>, vector<256x64xf32>
    tpu.vector_store %arg18[%c0_68, %c0_69], %121 {strides = array<i32>} : memref<256x128xf32, #tpu.memory_space<vmem>>, vector<256x64xf32>,
    %123 = vector.extract_strided_slice %120 {offsets = [256, 0], sizes = [256, 64], strides = [1, 1]} : vector<512x64xf32> to vector<256x64xf32>
    %c0_70 = arith.constant 0 : index
    %c64 = arith.constant 64 : index
    %124 = vector.load %arg18[%c0_70, %c64] : memref<256x128xf32, #tpu.memory_space<vmem>>, vector<256x64xf32>
    tpu.vector_store %arg18[%c0_70, %c64], %123 {strides = array<i32>} : memref<256x128xf32, #tpu.memory_space<vmem>>, vector<256x64xf32>,
    %c0_71 = arith.constant 0 : index
    %c0_72 = arith.constant 0 : index
    %125 = vector.load %arg18[%c0_71, %c0_72] : memref<256x128xf32, #tpu.memory_space<vmem>>, vector<256x128xf32>
    %c0_73 = arith.constant 0 : index
    %c0_74 = arith.constant 0 : index
    %126 = vector.load %arg14[%c0_73, %c0_74] : memref<256x256xf32, #tpu.memory_space<vmem>>, vector<256x256xf32>
    %cst_75 = arith.constant dense<0.000000e+00> : vector<256x128xf32>
    %127 = tpu.matmul %126, %125, %cst_75 {dimension_numbers = #tpu.dot_dimension_numbers<[1], [0], [0], [1], [0, 0, 1, 1], [], []>} : vector<256x256xf32>, vector<256x128xf32>, vector<256x128xf32> -> vector<256x128xf32>
    %c0_76 = arith.constant 0 : index
    %c0_77 = arith.constant 0 : index
    %128 = vector.load %arg15[%c0_76, %c0_77] : memref<256x1xf32, #tpu.memory_space<vmem>>, vector<256x1xf32>
    %129 = vector.broadcast %128 : vector<256x1xf32> to vector<256x128xf32>
    %130 = arith.addf %127, %129 : vector<256x128xf32>
    %cst_78 = arith.constant 0.000000e+00 : f32
    %131 = vector.broadcast %cst_78 : f32 to vector<256x128xf32>
    %132 = arith.cmpf ogt, %130, %131 : vector<256x128xf32>
    %cst_79 = arith.constant 0.000000e+00 : f32
    %133 = vector.broadcast %cst_79 : f32 to vector<256x128xf32>
    %134 = arith.minimumf %130, %133 : vector<256x128xf32>
    %135 = math.exp %134 : vector<256x128xf32>
    %cst_80 = arith.constant 1.000000e+00 : f32
    %136 = vector.broadcast %cst_80 : f32 to vector<256x128xf32>
    %137 = arith.subf %135, %136 : vector<256x128xf32>
    %138 = arith.select %132, %130, %137 : vector<256x128xi1>, vector<256x128xf32>
    %cst_81 = arith.constant 0.000000e+00 : f32
    %139 = vector.broadcast %cst_81 : f32 to vector<128x256xf32>
    %140 = vector.extract_strided_slice %138 {offsets = [0, 0], sizes = [128, 128], strides = [1, 1]} : vector<256x128xf32> to vector<128x128xf32>
    %c0_82 = arith.constant 0 : index
    %c0_83 = arith.constant 0 : index
    %c0_84 = arith.constant 0 : index
    %141 = vector.load %arg16[%c0_82, %c0_83, %c0_84] : memref<2x128x256xf32, #tpu.memory_space<vmem>>, vector<1x128x256xf32>
    %142 = vector.shape_cast %141 : vector<1x128x256xf32> to vector<128x256xf32>
    %cst_85 = arith.constant dense<0.000000e+00> : vector<128x256xf32>
    %143 = tpu.matmul %140, %142, %cst_85 {dimension_numbers = #tpu.dot_dimension_numbers<[1], [0], [0], [1], [0, 0, 1, 1], [], []>} : vector<128x128xf32>, vector<128x256xf32>, vector<128x256xf32> -> vector<128x256xf32>
    %144 = arith.addf %139, %143 : vector<128x256xf32>
    %145 = vector.extract_strided_slice %138 {offsets = [128, 0], sizes = [128, 128], strides = [1, 1]} : vector<256x128xf32> to vector<128x128xf32>
    %c1 = arith.constant 1 : index
    %c0_86 = arith.constant 0 : index
    %c0_87 = arith.constant 0 : index
    %146 = vector.load %arg16[%c1, %c0_86, %c0_87] : memref<2x128x256xf32, #tpu.memory_space<vmem>>, vector<1x128x256xf32>
    %147 = vector.shape_cast %146 : vector<1x128x256xf32> to vector<128x256xf32>
    %cst_88 = arith.constant dense<0.000000e+00> : vector<128x256xf32>
    %148 = tpu.matmul %145, %147, %cst_88 {dimension_numbers = #tpu.dot_dimension_numbers<[1], [0], [0], [1], [0, 0, 1, 1], [], []>} : vector<128x128xf32>, vector<128x256xf32>, vector<128x256xf32> -> vector<128x256xf32>
    %149 = arith.addf %144, %148 : vector<128x256xf32>
    %150 = vector.extract_strided_slice %149 {offsets = [0, 0], sizes = [128, 128], strides = [1, 1]} : vector<128x256xf32> to vector<128x128xf32>
    %c0_89 = arith.constant 0 : index
    %c0_90 = arith.constant 0 : index
    %c0_91 = arith.constant 0 : index
    %151 = vector.load %arg17[%c0_89, %c0_90, %c0_91] : memref<2x128x128xf32, #tpu.memory_space<vmem>>, vector<1x128x128xf32>
    %152 = vector.shape_cast %151 : vector<1x128x128xf32> to vector<128x128xf32>
    %153 = vector.shape_cast %150 : vector<128x128xf32> to vector<1x128x128xf32>
    tpu.vector_store %arg17[%c0_89, %c0_90, %c0_91], %153 {strides = array<i32>} : memref<2x128x128xf32, #tpu.memory_space<vmem>>, vector<1x128x128xf32>,
    %154 = vector.extract_strided_slice %149 {offsets = [0, 128], sizes = [128, 128], strides = [1, 1]} : vector<128x256xf32> to vector<128x128xf32>
    %c1_92 = arith.constant 1 : index
    %c0_93 = arith.constant 0 : index
    %c0_94 = arith.constant 0 : index
    %155 = vector.load %arg17[%c1_92, %c0_93, %c0_94] : memref<2x128x128xf32, #tpu.memory_space<vmem>>, vector<1x128x128xf32>
    %156 = vector.shape_cast %155 : vector<1x128x128xf32> to vector<128x128xf32>
    %157 = vector.shape_cast %154 : vector<128x128xf32> to vector<1x128x128xf32>
    tpu.vector_store %arg17[%c1_92, %c0_93, %c0_94], %157 {strides = array<i32>} : memref<2x128x128xf32, #tpu.memory_space<vmem>>, vector<1x128x128xf32>,
    return
  }
  func.func @transform_0(%arg0: i32) -> (i32, i32, i32) {
    %c0_i32 = arith.constant 0 : i32
    %c0_i32_0 = arith.constant 0 : i32
    %c0_i32_1 = arith.constant 0 : i32
    return %arg0, %c0_i32, %c0_i32_0 : i32, i32, i32
  }
  func.func @transform_1(%arg0: i32) -> (i32, i32) {
    %c0_i32 = arith.constant 0 : i32
    %c0_i32_0 = arith.constant 0 : i32
    %c0_i32_1 = arith.constant 0 : i32
    return %c0_i32, %c0_i32_0 : i32, i32
  }
  func.func @transform_2(%arg0: i32) -> (i32, i32) {
    %c0_i32 = arith.constant 0 : i32
    %c0_i32_0 = arith.constant 0 : i32
    %c0_i32_1 = arith.constant 0 : i32
    return %c0_i32, %c0_i32_0 : i32, i32
  }
  func.func @transform_3(%arg0: i32) -> (i32, i32) {
    %c0_i32 = arith.constant 0 : i32
    %c0_i32_0 = arith.constant 0 : i32
    %c0_i32_1 = arith.constant 0 : i32
    return %c0_i32, %c0_i32_0 : i32, i32
  }
  func.func @transform_4(%arg0: i32) -> (i32, i32) {
    %c0_i32 = arith.constant 0 : i32
    %c0_i32_0 = arith.constant 0 : i32
    %c0_i32_1 = arith.constant 0 : i32
    return %c0_i32, %c0_i32_0 : i32, i32
  }
  func.func @transform_5(%arg0: i32) -> (i32, i32) {
    %c0_i32 = arith.constant 0 : i32
    %c0_i32_0 = arith.constant 0 : i32
    %c0_i32_1 = arith.constant 0 : i32
    return %c0_i32, %c0_i32_0 : i32, i32
  }
  func.func @transform_6(%arg0: i32) -> (i32, i32) {
    %c0_i32 = arith.constant 0 : i32
    %c0_i32_0 = arith.constant 0 : i32
    %c0_i32_1 = arith.constant 0 : i32
    return %c0_i32, %c0_i32_0 : i32, i32
  }
  func.func @transform_7(%arg0: i32) -> (i32, i32) {
    %c0_i32 = arith.constant 0 : i32
    %c0_i32_0 = arith.constant 0 : i32
    %c0_i32_1 = arith.constant 0 : i32
    return %c0_i32, %c0_i32_0 : i32, i32
  }
  func.func @transform_8(%arg0: i32) -> (i32, i32) {
    %c0_i32 = arith.constant 0 : i32
    %c0_i32_0 = arith.constant 0 : i32
    %c0_i32_1 = arith.constant 0 : i32
    return %c0_i32, %c0_i32_0 : i32, i32
  }
  func.func @transform_9(%arg0: i32) -> (i32, i32) {
    %c0_i32 = arith.constant 0 : i32
    %c0_i32_0 = arith.constant 0 : i32
    %c0_i32_1 = arith.constant 0 : i32
    return %c0_i32, %c0_i32_0 : i32, i32
  }
  func.func @transform_10(%arg0: i32) -> (i32, i32) {
    %c0_i32 = arith.constant 0 : i32
    %c0_i32_0 = arith.constant 0 : i32
    %c0_i32_1 = arith.constant 0 : i32
    return %c0_i32, %c0_i32_0 : i32, i32
  }
  func.func @transform_11(%arg0: i32) -> (i32, i32) {
    %c0_i32 = arith.constant 0 : i32
    %c0_i32_0 = arith.constant 0 : i32
    %c0_i32_1 = arith.constant 0 : i32
    return %c0_i32, %c0_i32_0 : i32, i32
  }
  func.func @transform_12(%arg0: i32) -> (i32, i32) {
    %c0_i32 = arith.constant 0 : i32
    %c0_i32_0 = arith.constant 0 : i32
    %c0_i32_1 = arith.constant 0 : i32
    return %c0_i32, %c0_i32_0 : i32, i32
  }
  func.func @transform_13(%arg0: i32) -> (i32, i32) {
    %c0_i32 = arith.constant 0 : i32
    %c0_i32_0 = arith.constant 0 : i32
    %c0_i32_1 = arith.constant 0 : i32
    return %c0_i32, %c0_i32_0 : i32, i32
  }
  func.func @transform_14(%arg0: i32) -> (i32, i32) {
    %c0_i32 = arith.constant 0 : i32
    %c0_i32_0 = arith.constant 0 : i32
    %c0_i32_1 = arith.constant 0 : i32
    return %c0_i32, %c0_i32_0 : i32, i32
  }
  func.func @transform_15(%arg0: i32) -> (i32, i32, i32) {
    %c0_i32 = arith.constant 0 : i32
    %c0_i32_0 = arith.constant 0 : i32
    %c0_i32_1 = arith.constant 0 : i32
    %c0_i32_2 = arith.constant 0 : i32
    return %c0_i32, %c0_i32_0, %c0_i32_1 : i32, i32, i32
  }
  func.func @transform_16(%arg0: i32) -> (i32, i32, i32) {
    %c0_i32 = arith.constant 0 : i32
    %c0_i32_0 = arith.constant 0 : i32
    %c0_i32_1 = arith.constant 0 : i32
    return %arg0, %c0_i32, %c0_i32_0 : i32, i32, i32
  }
}

</mosaic_0001>

<llo_original>
// kernel: _lambda_.1
$region0: #{_lambda_.1}
  #allocation0 [shape = 'u32[]', space=smem, size = 0x4, offset = 0x4, fixed_abs, tag = 'smem constant byte address 0x4 - core index']
  #allocation1 [shape = 'u32[144,128]{1,0:T(1,128)}', space=vmem, size = 0x12000, scoped, tag = 'internal scratch']
  #allocation2 [shape = 'f32[256,128]{1,0:T(8,128)}', space=vmem, size = 0x20000, scoped, tag = 'scratch operand']
  #allocation3 [shape = 'f32[256,128]{1,0:T(8,128)}', space=vmem, size = 0x20000, scoped, tag = 'scratch operand']
  %s0 = inlined_call_operand.vmem [shape: f32[1,2,2], index: 0, kind: input, shape index: {}]
  %s1 = inlined_call_operand.vmem [shape: f32[2,2], index: 1, kind: input, shape index: {}]
  %s2 = inlined_call_operand.vmem [shape: f32[2,1], index: 2, kind: input, shape index: {}]
  %s3 = inlined_call_operand.hbm [shape: f32[1024,2], index: 3, kind: input, shape index: {}]
  %s4 = inlined_call_operand.hbm [shape: f32[1024,1], index: 4, kind: input, shape index: {}]
  %s5 = inlined_call_operand.hbm [shape: f32[512,256], index: 5, kind: input, shape index: {}]
  %s6 = inlined_call_operand.hbm [shape: f32[512,1], index: 6, kind: input, shape index: {}]
  %s7 = inlined_call_operand.hbm [shape: f32[512,256], index: 7, kind: input, shape index: {}]
  %s8 = inlined_call_operand.hbm [shape: f32[512,1], index: 8, kind: input, shape index: {}]
  %s9 = inlined_call_operand.hbm [shape: f32[512,256], index: 9, kind: input, shape index: {}]
  %s10 = inlined_call_operand.hbm [shape: f32[512,1], index: 10, kind: input, shape index: {}]
  %s11 = inlined_call_operand.hbm [shape: f32[512,256], index: 11, kind: input, shape index: {}]
  %s12 = inlined_call_operand.hbm [shape: f32[512,1], index: 12, kind: input, shape index: {}]
  %s13 = inlined_call_operand.hbm [shape: f32[256,256], index: 13, kind: input, shape index: {}]
  %s14 = inlined_call_operand.vmem [shape: f32[256,1], index: 14, kind: input, shape index: {}]
  %s15 = inlined_call_operand.hbm [shape: f32[2,128,256], index: 15, kind: input, shape index: {}]
  %s16 = inlined_call_operand.hbm [shape: f32[2,128,128], index: 16, kind: output, shape index: {}]
  %s17 = sld [smem:[#allocation0]]
  $region122: #{_lambda_.1} parent=0
    _
  %s19 = ssub.s32 1, %s17
  %s20 = scalar_select 0, %s19, %s17
  $region1: #{_lambda_.1} parent=0
    #allocation4 [shape = 'u8[524288]{0}', space=vmem, size = 0x80000, scoped, tag = 'input window, operand 3, single buffered']
    #allocation5 [shape = 's32[1]{0}', space=sflag, size = 0x4, scoped, tag = 'scoped memory for _lambda_.1']
    #allocation6 [shape = 's32[1]{0}', space=sflag, size = 0x4, scoped, tag = 'scoped memory for _lambda_.1']
    #allocation7 [shape = 'u8[524288]{0}', space=vmem, size = 0x80000, scoped, tag = 'input window, operand 4, single buffered']
    #allocation8 [shape = 's32[1]{0}', space=sflag, size = 0x4, scoped, tag = 'scoped memory for _lambda_.1']
    #allocation9 [shape = 'u8[524288]{0}', space=vmem, size = 0x80000, scoped, tag = 'input window, operand 5, single buffered']
    #allocation10 [shape = 'u8[262144]{0}', space=vmem, size = 0x40000, scoped, tag = 'input window, operand 6, single buffered']
    #allocation11 [shape = 's32[1]{0}', space=sflag, size = 0x4, scoped, tag = 'scoped memory for _lambda_.1']
    #allocation12 [shape = 'u8[524288]{0}', space=vmem, size = 0x80000, scoped, tag = 'input window, operand 7, single buffered']
    #allocation13 [shape = 'u8[262144]{0}', space=vmem, size = 0x40000, scoped, tag = 'input window, operand 8, single buffered']
    #allocation14 [shape = 's32[1]{0}', space=sflag, size = 0x4, scoped, tag = 'scoped memory for _lambda_.1']
    #allocation15 [shape = 'u8[524288]{0}', space=vmem, size = 0x80000, scoped, tag = 'input window, operand 9, single buffered']
    #allocation16 [shape = 'u8[262144]{0}', space=vmem, size = 0x40000, scoped, tag = 'input window, operand 10, single buffered']
    #allocation17 [shape = 's32[1]{0}', space=sflag, size = 0x4, scoped, tag = 'scoped memory for _lambda_.1']
    #allocation18 [shape = 'u8[524288]{0}', space=vmem, size = 0x80000, scoped, tag = 'input window, operand 11, single buffered']
    #allocation19 [shape = 'u8[262144]{0}', space=vmem, size = 0x40000, scoped, tag = 'input window, operand 12, single buffered']
    #allocation20 [shape = 's32[1]{0}', space=sflag, size = 0x4, scoped, tag = 'scoped memory for _lambda_.1']
    #allocation21 [shape = 'u8[262144]{0}', space=vmem, size = 0x40000, scoped, tag = 'input window, operand 13, single buffered']
    #allocation22 [shape = 'u8[262144]{0}', space=vmem, size = 0x40000, scoped, tag = 'input window, operand 15, single buffered']
    #allocation23 [shape = 's32[1]{0}', space=sflag, size = 0x4, scoped, tag = 'scoped memory for _lambda_.1']
    #allocation24 [shape = 'u8[131072]{0}', space=vmem, size = 0x20000, scoped, tag = 'output window, operand 0, single buffered']
    %21 = vsyncpa [#allocation5], 0
    %22 = vsyncpa [#allocation8], 0
    %23 = vsyncpa [#allocation11], 0
    %24 = vsyncpa [#allocation14], 0
    %25 = vsyncpa [#allocation17], 0
    %26 = vsyncpa [#allocation20], 0
    %27 = vsyncpa [#allocation23], 0
    %28 = vsyncpa [#allocation6], 0
    // Predicated region
    $region2: #{_lambda_.1} parent=1 // pred_check
      _
    $region3: #{_lambda_.1} parent=1 // pred_check_branch
      %30 = sbr.rel (0) target = $region5
    $region4: #{_lambda_.1} parent=1 // pred_region
      _
    $region5: #{_lambda_.1} parent=1 // pred_fallthru
      _
    // Predicated region
    $region6: #{_lambda_.1} parent=1 // pred_check
      _
    $region7: #{_lambda_.1} parent=1 // pred_check_branch
      %32 = sbr.rel (0) target = $region9
    $region8: #{_lambda_.1} parent=1 // pred_region
      _
    $region9: #{_lambda_.1} parent=1 // pred_fallthru
      _
    // Predicated region
    $region10: #{_lambda_.1} parent=1 // pred_check
      _
    $region11: #{_lambda_.1} parent=1 // pred_check_branch
      %34 = sbr.rel (0) target = $region13
    $region12: #{_lambda_.1} parent=1 // pred_region
      _
    $region13: #{_lambda_.1} parent=1 // pred_fallthru
      _
    // Predicated region
    $region14: #{_lambda_.1} parent=1 // pred_check
      _
    $region15: #{_lambda_.1} parent=1 // pred_check_branch
      %36 = sbr.rel (0) target = $region17
    $region16: #{_lambda_.1} parent=1 // pred_region
      %s38 = ssub.s32 16384, 16384
      %39 = vsyncadd [#allocation5], %s38
      %s40 = sshll.u32 [#allocation4], 4
      %s41 = int_to_ptr.vmem [resolvable:$true] %s40
      %46 = dma.hbm_to_vmem [thread:$0]  %s3, 16384, %s41, [#allocation5], 128, 128, 8
    $region17: #{_lambda_.1} parent=1 // pred_fallthru
      _
    // Predicated region
    $region18: #{_lambda_.1} parent=1 // pred_check
      _
    $region19: #{_lambda_.1} parent=1 // pred_check_branch
      %48 = sbr.rel (0) target = $region21
    $region20: #{_lambda_.1} parent=1 // pred_region
      %s50 = ssub.s32 16384, 16384
      %51 = vsyncadd [#allocation8], %s50
      %s52 = sshll.u32 [#allocation7], 4
      %s53 = int_to_ptr.vmem [resolvable:$true] %s52
      %58 = dma.hbm_to_vmem [thread:$0]  %s4, 16384, %s53, [#allocation8], 128, 128, 8
    $region21: #{_lambda_.1} parent=1 // pred_fallthru
      _
    // Predicated region
    $region22: #{_lambda_.1} parent=1 // pred_check
      _
    $region23: #{_lambda_.1} parent=1 // pred_check_branch
      %60 = sbr.rel (0) target = $region25
    $region24: #{_lambda_.1} parent=1 // pred_region
      %s62 = ssub.s32 16384, 16384
      %63 = vsyncadd [#allocation8], %s62
      %s64 = sshll.u32 [#allocation9], 4
      %s65 = int_to_ptr.vmem [resolvable:$true] %s64
      %70 = dma.hbm_to_vmem [thread:$0]  %s5, 16384, %s65, [#allocation8], 256, 256, 16
    $region25: #{_lambda_.1} parent=1 // pred_fallthru
      _
    // Predicated region
    $region26: #{_lambda_.1} parent=1 // pred_check
      _
    $region27: #{_lambda_.1} parent=1 // pred_check_branch
      %72 = sbr.rel (0) target = $region29
    $region28: #{_lambda_.1} parent=1 // pred_region
      %s74 = ssub.s32 8192, 8192
      %75 = vsyncadd [#allocation11], %s74
      %s76 = sshll.u32 [#allocation10], 4
      %s77 = int_to_ptr.vmem [resolvable:$true] %s76
      %82 = dma.hbm_to_vmem [thread:$0]  %s6, 8192, %s77, [#allocation11], 128, 128, 8
    $region29: #{_lambda_.1} parent=1 // pred_fallthru
      _
    // Predicated region
    $region30: #{_lambda_.1} parent=1 // pred_check
      _
    $region31: #{_lambda_.1} parent=1 // pred_check_branch
      %84 = sbr.rel (0) target = $region33
    $region32: #{_lambda_.1} parent=1 // pred_region
      %s86 = ssub.s32 16384, 16384
      %87 = vsyncadd [#allocation11], %s86
      %s88 = sshll.u32 [#allocation12], 4
      %s89 = int_to_ptr.vmem [resolvable:$true] %s88
      %94 = dma.hbm_to_vmem [thread:$0]  %s7, 16384, %s89, [#allocation11], 256, 256, 16
    $region33: #{_lambda_.1} parent=1 // pred_fallthru
      _
    // Predicated region
    $region34: #{_lambda_.1} parent=1 // pred_check
      _
    $region35: #{_lambda_.1} parent=1 // pred_check_branch
      %96 = sbr.rel (0) target = $region37
    $region36: #{_lambda_.1} parent=1 // pred_region
      %s98 = ssub.s32 8192, 8192
      %99 = vsyncadd [#allocation14], %s98
      %s100 = sshll.u32 [#allocation13], 4
      %s101 = int_to_ptr.vmem [resolvable:$true] %s100
      %106 = dma.hbm_to_vmem [thread:$0]  %s8, 8192, %s101, [#allocation14], 128, 128, 8
    $region37: #{_lambda_.1} parent=1 // pred_fallthru
      _
    // Predicated region
    $region38: #{_lambda_.1} parent=1 // pred_check
      _
    $region39: #{_lambda_.1} parent=1 // pred_check_branch
      %108 = sbr.rel (0) target = $region41
    $region40: #{_lambda_.1} parent=1 // pred_region
      %s110 = ssub.s32 16384, 16384
      %111 = vsyncadd [#allocation14], %s110
      %s112 = sshll.u32 [#allocation15], 4
      %s113 = int_to_ptr.vmem [resolvable:$true] %s112
      %118 = dma.hbm_to_vmem [thread:$0]  %s9, 16384, %s113, [#allocation14], 256, 256, 16
    $region41: #{_lambda_.1} parent=1 // pred_fallthru
      _
    // Predicated region
    $region42: #{_lambda_.1} parent=1 // pred_check
      _
    $region43: #{_lambda_.1} parent=1 // pred_check_branch
      %120 = sbr.rel (0) target = $region45
    $region44: #{_lambda_.1} parent=1 // pred_region
      %s122 = ssub.s32 8192, 8192
      %123 = vsyncadd [#allocation17], %s122
      %s124 = sshll.u32 [#allocation16], 4
      %s125 = int_to_ptr.vmem [resolvable:$true] %s124
      %130 = dma.hbm_to_vmem [thread:$0]  %s10, 8192, %s125, [#allocation17], 128, 128, 8
    $region45: #{_lambda_.1} parent=1 // pred_fallthru
      _
    // Predicated region
    $region46: #{_lambda_.1} parent=1 // pred_check
      _
    $region47: #{_lambda_.1} parent=1 // pred_check_branch
      %132 = sbr.rel (0) target = $region49
    $region48: #{_lambda_.1} parent=1 // pred_region
      %s134 = ssub.s32 16384, 16384
      %135 = vsyncadd [#allocation17], %s134
      %s136 = sshll.u32 [#allocation18], 4
      %s137 = int_to_ptr.vmem [resolvable:$true] %s136
      %142 = dma.hbm_to_vmem [thread:$0]  %s11, 16384, %s137, [#allocation17], 256, 256, 16
    $region49: #{_lambda_.1} parent=1 // pred_fallthru
      _
    // Predicated region
    $region50: #{_lambda_.1} parent=1 // pred_check
      _
    $region51: #{_lambda_.1} parent=1 // pred_check_branch
      %144 = sbr.rel (0) target = $region53
    $region52: #{_lambda_.1} parent=1 // pred_region
      %s146 = ssub.s32 8192, 8192
      %147 = vsyncadd [#allocation20], %s146
      %s148 = sshll.u32 [#allocation19], 4
      %s149 = int_to_ptr.vmem [resolvable:$true] %s148
      %154 = dma.hbm_to_vmem [thread:$0]  %s12, 8192, %s149, [#allocation20], 128, 128, 8
    $region53: #{_lambda_.1} parent=1 // pred_fallthru
      _
    // Predicated region
    $region54: #{_lambda_.1} parent=1 // pred_check
      _
    $region55: #{_lambda_.1} parent=1 // pred_check_branch
      %156 = sbr.rel (0) target = $region57
    $region56: #{_lambda_.1} parent=1 // pred_region
      %s158 = ssub.s32 8192, 8192
      %159 = vsyncadd [#allocation20], %s158
      %s160 = sshll.u32 [#allocation21], 4
      %s161 = int_to_ptr.vmem [resolvable:$true] %s160
      %166 = dma.hbm_to_vmem [thread:$0]  %s13, 8192, %s161, [#allocation20], 256, 256, 16
    $region57: #{_lambda_.1} parent=1 // pred_fallthru
      _
    // Predicated region
    $region58: #{_lambda_.1} parent=1 // pred_check
      _
    $region59: #{_lambda_.1} parent=1 // pred_check_branch
      %168 = sbr.rel (0) target = $region61
    $region60: #{_lambda_.1} parent=1 // pred_region
      _
    $region61: #{_lambda_.1} parent=1 // pred_fallthru
      _
    // Predicated region
    $region62: #{_lambda_.1} parent=1 // pred_check
      _
    $region63: #{_lambda_.1} parent=1 // pred_check_branch
      %170 = sbr.rel (0) target = $region65
    $region64: #{_lambda_.1} parent=1 // pred_region
      %s172 = ssub.s32 8192, 8192
      %173 = vsyncadd [#allocation23], %s172
      %s174 = sshll.u32 [#allocation22], 4
      %s175 = int_to_ptr.vmem [resolvable:$true] %s174
      %180 = dma.hbm_to_vmem [thread:$0]  %s15, 8192, %s175, [#allocation23], 256, 256, 16
    $region65: #{_lambda_.1} parent=1 // pred_fallthru
      _
    // Predicated region
    $region66: #{_lambda_.1} parent=1 // pred_check
      _
    $region67: #{_lambda_.1} parent=1 // pred_check_branch
      %182 = sbr.rel (0) target = $region69
    $region68: #{_lambda_.1} parent=1 // pred_region
      %183 = dma.done [#allocation5], 16384
    $region69: #{_lambda_.1} parent=1 // pred_fallthru
      _
    // Predicated region
    $region70: #{_lambda_.1} parent=1 // pred_check
      _
    $region71: #{_lambda_.1} parent=1 // pred_check_branch
      %185 = sbr.rel (0) target = $region73
    $region72: #{_lambda_.1} parent=1 // pred_region
      %186 = dma.done [#allocation8], 16384
    $region73: #{_lambda_.1} parent=1 // pred_fallthru
      _
    // Predicated region
    $region74: #{_lambda_.1} parent=1 // pred_check
      _
    $region75: #{_lambda_.1} parent=1 // pred_check_branch
      %188 = sbr.rel (0) target = $region77
    $region76: #{_lambda_.1} parent=1 // pred_region
      %189 = dma.done [#allocation8], 16384
    $region77: #{_lambda_.1} parent=1 // pred_fallthru
      _
    // Predicated region
    $region78: #{_lambda_.1} parent=1 // pred_check
      _
    $region79: #{_lambda_.1} parent=1 // pred_check_branch
      %191 = sbr.rel (0) target = $region81
    $region80: #{_lambda_.1} parent=1 // pred_region
      %192 = dma.done [#allocation11], 8192
    $region81: #{_lambda_.1} parent=1 // pred_fallthru
      _
    // Predicated region
    $region82: #{_lambda_.1} parent=1 // pred_check
      _
    $region83: #{_lambda_.1} parent=1 // pred_check_branch
      %194 = sbr.rel (0) target = $region85
    $region84: #{_lambda_.1} parent=1 // pred_region
      %195 = dma.done [#allocation11], 16384
    $region85: #{_lambda_.1} parent=1 // pred_fallthru
      _
    // Predicated region
    $region86: #{_lambda_.1} parent=1 // pred_check
      _
    $region87: #{_lambda_.1} parent=1 // pred_check_branch
      %197 = sbr.rel (0) target = $region89
    $region88: #{_lambda_.1} parent=1 // pred_region
      %198 = dma.done [#allocation14], 8192
    $region89: #{_lambda_.1} parent=1 // pred_fallthru
      _
    // Predicated region
    $region90: #{_lambda_.1} parent=1 // pred_check
      _
    $region91: #{_lambda_.1} parent=1 // pred_check_branch
      %200 = sbr.rel (0) target = $region93
    $region92: #{_lambda_.1} parent=1 // pred_region
      %201 = dma.done [#allocation14], 16384
    $region93: #{_lambda_.1} parent=1 // pred_fallthru
      _
    // Predicated region
    $region94: #{_lambda_.1} parent=1 // pred_check
      _
    $region95: #{_lambda_.1} parent=1 // pred_check_branch
      %203 = sbr.rel (0) target = $region97
    $region96: #{_lambda_.1} parent=1 // pred_region
      %204 = dma.done [#allocation17], 8192
    $region97: #{_lambda_.1} parent=1 // pred_fallthru
      _
    // Predicated region
    $region98: #{_lambda_.1} parent=1 // pred_check
      _
    $region99: #{_lambda_.1} parent=1 // pred_check_branch
      %206 = sbr.rel (0) target = $region101
    $region100: #{_lambda_.1} parent=1 // pred_region
      %207 = dma.done [#allocation17], 16384
    $region101: #{_lambda_.1} parent=1 // pred_fallthru
      _
    // Predicated region
    $region102: #{_lambda_.1} parent=1 // pred_check
      _
    $region103: #{_lambda_.1} parent=1 // pred_check_branch
      %209 = sbr.rel (0) target = $region105
    $region104: #{_lambda_.1} parent=1 // pred_region
      %210 = dma.done [#allocation20], 8192
    $region105: #{_lambda_.1} parent=1 // pred_fallthru
      _
    // Predicated region
    $region106: #{_lambda_.1} parent=1 // pred_check
      _
    $region107: #{_lambda_.1} parent=1 // pred_check_branch
      %212 = sbr.rel (0) target = $region109
    $region108: #{_lambda_.1} parent=1 // pred_region
      %213 = dma.done [#allocation20], 8192
    $region109: #{_lambda_.1} parent=1 // pred_fallthru
      _
    // Predicated region
    $region110: #{_lambda_.1} parent=1 // pred_check
      _
    $region111: #{_lambda_.1} parent=1 // pred_check_branch
      %215 = sbr.rel (0) target = $region113
    $region112: #{_lambda_.1} parent=1 // pred_region
      %216 = dma.done [#allocation23], 8192
    $region113: #{_lambda_.1} parent=1 // pred_fallthru
      _
    %v217 = vld [vmem:[%s0] sm:$0x3]
    %v218 = vld [vmem:[%s1] sm:$0x3]
    %220 = vset.pattern.permute.xlu0 0
    %221 = vperm.xlu0 %220, %v218
    %v222 = vpop.permute.xlu0 %221
    %v224 = vlaneseq
    %v225 = vshrl.u32 %v224, 7
    %v226 = vsub.s32 0, %v225
    %v227 = vrot.slane %v217, %v226
    %v228 = vmul.f32 %v222, %v227
    %v229 = vadd.f32 %v228, 0.0
    %230 = vset.pattern.permute.xlu0 1
    %231 = vperm.xlu0 %230, %v218
    %v232 = vpop.permute.xlu0 %231
    %v234 = vlaneseq
    %v235 = vshrl.u32 %v234, 7
    %v236 = vsub.s32 1, %v235
    %v237 = vrot.slane %v217, %v236
    %v238 = vmul.f32 %v232, %v237
    %v239 = vadd.f32 %v229, %v238
    %v240 = vld [vmem:[%s2] sm:$0x3]
    %242 = vset.pattern.permute.xlu0 0
    %243 = vperm.xlu0 %242, %v240
    %v244 = vpop.permute.xlu0 %243
    %v246 = vadd.f32 %v239, %v244
    %v247 = vtanh.pop %v246
    %v248 = vld [vmem:[#allocation4] sm:$0xff]
    %v249 = vld [vmem:[#allocation4 + $0x8] sm:$0xff]
    %v250 = vld [vmem:[#allocation4 + $0x10] sm:$0xff]
    %v251 = vld [vmem:[#allocation4 + $0x18] sm:$0xff]
    %v252 = vld [vmem:[#allocation4 + $0x20] sm:$0xff]
    %v253 = vld [vmem:[#allocation4 + $0x28] sm:$0xff]
    %v254 = vld [vmem:[#allocation4 + $0x30] sm:$0xff]
    %v255 = vld [vmem:[#allocation4 + $0x38] sm:$0xff]
    %v256 = vld [vmem:[#allocation4 + $0x40] sm:$0xff]
    %v257 = vld [vmem:[#allocation4 + $0x48] sm:$0xff]
    %v258 = vld [vmem:[#allocation4 + $0x50] sm:$0xff]
    %v259 = vld [vmem:[#allocation4 + $0x58] sm:$0xff]
    %v260 = vld [vmem:[#allocation4 + $0x60] sm:$0xff]
    %v261 = vld [vmem:[#allocation4 + $0x68] sm:$0xff]
    %v262 = vld [vmem:[#allocation4 + $0x70] sm:$0xff]
    %v263 = vld [vmem:[#allocation4 + $0x78] sm:$0xff]
    %v264 = vld [vmem:[#allocation4 + $0x80] sm:$0xff]
    %v265 = vld [vmem:[#allocation4 + $0x88] sm:$0xff]
    %v266 = vld [vmem:[#allocation4 + $0x90] sm:$0xff]
    %v267 = vld [vmem:[#allocation4 + $0x98] sm:$0xff]
    %v268 = vld [vmem:[#allocation4 + $0xa0] sm:$0xff]
    %v269 = vld [vmem:[#allocation4 + $0xa8] sm:$0xff]
    %v270 = vld [vmem:[#allocation4 + $0xb0] sm:$0xff]
    %v271 = vld [vmem:[#allocation4 + $0xb8] sm:$0xff]
    %v272 = vld [vmem:[#allocation4 + $0xc0] sm:$0xff]
    %v273 = vld [vmem:[#allocation4 + $0xc8] sm:$0xff]
    %v274 = vld [vmem:[#allocation4 + $0xd0] sm:$0xff]
    %v275 = vld [vmem:[#allocation4 + $0xd8] sm:$0xff]
    %v276 = vld [vmem:[#allocation4 + $0xe0] sm:$0xff]
    %v277 = vld [vmem:[#allocation4 + $0xe8] sm:$0xff]
    %v278 = vld [vmem:[#allocation4 + $0xf0] sm:$0xff]
    %v279 = vld [vmem:[#allocation4 + $0xf8] sm:$0xff]
    %v280 = vld [vmem:[#allocation4 + $0x100] sm:$0xff]
    %v281 = vld [vmem:[#allocation4 + $0x108] sm:$0xff]
    %v282 = vld [vmem:[#allocation4 + $0x110] sm:$0xff]
    %v283 = vld [vmem:[#allocation4 + $0x118] sm:$0xff]
    %v284 = vld [vmem:[#allocation4 + $0x120] sm:$0xff]
    %v285 = vld [vmem:[#allocation4 + $0x128] sm:$0xff]
    %v286 = vld [vmem:[#allocation4 + $0x130] sm:$0xff]
    %v287 = vld [vmem:[#allocation4 + $0x138] sm:$0xff]
    %v288 = vld [vmem:[#allocation4 + $0x140] sm:$0xff]
    %v289 = vld [vmem:[#allocation4 + $0x148] sm:$0xff]
    %v290 = vld [vmem:[#allocation4 + $0x150] sm:$0xff]
    %v291 = vld [vmem:[#allocation4 + $0x158] sm:$0xff]
    %v292 = vld [vmem:[#allocation4 + $0x160] sm:$0xff]
    %v293 = vld [vmem:[#allocation4 + $0x168] sm:$0xff]
    %v294 = vld [vmem:[#allocation4 + $0x170] sm:$0xff]
    %v295 = vld [vmem:[#allocation4 + $0x178] sm:$0xff]
    %v296 = vld [vmem:[#allocation4 + $0x180] sm:$0xff]
    %v297 = vld [vmem:[#allocation4 + $0x188] sm:$0xff]
    %v298 = vld [vmem:[#allocation4 + $0x190] sm:$0xff]
    %v299 = vld [vmem:[#allocation4 + $0x198] sm:$0xff]
    %v300 = vld [vmem:[#allocation4 + $0x1a0] sm:$0xff]
    %v301 = vld [vmem:[#allocation4 + $0x1a8] sm:$0xff]
    %v302 = vld [vmem:[#allocation4 + $0x1b0] sm:$0xff]
    %v303 = vld [vmem:[#allocation4 + $0x1b8] sm:$0xff]
    %v304 = vld [vmem:[#allocation4 + $0x1c0] sm:$0xff]
    %v305 = vld [vmem:[#allocation4 + $0x1c8] sm:$0xff]
    %v306 = vld [vmem:[#allocation4 + $0x1d0] sm:$0xff]
    %v307 = vld [vmem:[#allocation4 + $0x1d8] sm:$0xff]
    %v308 = vld [vmem:[#allocation4 + $0x1e0] sm:$0xff]
    %v309 = vld [vmem:[#allocation4 + $0x1e8] sm:$0xff]
    %v310 = vld [vmem:[#allocation4 + $0x1f0] sm:$0xff]
    %v311 = vld [vmem:[#allocation4 + $0x1f8] sm:$0xff]
    %v312 = vld [vmem:[#allocation4 + $0x200] sm:$0xff]
    %v313 = vld [vmem:[#allocation4 + $0x208] sm:$0xff]
    %v314 = vld [vmem:[#allocation4 + $0x210] sm:$0xff]
    %v315 = vld [vmem:[#allocation4 + $0x218] sm:$0xff]
    %v316 = vld [vmem:[#allocation4 + $0x220] sm:$0xff]
    %v317 = vld [vmem:[#allocation4 + $0x228] sm:$0xff]
    %v318 = vld [vmem:[#allocation4 + $0x230] sm:$0xff]
    %v319 = vld [vmem:[#allocation4 + $0x238] sm:$0xff]
    %v320 = vld [vmem:[#allocation4 + $0x240] sm:$0xff]
    %v321 = vld [vmem:[#allocation4 + $0x248] sm:$0xff]
    %v322 = vld [vmem:[#allocation4 + $0x250] sm:$0xff]
    %v323 = vld [vmem:[#allocation4 + $0x258] sm:$0xff]
    %v324 = vld [vmem:[#allocation4 + $0x260] sm:$0xff]
    %v325 = vld [vmem:[#allocation4 + $0x268] sm:$0xff]
    %v326 = vld [vmem:[#allocation4 + $0x270] sm:$0xff]
    %v327 = vld [vmem:[#allocation4 + $0x278] sm:$0xff]
    %v328 = vld [vmem:[#allocation4 + $0x280] sm:$0xff]
    %v329 = vld [vmem:[#allocation4 + $0x288] sm:$0xff]
    %v330 = vld [vmem:[#allocation4 + $0x290] sm:$0xff]
    %v331 = vld [vmem:[#allocation4 + $0x298] sm:$0xff]
    %v332 = vld [vmem:[#allocation4 + $0x2a0] sm:$0xff]
    %v333 = vld [vmem:[#allocation4 + $0x2a8] sm:$0xff]
    %v334 = vld [vmem:[#allocation4 + $0x2b0] sm:$0xff]
    %v335 = vld [vmem:[#allocation4 + $0x2b8] sm:$0xff]
    %v336 = vld [vmem:[#allocation4 + $0x2c0] sm:$0xff]
    %v337 = vld [vmem:[#allocation4 + $0x2c8] sm:$0xff]
    %v338 = vld [vmem:[#allocation4 + $0x2d0] sm:$0xff]
    %v339 = vld [vmem:[#allocation4 + $0x2d8] sm:$0xff]
    %v340 = vld [vmem:[#allocation4 + $0x2e0] sm:$0xff]
    %v341 = vld [vmem:[#allocation4 + $0x2e8] sm:$0xff]
    %v342 = vld [vmem:[#allocation4 + $0x2f0] sm:$0xff]
    %v343 = vld [vmem:[#allocation4 + $0x2f8] sm:$0xff]
    %v344 = vld [vmem:[#allocation4 + $0x300] sm:$0xff]
    %v345 = vld [vmem:[#allocation4 + $0x308] sm:$0xff]
    %v346 = vld [vmem:[#allocation4 + $0x310] sm:$0xff]
    %v347 = vld [vmem:[#allocation4 + $0x318] sm:$0xff]
    %v348 = vld [vmem:[#allocation4 + $0x320] sm:$0xff]
    %v349 = vld [vmem:[#allocation4 + $0x328] sm:$0xff]
    %v350 = vld [vmem:[#allocation4 + $0x330] sm:$0xff]
    %v351 = vld [vmem:[#allocation4 + $0x338] sm:$0xff]
    %v352 = vld [vmem:[#allocation4 + $0x340] sm:$0xff]
    %v353 = vld [vmem:[#allocation4 + $0x348] sm:$0xff]
    %v354 = vld [vmem:[#allocation4 + $0x350] sm:$0xff]
    %v355 = vld [vmem:[#allocation4 + $0x358] sm:$0xff]
    %v356 = vld [vmem:[#allocation4 + $0x360] sm:$0xff]
    %v357 = vld [vmem:[#allocation4 + $0x368] sm:$0xff]
    %v358 = vld [vmem:[#allocation4 + $0x370] sm:$0xff]
    %v359 = vld [vmem:[#allocation4 + $0x378] sm:$0xff]
    %v360 = vld [vmem:[#allocation4 + $0x380] sm:$0xff]
    %v361 = vld [vmem:[#allocation4 + $0x388] sm:$0xff]
    %v362 = vld [vmem:[#allocation4 + $0x390] sm:$0xff]
    %v363 = vld [vmem:[#allocation4 + $0x398] sm:$0xff]
    %v364 = vld [vmem:[#allocation4 + $0x3a0] sm:$0xff]
    %v365 = vld [vmem:[#allocation4 + $0x3a8] sm:$0xff]
    %v366 = vld [vmem:[#allocation4 + $0x3b0] sm:$0xff]
    %v367 = vld [vmem:[#allocation4 + $0x3b8] sm:$0xff]
    %v368 = vld [vmem:[#allocation4 + $0x3c0] sm:$0xff]
    %v369 = vld [vmem:[#allocation4 + $0x3c8] sm:$0xff]
    %v370 = vld [vmem:[#allocation4 + $0x3d0] sm:$0xff]
    %v371 = vld [vmem:[#allocation4 + $0x3d8] sm:$0xff]
    %v372 = vld [vmem:[#allocation4 + $0x3e0] sm:$0xff]
    %v373 = vld [vmem:[#allocation4 + $0x3e8] sm:$0xff]
    %v374 = vld [vmem:[#allocation4 + $0x3f0] sm:$0xff]
    %v375 = vld [vmem:[#allocation4 + $0x3f8] sm:$0xff]
    %377 = vset.pattern.permute.xlu0 0
    %378 = vperm.xlu0 %377, %v248
    %v379 = vpop.permute.xlu0 %378
    %382 = vset.pattern.permute.xlu0 0
    %383 = vperm.xlu0 %382, %v249
    %v384 = vpop.permute.xlu0 %383
    %387 = vset.pattern.permute.xlu0 0
    %388 = vperm.xlu0 %387, %v250
    %v389 = vpop.permute.xlu0 %388
    %392 = vset.pattern.permute.xlu0 0
    %393 = vperm.xlu0 %392, %v251
    %v394 = vpop.permute.xlu0 %393
    %397 = vset.pattern.permute.xlu0 0
    %398 = vperm.xlu0 %397, %v252
    %v399 = vpop.permute.xlu0 %398
    %402 = vset.pattern.permute.xlu0 0
    %403 = vperm.xlu0 %402, %v253
    %v404 = vpop.permute.xlu0 %403
    %407 = vset.pattern.permute.xlu0 0
    %408 = vperm.xlu0 %407, %v254
    %v409 = vpop.permute.xlu0 %408
    %412 = vset.pattern.permute.xlu0 0
    %413 = vperm.xlu0 %412, %v255
    %v414 = vpop.permute.xlu0 %413
    %417 = vset.pattern.permute.xlu0 0
    %418 = vperm.xlu0 %417, %v256
    %v419 = vpop.permute.xlu0 %418
    %422 = vset.pattern.permute.xlu0 0
    %423 = vperm.xlu0 %422, %v257
    %v424 = vpop.permute.xlu0 %423
    %427 = vset.pattern.permute.xlu0 0
    %428 = vperm.xlu0 %427, %v258
    %v429 = vpop.permute.xlu0 %428
    %432 = vset.pattern.permute.xlu0 0
    %433 = vperm.xlu0 %432, %v259
    %v434 = vpop.permute.xlu0 %433
    %437 = vset.pattern.permute.xlu0 0
    %438 = vperm.xlu0 %437, %v260
    %v439 = vpop.permute.xlu0 %438
    %442 = vset.pattern.permute.xlu0 0
    %443 = vperm.xlu0 %442, %v261
    %v444 = vpop.permute.xlu0 %443
    %447 = vset.pattern.permute.xlu0 0
    %448 = vperm.xlu0 %447, %v262
    %v449 = vpop.permute.xlu0 %448
    %452 = vset.pattern.permute.xlu0 0
    %453 = vperm.xlu0 %452, %v263
    %v454 = vpop.permute.xlu0 %453
    %457 = vset.pattern.permute.xlu0 0
    %458 = vperm.xlu0 %457, %v264
    %v459 = vpop.permute.xlu0 %458
    %462 = vset.pattern.permute.xlu0 0
    %463 = vperm.xlu0 %462, %v265
    %v464 = vpop.permute.xlu0 %463
    %467 = vset.pattern.permute.xlu0 0
    %468 = vperm.xlu0 %467, %v266
    %v469 = vpop.permute.xlu0 %468
    %472 = vset.pattern.permute.xlu0 0
    %473 = vperm.xlu0 %472, %v267
    %v474 = vpop.permute.xlu0 %473
    %477 = vset.pattern.permute.xlu0 0
    %478 = vperm.xlu0 %477, %v268
    %v479 = vpop.permute.xlu0 %478
    %482 = vset.pattern.permute.xlu0 0
    %483 = vperm.xlu0 %482, %v269
    %v484 = vpop.permute.xlu0 %483
    %487 = vset.pattern.permute.xlu0 0
    %488 = vperm.xlu0 %487, %v270
    %v489 = vpop.permute.xlu0 %488
    %492 = vset.pattern.permute.xlu0 0
    %493 = vperm.xlu0 %492, %v271
    %v494 = vpop.permute.xlu0 %493
    %497 = vset.pattern.permute.xlu0 0
    %498 = vperm.xlu0 %497, %v272
    %v499 = vpop.permute.xlu0 %498
    %502 = vset.pattern.permute.xlu0 0
    %503 = vperm.xlu0 %502, %v273
    %v504 = vpop.permute.xlu0 %503
    %507 = vset.pattern.permute.xlu0 0
    %508 = vperm.xlu0 %507, %v274
    %v509 = vpop.permute.xlu0 %508
    %512 = vset.pattern.permute.xlu0 0
    %513 = vperm.xlu0 %512, %v275
    %v514 = vpop.permute.xlu0 %513
    %517 = vset.pattern.permute.xlu0 0
    %518 = vperm.xlu0 %517, %v276
    %v519 = vpop.permute.xlu0 %518
    %522 = vset.pattern.permute.xlu0 0
    %523 = vperm.xlu0 %522, %v277
    %v524 = vpop.permute.xlu0 %523
    %527 = vset.pattern.permute.xlu0 0
    %528 = vperm.xlu0 %527, %v278
    %v529 = vpop.permute.xlu0 %528
    %532 = vset.pattern.permute.xlu0 0
    %533 = vperm.xlu0 %532, %v279
    %v534 = vpop.permute.xlu0 %533
    %537 = vset.pattern.permute.xlu0 0
    %538 = vperm.xlu0 %537, %v280
    %v539 = vpop.permute.xlu0 %538
    %542 = vset.pattern.permute.xlu0 0
    %543 = vperm.xlu0 %542, %v281
    %v544 = vpop.permute.xlu0 %543
    %547 = vset.pattern.permute.xlu0 0
    %548 = vperm.xlu0 %547, %v282
    %v549 = vpop.permute.xlu0 %548
    %552 = vset.pattern.permute.xlu0 0
    %553 = vperm.xlu0 %552, %v283
    %v554 = vpop.permute.xlu0 %553
    %557 = vset.pattern.permute.xlu0 0
    %558 = vperm.xlu0 %557, %v284
    %v559 = vpop.permute.xlu0 %558
    %562 = vset.pattern.permute.xlu0 0
    %563 = vperm.xlu0 %562, %v285
    %v564 = vpop.permute.xlu0 %563
    %567 = vset.pattern.permute.xlu0 0
    %568 = vperm.xlu0 %567, %v286
    %v569 = vpop.permute.xlu0 %568
    %572 = vset.pattern.permute.xlu0 0
    %573 = vperm.xlu0 %572, %v287
    %v574 = vpop.permute.xlu0 %573
    %577 = vset.pattern.permute.xlu0 0
    %578 = vperm.xlu0 %577, %v288
    %v579 = vpop.permute.xlu0 %578
    %582 = vset.pattern.permute.xlu0 0
    %583 = vperm.xlu0 %582, %v289
    %v584 = vpop.permute.xlu0 %583
    %587 = vset.pattern.permute.xlu0 0
    %588 = vperm.xlu0 %587, %v290
    %v589 = vpop.permute.xlu0 %588
    %592 = vset.pattern.permute.xlu0 0
    %593 = vperm.xlu0 %592, %v291
    %v594 = vpop.permute.xlu0 %593
    %597 = vset.pattern.permute.xlu0 0
    %598 = vperm.xlu0 %597, %v292
    %v599 = vpop.permute.xlu0 %598
    %602 = vset.pattern.permute.xlu0 0
    %603 = vperm.xlu0 %602, %v293
    %v604 = vpop.permute.xlu0 %603
    %607 = vset.pattern.permute.xlu0 0
    %608 = vperm.xlu0 %607, %v294
    %v609 = vpop.permute.xlu0 %608
    %612 = vset.pattern.permute.xlu0 0
    %613 = vperm.xlu0 %612, %v295
    %v614 = vpop.permute.xlu0 %613
    %617 = vset.pattern.permute.xlu0 0
    %618 = vperm.xlu0 %617, %v296
    %v619 = vpop.permute.xlu0 %618
    %622 = vset.pattern.permute.xlu0 0
    %623 = vperm.xlu0 %622, %v297
    %v624 = vpop.permute.xlu0 %623
    %627 = vset.pattern.permute.xlu0 0
    %628 = vperm.xlu0 %627, %v298
    %v629 = vpop.permute.xlu0 %628
    %632 = vset.pattern.permute.xlu0 0
    %633 = vperm.xlu0 %632, %v299
    %v634 = vpop.permute.xlu0 %633
    %637 = vset.pattern.permute.xlu0 0
    %638 = vperm.xlu0 %637, %v300
    %v639 = vpop.permute.xlu0 %638
    %642 = vset.pattern.permute.xlu0 0
    %643 = vperm.xlu0 %642, %v301
    %v644 = vpop.permute.xlu0 %643
    %647 = vset.pattern.permute.xlu0 0
    %648 = vperm.xlu0 %647, %v302
    %v649 = vpop.permute.xlu0 %648
    %652 = vset.pattern.permute.xlu0 0
    %653 = vperm.xlu0 %652, %v303
    %v654 = vpop.permute.xlu0 %653
    %657 = vset.pattern.permute.xlu0 0
    %658 = vperm.xlu0 %657, %v304
    %v659 = vpop.permute.xlu0 %658
    %662 = vset.pattern.permute.xlu0 0
    %663 = vperm.xlu0 %662, %v305
    %v664 = vpop.permute.xlu0 %663
    %667 = vset.pattern.permute.xlu0 0
    %668 = vperm.xlu0 %667, %v306
    %v669 = vpop.permute.xlu0 %668
    %672 = vset.pattern.permute.xlu0 0
    %673 = vperm.xlu0 %672, %v307
    %v674 = vpop.permute.xlu0 %673
    %677 = vset.pattern.permute.xlu0 0
    %678 = vperm.xlu0 %677, %v308
    %v679 = vpop.permute.xlu0 %678
    %682 = vset.pattern.permute.xlu0 0
    %683 = vperm.xlu0 %682, %v309
    %v684 = vpop.permute.xlu0 %683
    %687 = vset.pattern.permute.xlu0 0
    %688 = vperm.xlu0 %687, %v310
    %v689 = vpop.permute.xlu0 %688
    %692 = vset.pattern.permute.xlu0 0
    %693 = vperm.xlu0 %692, %v311
    %v694 = vpop.permute.xlu0 %693
    %697 = vset.pattern.permute.xlu0 0
    %698 = vperm.xlu0 %697, %v312
    %v699 = vpop.permute.xlu0 %698
    %702 = vset.pattern.permute.xlu0 0
    %703 = vperm.xlu0 %702, %v313
    %v704 = vpop.permute.xlu0 %703
    %707 = vset.pattern.permute.xlu0 0
    %708 = vperm.xlu0 %707, %v314
    %v709 = vpop.permute.xlu0 %708
    %712 = vset.pattern.permute.xlu0 0
    %713 = vperm.xlu0 %712, %v315
    %v714 = vpop.permute.xlu0 %713
    %717 = vset.pattern.permute.xlu0 0
    %718 = vperm.xlu0 %717, %v316
    %v719 = vpop.permute.xlu0 %718
    %722 = vset.pattern.permute.xlu0 0
    %723 = vperm.xlu0 %722, %v317
    %v724 = vpop.permute.xlu0 %723
    %727 = vset.pattern.permute.xlu0 0
    %728 = vperm.xlu0 %727, %v318
    %v729 = vpop.permute.xlu0 %728
    %732 = vset.pattern.permute.xlu0 0
    %733 = vperm.xlu0 %732, %v319
    %v734 = vpop.permute.xlu0 %733
    %737 = vset.pattern.permute.xlu0 0
    %738 = vperm.xlu0 %737, %v320
    %v739 = vpop.permute.xlu0 %738
    %742 = vset.pattern.permute.xlu0 0
    %743 = vperm.xlu0 %742, %v321
    %v744 = vpop.permute.xlu0 %743
    %747 = vset.pattern.permute.xlu0 0
    %748 = vperm.xlu0 %747, %v322
    %v749 = vpop.permute.xlu0 %748
    %752 = vset.pattern.permute.xlu0 0
    %753 = vperm.xlu0 %752, %v323
    %v754 = vpop.permute.xlu0 %753
    %757 = vset.pattern.permute.xlu0 0
    %758 = vperm.xlu0 %757, %v324
    %v759 = vpop.permute.xlu0 %758
    %762 = vset.pattern.permute.xlu0 0
    %763 = vperm.xlu0 %762, %v325
    %v764 = vpop.permute.xlu0 %763
    %767 = vset.pattern.permute.xlu0 0
    %768 = vperm.xlu0 %767, %v326
    %v769 = vpop.permute.xlu0 %768
    %772 = vset.pattern.permute.xlu0 0
    %773 = vperm.xlu0 %772, %v327
    %v774 = vpop.permute.xlu0 %773
    %777 = vset.pattern.permute.xlu0 0
    %778 = vperm.xlu0 %777, %v328
    %v779 = vpop.permute.xlu0 %778
    %782 = vset.pattern.permute.xlu0 0
    %783 = vperm.xlu0 %782, %v329
    %v784 = vpop.permute.xlu0 %783
    %787 = vset.pattern.permute.xlu0 0
    %788 = vperm.xlu0 %787, %v330
    %v789 = vpop.permute.xlu0 %788
    %792 = vset.pattern.permute.xlu0 0
    %793 = vperm.xlu0 %792, %v331
    %v794 = vpop.permute.xlu0 %793
    %797 = vset.pattern.permute.xlu0 0
    %798 = vperm.xlu0 %797, %v332
    %v799 = vpop.permute.xlu0 %798
    %802 = vset.pattern.permute.xlu0 0
    %803 = vperm.xlu0 %802, %v333
    %v804 = vpop.permute.xlu0 %803
    %807 = vset.pattern.permute.xlu0 0
    %808 = vperm.xlu0 %807, %v334
    %v809 = vpop.permute.xlu0 %808
    %812 = vset.pattern.permute.xlu0 0
    %813 = vperm.xlu0 %812, %v335
    %v814 = vpop.permute.xlu0 %813
    %817 = vset.pattern.permute.xlu0 0
    %818 = vperm.xlu0 %817, %v336
    %v819 = vpop.permute.xlu0 %818
    %822 = vset.pattern.permute.xlu0 0
    %823 = vperm.xlu0 %822, %v337
    %v824 = vpop.permute.xlu0 %823
    %827 = vset.pattern.permute.xlu0 0
    %828 = vperm.xlu0 %827, %v338
    %v829 = vpop.permute.xlu0 %828
    %832 = vset.pattern.permute.xlu0 0
    %833 = vperm.xlu0 %832, %v339
    %v834 = vpop.permute.xlu0 %833
    %837 = vset.pattern.permute.xlu0 0
    %838 = vperm.xlu0 %837, %v340
    %v839 = vpop.permute.xlu0 %838
    %842 = vset.pattern.permute.xlu0 0
    %843 = vperm.xlu0 %842, %v341
    %v844 = vpop.permute.xlu0 %843
    %847 = vset.pattern.permute.xlu0 0
    %848 = vperm.xlu0 %847, %v342
    %v849 = vpop.permute.xlu0 %848
    %852 = vset.pattern.permute.xlu0 0
    %853 = vperm.xlu0 %852, %v343
    %v854 = vpop.permute.xlu0 %853
    %857 = vset.pattern.permute.xlu0 0
    %858 = vperm.xlu0 %857, %v344
    %v859 = vpop.permute.xlu0 %858
    %862 = vset.pattern.permute.xlu0 0
    %863 = vperm.xlu0 %862, %v345
    %v864 = vpop.permute.xlu0 %863
    %867 = vset.pattern.permute.xlu0 0
    %868 = vperm.xlu0 %867, %v346
    %v869 = vpop.permute.xlu0 %868
    %872 = vset.pattern.permute.xlu0 0
    %873 = vperm.xlu0 %872, %v347
    %v874 = vpop.permute.xlu0 %873
    %877 = vset.pattern.permute.xlu0 0
    %878 = vperm.xlu0 %877, %v348
    %v879 = vpop.permute.xlu0 %878
    %882 = vset.pattern.permute.xlu0 0
    %883 = vperm.xlu0 %882, %v349
    %v884 = vpop.permute.xlu0 %883
    %887 = vset.pattern.permute.xlu0 0
    %888 = vperm.xlu0 %887, %v350
    %v889 = vpop.permute.xlu0 %888
    %892 = vset.pattern.permute.xlu0 0
    %893 = vperm.xlu0 %892, %v351
    %v894 = vpop.permute.xlu0 %893
    %897 = vset.pattern.permute.xlu0 0
    %898 = vperm.xlu0 %897, %v352
    %v899 = vpop.permute.xlu0 %898
    %902 = vset.pattern.permute.xlu0 0
    %903 = vperm.xlu0 %902, %v353
    %v904 = vpop.permute.xlu0 %903
    %907 = vset.pattern.permute.xlu0 0
    %908 = vperm.xlu0 %907, %v354
    %v909 = vpop.permute.xlu0 %908
    %912 = vset.pattern.permute.xlu0 0
    %913 = vperm.xlu0 %912, %v355
    %v914 = vpop.permute.xlu0 %913
    %917 = vset.pattern.permute.xlu0 0
    %918 = vperm.xlu0 %917, %v356
    %v919 = vpop.permute.xlu0 %918
    %922 = vset.pattern.permute.xlu0 0
    %923 = vperm.xlu0 %922, %v357
    %v924 = vpop.permute.xlu0 %923
    %927 = vset.pattern.permute.xlu0 0
    %928 = vperm.xlu0 %927, %v358
    %v929 = vpop.permute.xlu0 %928
    %932 = vset.pattern.permute.xlu0 0
    %933 = vperm.xlu0 %932, %v359
    %v934 = vpop.permute.xlu0 %933
    %937 = vset.pattern.permute.xlu0 0
    %938 = vperm.xlu0 %937, %v360
    %v939 = vpop.permute.xlu0 %938
    %942 = vset.pattern.permute.xlu0 0
    %943 = vperm.xlu0 %942, %v361
    %v944 = vpop.permute.xlu0 %943
    %947 = vset.pattern.permute.xlu0 0
    %948 = vperm.xlu0 %947, %v362
    %v949 = vpop.permute.xlu0 %948
    %952 = vset.pattern.permute.xlu0 0
    %953 = vperm.xlu0 %952, %v363
    %v954 = vpop.permute.xlu0 %953
    %957 = vset.pattern.permute.xlu0 0
    %958 = vperm.xlu0 %957, %v364
    %v959 = vpop.permute.xlu0 %958
    %962 = vset.pattern.permute.xlu0 0
    %963 = vperm.xlu0 %962, %v365
    %v964 = vpop.permute.xlu0 %963
    %967 = vset.pattern.permute.xlu0 0
    %968 = vperm.xlu0 %967, %v366
    %v969 = vpop.permute.xlu0 %968
    %972 = vset.pattern.permute.xlu0 0
    %973 = vperm.xlu0 %972, %v367
    %v974 = vpop.permute.xlu0 %973
    %977 = vset.pattern.permute.xlu0 0
    %978 = vperm.xlu0 %977, %v368
    %v979 = vpop.permute.xlu0 %978
    %982 = vset.pattern.permute.xlu0 0
    %983 = vperm.xlu0 %982, %v369
    %v984 = vpop.permute.xlu0 %983
    %987 = vset.pattern.permute.xlu0 0
    %988 = vperm.xlu0 %987, %v370
    %v989 = vpop.permute.xlu0 %988
    %992 = vset.pattern.permute.xlu0 0
    %993 = vperm.xlu0 %992, %v371
    %v994 = vpop.permute.xlu0 %993
    %997 = vset.pattern.permute.xlu0 0
    %998 = vperm.xlu0 %997, %v372
    %v999 = vpop.permute.xlu0 %998
    %1002 = vset.pattern.permute.xlu0 0
    %1003 = vperm.xlu0 %1002, %v373
    %v1004 = vpop.permute.xlu0 %1003
    %1007 = vset.pattern.permute.xlu0 0
    %1008 = vperm.xlu0 %1007, %v374
    %v1009 = vpop.permute.xlu0 %1008
    %1012 = vset.pattern.permute.xlu0 0
    %1013 = vperm.xlu0 %1012, %v375
    %v1014 = vpop.permute.xlu0 %1013
    %v1016 = vlaneseq
    %v1017 = vshrl.u32 %v1016, 7
    %v1018 = vsub.s32 0, %v1017
    %v1019 = vrot.slane %v247, %v1018
    %v1020 = vmul.f32 %v379, %v1019
    %v1021 = vmul.f32 %v384, %v1019
    %v1022 = vmul.f32 %v389, %v1019
    %v1023 = vmul.f32 %v394, %v1019
    %v1024 = vmul.f32 %v399, %v1019
    %v1025 = vmul.f32 %v404, %v1019
    %v1026 = vmul.f32 %v409, %v1019
    %v1027 = vmul.f32 %v414, %v1019
    %v1028 = vmul.f32 %v419, %v1019
    %v1029 = vmul.f32 %v424, %v1019
    %v1030 = vmul.f32 %v429, %v1019
    %v1031 = vmul.f32 %v434, %v1019
    %v1032 = vmul.f32 %v439, %v1019
    %v1033 = vmul.f32 %v444, %v1019
    %v1034 = vmul.f32 %v449, %v1019
    %v1035 = vmul.f32 %v454, %v1019
    %v1036 = vmul.f32 %v459, %v1019
    %v1037 = vmul.f32 %v464, %v1019
    %v1038 = vmul.f32 %v469, %v1019
    %v1039 = vmul.f32 %v474, %v1019
    %v1040 = vmul.f32 %v479, %v1019
    %v1041 = vmul.f32 %v484, %v1019
    %v1042 = vmul.f32 %v489, %v1019
    %v1043 = vmul.f32 %v494, %v1019
    %v1044 = vmul.f32 %v499, %v1019
    %v1045 = vmul.f32 %v504, %v1019
    %v1046 = vmul.f32 %v509, %v1019
    %v1047 = vmul.f32 %v514, %v1019
    %v1048 = vmul.f32 %v519, %v1019
    %v1049 = vmul.f32 %v524, %v1019
    %v1050 = vmul.f32 %v529, %v1019
    %v1051 = vmul.f32 %v534, %v1019
    %v1052 = vmul.f32 %v539, %v1019
    %v1053 = vmul.f32 %v544, %v1019
    %v1054 = vmul.f32 %v549, %v1019
    %v1055 = vmul.f32 %v554, %v1019
    %v1056 = vmul.f32 %v559, %v1019
    %v1057 = vmul.f32 %v564, %v1019
    %v1058 = vmul.f32 %v569, %v1019
    %v1059 = vmul.f32 %v574, %v1019
    %v1060 = vmul.f32 %v579, %v1019
    %v1061 = vmul.f32 %v584, %v1019
    %v1062 = vmul.f32 %v589, %v1019
    %v1063 = vmul.f32 %v594, %v1019
    %v1064 = vmul.f32 %v599, %v1019
    %v1065 = vmul.f32 %v604, %v1019
    %v1066 = vmul.f32 %v609, %v1019
    %v1067 = vmul.f32 %v614, %v1019
    %v1068 = vmul.f32 %v619, %v1019
    %v1069 = vmul.f32 %v624, %v1019
    %v1070 = vmul.f32 %v629, %v1019
    %v1071 = vmul.f32 %v634, %v1019
    %v1072 = vmul.f32 %v639, %v1019
    %v1073 = vmul.f32 %v644, %v1019
    %v1074 = vmul.f32 %v649, %v1019
    %v1075 = vmul.f32 %v654, %v1019
    %v1076 = vmul.f32 %v659, %v1019
    %v1077 = vmul.f32 %v664, %v1019
    %v1078 = vmul.f32 %v669, %v1019
    %v1079 = vmul.f32 %v674, %v1019
    %v1080 = vmul.f32 %v679, %v1019
    %v1081 = vmul.f32 %v684, %v1019
    %v1082 = vmul.f32 %v689, %v1019
    %v1083 = vmul.f32 %v694, %v1019
    %v1084 = vmul.f32 %v699, %v1019
    %v1085 = vmul.f32 %v704, %v1019
    %v1086 = vmul.f32 %v709, %v1019
    %v1087 = vmul.f32 %v714, %v1019
    %v1088 = vmul.f32 %v719, %v1019
    %v1089 = vmul.f32 %v724, %v1019
    %v1090 = vmul.f32 %v729, %v1019
    %v1091 = vmul.f32 %v734, %v1019
    %v1092 = vmul.f32 %v739, %v1019
    %v1093 = vmul.f32 %v744, %v1019
    %v1094 = vmul.f32 %v749, %v1019
    %v1095 = vmul.f32 %v754, %v1019
    %v1096 = vmul.f32 %v759, %v1019
    %v1097 = vmul.f32 %v764, %v1019
    %v1098 = vmul.f32 %v769, %v1019
    %v1099 = vmul.f32 %v774, %v1019
    %v1100 = vmul.f32 %v779, %v1019
    %v1101 = vmul.f32 %v784, %v1019
    %v1102 = vmul.f32 %v789, %v1019
    %v1103 = vmul.f32 %v794, %v1019
    %v1104 = vmul.f32 %v799, %v1019
    %v1105 = vmul.f32 %v804, %v1019
    %v1106 = vmul.f32 %v809, %v1019
    %v1107 = vmul.f32 %v814, %v1019
    %v1108 = vmul.f32 %v819, %v1019
    %v1109 = vmul.f32 %v824, %v1019
    %v1110 = vmul.f32 %v829, %v1019
    %v1111 = vmul.f32 %v834, %v1019
    %v1112 = vmul.f32 %v839, %v1019
    %v1113 = vmul.f32 %v844, %v1019
    %v1114 = vmul.f32 %v849, %v1019
    %v1115 = vmul.f32 %v854, %v1019
    %v1116 = vmul.f32 %v859, %v1019
    %v1117 = vmul.f32 %v864, %v1019
    %v1118 = vmul.f32 %v869, %v1019
    %v1119 = vmul.f32 %v874, %v1019
    %v1120 = vmul.f32 %v879, %v1019
    %v1121 = vmul.f32 %v884, %v1019
    %v1122 = vmul.f32 %v889, %v1019
    %v1123 = vmul.f32 %v894, %v1019
    %v1124 = vmul.f32 %v899, %v1019
    %v1125 = vmul.f32 %v904, %v1019
    %v1126 = vmul.f32 %v909, %v1019
    %v1127 = vmul.f32 %v914, %v1019
    %v1128 = vmul.f32 %v919, %v1019
    %v1129 = vmul.f32 %v924, %v1019
    %v1130 = vmul.f32 %v929, %v1019
    %v1131 = vmul.f32 %v934, %v1019
    %v1132 = vmul.f32 %v939, %v1019
    %v1133 = vmul.f32 %v944, %v1019
    %v1134 = vmul.f32 %v949, %v1019
    %v1135 = vmul.f32 %v954, %v1019
    %v1136 = vmul.f32 %v959, %v1019
    %v1137 = vmul.f32 %v964, %v1019
    %v1138 = vmul.f32 %v969, %v1019
    %v1139 = vmul.f32 %v974, %v1019
    %v1140 = vmul.f32 %v979, %v1019
    %v1141 = vmul.f32 %v984, %v1019
    %v1142 = vmul.f32 %v989, %v1019
    %v1143 = vmul.f32 %v994, %v1019
    %v1144 = vmul.f32 %v999, %v1019
    %v1145 = vmul.f32 %v1004, %v1019
    %v1146 = vmul.f32 %v1009, %v1019
    %v1147 = vmul.f32 %v1014, %v1019
    %v1148 = vadd.f32 %v1020, 0.0
    %v1149 = vadd.f32 %v1021, 0.0
    %v1150 = vadd.f32 %v1022, 0.0
    %v1151 = vadd.f32 %v1023, 0.0
    %v1152 = vadd.f32 %v1024, 0.0
    %v1153 = vadd.f32 %v1025, 0.0
    %v1154 = vadd.f32 %v1026, 0.0
    %v1155 = vadd.f32 %v1027, 0.0
    %v1156 = vadd.f32 %v1028, 0.0
    %v1157 = vadd.f32 %v1029, 0.0
    %v1158 = vadd.f32 %v1030, 0.0
    %v1159 = vadd.f32 %v1031, 0.0
    %v1160 = vadd.f32 %v1032, 0.0
    %v1161 = vadd.f32 %v1033, 0.0
    %v1162 = vadd.f32 %v1034, 0.0
    %v1163 = vadd.f32 %v1035, 0.0
    %v1164 = vadd.f32 %v1036, 0.0
    %v1165 = vadd.f32 %v1037, 0.0
    %v1166 = vadd.f32 %v1038, 0.0
    %v1167 = vadd.f32 %v1039, 0.0
    %v1168 = vadd.f32 %v1040, 0.0
    %v1169 = vadd.f32 %v1041, 0.0
    %v1170 = vadd.f32 %v1042, 0.0
    %v1171 = vadd.f32 %v1043, 0.0
    %v1172 = vadd.f32 %v1044, 0.0
    %v1173 = vadd.f32 %v1045, 0.0
    %v1174 = vadd.f32 %v1046, 0.0
    %v1175 = vadd.f32 %v1047, 0.0
    %v1176 = vadd.f32 %v1048, 0.0
    %v1177 = vadd.f32 %v1049, 0.0
    %v1178 = vadd.f32 %v1050, 0.0
    %v1179 = vadd.f32 %v1051, 0.0
    %v1180 = vadd.f32 %v1052, 0.0
    %v1181 = vadd.f32 %v1053, 0.0
    %v1182 = vadd.f32 %v1054, 0.0
    %v1183 = vadd.f32 %v1055, 0.0
    %v1184 = vadd.f32 %v1056, 0.0
    %v1185 = vadd.f32 %v1057, 0.0
    %v1186 = vadd.f32 %v1058, 0.0
    %v1187 = vadd.f32 %v1059, 0.0
    %v1188 = vadd.f32 %v1060, 0.0
    %v1189 = vadd.f32 %v1061, 0.0
    %v1190 = vadd.f32 %v1062, 0.0
    %v1191 = vadd.f32 %v1063, 0.0
    %v1192 = vadd.f32 %v1064, 0.0
    %v1193 = vadd.f32 %v1065, 0.0
    %v1194 = vadd.f32 %v1066, 0.0
    %v1195 = vadd.f32 %v1067, 0.0
    %v1196 = vadd.f32 %v1068, 0.0
    %v1197 = vadd.f32 %v1069, 0.0
    %v1198 = vadd.f32 %v1070, 0.0
    %v1199 = vadd.f32 %v1071, 0.0
    %v1200 = vadd.f32 %v1072, 0.0
    %v1201 = vadd.f32 %v1073, 0.0
    %v1202 = vadd.f32 %v1074, 0.0
    %v1203 = vadd.f32 %v1075, 0.0
    %v1204 = vadd.f32 %v1076, 0.0
    %v1205 = vadd.f32 %v1077, 0.0
    %v1206 = vadd.f32 %v1078, 0.0
    %v1207 = vadd.f32 %v1079, 0.0
    %v1208 = vadd.f32 %v1080, 0.0
    %v1209 = vadd.f32 %v1081, 0.0
    %v1210 = vadd.f32 %v1082, 0.0
    %v1211 = vadd.f32 %v1083, 0.0
    %v1212 = vadd.f32 %v1084, 0.0
    %v1213 = vadd.f32 %v1085, 0.0
    %v1214 = vadd.f32 %v1086, 0.0
    %v1215 = vadd.f32 %v1087, 0.0
    %v1216 = vadd.f32 %v1088, 0.0
    %v1217 = vadd.f32 %v1089, 0.0
    %v1218 = vadd.f32 %v1090, 0.0
    %v1219 = vadd.f32 %v1091, 0.0
    %v1220 = vadd.f32 %v1092, 0.0
    %v1221 = vadd.f32 %v1093, 0.0
    %v1222 = vadd.f32 %v1094, 0.0
    %v1223 = vadd.f32 %v1095, 0.0
    %v1224 = vadd.f32 %v1096, 0.0
    %v1225 = vadd.f32 %v1097, 0.0
    %v1226 = vadd.f32 %v1098, 0.0
    %v1227 = vadd.f32 %v1099, 0.0
    %v1228 = vadd.f32 %v1100, 0.0
    %v1229 = vadd.f32 %v1101, 0.0
    %v1230 = vadd.f32 %v1102, 0.0
    %v1231 = vadd.f32 %v1103, 0.0
    %v1232 = vadd.f32 %v1104, 0.0
    %v1233 = vadd.f32 %v1105, 0.0
    %v1234 = vadd.f32 %v1106, 0.0
    %v1235 = vadd.f32 %v1107, 0.0
    %v1236 = vadd.f32 %v1108, 0.0
    %v1237 = vadd.f32 %v1109, 0.0
    %v1238 = vadd.f32 %v1110, 0.0
    %v1239 = vadd.f32 %v1111, 0.0
    %v1240 = vadd.f32 %v1112, 0.0
    %v1241 = vadd.f32 %v1113, 0.0
    %v1242 = vadd.f32 %v1114, 0.0
    %v1243 = vadd.f32 %v1115, 0.0
    %v1244 = vadd.f32 %v1116, 0.0
    %v1245 = vadd.f32 %v1117, 0.0
    %v1246 = vadd.f32 %v1118, 0.0
    %v1247 = vadd.f32 %v1119, 0.0
    %v1248 = vadd.f32 %v1120, 0.0
    %v1249 = vadd.f32 %v1121, 0.0
    %v1250 = vadd.f32 %v1122, 0.0
    %v1251 = vadd.f32 %v1123, 0.0
    %v1252 = vadd.f32 %v1124, 0.0
    %v1253 = vadd.f32 %v1125, 0.0
    %v1254 = vadd.f32 %v1126, 0.0
    %v1255 = vadd.f32 %v1127, 0.0
    %v1256 = vadd.f32 %v1128, 0.0
    %v1257 = vadd.f32 %v1129, 0.0
    %v1258 = vadd.f32 %v1130, 0.0
    %v1259 = vadd.f32 %v1131, 0.0
    %v1260 = vadd.f32 %v1132, 0.0
    %v1261 = vadd.f32 %v1133, 0.0
    %v1262 = vadd.f32 %v1134, 0.0
    %v1263 = vadd.f32 %v1135, 0.0
    %v1264 = vadd.f32 %v1136, 0.0
    %v1265 = vadd.f32 %v1137, 0.0
    %v1266 = vadd.f32 %v1138, 0.0
    %v1267 = vadd.f32 %v1139, 0.0
    %v1268 = vadd.f32 %v1140, 0.0
    %v1269 = vadd.f32 %v1141, 0.0
    %v1270 = vadd.f32 %v1142, 0.0
    %v1271 = vadd.f32 %v1143, 0.0
    %v1272 = vadd.f32 %v1144, 0.0
    %v1273 = vadd.f32 %v1145, 0.0
    %v1274 = vadd.f32 %v1146, 0.0
    %v1275 = vadd.f32 %v1147, 0.0
    %1276 = vset.pattern.permute.xlu0 1
    %1277 = vperm.xlu0 %1276, %v248
    %v1278 = vpop.permute.xlu0 %1277
    %1280 = vset.pattern.permute.xlu0 1
    %1281 = vperm.xlu0 %1280, %v249
    %v1282 = vpop.permute.xlu0 %1281
    %1284 = vset.pattern.permute.xlu0 1
    %1285 = vperm.xlu0 %1284, %v250
    %v1286 = vpop.permute.xlu0 %1285
    %1288 = vset.pattern.permute.xlu0 1
    %1289 = vperm.xlu0 %1288, %v251
    %v1290 = vpop.permute.xlu0 %1289
    %1292 = vset.pattern.permute.xlu0 1
    %1293 = vperm.xlu0 %1292, %v252
    %v1294 = vpop.permute.xlu0 %1293
    %1296 = vset.pattern.permute.xlu0 1
    %1297 = vperm.xlu0 %1296, %v253
    %v1298 = vpop.permute.xlu0 %1297
    %1300 = vset.pattern.permute.xlu0 1
    %1301 = vperm.xlu0 %1300, %v254
    %v1302 = vpop.permute.xlu0 %1301
    %1304 = vset.pattern.permute.xlu0 1
    %1305 = vperm.xlu0 %1304, %v255
    %v1306 = vpop.permute.xlu0 %1305
    %1308 = vset.pattern.permute.xlu0 1
    %1309 = vperm.xlu0 %1308, %v256
    %v1310 = vpop.permute.xlu0 %1309
    %1312 = vset.pattern.permute.xlu0 1
    %1313 = vperm.xlu0 %1312, %v257
    %v1314 = vpop.permute.xlu0 %1313
    %1316 = vset.pattern.permute.xlu0 1
    %1317 = vperm.xlu0 %1316, %v258
    %v1318 = vpop.permute.xlu0 %1317
    %1320 = vset.pattern.permute.xlu0 1
    %1321 = vperm.xlu0 %1320, %v259
    %v1322 = vpop.permute.xlu0 %1321
    %1324 = vset.pattern.permute.xlu0 1
    %1325 = vperm.xlu0 %1324, %v260
    %v1326 = vpop.permute.xlu0 %1325
    %1328 = vset.pattern.permute.xlu0 1
    %1329 = vperm.xlu0 %1328, %v261
    %v1330 = vpop.permute.xlu0 %1329
    %1332 = vset.pattern.permute.xlu0 1
    %1333 = vperm.xlu0 %1332, %v262
    %v1334 = vpop.permute.xlu0 %1333
    %1336 = vset.pattern.permute.xlu0 1
    %1337 = vperm.xlu0 %1336, %v263
    %v1338 = vpop.permute.xlu0 %1337
    %1340 = vset.pattern.permute.xlu0 1
    %1341 = vperm.xlu0 %1340, %v264
    %v1342 = vpop.permute.xlu0 %1341
    %1344 = vset.pattern.permute.xlu0 1
    %1345 = vperm.xlu0 %1344, %v265
    %v1346 = vpop.permute.xlu0 %1345
    %1348 = vset.pattern.permute.xlu0 1
    %1349 = vperm.xlu0 %1348, %v266
    %v1350 = vpop.permute.xlu0 %1349
    %1352 = vset.pattern.permute.xlu0 1
    %1353 = vperm.xlu0 %1352, %v267
    %v1354 = vpop.permute.xlu0 %1353
    %1356 = vset.pattern.permute.xlu0 1
    %1357 = vperm.xlu0 %1356, %v268
    %v1358 = vpop.permute.xlu0 %1357
    %1360 = vset.pattern.permute.xlu0 1
    %1361 = vperm.xlu0 %1360, %v269
    %v1362 = vpop.permute.xlu0 %1361
    %1364 = vset.pattern.permute.xlu0 1
    %1365 = vperm.xlu0 %1364, %v270
    %v1366 = vpop.permute.xlu0 %1365
    %1368 = vset.pattern.permute.xlu0 1
    %1369 = vperm.xlu0 %1368, %v271
    %v1370 = vpop.permute.xlu0 %1369
    %1372 = vset.pattern.permute.xlu0 1
    %1373 = vperm.xlu0 %1372, %v272
    %v1374 = vpop.permute.xlu0 %1373
    %1376 = vset.pattern.permute.xlu0 1
    %1377 = vperm.xlu0 %1376, %v273
    %v1378 = vpop.permute.xlu0 %1377
    %1380 = vset.pattern.permute.xlu0 1
    %1381 = vperm.xlu0 %1380, %v274
    %v1382 = vpop.permute.xlu0 %1381
    %1384 = vset.pattern.permute.xlu0 1
    %1385 = vperm.xlu0 %1384, %v275
    %v1386 = vpop.permute.xlu0 %1385
    %1388 = vset.pattern.permute.xlu0 1
    %1389 = vperm.xlu0 %1388, %v276
    %v1390 = vpop.permute.xlu0 %1389
    %1392 = vset.pattern.permute.xlu0 1
    %1393 = vperm.xlu0 %1392, %v277
    %v1394 = vpop.permute.xlu0 %1393
    %1396 = vset.pattern.permute.xlu0 1
    %1397 = vperm.xlu0 %1396, %v278
    %v1398 = vpop.permute.xlu0 %1397
    %1400 = vset.pattern.permute.xlu0 1
    %1401 = vperm.xlu0 %1400, %v279
    %v1402 = vpop.permute.xlu0 %1401
    %1404 = vset.pattern.permute.xlu0 1
    %1405 = vperm.xlu0 %1404, %v280
    %v1406 = vpop.permute.xlu0 %1405
    %1408 = vset.pattern.permute.xlu0 1
    %1409 = vperm.xlu0 %1408, %v281
    %v1410 = vpop.permute.xlu0 %1409
    %1412 = vset.pattern.permute.xlu0 1
    %1413 = vperm.xlu0 %1412, %v282
    %v1414 = vpop.permute.xlu0 %1413
    %1416 = vset.pattern.permute.xlu0 1
    %1417 = vperm.xlu0 %1416, %v283
    %v1418 = vpop.permute.xlu0 %1417
    %1420 = vset.pattern.permute.xlu0 1
    %1421 = vperm.xlu0 %1420, %v284
    %v1422 = vpop.permute.xlu0 %1421
    %1424 = vset.pattern.permute.xlu0 1
    %1425 = vperm.xlu0 %1424, %v285
    %v1426 = vpop.permute.xlu0 %1425
    %1428 = vset.pattern.permute.xlu0 1
    %1429 = vperm.xlu0 %1428, %v286
    %v1430 = vpop.permute.xlu0 %1429
    %1432 = vset.pattern.permute.xlu0 1
    %1433 = vperm.xlu0 %1432, %v287
    %v1434 = vpop.permute.xlu0 %1433
    %1436 = vset.pattern.permute.xlu0 1
    %1437 = vperm.xlu0 %1436, %v288
    %v1438 = vpop.permute.xlu0 %1437
    %1440 = vset.pattern.permute.xlu0 1
    %1441 = vperm.xlu0 %1440, %v289
    %v1442 = vpop.permute.xlu0 %1441
    %1444 = vset.pattern.permute.xlu0 1
    %1445 = vperm.xlu0 %1444, %v290
    %v1446 = vpop.permute.xlu0 %1445
    %1448 = vset.pattern.permute.xlu0 1
    %1449 = vperm.xlu0 %1448, %v291
    %v1450 = vpop.permute.xlu0 %1449
    %1452 = vset.pattern.permute.xlu0 1
    %1453 = vperm.xlu0 %1452, %v292
    %v1454 = vpop.permute.xlu0 %1453
    %1456 = vset.pattern.permute.xlu0 1
    %1457 = vperm.xlu0 %1456, %v293
    %v1458 = vpop.permute.xlu0 %1457
    %1460 = vset.pattern.permute.xlu0 1
    %1461 = vperm.xlu0 %1460, %v294
    %v1462 = vpop.permute.xlu0 %1461
    %1464 = vset.pattern.permute.xlu0 1
    %1465 = vperm.xlu0 %1464, %v295
    %v1466 = vpop.permute.xlu0 %1465
    %1468 = vset.pattern.permute.xlu0 1
    %1469 = vperm.xlu0 %1468, %v296
    %v1470 = vpop.permute.xlu0 %1469
    %1472 = vset.pattern.permute.xlu0 1
    %1473 = vperm.xlu0 %1472, %v297
    %v1474 = vpop.permute.xlu0 %1473
    %1476 = vset.pattern.permute.xlu0 1
    %1477 = vperm.xlu0 %1476, %v298
    %v1478 = vpop.permute.xlu0 %1477
    %1480 = vset.pattern.permute.xlu0 1
    %1481 = vperm.xlu0 %1480, %v299
    %v1482 = vpop.permute.xlu0 %1481
    %1484 = vset.pattern.permute.xlu0 1
    %1485 = vperm.xlu0 %1484, %v300
    %v1486 = vpop.permute.xlu0 %1485
    %1488 = vset.pattern.permute.xlu0 1
    %1489 = vperm.xlu0 %1488, %v301
    %v1490 = vpop.permute.xlu0 %1489
    %1492 = vset.pattern.permute.xlu0 1
    %1493 = vperm.xlu0 %1492, %v302
    %v1494 = vpop.permute.xlu0 %1493
    %1496 = vset.pattern.permute.xlu0 1
    %1497 = vperm.xlu0 %1496, %v303
    %v1498 = vpop.permute.xlu0 %1497
    %1500 = vset.pattern.permute.xlu0 1
    %1501 = vperm.xlu0 %1500, %v304
    %v1502 = vpop.permute.xlu0 %1501
    %1504 = vset.pattern.permute.xlu0 1
    %1505 = vperm.xlu0 %1504, %v305
    %v1506 = vpop.permute.xlu0 %1505
    %1508 = vset.pattern.permute.xlu0 1
    %1509 = vperm.xlu0 %1508, %v306
    %v1510 = vpop.permute.xlu0 %1509
    %1512 = vset.pattern.permute.xlu0 1
    %1513 = vperm.xlu0 %1512, %v307
    %v1514 = vpop.permute.xlu0 %1513
    %1516 = vset.pattern.permute.xlu0 1
    %1517 = vperm.xlu0 %1516, %v308
    %v1518 = vpop.permute.xlu0 %1517
    %1520 = vset.pattern.permute.xlu0 1
    %1521 = vperm.xlu0 %1520, %v309
    %v1522 = vpop.permute.xlu0 %1521
    %1524 = vset.pattern.permute.xlu0 1
    %1525 = vperm.xlu0 %1524, %v310
    %v1526 = vpop.permute.xlu0 %1525
    %1528 = vset.pattern.permute.xlu0 1
    %1529 = vperm.xlu0 %1528, %v311
    %v1530 = vpop.permute.xlu0 %1529
    %1532 = vset.pattern.permute.xlu0 1
    %1533 = vperm.xlu0 %1532, %v312
    %v1534 = vpop.permute.xlu0 %1533
    %1536 = vset.pattern.permute.xlu0 1
    %1537 = vperm.xlu0 %1536, %v313
    %v1538 = vpop.permute.xlu0 %1537
    %1540 = vset.pattern.permute.xlu0 1
    %1541 = vperm.xlu0 %1540, %v314
    %v1542 = vpop.permute.xlu0 %1541
    %1544 = vset.pattern.permute.xlu0 1
    %1545 = vperm.xlu0 %1544, %v315
    %v1546 = vpop.permute.xlu0 %1545
    %1548 = vset.pattern.permute.xlu0 1
    %1549 = vperm.xlu0 %1548, %v316
    %v1550 = vpop.permute.xlu0 %1549
    %1552 = vset.pattern.permute.xlu0 1
    %1553 = vperm.xlu0 %1552, %v317
    %v1554 = vpop.permute.xlu0 %1553
    %1556 = vset.pattern.permute.xlu0 1
    %1557 = vperm.xlu0 %1556, %v318
    %v1558 = vpop.permute.xlu0 %1557
    %1560 = vset.pattern.permute.xlu0 1
    %1561 = vperm.xlu0 %1560, %v319
    %v1562 = vpop.permute.xlu0 %1561
    %1564 = vset.pattern.permute.xlu0 1
    %1565 = vperm.xlu0 %1564, %v320
    %v1566 = vpop.permute.xlu0 %1565
    %1568 = vset.pattern.permute.xlu0 1
    %1569 = vperm.xlu0 %1568, %v321
    %v1570 = vpop.permute.xlu0 %1569
    %1572 = vset.pattern.permute.xlu0 1
    %1573 = vperm.xlu0 %1572, %v322
    %v1574 = vpop.permute.xlu0 %1573
    %1576 = vset.pattern.permute.xlu0 1
    %1577 = vperm.xlu0 %1576, %v323
    %v1578 = vpop.permute.xlu0 %1577
    %1580 = vset.pattern.permute.xlu0 1
    %1581 = vperm.xlu0 %1580, %v324
    %v1582 = vpop.permute.xlu0 %1581
    %1584 = vset.pattern.permute.xlu0 1
    %1585 = vperm.xlu0 %1584, %v325
    %v1586 = vpop.permute.xlu0 %1585
    %1588 = vset.pattern.permute.xlu0 1
    %1589 = vperm.xlu0 %1588, %v326
    %v1590 = vpop.permute.xlu0 %1589
    %1592 = vset.pattern.permute.xlu0 1
    %1593 = vperm.xlu0 %1592, %v327
    %v1594 = vpop.permute.xlu0 %1593
    %1596 = vset.pattern.permute.xlu0 1
    %1597 = vperm.xlu0 %1596, %v328
    %v1598 = vpop.permute.xlu0 %1597
    %1600 = vset.pattern.permute.xlu0 1
    %1601 = vperm.xlu0 %1600, %v329
    %v1602 = vpop.permute.xlu0 %1601
    %1604 = vset.pattern.permute.xlu0 1
    %1605 = vperm.xlu0 %1604, %v330
    %v1606 = vpop.permute.xlu0 %1605
    %1608 = vset.pattern.permute.xlu0 1
    %1609 = vperm.xlu0 %1608, %v331
    %v1610 = vpop.permute.xlu0 %1609
    %1612 = vset.pattern.permute.xlu0 1
    %1613 = vperm.xlu0 %1612, %v332
    %v1614 = vpop.permute.xlu0 %1613
    %1616 = vset.pattern.permute.xlu0 1
    %1617 = vperm.xlu0 %1616, %v333
    %v1618 = vpop.permute.xlu0 %1617
    %1620 = vset.pattern.permute.xlu0 1
    %1621 = vperm.xlu0 %1620, %v334
    %v1622 = vpop.permute.xlu0 %1621
    %1624 = vset.pattern.permute.xlu0 1
    %1625 = vperm.xlu0 %1624, %v335
    %v1626 = vpop.permute.xlu0 %1625
    %1628 = vset.pattern.permute.xlu0 1
    %1629 = vperm.xlu0 %1628, %v336
    %v1630 = vpop.permute.xlu0 %1629
    %1632 = vset.pattern.permute.xlu0 1
    %1633 = vperm.xlu0 %1632, %v337
    %v1634 = vpop.permute.xlu0 %1633
    %1636 = vset.pattern.permute.xlu0 1
    %1637 = vperm.xlu0 %1636, %v338
    %v1638 = vpop.permute.xlu0 %1637
    %1640 = vset.pattern.permute.xlu0 1
    %1641 = vperm.xlu0 %1640, %v339
    %v1642 = vpop.permute.xlu0 %1641
    %1644 = vset.pattern.permute.xlu0 1
    %1645 = vperm.xlu0 %1644, %v340
    %v1646 = vpop.permute.xlu0 %1645
    %1648 = vset.pattern.permute.xlu0 1
    %1649 = vperm.xlu0 %1648, %v341
    %v1650 = vpop.permute.xlu0 %1649
    %1652 = vset.pattern.permute.xlu0 1
    %1653 = vperm.xlu0 %1652, %v342
    %v1654 = vpop.permute.xlu0 %1653
    %1656 = vset.pattern.permute.xlu0 1
    %1657 = vperm.xlu0 %1656, %v343
    %v1658 = vpop.permute.xlu0 %1657
    %1660 = vset.pattern.permute.xlu0 1
    %1661 = vperm.xlu0 %1660, %v344
    %v1662 = vpop.permute.xlu0 %1661
    %1664 = vset.pattern.permute.xlu0 1
    %1665 = vperm.xlu0 %1664, %v345
    %v1666 = vpop.permute.xlu0 %1665
    %1668 = vset.pattern.permute.xlu0 1
    %1669 = vperm.xlu0 %1668, %v346
    %v1670 = vpop.permute.xlu0 %1669
    %1672 = vset.pattern.permute.xlu0 1
    %1673 = vperm.xlu0 %1672, %v347
    %v1674 = vpop.permute.xlu0 %1673
    %1676 = vset.pattern.permute.xlu0 1
    %1677 = vperm.xlu0 %1676, %v348
    %v1678 = vpop.permute.xlu0 %1677
    %1680 = vset.pattern.permute.xlu0 1
    %1681 = vperm.xlu0 %1680, %v349
    %v1682 = vpop.permute.xlu0 %1681
    %1684 = vset.pattern.permute.xlu0 1
    %1685 = vperm.xlu0 %1684, %v350
    %v1686 = vpop.permute.xlu0 %1685
    %1688 = vset.pattern.permute.xlu0 1
    %1689 = vperm.xlu0 %1688, %v351
    %v1690 = vpop.permute.xlu0 %1689
    %1692 = vset.pattern.permute.xlu0 1
    %1693 = vperm.xlu0 %1692, %v352
    %v1694 = vpop.permute.xlu0 %1693
    %1696 = vset.pattern.permute.xlu0 1
    %1697 = vperm.xlu0 %1696, %v353
    %v1698 = vpop.permute.xlu0 %1697
    %1700 = vset.pattern.permute.xlu0 1
    %1701 = vperm.xlu0 %1700, %v354
    %v1702 = vpop.permute.xlu0 %1701
    %1704 = vset.pattern.permute.xlu0 1
    %1705 = vperm.xlu0 %1704, %v355
    %v1706 = vpop.permute.xlu0 %1705
    %1708 = vset.pattern.permute.xlu0 1
    %1709 = vperm.xlu0 %1708, %v356
    %v1710 = vpop.permute.xlu0 %1709
    %1712 = vset.pattern.permute.xlu0 1
    %1713 = vperm.xlu0 %1712, %v357
    %v1714 = vpop.permute.xlu0 %1713
    %1716 = vset.pattern.permute.xlu0 1
    %1717 = vperm.xlu0 %1716, %v358
    %v1718 = vpop.permute.xlu0 %1717
    %1720 = vset.pattern.permute.xlu0 1
    %1721 = vperm.xlu0 %1720, %v359
    %v1722 = vpop.permute.xlu0 %1721
    %1724 = vset.pattern.permute.xlu0 1
    %1725 = vperm.xlu0 %1724, %v360
    %v1726 = vpop.permute.xlu0 %1725
    %1728 = vset.pattern.permute.xlu0 1
    %1729 = vperm.xlu0 %1728, %v361
    %v1730 = vpop.permute.xlu0 %1729
    %1732 = vset.pattern.permute.xlu0 1
    %1733 = vperm.xlu0 %1732, %v362
    %v1734 = vpop.permute.xlu0 %1733
    %1736 = vset.pattern.permute.xlu0 1
    %1737 = vperm.xlu0 %1736, %v363
    %v1738 = vpop.permute.xlu0 %1737
    %1740 = vset.pattern.permute.xlu0 1
    %1741 = vperm.xlu0 %1740, %v364
    %v1742 = vpop.permute.xlu0 %1741
    %1744 = vset.pattern.permute.xlu0 1
    %1745 = vperm.xlu0 %1744, %v365
    %v1746 = vpop.permute.xlu0 %1745
    %1748 = vset.pattern.permute.xlu0 1
    %1749 = vperm.xlu0 %1748, %v366
    %v1750 = vpop.permute.xlu0 %1749
    %1752 = vset.pattern.permute.xlu0 1
    %1753 = vperm.xlu0 %1752, %v367
    %v1754 = vpop.permute.xlu0 %1753
    %1756 = vset.pattern.permute.xlu0 1
    %1757 = vperm.xlu0 %1756, %v368
    %v1758 = vpop.permute.xlu0 %1757
    %1760 = vset.pattern.permute.xlu0 1
    %1761 = vperm.xlu0 %1760, %v369
    %v1762 = vpop.permute.xlu0 %1761
    %1764 = vset.pattern.permute.xlu0 1
    %1765 = vperm.xlu0 %1764, %v370
    %v1766 = vpop.permute.xlu0 %1765
    %1768 = vset.pattern.permute.xlu0 1
    %1769 = vperm.xlu0 %1768, %v371
    %v1770 = vpop.permute.xlu0 %1769
    %1772 = vset.pattern.permute.xlu0 1
    %1773 = vperm.xlu0 %1772, %v372
    %v1774 = vpop.permute.xlu0 %1773
    %1776 = vset.pattern.permute.xlu0 1
    %1777 = vperm.xlu0 %1776, %v373
    %v1778 = vpop.permute.xlu0 %1777
    %1780 = vset.pattern.permute.xlu0 1
    %1781 = vperm.xlu0 %1780, %v374
    %v1782 = vpop.permute.xlu0 %1781
    %1784 = vset.pattern.permute.xlu0 1
    %1785 = vperm.xlu0 %1784, %v375
    %v1786 = vpop.permute.xlu0 %1785
    %v1788 = vlaneseq
    %v1789 = vshrl.u32 %v1788, 7
    %v1790 = vsub.s32 1, %v1789
    %v1791 = vrot.slane %v247, %v1790
    %v1792 = vmul.f32 %v1278, %v1791
    %v1793 = vmul.f32 %v1282, %v1791
    %v1794 = vmul.f32 %v1286, %v1791
    %v1795 = vmul.f32 %v1290, %v1791
    %v1796 = vmul.f32 %v1294, %v1791
    %v1797 = vmul.f32 %v1298, %v1791
    %v1798 = vmul.f32 %v1302, %v1791
    %v1799 = vmul.f32 %v1306, %v1791
    %v1800 = vmul.f32 %v1310, %v1791
    %v1801 = vmul.f32 %v1314, %v1791
    %v1802 = vmul.f32 %v1318, %v1791
    %v1803 = vmul.f32 %v1322, %v1791
    %v1804 = vmul.f32 %v1326, %v1791
    %v1805 = vmul.f32 %v1330, %v1791
    %v1806 = vmul.f32 %v1334, %v1791
    %v1807 = vmul.f32 %v1338, %v1791
    %v1808 = vmul.f32 %v1342, %v1791
    %v1809 = vmul.f32 %v1346, %v1791
    %v1810 = vmul.f32 %v1350, %v1791
    %v1811 = vmul.f32 %v1354, %v1791
    %v1812 = vmul.f32 %v1358, %v1791
    %v1813 = vmul.f32 %v1362, %v1791
    %v1814 = vmul.f32 %v1366, %v1791
    %v1815 = vmul.f32 %v1370, %v1791
    %v1816 = vmul.f32 %v1374, %v1791
    %v1817 = vmul.f32 %v1378, %v1791
    %v1818 = vmul.f32 %v1382, %v1791
    %v1819 = vmul.f32 %v1386, %v1791
    %v1820 = vmul.f32 %v1390, %v1791
    %v1821 = vmul.f32 %v1394, %v1791
    %v1822 = vmul.f32 %v1398, %v1791
    %v1823 = vmul.f32 %v1402, %v1791
    %v1824 = vmul.f32 %v1406, %v1791
    %v1825 = vmul.f32 %v1410, %v1791
    %v1826 = vmul.f32 %v1414, %v1791
    %v1827 = vmul.f32 %v1418, %v1791
    %v1828 = vmul.f32 %v1422, %v1791
    %v1829 = vmul.f32 %v1426, %v1791
    %v1830 = vmul.f32 %v1430, %v1791
    %v1831 = vmul.f32 %v1434, %v1791
    %v1832 = vmul.f32 %v1438, %v1791
    %v1833 = vmul.f32 %v1442, %v1791
    %v1834 = vmul.f32 %v1446, %v1791
    %v1835 = vmul.f32 %v1450, %v1791
    %v1836 = vmul.f32 %v1454, %v1791
    %v1837 = vmul.f32 %v1458, %v1791
    %v1838 = vmul.f32 %v1462, %v1791
    %v1839 = vmul.f32 %v1466, %v1791
    %v1840 = vmul.f32 %v1470, %v1791
    %v1841 = vmul.f32 %v1474, %v1791
    %v1842 = vmul.f32 %v1478, %v1791
    %v1843 = vmul.f32 %v1482, %v1791
    %v1844 = vmul.f32 %v1486, %v1791
    %v1845 = vmul.f32 %v1490, %v1791
    %v1846 = vmul.f32 %v1494, %v1791
    %v1847 = vmul.f32 %v1498, %v1791
    %v1848 = vmul.f32 %v1502, %v1791
    %v1849 = vmul.f32 %v1506, %v1791
    %v1850 = vmul.f32 %v1510, %v1791
    %v1851 = vmul.f32 %v1514, %v1791
    %v1852 = vmul.f32 %v1518, %v1791
    %v1853 = vmul.f32 %v1522, %v1791
    %v1854 = vmul.f32 %v1526, %v1791
    %v1855 = vmul.f32 %v1530, %v1791
    %v1856 = vmul.f32 %v1534, %v1791
    %v1857 = vmul.f32 %v1538, %v1791
    %v1858 = vmul.f32 %v1542, %v1791
    %v1859 = vmul.f32 %v1546, %v1791
    %v1860 = vmul.f32 %v1550, %v1791
    %v1861 = vmul.f32 %v1554, %v1791
    %v1862 = vmul.f32 %v1558, %v1791
    %v1863 = vmul.f32 %v1562, %v1791
    %v1864 = vmul.f32 %v1566, %v1791
    %v1865 = vmul.f32 %v1570, %v1791
    %v1866 = vmul.f32 %v1574, %v1791
    %v1867 = vmul.f32 %v1578, %v1791
    %v1868 = vmul.f32 %v1582, %v1791
    %v1869 = vmul.f32 %v1586, %v1791
    %v1870 = vmul.f32 %v1590, %v1791
    %v1871 = vmul.f32 %v1594, %v1791
    %v1872 = vmul.f32 %v1598, %v1791
    %v1873 = vmul.f32 %v1602, %v1791
    %v1874 = vmul.f32 %v1606, %v1791
    %v1875 = vmul.f32 %v1610, %v1791
    %v1876 = vmul.f32 %v1614, %v1791
    %v1877 = vmul.f32 %v1618, %v1791
    %v1878 = vmul.f32 %v1622, %v1791
    %v1879 = vmul.f32 %v1626, %v1791
    %v1880 = vmul.f32 %v1630, %v1791
    %v1881 = vmul.f32 %v1634, %v1791
    %v1882 = vmul.f32 %v1638, %v1791
    %v1883 = vmul.f32 %v1642, %v1791
    %v1884 = vmul.f32 %v1646, %v1791
    %v1885 = vmul.f32 %v1650, %v1791
    %v1886 = vmul.f32 %v1654, %v1791
    %v1887 = vmul.f32 %v1658, %v1791
    %v1888 = vmul.f32 %v1662, %v1791
    %v1889 = vmul.f32 %v1666, %v1791
    %v1890 = vmul.f32 %v1670, %v1791
    %v1891 = vmul.f32 %v1674, %v1791
    %v1892 = vmul.f32 %v1678, %v1791
    %v1893 = vmul.f32 %v1682, %v1791
    %v1894 = vmul.f32 %v1686, %v1791
    %v1895 = vmul.f32 %v1690, %v1791
    %v1896 = vmul.f32 %v1694, %v1791
    %v1897 = vmul.f32 %v1698, %v1791
    %v1898 = vmul.f32 %v1702, %v1791
    %v1899 = vmul.f32 %v1706, %v1791
    %v1900 = vmul.f32 %v1710, %v1791
    %v1901 = vmul.f32 %v1714, %v1791
    %v1902 = vmul.f32 %v1718, %v1791
    %v1903 = vmul.f32 %v1722, %v1791
    %v1904 = vmul.f32 %v1726, %v1791
    %v1905 = vmul.f32 %v1730, %v1791
    %v1906 = vmul.f32 %v1734, %v1791
    %v1907 = vmul.f32 %v1738, %v1791
    %v1908 = vmul.f32 %v1742, %v1791
    %v1909 = vmul.f32 %v1746, %v1791
    %v1910 = vmul.f32 %v1750, %v1791
    %v1911 = vmul.f32 %v1754, %v1791
    %v1912 = vmul.f32 %v1758, %v1791
    %v1913 = vmul.f32 %v1762, %v1791
    %v1914 = vmul.f32 %v1766, %v1791
    %v1915 = vmul.f32 %v1770, %v1791
    %v1916 = vmul.f32 %v1774, %v1791
    %v1917 = vmul.f32 %v1778, %v1791
    %v1918 = vmul.f32 %v1782, %v1791
    %v1919 = vmul.f32 %v1786, %v1791
    %v1920 = vadd.f32 %v1148, %v1792
    %v1921 = vadd.f32 %v1149, %v1793
    %v1922 = vadd.f32 %v1150, %v1794
    %v1923 = vadd.f32 %v1151, %v1795
    %v1924 = vadd.f32 %v1152, %v1796
    %v1925 = vadd.f32 %v1153, %v1797
    %v1926 = vadd.f32 %v1154, %v1798
    %v1927 = vadd.f32 %v1155, %v1799
    %v1928 = vadd.f32 %v1156, %v1800
    %v1929 = vadd.f32 %v1157, %v1801
    %v1930 = vadd.f32 %v1158, %v1802
    %v1931 = vadd.f32 %v1159, %v1803
    %v1932 = vadd.f32 %v1160, %v1804
    %v1933 = vadd.f32 %v1161, %v1805
    %v1934 = vadd.f32 %v1162, %v1806
    %v1935 = vadd.f32 %v1163, %v1807
    %v1936 = vadd.f32 %v1164, %v1808
    %v1937 = vadd.f32 %v1165, %v1809
    %v1938 = vadd.f32 %v1166, %v1810
    %v1939 = vadd.f32 %v1167, %v1811
    %v1940 = vadd.f32 %v1168, %v1812
    %v1941 = vadd.f32 %v1169, %v1813
    %v1942 = vadd.f32 %v1170, %v1814
    %v1943 = vadd.f32 %v1171, %v1815
    %v1944 = vadd.f32 %v1172, %v1816
    %v1945 = vadd.f32 %v1173, %v1817
    %v1946 = vadd.f32 %v1174, %v1818
    %v1947 = vadd.f32 %v1175, %v1819
    %v1948 = vadd.f32 %v1176, %v1820
    %v1949 = vadd.f32 %v1177, %v1821
    %v1950 = vadd.f32 %v1178, %v1822
    %v1951 = vadd.f32 %v1179, %v1823
    %v1952 = vadd.f32 %v1180, %v1824
    %v1953 = vadd.f32 %v1181, %v1825
    %v1954 = vadd.f32 %v1182, %v1826
    %v1955 = vadd.f32 %v1183, %v1827
    %v1956 = vadd.f32 %v1184, %v1828
    %v1957 = vadd.f32 %v1185, %v1829
    %v1958 = vadd.f32 %v1186, %v1830
    %v1959 = vadd.f32 %v1187, %v1831
    %v1960 = vadd.f32 %v1188, %v1832
    %v1961 = vadd.f32 %v1189, %v1833
    %v1962 = vadd.f32 %v1190, %v1834
    %v1963 = vadd.f32 %v1191, %v1835
    %v1964 = vadd.f32 %v1192, %v1836
    %v1965 = vadd.f32 %v1193, %v1837
    %v1966 = vadd.f32 %v1194, %v1838
    %v1967 = vadd.f32 %v1195, %v1839
    %v1968 = vadd.f32 %v1196, %v1840
    %v1969 = vadd.f32 %v1197, %v1841
    %v1970 = vadd.f32 %v1198, %v1842
    %v1971 = vadd.f32 %v1199, %v1843
    %v1972 = vadd.f32 %v1200, %v1844
    %v1973 = vadd.f32 %v1201, %v1845
    %v1974 = vadd.f32 %v1202, %v1846
    %v1975 = vadd.f32 %v1203, %v1847
    %v1976 = vadd.f32 %v1204, %v1848
    %v1977 = vadd.f32 %v1205, %v1849
    %v1978 = vadd.f32 %v1206, %v1850
    %v1979 = vadd.f32 %v1207, %v1851
    %v1980 = vadd.f32 %v1208, %v1852
    %v1981 = vadd.f32 %v1209, %v1853
    %v1982 = vadd.f32 %v1210, %v1854
    %v1983 = vadd.f32 %v1211, %v1855
    %v1984 = vadd.f32 %v1212, %v1856
    %v1985 = vadd.f32 %v1213, %v1857
    %v1986 = vadd.f32 %v1214, %v1858
    %v1987 = vadd.f32 %v1215, %v1859
    %v1988 = vadd.f32 %v1216, %v1860
    %v1989 = vadd.f32 %v1217, %v1861
    %v1990 = vadd.f32 %v1218, %v1862
    %v1991 = vadd.f32 %v1219, %v1863
    %v1992 = vadd.f32 %v1220, %v1864
    %v1993 = vadd.f32 %v1221, %v1865
    %v1994 = vadd.f32 %v1222, %v1866
    %v1995 = vadd.f32 %v1223, %v1867
    %v1996 = vadd.f32 %v1224, %v1868
    %v1997 = vadd.f32 %v1225, %v1869
    %v1998 = vadd.f32 %v1226, %v1870
    %v1999 = vadd.f32 %v1227, %v1871
    %v2000 = vadd.f32 %v1228, %v1872
    %v2001 = vadd.f32 %v1229, %v1873
    %v2002 = vadd.f32 %v1230, %v1874
    %v2003 = vadd.f32 %v1231, %v1875
    %v2004 = vadd.f32 %v1232, %v1876
    %v2005 = vadd.f32 %v1233, %v1877
    %v2006 = vadd.f32 %v1234, %v1878
    %v2007 = vadd.f32 %v1235, %v1879
    %v2008 = vadd.f32 %v1236, %v1880
    %v2009 = vadd.f32 %v1237, %v1881
    %v2010 = vadd.f32 %v1238, %v1882
    %v2011 = vadd.f32 %v1239, %v1883
    %v2012 = vadd.f32 %v1240, %v1884
    %v2013 = vadd.f32 %v1241, %v1885
    %v2014 = vadd.f32 %v1242, %v1886
    %v2015 = vadd.f32 %v1243, %v1887
    %v2016 = vadd.f32 %v1244, %v1888
    %v2017 = vadd.f32 %v1245, %v1889
    %v2018 = vadd.f32 %v1246, %v1890
    %v2019 = vadd.f32 %v1247, %v1891
    %v2020 = vadd.f32 %v1248, %v1892
    %v2021 = vadd.f32 %v1249, %v1893
    %v2022 = vadd.f32 %v1250, %v1894
    %v2023 = vadd.f32 %v1251, %v1895
    %v2024 = vadd.f32 %v1252, %v1896
    %v2025 = vadd.f32 %v1253, %v1897
    %v2026 = vadd.f32 %v1254, %v1898
    %v2027 = vadd.f32 %v1255, %v1899
    %v2028 = vadd.f32 %v1256, %v1900
    %v2029 = vadd.f32 %v1257, %v1901
    %v2030 = vadd.f32 %v1258, %v1902
    %v2031 = vadd.f32 %v1259, %v1903
    %v2032 = vadd.f32 %v1260, %v1904
    %v2033 = vadd.f32 %v1261, %v1905
    %v2034 = vadd.f32 %v1262, %v1906
    %v2035 = vadd.f32 %v1263, %v1907
    %v2036 = vadd.f32 %v1264, %v1908
    %v2037 = vadd.f32 %v1265, %v1909
    %v2038 = vadd.f32 %v1266, %v1910
    %v2039 = vadd.f32 %v1267, %v1911
    %v2040 = vadd.f32 %v1268, %v1912
    %v2041 = vadd.f32 %v1269, %v1913
    %v2042 = vadd.f32 %v1270, %v1914
    %v2043 = vadd.f32 %v1271, %v1915
    %v2044 = vadd.f32 %v1272, %v1916
    %v2045 = vadd.f32 %v1273, %v1917
    %v2046 = vadd.f32 %v1274, %v1918
    %v2047 = vadd.f32 %v1275, %v1919
    %v2048 = vld [vmem:[#allocation7] sm:$0xff]
    %v2049 = vld [vmem:[#allocation7 + $0x8] sm:$0xff]
    %v2050 = vld [vmem:[#allocation7 + $0x10] sm:$0xff]
    %v2051 = vld [vmem:[#allocation7 + $0x18] sm:$0xff]
    %v2052 = vld [vmem:[#allocation7 + $0x20] sm:$0xff]
    %v2053 = vld [vmem:[#allocation7 + $0x28] sm:$0xff]
    %v2054 = vld [vmem:[#allocation7 + $0x30] sm:$0xff]
    %v2055 = vld [vmem:[#allocation7 + $0x38] sm:$0xff]
    %v2056 = vld [vmem:[#allocation7 + $0x40] sm:$0xff]
    %v2057 = vld [vmem:[#allocation7 + $0x48] sm:$0xff]
    %v2058 = vld [vmem:[#allocation7 + $0x50] sm:$0xff]
    %v2059 = vld [vmem:[#allocation7 + $0x58] sm:$0xff]
    %v2060 = vld [vmem:[#allocation7 + $0x60] sm:$0xff]
    %v2061 = vld [vmem:[#allocation7 + $0x68] sm:$0xff]
    %v2062 = vld [vmem:[#allocation7 + $0x70] sm:$0xff]
    %v2063 = vld [vmem:[#allocation7 + $0x78] sm:$0xff]
    %v2064 = vld [vmem:[#allocation7 + $0x80] sm:$0xff]
    %v2065 = vld [vmem:[#allocation7 + $0x88] sm:$0xff]
    %v2066 = vld [vmem:[#allocation7 + $0x90] sm:$0xff]
    %v2067 = vld [vmem:[#allocation7 + $0x98] sm:$0xff]
    %v2068 = vld [vmem:[#allocation7 + $0xa0] sm:$0xff]
    %v2069 = vld [vmem:[#allocation7 + $0xa8] sm:$0xff]
    %v2070 = vld [vmem:[#allocation7 + $0xb0] sm:$0xff]
    %v2071 = vld [vmem:[#allocation7 + $0xb8] sm:$0xff]
    %v2072 = vld [vmem:[#allocation7 + $0xc0] sm:$0xff]
    %v2073 = vld [vmem:[#allocation7 + $0xc8] sm:$0xff]
    %v2074 = vld [vmem:[#allocation7 + $0xd0] sm:$0xff]
    %v2075 = vld [vmem:[#allocation7 + $0xd8] sm:$0xff]
    %v2076 = vld [vmem:[#allocation7 + $0xe0] sm:$0xff]
    %v2077 = vld [vmem:[#allocation7 + $0xe8] sm:$0xff]
    %v2078 = vld [vmem:[#allocation7 + $0xf0] sm:$0xff]
    %v2079 = vld [vmem:[#allocation7 + $0xf8] sm:$0xff]
    %v2080 = vld [vmem:[#allocation7 + $0x100] sm:$0xff]
    %v2081 = vld [vmem:[#allocation7 + $0x108] sm:$0xff]
    %v2082 = vld [vmem:[#allocation7 + $0x110] sm:$0xff]
    %v2083 = vld [vmem:[#allocation7 + $0x118] sm:$0xff]
    %v2084 = vld [vmem:[#allocation7 + $0x120] sm:$0xff]
    %v2085 = vld [vmem:[#allocation7 + $0x128] sm:$0xff]
    %v2086 = vld [vmem:[#allocation7 + $0x130] sm:$0xff]
    %v2087 = vld [vmem:[#allocation7 + $0x138] sm:$0xff]
    %v2088 = vld [vmem:[#allocation7 + $0x140] sm:$0xff]
    %v2089 = vld [vmem:[#allocation7 + $0x148] sm:$0xff]
    %v2090 = vld [vmem:[#allocation7 + $0x150] sm:$0xff]
    %v2091 = vld [vmem:[#allocation7 + $0x158] sm:$0xff]
    %v2092 = vld [vmem:[#allocation7 + $0x160] sm:$0xff]
    %v2093 = vld [vmem:[#allocation7 + $0x168] sm:$0xff]
    %v2094 = vld [vmem:[#allocation7 + $0x170] sm:$0xff]
    %v2095 = vld [vmem:[#allocation7 + $0x178] sm:$0xff]
    %v2096 = vld [vmem:[#allocation7 + $0x180] sm:$0xff]
    %v2097 = vld [vmem:[#allocation7 + $0x188] sm:$0xff]
    %v2098 = vld [vmem:[#allocation7 + $0x190] sm:$0xff]
    %v2099 = vld [vmem:[#allocation7 + $0x198] sm:$0xff]
    %v2100 = vld [vmem:[#allocation7 + $0x1a0] sm:$0xff]
    %v2101 = vld [vmem:[#allocation7 + $0x1a8] sm:$0xff]
    %v2102 = vld [vmem:[#allocation7 + $0x1b0] sm:$0xff]
    %v2103 = vld [vmem:[#allocation7 + $0x1b8] sm:$0xff]
    %v2104 = vld [vmem:[#allocation7 + $0x1c0] sm:$0xff]
    %v2105 = vld [vmem:[#allocation7 + $0x1c8] sm:$0xff]
    %v2106 = vld [vmem:[#allocation7 + $0x1d0] sm:$0xff]
    %v2107 = vld [vmem:[#allocation7 + $0x1d8] sm:$0xff]
    %v2108 = vld [vmem:[#allocation7 + $0x1e0] sm:$0xff]
    %v2109 = vld [vmem:[#allocation7 + $0x1e8] sm:$0xff]
    %v2110 = vld [vmem:[#allocation7 + $0x1f0] sm:$0xff]
    %v2111 = vld [vmem:[#allocation7 + $0x1f8] sm:$0xff]
    %v2112 = vld [vmem:[#allocation7 + $0x200] sm:$0xff]
    %v2113 = vld [vmem:[#allocation7 + $0x208] sm:$0xff]
    %v2114 = vld [vmem:[#allocation7 + $0x210] sm:$0xff]
    %v2115 = vld [vmem:[#allocation7 + $0x218] sm:$0xff]
    %v2116 = vld [vmem:[#allocation7 + $0x220] sm:$0xff]
    %v2117 = vld [vmem:[#allocation7 + $0x228] sm:$0xff]
    %v2118 = vld [vmem:[#allocation7 + $0x230] sm:$0xff]
    %v2119 = vld [vmem:[#allocation7 + $0x238] sm:$0xff]
    %v2120 = vld [vmem:[#allocation7 + $0x240] sm:$0xff]
    %v2121 = vld [vmem:[#allocation7 + $0x248] sm:$0xff]
    %v2122 = vld [vmem:[#allocation7 + $0x250] sm:$0xff]
    %v2123 = vld [vmem:[#allocation7 + $0x258] sm:$0xff]
    %v2124 = vld [vmem:[#allocation7 + $0x260] sm:$0xff]
    %v2125 = vld [vmem:[#allocation7 + $0x268] sm:$0xff]
    %v2126 = vld [vmem:[#allocation7 + $0x270] sm:$0xff]
    %v2127 = vld [vmem:[#allocation7 + $0x278] sm:$0xff]
    %v2128 = vld [vmem:[#allocation7 + $0x280] sm:$0xff]
    %v2129 = vld [vmem:[#allocation7 + $0x288] sm:$0xff]
    %v2130 = vld [vmem:[#allocation7 + $0x290] sm:$0xff]
    %v2131 = vld [vmem:[#allocation7 + $0x298] sm:$0xff]
    %v2132 = vld [vmem:[#allocation7 + $0x2a0] sm:$0xff]
    %v2133 = vld [vmem:[#allocation7 + $0x2a8] sm:$0xff]
    %v2134 = vld [vmem:[#allocation7 + $0x2b0] sm:$0xff]
    %v2135 = vld [vmem:[#allocation7 + $0x2b8] sm:$0xff]
    %v2136 = vld [vmem:[#allocation7 + $0x2c0] sm:$0xff]
    %v2137 = vld [vmem:[#allocation7 + $0x2c8] sm:$0xff]
    %v2138 = vld [vmem:[#allocation7 + $0x2d0] sm:$0xff]
    %v2139 = vld [vmem:[#allocation7 + $0x2d8] sm:$0xff]
    %v2140 = vld [vmem:[#allocation7 + $0x2e0] sm:$0xff]
    %v2141 = vld [vmem:[#allocation7 + $0x2e8] sm:$0xff]
    %v2142 = vld [vmem:[#allocation7 + $0x2f0] sm:$0xff]
    %v2143 = vld [vmem:[#allocation7 + $0x2f8] sm:$0xff]
    %v2144 = vld [vmem:[#allocation7 + $0x300] sm:$0xff]
    %v2145 = vld [vmem:[#allocation7 + $0x308] sm:$0xff]
    %v2146 = vld [vmem:[#allocation7 + $0x310] sm:$0xff]
    %v2147 = vld [vmem:[#allocation7 + $0x318] sm:$0xff]
    %v2148 = vld [vmem:[#allocation7 + $0x320] sm:$0xff]
    %v2149 = vld [vmem:[#allocation7 + $0x328] sm:$0xff]
    %v2150 = vld [vmem:[#allocation7 + $0x330] sm:$0xff]
    %v2151 = vld [vmem:[#allocation7 + $0x338] sm:$0xff]
    %v2152 = vld [vmem:[#allocation7 + $0x340] sm:$0xff]
    %v2153 = vld [vmem:[#allocation7 + $0x348] sm:$0xff]
    %v2154 = vld [vmem:[#allocation7 + $0x350] sm:$0xff]
    %v2155 = vld [vmem:[#allocation7 + $0x358] sm:$0xff]
    %v2156 = vld [vmem:[#allocation7 + $0x360] sm:$0xff]
    %v2157 = vld [vmem:[#allocation7 + $0x368] sm:$0xff]
    %v2158 = vld [vmem:[#allocation7 + $0x370] sm:$0xff]
    %v2159 = vld [vmem:[#allocation7 + $0x378] sm:$0xff]
    %v2160 = vld [vmem:[#allocation7 + $0x380] sm:$0xff]
    %v2161 = vld [vmem:[#allocation7 + $0x388] sm:$0xff]
    %v2162 = vld [vmem:[#allocation7 + $0x390] sm:$0xff]
    %v2163 = vld [vmem:[#allocation7 + $0x398] sm:$0xff]
    %v2164 = vld [vmem:[#allocation7 + $0x3a0] sm:$0xff]
    %v2165 = vld [vmem:[#allocation7 + $0x3a8] sm:$0xff]
    %v2166 = vld [vmem:[#allocation7 + $0x3b0] sm:$0xff]
    %v2167 = vld [vmem:[#allocation7 + $0x3b8] sm:$0xff]
    %v2168 = vld [vmem:[#allocation7 + $0x3c0] sm:$0xff]
    %v2169 = vld [vmem:[#allocation7 + $0x3c8] sm:$0xff]
    %v2170 = vld [vmem:[#allocation7 + $0x3d0] sm:$0xff]
    %v2171 = vld [vmem:[#allocation7 + $0x3d8] sm:$0xff]
    %v2172 = vld [vmem:[#allocation7 + $0x3e0] sm:$0xff]
    %v2173 = vld [vmem:[#allocation7 + $0x3e8] sm:$0xff]
    %v2174 = vld [vmem:[#allocation7 + $0x3f0] sm:$0xff]
    %v2175 = vld [vmem:[#allocation7 + $0x3f8] sm:$0xff]
    %2177 = vset.pattern.permute.xlu0 0
    %2178 = vperm.xlu0 %2177, %v2048
    %v2179 = vpop.permute.xlu0 %2178
    %2182 = vset.pattern.permute.xlu0 0
    %2183 = vperm.xlu0 %2182, %v2049
    %v2184 = vpop.permute.xlu0 %2183
    %2187 = vset.pattern.permute.xlu0 0
    %2188 = vperm.xlu0 %2187, %v2050
    %v2189 = vpop.permute.xlu0 %2188
    %2192 = vset.pattern.permute.xlu0 0
    %2193 = vperm.xlu0 %2192, %v2051
    %v2194 = vpop.permute.xlu0 %2193
    %2197 = vset.pattern.permute.xlu0 0
    %2198 = vperm.xlu0 %2197, %v2052
    %v2199 = vpop.permute.xlu0 %2198
    %2202 = vset.pattern.permute.xlu0 0
    %2203 = vperm.xlu0 %2202, %v2053
    %v2204 = vpop.permute.xlu0 %2203
    %2207 = vset.pattern.permute.xlu0 0
    %2208 = vperm.xlu0 %2207, %v2054
    %v2209 = vpop.permute.xlu0 %2208
    %2212 = vset.pattern.permute.xlu0 0
    %2213 = vperm.xlu0 %2212, %v2055
    %v2214 = vpop.permute.xlu0 %2213
    %2217 = vset.pattern.permute.xlu0 0
    %2218 = vperm.xlu0 %2217, %v2056
    %v2219 = vpop.permute.xlu0 %2218
    %2222 = vset.pattern.permute.xlu0 0
    %2223 = vperm.xlu0 %2222, %v2057
    %v2224 = vpop.permute.xlu0 %2223
    %2227 = vset.pattern.permute.xlu0 0
    %2228 = vperm.xlu0 %2227, %v2058
    %v2229 = vpop.permute.xlu0 %2228
    %2232 = vset.pattern.permute.xlu0 0
    %2233 = vperm.xlu0 %2232, %v2059
    %v2234 = vpop.permute.xlu0 %2233
    %2237 = vset.pattern.permute.xlu0 0
    %2238 = vperm.xlu0 %2237, %v2060
    %v2239 = vpop.permute.xlu0 %2238
    %2242 = vset.pattern.permute.xlu0 0
    %2243 = vperm.xlu0 %2242, %v2061
    %v2244 = vpop.permute.xlu0 %2243
    %2247 = vset.pattern.permute.xlu0 0
    %2248 = vperm.xlu0 %2247, %v2062
    %v2249 = vpop.permute.xlu0 %2248
    %2252 = vset.pattern.permute.xlu0 0
    %2253 = vperm.xlu0 %2252, %v2063
    %v2254 = vpop.permute.xlu0 %2253
    %2257 = vset.pattern.permute.xlu0 0
    %2258 = vperm.xlu0 %2257, %v2064
    %v2259 = vpop.permute.xlu0 %2258
    %2262 = vset.pattern.permute.xlu0 0
    %2263 = vperm.xlu0 %2262, %v2065
    %v2264 = vpop.permute.xlu0 %2263
    %2267 = vset.pattern.permute.xlu0 0
    %2268 = vperm.xlu0 %2267, %v2066
    %v2269 = vpop.permute.xlu0 %2268
    %2272 = vset.pattern.permute.xlu0 0
    %2273 = vperm.xlu0 %2272, %v2067
    %v2274 = vpop.permute.xlu0 %2273
    %2277 = vset.pattern.permute.xlu0 0
    %2278 = vperm.xlu0 %2277, %v2068
    %v2279 = vpop.permute.xlu0 %2278
    %2282 = vset.pattern.permute.xlu0 0
    %2283 = vperm.xlu0 %2282, %v2069
    %v2284 = vpop.permute.xlu0 %2283
    %2287 = vset.pattern.permute.xlu0 0
    %2288 = vperm.xlu0 %2287, %v2070
    %v2289 = vpop.permute.xlu0 %2288
    %2292 = vset.pattern.permute.xlu0 0
    %2293 = vperm.xlu0 %2292, %v2071
    %v2294 = vpop.permute.xlu0 %2293
    %2297 = vset.pattern.permute.xlu0 0
    %2298 = vperm.xlu0 %2297, %v2072
    %v2299 = vpop.permute.xlu0 %2298
    %2302 = vset.pattern.permute.xlu0 0
    %2303 = vperm.xlu0 %2302, %v2073
    %v2304 = vpop.permute.xlu0 %2303
    %2307 = vset.pattern.permute.xlu0 0
    %2308 = vperm.xlu0 %2307, %v2074
    %v2309 = vpop.permute.xlu0 %2308
    %2312 = vset.pattern.permute.xlu0 0
    %2313 = vperm.xlu0 %2312, %v2075
    %v2314 = vpop.permute.xlu0 %2313
    %2317 = vset.pattern.permute.xlu0 0
    %2318 = vperm.xlu0 %2317, %v2076
    %v2319 = vpop.permute.xlu0 %2318
    %2322 = vset.pattern.permute.xlu0 0
    %2323 = vperm.xlu0 %2322, %v2077
    %v2324 = vpop.permute.xlu0 %2323
    %2327 = vset.pattern.permute.xlu0 0
    %2328 = vperm.xlu0 %2327, %v2078
    %v2329 = vpop.permute.xlu0 %2328
    %2332 = vset.pattern.permute.xlu0 0
    %2333 = vperm.xlu0 %2332, %v2079
    %v2334 = vpop.permute.xlu0 %2333
    %2337 = vset.pattern.permute.xlu0 0
    %2338 = vperm.xlu0 %2337, %v2080
    %v2339 = vpop.permute.xlu0 %2338
    %2342 = vset.pattern.permute.xlu0 0
    %2343 = vperm.xlu0 %2342, %v2081
    %v2344 = vpop.permute.xlu0 %2343
    %2347 = vset.pattern.permute.xlu0 0
    %2348 = vperm.xlu0 %2347, %v2082
    %v2349 = vpop.permute.xlu0 %2348
    %2352 = vset.pattern.permute.xlu0 0
    %2353 = vperm.xlu0 %2352, %v2083
    %v2354 = vpop.permute.xlu0 %2353
    %2357 = vset.pattern.permute.xlu0 0
    %2358 = vperm.xlu0 %2357, %v2084
    %v2359 = vpop.permute.xlu0 %2358
    %2362 = vset.pattern.permute.xlu0 0
    %2363 = vperm.xlu0 %2362, %v2085
    %v2364 = vpop.permute.xlu0 %2363
    %2367 = vset.pattern.permute.xlu0 0
    %2368 = vperm.xlu0 %2367, %v2086
    %v2369 = vpop.permute.xlu0 %2368
    %2372 = vset.pattern.permute.xlu0 0
    %2373 = vperm.xlu0 %2372, %v2087
    %v2374 = vpop.permute.xlu0 %2373
    %2377 = vset.pattern.permute.xlu0 0
    %2378 = vperm.xlu0 %2377, %v2088
    %v2379 = vpop.permute.xlu0 %2378
    %2382 = vset.pattern.permute.xlu0 0
    %2383 = vperm.xlu0 %2382, %v2089
    %v2384 = vpop.permute.xlu0 %2383
    %2387 = vset.pattern.permute.xlu0 0
    %2388 = vperm.xlu0 %2387, %v2090
    %v2389 = vpop.permute.xlu0 %2388
    %2392 = vset.pattern.permute.xlu0 0
    %2393 = vperm.xlu0 %2392, %v2091
    %v2394 = vpop.permute.xlu0 %2393
    %2397 = vset.pattern.permute.xlu0 0
    %2398 = vperm.xlu0 %2397, %v2092
    %v2399 = vpop.permute.xlu0 %2398
    %2402 = vset.pattern.permute.xlu0 0
    %2403 = vperm.xlu0 %2402, %v2093
    %v2404 = vpop.permute.xlu0 %2403
    %2407 = vset.pattern.permute.xlu0 0
    %2408 = vperm.xlu0 %2407, %v2094
    %v2409 = vpop.permute.xlu0 %2408
    %2412 = vset.pattern.permute.xlu0 0
    %2413 = vperm.xlu0 %2412, %v2095
    %v2414 = vpop.permute.xlu0 %2413
    %2417 = vset.pattern.permute.xlu0 0
    %2418 = vperm.xlu0 %2417, %v2096
    %v2419 = vpop.permute.xlu0 %2418
    %2422 = vset.pattern.permute.xlu0 0
    %2423 = vperm.xlu0 %2422, %v2097
    %v2424 = vpop.permute.xlu0 %2423
    %2427 = vset.pattern.permute.xlu0 0
    %2428 = vperm.xlu0 %2427, %v2098
    %v2429 = vpop.permute.xlu0 %2428
    %2432 = vset.pattern.permute.xlu0 0
    %2433 = vperm.xlu0 %2432, %v2099
    %v2434 = vpop.permute.xlu0 %2433
    %2437 = vset.pattern.permute.xlu0 0
    %2438 = vperm.xlu0 %2437, %v2100
    %v2439 = vpop.permute.xlu0 %2438
    %2442 = vset.pattern.permute.xlu0 0
    %2443 = vperm.xlu0 %2442, %v2101
    %v2444 = vpop.permute.xlu0 %2443
    %2447 = vset.pattern.permute.xlu0 0
    %2448 = vperm.xlu0 %2447, %v2102
    %v2449 = vpop.permute.xlu0 %2448
    %2452 = vset.pattern.permute.xlu0 0
    %2453 = vperm.xlu0 %2452, %v2103
    %v2454 = vpop.permute.xlu0 %2453
    %2457 = vset.pattern.permute.xlu0 0
    %2458 = vperm.xlu0 %2457, %v2104
    %v2459 = vpop.permute.xlu0 %2458
    %2462 = vset.pattern.permute.xlu0 0
    %2463 = vperm.xlu0 %2462, %v2105
    %v2464 = vpop.permute.xlu0 %2463
    %2467 = vset.pattern.permute.xlu0 0
    %2468 = vperm.xlu0 %2467, %v2106
    %v2469 = vpop.permute.xlu0 %2468
    %2472 = vset.pattern.permute.xlu0 0
    %2473 = vperm.xlu0 %2472, %v2107
    %v2474 = vpop.permute.xlu0 %2473
    %2477 = vset.pattern.permute.xlu0 0
    %2478 = vperm.xlu0 %2477, %v2108
    %v2479 = vpop.permute.xlu0 %2478
    %2482 = vset.pattern.permute.xlu0 0
    %2483 = vperm.xlu0 %2482, %v2109
    %v2484 = vpop.permute.xlu0 %2483
    %2487 = vset.pattern.permute.xlu0 0
    %2488 = vperm.xlu0 %2487, %v2110
    %v2489 = vpop.permute.xlu0 %2488
    %2492 = vset.pattern.permute.xlu0 0
    %2493 = vperm.xlu0 %2492, %v2111
    %v2494 = vpop.permute.xlu0 %2493
    %2497 = vset.pattern.permute.xlu0 0
    %2498 = vperm.xlu0 %2497, %v2112
    %v2499 = vpop.permute.xlu0 %2498
    %2502 = vset.pattern.permute.xlu0 0
    %2503 = vperm.xlu0 %2502, %v2113
    %v2504 = vpop.permute.xlu0 %2503
    %2507 = vset.pattern.permute.xlu0 0
    %2508 = vperm.xlu0 %2507, %v2114
    %v2509 = vpop.permute.xlu0 %2508
    %2512 = vset.pattern.permute.xlu0 0
    %2513 = vperm.xlu0 %2512, %v2115
    %v2514 = vpop.permute.xlu0 %2513
    %2517 = vset.pattern.permute.xlu0 0
    %2518 = vperm.xlu0 %2517, %v2116
    %v2519 = vpop.permute.xlu0 %2518
    %2522 = vset.pattern.permute.xlu0 0
    %2523 = vperm.xlu0 %2522, %v2117
    %v2524 = vpop.permute.xlu0 %2523
    %2527 = vset.pattern.permute.xlu0 0
    %2528 = vperm.xlu0 %2527, %v2118
    %v2529 = vpop.permute.xlu0 %2528
    %2532 = vset.pattern.permute.xlu0 0
    %2533 = vperm.xlu0 %2532, %v2119
    %v2534 = vpop.permute.xlu0 %2533
    %2537 = vset.pattern.permute.xlu0 0
    %2538 = vperm.xlu0 %2537, %v2120
    %v2539 = vpop.permute.xlu0 %2538
    %2542 = vset.pattern.permute.xlu0 0
    %2543 = vperm.xlu0 %2542, %v2121
    %v2544 = vpop.permute.xlu0 %2543
    %2547 = vset.pattern.permute.xlu0 0
    %2548 = vperm.xlu0 %2547, %v2122
    %v2549 = vpop.permute.xlu0 %2548
    %2552 = vset.pattern.permute.xlu0 0
    %2553 = vperm.xlu0 %2552, %v2123
    %v2554 = vpop.permute.xlu0 %2553
    %2557 = vset.pattern.permute.xlu0 0
    %2558 = vperm.xlu0 %2557, %v2124
    %v2559 = vpop.permute.xlu0 %2558
    %2562 = vset.pattern.permute.xlu0 0
    %2563 = vperm.xlu0 %2562, %v2125
    %v2564 = vpop.permute.xlu0 %2563
    %2567 = vset.pattern.permute.xlu0 0
    %2568 = vperm.xlu0 %2567, %v2126
    %v2569 = vpop.permute.xlu0 %2568
    %2572 = vset.pattern.permute.xlu0 0
    %2573 = vperm.xlu0 %2572, %v2127
    %v2574 = vpop.permute.xlu0 %2573
    %2577 = vset.pattern.permute.xlu0 0
    %2578 = vperm.xlu0 %2577, %v2128
    %v2579 = vpop.permute.xlu0 %2578
    %2582 = vset.pattern.permute.xlu0 0
    %2583 = vperm.xlu0 %2582, %v2129
    %v2584 = vpop.permute.xlu0 %2583
    %2587 = vset.pattern.permute.xlu0 0
    %2588 = vperm.xlu0 %2587, %v2130
    %v2589 = vpop.permute.xlu0 %2588
    %2592 = vset.pattern.permute.xlu0 0
    %2593 = vperm.xlu0 %2592, %v2131
    %v2594 = vpop.permute.xlu0 %2593
    %2597 = vset.pattern.permute.xlu0 0
    %2598 = vperm.xlu0 %2597, %v2132
    %v2599 = vpop.permute.xlu0 %2598
    %2602 = vset.pattern.permute.xlu0 0
    %2603 = vperm.xlu0 %2602, %v2133
    %v2604 = vpop.permute.xlu0 %2603
    %2607 = vset.pattern.permute.xlu0 0
    %2608 = vperm.xlu0 %2607, %v2134
    %v2609 = vpop.permute.xlu0 %2608
    %2612 = vset.pattern.permute.xlu0 0
    %2613 = vperm.xlu0 %2612, %v2135
    %v2614 = vpop.permute.xlu0 %2613
    %2617 = vset.pattern.permute.xlu0 0
    %2618 = vperm.xlu0 %2617, %v2136
    %v2619 = vpop.permute.xlu0 %2618
    %2622 = vset.pattern.permute.xlu0 0
    %2623 = vperm.xlu0 %2622, %v2137
    %v2624 = vpop.permute.xlu0 %2623
    %2627 = vset.pattern.permute.xlu0 0
    %2628 = vperm.xlu0 %2627, %v2138
    %v2629 = vpop.permute.xlu0 %2628
    %2632 = vset.pattern.permute.xlu0 0
    %2633 = vperm.xlu0 %2632, %v2139
    %v2634 = vpop.permute.xlu0 %2633
    %2637 = vset.pattern.permute.xlu0 0
    %2638 = vperm.xlu0 %2637, %v2140
    %v2639 = vpop.permute.xlu0 %2638
    %2642 = vset.pattern.permute.xlu0 0
    %2643 = vperm.xlu0 %2642, %v2141
    %v2644 = vpop.permute.xlu0 %2643
    %2647 = vset.pattern.permute.xlu0 0
    %2648 = vperm.xlu0 %2647, %v2142
    %v2649 = vpop.permute.xlu0 %2648
    %2652 = vset.pattern.permute.xlu0 0
    %2653 = vperm.xlu0 %2652, %v2143
    %v2654 = vpop.permute.xlu0 %2653
    %2657 = vset.pattern.permute.xlu0 0
    %2658 = vperm.xlu0 %2657, %v2144
    %v2659 = vpop.permute.xlu0 %2658
    %2662 = vset.pattern.permute.xlu0 0
    %2663 = vperm.xlu0 %2662, %v2145
    %v2664 = vpop.permute.xlu0 %2663
    %2667 = vset.pattern.permute.xlu0 0
    %2668 = vperm.xlu0 %2667, %v2146
    %v2669 = vpop.permute.xlu0 %2668
    %2672 = vset.pattern.permute.xlu0 0
    %2673 = vperm.xlu0 %2672, %v2147
    %v2674 = vpop.permute.xlu0 %2673
    %2677 = vset.pattern.permute.xlu0 0
    %2678 = vperm.xlu0 %2677, %v2148
    %v2679 = vpop.permute.xlu0 %2678
    %2682 = vset.pattern.permute.xlu0 0
    %2683 = vperm.xlu0 %2682, %v2149
    %v2684 = vpop.permute.xlu0 %2683
    %2687 = vset.pattern.permute.xlu0 0
    %2688 = vperm.xlu0 %2687, %v2150
    %v2689 = vpop.permute.xlu0 %2688
    %2692 = vset.pattern.permute.xlu0 0
    %2693 = vperm.xlu0 %2692, %v2151
    %v2694 = vpop.permute.xlu0 %2693
    %2697 = vset.pattern.permute.xlu0 0
    %2698 = vperm.xlu0 %2697, %v2152
    %v2699 = vpop.permute.xlu0 %2698
    %2702 = vset.pattern.permute.xlu0 0
    %2703 = vperm.xlu0 %2702, %v2153
    %v2704 = vpop.permute.xlu0 %2703
    %2707 = vset.pattern.permute.xlu0 0
    %2708 = vperm.xlu0 %2707, %v2154
    %v2709 = vpop.permute.xlu0 %2708
    %2712 = vset.pattern.permute.xlu0 0
    %2713 = vperm.xlu0 %2712, %v2155
    %v2714 = vpop.permute.xlu0 %2713
    %2717 = vset.pattern.permute.xlu0 0
    %2718 = vperm.xlu0 %2717, %v2156
    %v2719 = vpop.permute.xlu0 %2718
    %2722 = vset.pattern.permute.xlu0 0
    %2723 = vperm.xlu0 %2722, %v2157
    %v2724 = vpop.permute.xlu0 %2723
    %2727 = vset.pattern.permute.xlu0 0
    %2728 = vperm.xlu0 %2727, %v2158
    %v2729 = vpop.permute.xlu0 %2728
    %2732 = vset.pattern.permute.xlu0 0
    %2733 = vperm.xlu0 %2732, %v2159
    %v2734 = vpop.permute.xlu0 %2733
    %2737 = vset.pattern.permute.xlu0 0
    %2738 = vperm.xlu0 %2737, %v2160
    %v2739 = vpop.permute.xlu0 %2738
    %2742 = vset.pattern.permute.xlu0 0
    %2743 = vperm.xlu0 %2742, %v2161
    %v2744 = vpop.permute.xlu0 %2743
    %2747 = vset.pattern.permute.xlu0 0
    %2748 = vperm.xlu0 %2747, %v2162
    %v2749 = vpop.permute.xlu0 %2748
    %2752 = vset.pattern.permute.xlu0 0
    %2753 = vperm.xlu0 %2752, %v2163
    %v2754 = vpop.permute.xlu0 %2753
    %2757 = vset.pattern.permute.xlu0 0
    %2758 = vperm.xlu0 %2757, %v2164
    %v2759 = vpop.permute.xlu0 %2758
    %2762 = vset.pattern.permute.xlu0 0
    %2763 = vperm.xlu0 %2762, %v2165
    %v2764 = vpop.permute.xlu0 %2763
    %2767 = vset.pattern.permute.xlu0 0
    %2768 = vperm.xlu0 %2767, %v2166
    %v2769 = vpop.permute.xlu0 %2768
    %2772 = vset.pattern.permute.xlu0 0
    %2773 = vperm.xlu0 %2772, %v2167
    %v2774 = vpop.permute.xlu0 %2773
    %2777 = vset.pattern.permute.xlu0 0
    %2778 = vperm.xlu0 %2777, %v2168
    %v2779 = vpop.permute.xlu0 %2778
    %2782 = vset.pattern.permute.xlu0 0
    %2783 = vperm.xlu0 %2782, %v2169
    %v2784 = vpop.permute.xlu0 %2783
    %2787 = vset.pattern.permute.xlu0 0
    %2788 = vperm.xlu0 %2787, %v2170
    %v2789 = vpop.permute.xlu0 %2788
    %2792 = vset.pattern.permute.xlu0 0
    %2793 = vperm.xlu0 %2792, %v2171
    %v2794 = vpop.permute.xlu0 %2793
    %2797 = vset.pattern.permute.xlu0 0
    %2798 = vperm.xlu0 %2797, %v2172
    %v2799 = vpop.permute.xlu0 %2798
    %2802 = vset.pattern.permute.xlu0 0
    %2803 = vperm.xlu0 %2802, %v2173
    %v2804 = vpop.permute.xlu0 %2803
    %2807 = vset.pattern.permute.xlu0 0
    %2808 = vperm.xlu0 %2807, %v2174
    %v2809 = vpop.permute.xlu0 %2808
    %2812 = vset.pattern.permute.xlu0 0
    %2813 = vperm.xlu0 %2812, %v2175
    %v2814 = vpop.permute.xlu0 %2813
    %v2816 = vadd.f32 %v1920, %v2179
    %v2817 = vadd.f32 %v1921, %v2184
    %v2818 = vadd.f32 %v1922, %v2189
    %v2819 = vadd.f32 %v1923, %v2194
    %v2820 = vadd.f32 %v1924, %v2199
    %v2821 = vadd.f32 %v1925, %v2204
    %v2822 = vadd.f32 %v1926, %v2209
    %v2823 = vadd.f32 %v1927, %v2214
    %v2824 = vadd.f32 %v1928, %v2219
    %v2825 = vadd.f32 %v1929, %v2224
    %v2826 = vadd.f32 %v1930, %v2229
    %v2827 = vadd.f32 %v1931, %v2234
    %v2828 = vadd.f32 %v1932, %v2239
    %v2829 = vadd.f32 %v1933, %v2244
    %v2830 = vadd.f32 %v1934, %v2249
    %v2831 = vadd.f32 %v1935, %v2254
    %v2832 = vadd.f32 %v1936, %v2259
    %v2833 = vadd.f32 %v1937, %v2264
    %v2834 = vadd.f32 %v1938, %v2269
    %v2835 = vadd.f32 %v1939, %v2274
    %v2836 = vadd.f32 %v1940, %v2279
    %v2837 = vadd.f32 %v1941, %v2284
    %v2838 = vadd.f32 %v1942, %v2289
    %v2839 = vadd.f32 %v1943, %v2294
    %v2840 = vadd.f32 %v1944, %v2299
    %v2841 = vadd.f32 %v1945, %v2304
    %v2842 = vadd.f32 %v1946, %v2309
    %v2843 = vadd.f32 %v1947, %v2314
    %v2844 = vadd.f32 %v1948, %v2319
    %v2845 = vadd.f32 %v1949, %v2324
    %v2846 = vadd.f32 %v1950, %v2329
    %v2847 = vadd.f32 %v1951, %v2334
    %v2848 = vadd.f32 %v1952, %v2339
    %v2849 = vadd.f32 %v1953, %v2344
    %v2850 = vadd.f32 %v1954, %v2349
    %v2851 = vadd.f32 %v1955, %v2354
    %v2852 = vadd.f32 %v1956, %v2359
    %v2853 = vadd.f32 %v1957, %v2364
    %v2854 = vadd.f32 %v1958, %v2369
    %v2855 = vadd.f32 %v1959, %v2374
    %v2856 = vadd.f32 %v1960, %v2379
    %v2857 = vadd.f32 %v1961, %v2384
    %v2858 = vadd.f32 %v1962, %v2389
    %v2859 = vadd.f32 %v1963, %v2394
    %v2860 = vadd.f32 %v1964, %v2399
    %v2861 = vadd.f32 %v1965, %v2404
    %v2862 = vadd.f32 %v1966, %v2409
    %v2863 = vadd.f32 %v1967, %v2414
    %v2864 = vadd.f32 %v1968, %v2419
    %v2865 = vadd.f32 %v1969, %v2424
    %v2866 = vadd.f32 %v1970, %v2429
    %v2867 = vadd.f32 %v1971, %v2434
    %v2868 = vadd.f32 %v1972, %v2439
    %v2869 = vadd.f32 %v1973, %v2444
    %v2870 = vadd.f32 %v1974, %v2449
    %v2871 = vadd.f32 %v1975, %v2454
    %v2872 = vadd.f32 %v1976, %v2459
    %v2873 = vadd.f32 %v1977, %v2464
    %v2874 = vadd.f32 %v1978, %v2469
    %v2875 = vadd.f32 %v1979, %v2474
    %v2876 = vadd.f32 %v1980, %v2479
    %v2877 = vadd.f32 %v1981, %v2484
    %v2878 = vadd.f32 %v1982, %v2489
    %v2879 = vadd.f32 %v1983, %v2494
    %v2880 = vadd.f32 %v1984, %v2499
    %v2881 = vadd.f32 %v1985, %v2504
    %v2882 = vadd.f32 %v1986, %v2509
    %v2883 = vadd.f32 %v1987, %v2514
    %v2884 = vadd.f32 %v1988, %v2519
    %v2885 = vadd.f32 %v1989, %v2524
    %v2886 = vadd.f32 %v1990, %v2529
    %v2887 = vadd.f32 %v1991, %v2534
    %v2888 = vadd.f32 %v1992, %v2539
    %v2889 = vadd.f32 %v1993, %v2544
    %v2890 = vadd.f32 %v1994, %v2549
    %v2891 = vadd.f32 %v1995, %v2554
    %v2892 = vadd.f32 %v1996, %v2559
    %v2893 = vadd.f32 %v1997, %v2564
    %v2894 = vadd.f32 %v1998, %v2569
    %v2895 = vadd.f32 %v1999, %v2574
    %v2896 = vadd.f32 %v2000, %v2579
    %v2897 = vadd.f32 %v2001, %v2584
    %v2898 = vadd.f32 %v2002, %v2589
    %v2899 = vadd.f32 %v2003, %v2594
    %v2900 = vadd.f32 %v2004, %v2599
    %v2901 = vadd.f32 %v2005, %v2604
    %v2902 = vadd.f32 %v2006, %v2609
    %v2903 = vadd.f32 %v2007, %v2614
    %v2904 = vadd.f32 %v2008, %v2619
    %v2905 = vadd.f32 %v2009, %v2624
    %v2906 = vadd.f32 %v2010, %v2629
    %v2907 = vadd.f32 %v2011, %v2634
    %v2908 = vadd.f32 %v2012, %v2639
    %v2909 = vadd.f32 %v2013, %v2644
    %v2910 = vadd.f32 %v2014, %v2649
    %v2911 = vadd.f32 %v2015, %v2654
    %v2912 = vadd.f32 %v2016, %v2659
    %v2913 = vadd.f32 %v2017, %v2664
    %v2914 = vadd.f32 %v2018, %v2669
    %v2915 = vadd.f32 %v2019, %v2674
    %v2916 = vadd.f32 %v2020, %v2679
    %v2917 = vadd.f32 %v2021, %v2684
    %v2918 = vadd.f32 %v2022, %v2689
    %v2919 = vadd.f32 %v2023, %v2694
    %v2920 = vadd.f32 %v2024, %v2699
    %v2921 = vadd.f32 %v2025, %v2704
    %v2922 = vadd.f32 %v2026, %v2709
    %v2923 = vadd.f32 %v2027, %v2714
    %v2924 = vadd.f32 %v2028, %v2719
    %v2925 = vadd.f32 %v2029, %v2724
    %v2926 = vadd.f32 %v2030, %v2729
    %v2927 = vadd.f32 %v2031, %v2734
    %v2928 = vadd.f32 %v2032, %v2739
    %v2929 = vadd.f32 %v2033, %v2744
    %v2930 = vadd.f32 %v2034, %v2749
    %v2931 = vadd.f32 %v2035, %v2754
    %v2932 = vadd.f32 %v2036, %v2759
    %v2933 = vadd.f32 %v2037, %v2764
    %v2934 = vadd.f32 %v2038, %v2769
    %v2935 = vadd.f32 %v2039, %v2774
    %v2936 = vadd.f32 %v2040, %v2779
    %v2937 = vadd.f32 %v2041, %v2784
    %v2938 = vadd.f32 %v2042, %v2789
    %v2939 = vadd.f32 %v2043, %v2794
    %v2940 = vadd.f32 %v2044, %v2799
    %v2941 = vadd.f32 %v2045, %v2804
    %v2942 = vadd.f32 %v2046, %v2809
    %v2943 = vadd.f32 %v2047, %v2814
    %vm2944 = vcmp.gt.f32.partialorder %v2816, 0.0
    %vm2945 = vcmp.gt.f32.partialorder %v2817, 0.0
    %vm2946 = vcmp.gt.f32.partialorder %v2818, 0.0
    %vm2947 = vcmp.gt.f32.partialorder %v2819, 0.0
    %vm2948 = vcmp.gt.f32.partialorder %v2820, 0.0
    %vm2949 = vcmp.gt.f32.partialorder %v2821, 0.0
    %vm2950 = vcmp.gt.f32.partialorder %v2822, 0.0
    %vm2951 = vcmp.gt.f32.partialorder %v2823, 0.0
    %vm2952 = vcmp.gt.f32.partialorder %v2824, 0.0
    %vm2953 = vcmp.gt.f32.partialorder %v2825, 0.0
    %vm2954 = vcmp.gt.f32.partialorder %v2826, 0.0
    %vm2955 = vcmp.gt.f32.partialorder %v2827, 0.0
    %vm2956 = vcmp.gt.f32.partialorder %v2828, 0.0
    %vm2957 = vcmp.gt.f32.partialorder %v2829, 0.0
    %vm2958 = vcmp.gt.f32.partialorder %v2830, 0.0
    %vm2959 = vcmp.gt.f32.partialorder %v2831, 0.0
    %vm2960 = vcmp.gt.f32.partialorder %v2832, 0.0
    %vm2961 = vcmp.gt.f32.partialorder %v2833, 0.0
    %vm2962 = vcmp.gt.f32.partialorder %v2834, 0.0
    %vm2963 = vcmp.gt.f32.partialorder %v2835, 0.0
    %vm2964 = vcmp.gt.f32.partialorder %v2836, 0.0
    %vm2965 = vcmp.gt.f32.partialorder %v2837, 0.0
    %vm2966 = vcmp.gt.f32.partialorder %v2838, 0.0
    %vm2967 = vcmp.gt.f32.partialorder %v2839, 0.0
    %vm2968 = vcmp.gt.f32.partialorder %v2840, 0.0
    %vm2969 = vcmp.gt.f32.partialorder %v2841, 0.0
    %vm2970 = vcmp.gt.f32.partialorder %v2842, 0.0
    %vm2971 = vcmp.gt.f32.partialorder %v2843, 0.0
    %vm2972 = vcmp.gt.f32.partialorder %v2844, 0.0
    %vm2973 = vcmp.gt.f32.partialorder %v2845, 0.0
    %vm2974 = vcmp.gt.f32.partialorder %v2846, 0.0
    %vm2975 = vcmp.gt.f32.partialorder %v2847, 0.0
    %vm2976 = vcmp.gt.f32.partialorder %v2848, 0.0
    %vm2977 = vcmp.gt.f32.partialorder %v2849, 0.0
    %vm2978 = vcmp.gt.f32.partialorder %v2850, 0.0
    %vm2979 = vcmp.gt.f32.partialorder %v2851, 0.0
    %vm2980 = vcmp.gt.f32.partialorder %v2852, 0.0
    %vm2981 = vcmp.gt.f32.partialorder %v2853, 0.0
    %vm2982 = vcmp.gt.f32.partialorder %v2854, 0.0
    %vm2983 = vcmp.gt.f32.partialorder %v2855, 0.0
    %vm2984 = vcmp.gt.f32.partialorder %v2856, 0.0
    %vm2985 = vcmp.gt.f32.partialorder %v2857, 0.0
    %vm2986 = vcmp.gt.f32.partialorder %v2858, 0.0
    %vm2987 = vcmp.gt.f32.partialorder %v2859, 0.0
    %vm2988 = vcmp.gt.f32.partialorder %v2860, 0.0
    %vm2989 = vcmp.gt.f32.partialorder %v2861, 0.0
    %vm2990 = vcmp.gt.f32.partialorder %v2862, 0.0
    %vm2991 = vcmp.gt.f32.partialorder %v2863, 0.0
    %vm2992 = vcmp.gt.f32.partialorder %v2864, 0.0
    %vm2993 = vcmp.gt.f32.partialorder %v2865, 0.0
    %vm2994 = vcmp.gt.f32.partialorder %v2866, 0.0
    %vm2995 = vcmp.gt.f32.partialorder %v2867, 0.0
    %vm2996 = vcmp.gt.f32.partialorder %v2868, 0.0
    %vm2997 = vcmp.gt.f32.partialorder %v2869, 0.0
    %vm2998 = vcmp.gt.f32.partialorder %v2870, 0.0
    %vm2999 = vcmp.gt.f32.partialorder %v2871, 0.0
    %vm3000 = vcmp.gt.f32.partialorder %v2872, 0.0
    %vm3001 = vcmp.gt.f32.partialorder %v2873, 0.0
    %vm3002 = vcmp.gt.f32.partialorder %v2874, 0.0
    %vm3003 = vcmp.gt.f32.partialorder %v2875, 0.0
    %vm3004 = vcmp.gt.f32.partialorder %v2876, 0.0
    %vm3005 = vcmp.gt.f32.partialorder %v2877, 0.0
    %vm3006 = vcmp.gt.f32.partialorder %v2878, 0.0
    %vm3007 = vcmp.gt.f32.partialorder %v2879, 0.0
    %vm3008 = vcmp.gt.f32.partialorder %v2880, 0.0
    %vm3009 = vcmp.gt.f32.partialorder %v2881, 0.0
    %vm3010 = vcmp.gt.f32.partialorder %v2882, 0.0
    %vm3011 = vcmp.gt.f32.partialorder %v2883, 0.0
    %vm3012 = vcmp.gt.f32.partialorder %v2884, 0.0
    %vm3013 = vcmp.gt.f32.partialorder %v2885, 0.0
    %vm3014 = vcmp.gt.f32.partialorder %v2886, 0.0
    %vm3015 = vcmp.gt.f32.partialorder %v2887, 0.0
    %vm3016 = vcmp.gt.f32.partialorder %v2888, 0.0
    %vm3017 = vcmp.gt.f32.partialorder %v2889, 0.0
    %vm3018 = vcmp.gt.f32.partialorder %v2890, 0.0
    %vm3019 = vcmp.gt.f32.partialorder %v2891, 0.0
    %vm3020 = vcmp.gt.f32.partialorder %v2892, 0.0
    %vm3021 = vcmp.gt.f32.partialorder %v2893, 0.0
    %vm3022 = vcmp.gt.f32.partialorder %v2894, 0.0
    %vm3023 = vcmp.gt.f32.partialorder %v2895, 0.0
    %vm3024 = vcmp.gt.f32.partialorder %v2896, 0.0
    %vm3025 = vcmp.gt.f32.partialorder %v2897, 0.0
    %vm3026 = vcmp.gt.f32.partialorder %v2898, 0.0
    %vm3027 = vcmp.gt.f32.partialorder %v2899, 0.0
    %vm3028 = vcmp.gt.f32.partialorder %v2900, 0.0
    %vm3029 = vcmp.gt.f32.partialorder %v2901, 0.0
    %vm3030 = vcmp.gt.f32.partialorder %v2902, 0.0
    %vm3031 = vcmp.gt.f32.partialorder %v2903, 0.0
    %vm3032 = vcmp.gt.f32.partialorder %v2904, 0.0
    %vm3033 = vcmp.gt.f32.partialorder %v2905, 0.0
    %vm3034 = vcmp.gt.f32.partialorder %v2906, 0.0
    %vm3035 = vcmp.gt.f32.partialorder %v2907, 0.0
    %vm3036 = vcmp.gt.f32.partialorder %v2908, 0.0
    %vm3037 = vcmp.gt.f32.partialorder %v2909, 0.0
    %vm3038 = vcmp.gt.f32.partialorder %v2910, 0.0
    %vm3039 = vcmp.gt.f32.partialorder %v2911, 0.0
    %vm3040 = vcmp.gt.f32.partialorder %v2912, 0.0
    %vm3041 = vcmp.gt.f32.partialorder %v2913, 0.0
    %vm3042 = vcmp.gt.f32.partialorder %v2914, 0.0
    %vm3043 = vcmp.gt.f32.partialorder %v2915, 0.0
    %vm3044 = vcmp.gt.f32.partialorder %v2916, 0.0
    %vm3045 = vcmp.gt.f32.partialorder %v2917, 0.0
    %vm3046 = vcmp.gt.f32.partialorder %v2918, 0.0
    %vm3047 = vcmp.gt.f32.partialorder %v2919, 0.0
    %vm3048 = vcmp.gt.f32.partialorder %v2920, 0.0
    %vm3049 = vcmp.gt.f32.partialorder %v2921, 0.0
    %vm3050 = vcmp.gt.f32.partialorder %v2922, 0.0
    %vm3051 = vcmp.gt.f32.partialorder %v2923, 0.0
    %vm3052 = vcmp.gt.f32.partialorder %v2924, 0.0
    %vm3053 = vcmp.gt.f32.partialorder %v2925, 0.0
    %vm3054 = vcmp.gt.f32.partialorder %v2926, 0.0
    %vm3055 = vcmp.gt.f32.partialorder %v2927, 0.0
    %vm3056 = vcmp.gt.f32.partialorder %v2928, 0.0
    %vm3057 = vcmp.gt.f32.partialorder %v2929, 0.0
    %vm3058 = vcmp.gt.f32.partialorder %v2930, 0.0
    %vm3059 = vcmp.gt.f32.partialorder %v2931, 0.0
    %vm3060 = vcmp.gt.f32.partialorder %v2932, 0.0
    %vm3061 = vcmp.gt.f32.partialorder %v2933, 0.0
    %vm3062 = vcmp.gt.f32.partialorder %v2934, 0.0
    %vm3063 = vcmp.gt.f32.partialorder %v2935, 0.0
    %vm3064 = vcmp.gt.f32.partialorder %v2936, 0.0
    %vm3065 = vcmp.gt.f32.partialorder %v2937, 0.0
    %vm3066 = vcmp.gt.f32.partialorder %v2938, 0.0
    %vm3067 = vcmp.gt.f32.partialorder %v2939, 0.0
    %vm3068 = vcmp.gt.f32.partialorder %v2940, 0.0
    %vm3069 = vcmp.gt.f32.partialorder %v2941, 0.0
    %vm3070 = vcmp.gt.f32.partialorder %v2942, 0.0
    %vm3071 = vcmp.gt.f32.partialorder %v2943, 0.0
    %v3072 = vmin.f32 %v2816, 0.0
    %v3073 = vmin.f32 %v2817, 0.0
    %v3074 = vmin.f32 %v2818, 0.0
    %v3075 = vmin.f32 %v2819, 0.0
    %v3076 = vmin.f32 %v2820, 0.0
    %v3077 = vmin.f32 %v2821, 0.0
    %v3078 = vmin.f32 %v2822, 0.0
    %v3079 = vmin.f32 %v2823, 0.0
    %v3080 = vmin.f32 %v2824, 0.0
    %v3081 = vmin.f32 %v2825, 0.0
    %v3082 = vmin.f32 %v2826, 0.0
    %v3083 = vmin.f32 %v2827, 0.0
    %v3084 = vmin.f32 %v2828, 0.0
    %v3085 = vmin.f32 %v2829, 0.0
    %v3086 = vmin.f32 %v2830, 0.0
    %v3087 = vmin.f32 %v2831, 0.0
    %v3088 = vmin.f32 %v2832, 0.0
    %v3089 = vmin.f32 %v2833, 0.0
    %v3090 = vmin.f32 %v2834, 0.0
    %v3091 = vmin.f32 %v2835, 0.0
    %v3092 = vmin.f32 %v2836, 0.0
    %v3093 = vmin.f32 %v2837, 0.0
    %v3094 = vmin.f32 %v2838, 0.0
    %v3095 = vmin.f32 %v2839, 0.0
    %v3096 = vmin.f32 %v2840, 0.0
    %v3097 = vmin.f32 %v2841, 0.0
    %v3098 = vmin.f32 %v2842, 0.0
    %v3099 = vmin.f32 %v2843, 0.0
    %v3100 = vmin.f32 %v2844, 0.0
    %v3101 = vmin.f32 %v2845, 0.0
    %v3102 = vmin.f32 %v2846, 0.0
    %v3103 = vmin.f32 %v2847, 0.0
    %v3104 = vmin.f32 %v2848, 0.0
    %v3105 = vmin.f32 %v2849, 0.0
    %v3106 = vmin.f32 %v2850, 0.0
    %v3107 = vmin.f32 %v2851, 0.0
    %v3108 = vmin.f32 %v2852, 0.0
    %v3109 = vmin.f32 %v2853, 0.0
    %v3110 = vmin.f32 %v2854, 0.0
    %v3111 = vmin.f32 %v2855, 0.0
    %v3112 = vmin.f32 %v2856, 0.0
    %v3113 = vmin.f32 %v2857, 0.0
    %v3114 = vmin.f32 %v2858, 0.0
    %v3115 = vmin.f32 %v2859, 0.0
    %v3116 = vmin.f32 %v2860, 0.0
    %v3117 = vmin.f32 %v2861, 0.0
    %v3118 = vmin.f32 %v2862, 0.0
    %v3119 = vmin.f32 %v2863, 0.0
    %v3120 = vmin.f32 %v2864, 0.0
    %v3121 = vmin.f32 %v2865, 0.0
    %v3122 = vmin.f32 %v2866, 0.0
    %v3123 = vmin.f32 %v2867, 0.0
    %v3124 = vmin.f32 %v2868, 0.0
    %v3125 = vmin.f32 %v2869, 0.0
    %v3126 = vmin.f32 %v2870, 0.0
    %v3127 = vmin.f32 %v2871, 0.0
    %v3128 = vmin.f32 %v2872, 0.0
    %v3129 = vmin.f32 %v2873, 0.0
    %v3130 = vmin.f32 %v2874, 0.0
    %v3131 = vmin.f32 %v2875, 0.0
    %v3132 = vmin.f32 %v2876, 0.0
    %v3133 = vmin.f32 %v2877, 0.0
    %v3134 = vmin.f32 %v2878, 0.0
    %v3135 = vmin.f32 %v2879, 0.0
    %v3136 = vmin.f32 %v2880, 0.0
    %v3137 = vmin.f32 %v2881, 0.0
    %v3138 = vmin.f32 %v2882, 0.0
    %v3139 = vmin.f32 %v2883, 0.0
    %v3140 = vmin.f32 %v2884, 0.0
    %v3141 = vmin.f32 %v2885, 0.0
    %v3142 = vmin.f32 %v2886, 0.0
    %v3143 = vmin.f32 %v2887, 0.0
    %v3144 = vmin.f32 %v2888, 0.0
    %v3145 = vmin.f32 %v2889, 0.0
    %v3146 = vmin.f32 %v2890, 0.0
    %v3147 = vmin.f32 %v2891, 0.0
    %v3148 = vmin.f32 %v2892, 0.0
    %v3149 = vmin.f32 %v2893, 0.0
    %v3150 = vmin.f32 %v2894, 0.0
    %v3151 = vmin.f32 %v2895, 0.0
    %v3152 = vmin.f32 %v2896, 0.0
    %v3153 = vmin.f32 %v2897, 0.0
    %v3154 = vmin.f32 %v2898, 0.0
    %v3155 = vmin.f32 %v2899, 0.0
    %v3156 = vmin.f32 %v2900, 0.0
    %v3157 = vmin.f32 %v2901, 0.0
    %v3158 = vmin.f32 %v2902, 0.0
    %v3159 = vmin.f32 %v2903, 0.0
    %v3160 = vmin.f32 %v2904, 0.0
    %v3161 = vmin.f32 %v2905, 0.0
    %v3162 = vmin.f32 %v2906, 0.0
    %v3163 = vmin.f32 %v2907, 0.0
    %v3164 = vmin.f32 %v2908, 0.0
    %v3165 = vmin.f32 %v2909, 0.0
    %v3166 = vmin.f32 %v2910, 0.0
    %v3167 = vmin.f32 %v2911, 0.0
    %v3168 = vmin.f32 %v2912, 0.0
    %v3169 = vmin.f32 %v2913, 0.0
    %v3170 = vmin.f32 %v2914, 0.0
    %v3171 = vmin.f32 %v2915, 0.0
    %v3172 = vmin.f32 %v2916, 0.0
    %v3173 = vmin.f32 %v2917, 0.0
    %v3174 = vmin.f32 %v2918, 0.0
    %v3175 = vmin.f32 %v2919, 0.0
    %v3176 = vmin.f32 %v2920, 0.0
    %v3177 = vmin.f32 %v2921, 0.0
    %v3178 = vmin.f32 %v2922, 0.0
    %v3179 = vmin.f32 %v2923, 0.0
    %v3180 = vmin.f32 %v2924, 0.0
    %v3181 = vmin.f32 %v2925, 0.0
    %v3182 = vmin.f32 %v2926, 0.0
    %v3183 = vmin.f32 %v2927, 0.0
    %v3184 = vmin.f32 %v2928, 0.0
    %v3185 = vmin.f32 %v2929, 0.0
    %v3186 = vmin.f32 %v2930, 0.0
    %v3187 = vmin.f32 %v2931, 0.0
    %v3188 = vmin.f32 %v2932, 0.0
    %v3189 = vmin.f32 %v2933, 0.0
    %v3190 = vmin.f32 %v2934, 0.0
    %v3191 = vmin.f32 %v2935, 0.0
    %v3192 = vmin.f32 %v2936, 0.0
    %v3193 = vmin.f32 %v2937, 0.0
    %v3194 = vmin.f32 %v2938, 0.0
    %v3195 = vmin.f32 %v2939, 0.0
    %v3196 = vmin.f32 %v2940, 0.0
    %v3197 = vmin.f32 %v2941, 0.0
    %v3198 = vmin.f32 %v2942, 0.0
    %v3199 = vmin.f32 %v2943, 0.0
    %v3200 = vmul.f32 %v3072, 1.442695
    %v3201 = vpow.pop %v3200
    %v3202 = vmul.f32 %v3073, 1.442695
    %v3203 = vpow.pop %v3202
    %v3204 = vmul.f32 %v3074, 1.442695
    %v3205 = vpow.pop %v3204
    %v3206 = vmul.f32 %v3075, 1.442695
    %v3207 = vpow.pop %v3206
    %v3208 = vmul.f32 %v3076, 1.442695
    %v3209 = vpow.pop %v3208
    %v3210 = vmul.f32 %v3077, 1.442695
    %v3211 = vpow.pop %v3210
    %v3212 = vmul.f32 %v3078, 1.442695
    %v3213 = vpow.pop %v3212
    %v3214 = vmul.f32 %v3079, 1.442695
    %v3215 = vpow.pop %v3214
    %v3216 = vmul.f32 %v3080, 1.442695
    %v3217 = vpow.pop %v3216
    %v3218 = vmul.f32 %v3081, 1.442695
    %v3219 = vpow.pop %v3218
    %v3220 = vmul.f32 %v3082, 1.442695
    %v3221 = vpow.pop %v3220
    %v3222 = vmul.f32 %v3083, 1.442695
    %v3223 = vpow.pop %v3222
    %v3224 = vmul.f32 %v3084, 1.442695
    %v3225 = vpow.pop %v3224
    %v3226 = vmul.f32 %v3085, 1.442695
    %v3227 = vpow.pop %v3226
    %v3228 = vmul.f32 %v3086, 1.442695
    %v3229 = vpow.pop %v3228
    %v3230 = vmul.f32 %v3087, 1.442695
    %v3231 = vpow.pop %v3230
    %v3232 = vmul.f32 %v3088, 1.442695
    %v3233 = vpow.pop %v3232
    %v3234 = vmul.f32 %v3089, 1.442695
    %v3235 = vpow.pop %v3234
    %v3236 = vmul.f32 %v3090, 1.442695
    %v3237 = vpow.pop %v3236
    %v3238 = vmul.f32 %v3091, 1.442695
    %v3239 = vpow.pop %v3238
    %v3240 = vmul.f32 %v3092, 1.442695
    %v3241 = vpow.pop %v3240
    %v3242 = vmul.f32 %v3093, 1.442695
    %v3243 = vpow.pop %v3242
    %v3244 = vmul.f32 %v3094, 1.442695
    %v3245 = vpow.pop %v3244
    %v3246 = vmul.f32 %v3095, 1.442695
    %v3247 = vpow.pop %v3246
    %v3248 = vmul.f32 %v3096, 1.442695
    %v3249 = vpow.pop %v3248
    %v3250 = vmul.f32 %v3097, 1.442695
    %v3251 = vpow.pop %v3250
    %v3252 = vmul.f32 %v3098, 1.442695
    %v3253 = vpow.pop %v3252
    %v3254 = vmul.f32 %v3099, 1.442695
    %v3255 = vpow.pop %v3254
    %v3256 = vmul.f32 %v3100, 1.442695
    %v3257 = vpow.pop %v3256
    %v3258 = vmul.f32 %v3101, 1.442695
    %v3259 = vpow.pop %v3258
    %v3260 = vmul.f32 %v3102, 1.442695
    %v3261 = vpow.pop %v3260
    %v3262 = vmul.f32 %v3103, 1.442695
    %v3263 = vpow.pop %v3262
    %v3264 = vmul.f32 %v3104, 1.442695
    %v3265 = vpow.pop %v3264
    %v3266 = vmul.f32 %v3105, 1.442695
    %v3267 = vpow.pop %v3266
    %v3268 = vmul.f32 %v3106, 1.442695
    %v3269 = vpow.pop %v3268
    %v3270 = vmul.f32 %v3107, 1.442695
    %v3271 = vpow.pop %v3270
    %v3272 = vmul.f32 %v3108, 1.442695
    %v3273 = vpow.pop %v3272
    %v3274 = vmul.f32 %v3109, 1.442695
    %v3275 = vpow.pop %v3274
    %v3276 = vmul.f32 %v3110, 1.442695
    %v3277 = vpow.pop %v3276
    %v3278 = vmul.f32 %v3111, 1.442695
    %v3279 = vpow.pop %v3278
    %v3280 = vmul.f32 %v3112, 1.442695
    %v3281 = vpow.pop %v3280
    %v3282 = vmul.f32 %v3113, 1.442695
    %v3283 = vpow.pop %v3282
    %v3284 = vmul.f32 %v3114, 1.442695
    %v3285 = vpow.pop %v3284
    %v3286 = vmul.f32 %v3115, 1.442695
    %v3287 = vpow.pop %v3286
    %v3288 = vmul.f32 %v3116, 1.442695
    %v3289 = vpow.pop %v3288
    %v3290 = vmul.f32 %v3117, 1.442695
    %v3291 = vpow.pop %v3290
    %v3292 = vmul.f32 %v3118, 1.442695
    %v3293 = vpow.pop %v3292
    %v3294 = vmul.f32 %v3119, 1.442695
    %v3295 = vpow.pop %v3294
    %v3296 = vmul.f32 %v3120, 1.442695
    %v3297 = vpow.pop %v3296
    %v3298 = vmul.f32 %v3121, 1.442695
    %v3299 = vpow.pop %v3298
    %v3300 = vmul.f32 %v3122, 1.442695
    %v3301 = vpow.pop %v3300
    %v3302 = vmul.f32 %v3123, 1.442695
    %v3303 = vpow.pop %v3302
    %v3304 = vmul.f32 %v3124, 1.442695
    %v3305 = vpow.pop %v3304
    %v3306 = vmul.f32 %v3125, 1.442695
    %v3307 = vpow.pop %v3306
    %v3308 = vmul.f32 %v3126, 1.442695
    %v3309 = vpow.pop %v3308
    %v3310 = vmul.f32 %v3127, 1.442695
    %v3311 = vpow.pop %v3310
    %v3312 = vmul.f32 %v3128, 1.442695
    %v3313 = vpow.pop %v3312
    %v3314 = vmul.f32 %v3129, 1.442695
    %v3315 = vpow.pop %v3314
    %v3316 = vmul.f32 %v3130, 1.442695
    %v3317 = vpow.pop %v3316
    %v3318 = vmul.f32 %v3131, 1.442695
    %v3319 = vpow.pop %v3318
    %v3320 = vmul.f32 %v3132, 1.442695
    %v3321 = vpow.pop %v3320
    %v3322 = vmul.f32 %v3133, 1.442695
    %v3323 = vpow.pop %v3322
    %v3324 = vmul.f32 %v3134, 1.442695
    %v3325 = vpow.pop %v3324
    %v3326 = vmul.f32 %v3135, 1.442695
    %v3327 = vpow.pop %v3326
    %v3328 = vmul.f32 %v3136, 1.442695
    %v3329 = vpow.pop %v3328
    %v3330 = vmul.f32 %v3137, 1.442695
    %v3331 = vpow.pop %v3330
    %v3332 = vmul.f32 %v3138, 1.442695
    %v3333 = vpow.pop %v3332
    %v3334 = vmul.f32 %v3139, 1.442695
    %v3335 = vpow.pop %v3334
    %v3336 = vmul.f32 %v3140, 1.442695
    %v3337 = vpow.pop %v3336
    %v3338 = vmul.f32 %v3141, 1.442695
    %v3339 = vpow.pop %v3338
    %v3340 = vmul.f32 %v3142, 1.442695
    %v3341 = vpow.pop %v3340
    %v3342 = vmul.f32 %v3143, 1.442695
    %v3343 = vpow.pop %v3342
    %v3344 = vmul.f32 %v3144, 1.442695
    %v3345 = vpow.pop %v3344
    %v3346 = vmul.f32 %v3145, 1.442695
    %v3347 = vpow.pop %v3346
    %v3348 = vmul.f32 %v3146, 1.442695
    %v3349 = vpow.pop %v3348
    %v3350 = vmul.f32 %v3147, 1.442695
    %v3351 = vpow.pop %v3350
    %v3352 = vmul.f32 %v3148, 1.442695
    %v3353 = vpow.pop %v3352
    %v3354 = vmul.f32 %v3149, 1.442695
    %v3355 = vpow.pop %v3354
    %v3356 = vmul.f32 %v3150, 1.442695
    %v3357 = vpow.pop %v3356
    %v3358 = vmul.f32 %v3151, 1.442695
    %v3359 = vpow.pop %v3358
    %v3360 = vmul.f32 %v3152, 1.442695
    %v3361 = vpow.pop %v3360
    %v3362 = vmul.f32 %v3153, 1.442695
    %v3363 = vpow.pop %v3362
    %v3364 = vmul.f32 %v3154, 1.442695
    %v3365 = vpow.pop %v3364
    %v3366 = vmul.f32 %v3155, 1.442695
    %v3367 = vpow.pop %v3366
    %v3368 = vmul.f32 %v3156, 1.442695
    %v3369 = vpow.pop %v3368
    %v3370 = vmul.f32 %v3157, 1.442695
    %v3371 = vpow.pop %v3370
    %v3372 = vmul.f32 %v3158, 1.442695
    %v3373 = vpow.pop %v3372
    %v3374 = vmul.f32 %v3159, 1.442695
    %v3375 = vpow.pop %v3374
    %v3376 = vmul.f32 %v3160, 1.442695
    %v3377 = vpow.pop %v3376
    %v3378 = vmul.f32 %v3161, 1.442695
    %v3379 = vpow.pop %v3378
    %v3380 = vmul.f32 %v3162, 1.442695
    %v3381 = vpow.pop %v3380
    %v3382 = vmul.f32 %v3163, 1.442695
    %v3383 = vpow.pop %v3382
    %v3384 = vmul.f32 %v3164, 1.442695
    %v3385 = vpow.pop %v3384
    %v3386 = vmul.f32 %v3165, 1.442695
    %v3387 = vpow.pop %v3386
    %v3388 = vmul.f32 %v3166, 1.442695
    %v3389 = vpow.pop %v3388
    %v3390 = vmul.f32 %v3167, 1.442695
    %v3391 = vpow.pop %v3390
    %v3392 = vmul.f32 %v3168, 1.442695
    %v3393 = vpow.pop %v3392
    %v3394 = vmul.f32 %v3169, 1.442695
    %v3395 = vpow.pop %v3394
    %v3396 = vmul.f32 %v3170, 1.442695
    %v3397 = vpow.pop %v3396
    %v3398 = vmul.f32 %v3171, 1.442695
    %v3399 = vpow.pop %v3398
    %v3400 = vmul.f32 %v3172, 1.442695
    %v3401 = vpow.pop %v3400
    %v3402 = vmul.f32 %v3173, 1.442695
    %v3403 = vpow.pop %v3402
    %v3404 = vmul.f32 %v3174, 1.442695
    %v3405 = vpow.pop %v3404
    %v3406 = vmul.f32 %v3175, 1.442695
    %v3407 = vpow.pop %v3406
    %v3408 = vmul.f32 %v3176, 1.442695
    %v3409 = vpow.pop %v3408
    %v3410 = vmul.f32 %v3177, 1.442695
    %v3411 = vpow.pop %v3410
    %v3412 = vmul.f32 %v3178, 1.442695
    %v3413 = vpow.pop %v3412
    %v3414 = vmul.f32 %v3179, 1.442695
    %v3415 = vpow.pop %v3414
    %v3416 = vmul.f32 %v3180, 1.442695
    %v3417 = vpow.pop %v3416
    %v3418 = vmul.f32 %v3181, 1.442695
    %v3419 = vpow.pop %v3418
    %v3420 = vmul.f32 %v3182, 1.442695
    %v3421 = vpow.pop %v3420
    %v3422 = vmul.f32 %v3183, 1.442695
    %v3423 = vpow.pop %v3422
    %v3424 = vmul.f32 %v3184, 1.442695
    %v3425 = vpow.pop %v3424
    %v3426 = vmul.f32 %v3185, 1.442695
    %v3427 = vpow.pop %v3426
    %v3428 = vmul.f32 %v3186, 1.442695
    %v3429 = vpow.pop %v3428
    %v3430 = vmul.f32 %v3187, 1.442695
    %v3431 = vpow.pop %v3430
    %v3432 = vmul.f32 %v3188, 1.442695
    %v3433 = vpow.pop %v3432
    %v3434 = vmul.f32 %v3189, 1.442695
    %v3435 = vpow.pop %v3434
    %v3436 = vmul.f32 %v3190, 1.442695
    %v3437 = vpow.pop %v3436
    %v3438 = vmul.f32 %v3191, 1.442695
    %v3439 = vpow.pop %v3438
    %v3440 = vmul.f32 %v3192, 1.442695
    %v3441 = vpow.pop %v3440
    %v3442 = vmul.f32 %v3193, 1.442695
    %v3443 = vpow.pop %v3442
    %v3444 = vmul.f32 %v3194, 1.442695
    %v3445 = vpow.pop %v3444
    %v3446 = vmul.f32 %v3195, 1.442695
    %v3447 = vpow.pop %v3446
    %v3448 = vmul.f32 %v3196, 1.442695
    %v3449 = vpow.pop %v3448
    %v3450 = vmul.f32 %v3197, 1.442695
    %v3451 = vpow.pop %v3450
    %v3452 = vmul.f32 %v3198, 1.442695
    %v3453 = vpow.pop %v3452
    %v3454 = vmul.f32 %v3199, 1.442695
    %v3455 = vpow.pop %v3454
    %v3456 = vsub.f32 %v3201, 1.0
    %v3457 = vsub.f32 %v3203, 1.0
    %v3458 = vsub.f32 %v3205, 1.0
    %v3459 = vsub.f32 %v3207, 1.0
    %v3460 = vsub.f32 %v3209, 1.0
    %v3461 = vsub.f32 %v3211, 1.0
    %v3462 = vsub.f32 %v3213, 1.0
    %v3463 = vsub.f32 %v3215, 1.0
    %v3464 = vsub.f32 %v3217, 1.0
    %v3465 = vsub.f32 %v3219, 1.0
    %v3466 = vsub.f32 %v3221, 1.0
    %v3467 = vsub.f32 %v3223, 1.0
    %v3468 = vsub.f32 %v3225, 1.0
    %v3469 = vsub.f32 %v3227, 1.0
    %v3470 = vsub.f32 %v3229, 1.0
    %v3471 = vsub.f32 %v3231, 1.0
    %v3472 = vsub.f32 %v3233, 1.0
    %v3473 = vsub.f32 %v3235, 1.0
    %v3474 = vsub.f32 %v3237, 1.0
    %v3475 = vsub.f32 %v3239, 1.0
    %v3476 = vsub.f32 %v3241, 1.0
    %v3477 = vsub.f32 %v3243, 1.0
    %v3478 = vsub.f32 %v3245, 1.0
    %v3479 = vsub.f32 %v3247, 1.0
    %v3480 = vsub.f32 %v3249, 1.0
    %v3481 = vsub.f32 %v3251, 1.0
    %v3482 = vsub.f32 %v3253, 1.0
    %v3483 = vsub.f32 %v3255, 1.0
    %v3484 = vsub.f32 %v3257, 1.0
    %v3485 = vsub.f32 %v3259, 1.0
    %v3486 = vsub.f32 %v3261, 1.0
    %v3487 = vsub.f32 %v3263, 1.0
    %v3488 = vsub.f32 %v3265, 1.0
    %v3489 = vsub.f32 %v3267, 1.0
    %v3490 = vsub.f32 %v3269, 1.0
    %v3491 = vsub.f32 %v3271, 1.0
    %v3492 = vsub.f32 %v3273, 1.0
    %v3493 = vsub.f32 %v3275, 1.0
    %v3494 = vsub.f32 %v3277, 1.0
    %v3495 = vsub.f32 %v3279, 1.0
    %v3496 = vsub.f32 %v3281, 1.0
    %v3497 = vsub.f32 %v3283, 1.0
    %v3498 = vsub.f32 %v3285, 1.0
    %v3499 = vsub.f32 %v3287, 1.0
    %v3500 = vsub.f32 %v3289, 1.0
    %v3501 = vsub.f32 %v3291, 1.0
    %v3502 = vsub.f32 %v3293, 1.0
    %v3503 = vsub.f32 %v3295, 1.0
    %v3504 = vsub.f32 %v3297, 1.0
    %v3505 = vsub.f32 %v3299, 1.0
    %v3506 = vsub.f32 %v3301, 1.0
    %v3507 = vsub.f32 %v3303, 1.0
    %v3508 = vsub.f32 %v3305, 1.0
    %v3509 = vsub.f32 %v3307, 1.0
    %v3510 = vsub.f32 %v3309, 1.0
    %v3511 = vsub.f32 %v3311, 1.0
    %v3512 = vsub.f32 %v3313, 1.0
    %v3513 = vsub.f32 %v3315, 1.0
    %v3514 = vsub.f32 %v3317, 1.0
    %v3515 = vsub.f32 %v3319, 1.0
    %v3516 = vsub.f32 %v3321, 1.0
    %v3517 = vsub.f32 %v3323, 1.0
    %v3518 = vsub.f32 %v3325, 1.0
    %v3519 = vsub.f32 %v3327, 1.0
    %v3520 = vsub.f32 %v3329, 1.0
    %v3521 = vsub.f32 %v3331, 1.0
    %v3522 = vsub.f32 %v3333, 1.0
    %v3523 = vsub.f32 %v3335, 1.0
    %v3524 = vsub.f32 %v3337, 1.0
    %v3525 = vsub.f32 %v3339, 1.0
    %v3526 = vsub.f32 %v3341, 1.0
    %v3527 = vsub.f32 %v3343, 1.0
    %v3528 = vsub.f32 %v3345, 1.0
    %v3529 = vsub.f32 %v3347, 1.0
    %v3530 = vsub.f32 %v3349, 1.0
    %v3531 = vsub.f32 %v3351, 1.0
    %v3532 = vsub.f32 %v3353, 1.0
    %v3533 = vsub.f32 %v3355, 1.0
    %v3534 = vsub.f32 %v3357, 1.0
    %v3535 = vsub.f32 %v3359, 1.0
    %v3536 = vsub.f32 %v3361, 1.0
    %v3537 = vsub.f32 %v3363, 1.0
    %v3538 = vsub.f32 %v3365, 1.0
    %v3539 = vsub.f32 %v3367, 1.0
    %v3540 = vsub.f32 %v3369, 1.0
    %v3541 = vsub.f32 %v3371, 1.0
    %v3542 = vsub.f32 %v3373, 1.0
    %v3543 = vsub.f32 %v3375, 1.0
    %v3544 = vsub.f32 %v3377, 1.0
    %v3545 = vsub.f32 %v3379, 1.0
    %v3546 = vsub.f32 %v3381, 1.0
    %v3547 = vsub.f32 %v3383, 1.0
    %v3548 = vsub.f32 %v3385, 1.0
    %v3549 = vsub.f32 %v3387, 1.0
    %v3550 = vsub.f32 %v3389, 1.0
    %v3551 = vsub.f32 %v3391, 1.0
    %v3552 = vsub.f32 %v3393, 1.0
    %v3553 = vsub.f32 %v3395, 1.0
    %v3554 = vsub.f32 %v3397, 1.0
    %v3555 = vsub.f32 %v3399, 1.0
    %v3556 = vsub.f32 %v3401, 1.0
    %v3557 = vsub.f32 %v3403, 1.0
    %v3558 = vsub.f32 %v3405, 1.0
    %v3559 = vsub.f32 %v3407, 1.0
    %v3560 = vsub.f32 %v3409, 1.0
    %v3561 = vsub.f32 %v3411, 1.0
    %v3562 = vsub.f32 %v3413, 1.0
    %v3563 = vsub.f32 %v3415, 1.0
    %v3564 = vsub.f32 %v3417, 1.0
    %v3565 = vsub.f32 %v3419, 1.0
    %v3566 = vsub.f32 %v3421, 1.0
    %v3567 = vsub.f32 %v3423, 1.0
    %v3568 = vsub.f32 %v3425, 1.0
    %v3569 = vsub.f32 %v3427, 1.0
    %v3570 = vsub.f32 %v3429, 1.0
    %v3571 = vsub.f32 %v3431, 1.0
    %v3572 = vsub.f32 %v3433, 1.0
    %v3573 = vsub.f32 %v3435, 1.0
    %v3574 = vsub.f32 %v3437, 1.0
    %v3575 = vsub.f32 %v3439, 1.0
    %v3576 = vsub.f32 %v3441, 1.0
    %v3577 = vsub.f32 %v3443, 1.0
    %v3578 = vsub.f32 %v3445, 1.0
    %v3579 = vsub.f32 %v3447, 1.0
    %v3580 = vsub.f32 %v3449, 1.0
    %v3581 = vsub.f32 %v3451, 1.0
    %v3582 = vsub.f32 %v3453, 1.0
    %v3583 = vsub.f32 %v3455, 1.0
    %v3584 = vsel %vm2944, %v2816, %v3456
    %v3585 = vsel %vm2945, %v2817, %v3457
    %v3586 = vsel %vm2946, %v2818, %v3458
    %v3587 = vsel %vm2947, %v2819, %v3459
    %v3588 = vsel %vm2948, %v2820, %v3460
    %v3589 = vsel %vm2949, %v2821, %v3461
    %v3590 = vsel %vm2950, %v2822, %v3462
    %v3591 = vsel %vm2951, %v2823, %v3463
    %v3592 = vsel %vm2952, %v2824, %v3464
    %v3593 = vsel %vm2953, %v2825, %v3465
    %v3594 = vsel %vm2954, %v2826, %v3466
    %v3595 = vsel %vm2955, %v2827, %v3467
    %v3596 = vsel %vm2956, %v2828, %v3468
    %v3597 = vsel %vm2957, %v2829, %v3469
    %v3598 = vsel %vm2958, %v2830, %v3470
    %v3599 = vsel %vm2959, %v2831, %v3471
    %v3600 = vsel %vm2960, %v2832, %v3472
    %v3601 = vsel %vm2961, %v2833, %v3473
    %v3602 = vsel %vm2962, %v2834, %v3474
    %v3603 = vsel %vm2963, %v2835, %v3475
    %v3604 = vsel %vm2964, %v2836, %v3476
    %v3605 = vsel %vm2965, %v2837, %v3477
    %v3606 = vsel %vm2966, %v2838, %v3478
    %v3607 = vsel %vm2967, %v2839, %v3479
    %v3608 = vsel %vm2968, %v2840, %v3480
    %v3609 = vsel %vm2969, %v2841, %v3481
    %v3610 = vsel %vm2970, %v2842, %v3482
    %v3611 = vsel %vm2971, %v2843, %v3483
    %v3612 = vsel %vm2972, %v2844, %v3484
    %v3613 = vsel %vm2973, %v2845, %v3485
    %v3614 = vsel %vm2974, %v2846, %v3486
    %v3615 = vsel %vm2975, %v2847, %v3487
    %v3616 = vsel %vm2976, %v2848, %v3488
    %v3617 = vsel %vm2977, %v2849, %v3489
    %v3618 = vsel %vm2978, %v2850, %v3490
    %v3619 = vsel %vm2979, %v2851, %v3491
    %v3620 = vsel %vm2980, %v2852, %v3492
    %v3621 = vsel %vm2981, %v2853, %v3493
    %v3622 = vsel %vm2982, %v2854, %v3494
    %v3623 = vsel %vm2983, %v2855, %v3495
    %v3624 = vsel %vm2984, %v2856, %v3496
    %v3625 = vsel %vm2985, %v2857, %v3497
    %v3626 = vsel %vm2986, %v2858, %v3498
    %v3627 = vsel %vm2987, %v2859, %v3499
    %v3628 = vsel %vm2988, %v2860, %v3500
    %v3629 = vsel %vm2989, %v2861, %v3501
    %v3630 = vsel %vm2990, %v2862, %v3502
    %v3631 = vsel %vm2991, %v2863, %v3503
    %v3632 = vsel %vm2992, %v2864, %v3504
    %v3633 = vsel %vm2993, %v2865, %v3505
    %v3634 = vsel %vm2994, %v2866, %v3506
    %v3635 = vsel %vm2995, %v2867, %v3507
    %v3636 = vsel %vm2996, %v2868, %v3508
    %v3637 = vsel %vm2997, %v2869, %v3509
    %v3638 = vsel %vm2998, %v2870, %v3510
    %v3639 = vsel %vm2999, %v2871, %v3511
    %v3640 = vsel %vm3000, %v2872, %v3512
    %v3641 = vsel %vm3001, %v2873, %v3513
    %v3642 = vsel %vm3002, %v2874, %v3514
    %v3643 = vsel %vm3003, %v2875, %v3515
    %v3644 = vsel %vm3004, %v2876, %v3516
    %v3645 = vsel %vm3005, %v2877, %v3517
    %v3646 = vsel %vm3006, %v2878, %v3518
    %v3647 = vsel %vm3007, %v2879, %v3519
    %v3648 = vsel %vm3008, %v2880, %v3520
    %v3649 = vsel %vm3009, %v2881, %v3521
    %v3650 = vsel %vm3010, %v2882, %v3522
    %v3651 = vsel %vm3011, %v2883, %v3523
    %v3652 = vsel %vm3012, %v2884, %v3524
    %v3653 = vsel %vm3013, %v2885, %v3525
    %v3654 = vsel %vm3014, %v2886, %v3526
    %v3655 = vsel %vm3015, %v2887, %v3527
    %v3656 = vsel %vm3016, %v2888, %v3528
    %v3657 = vsel %vm3017, %v2889, %v3529
    %v3658 = vsel %vm3018, %v2890, %v3530
    %v3659 = vsel %vm3019, %v2891, %v3531
    %v3660 = vsel %vm3020, %v2892, %v3532
    %v3661 = vsel %vm3021, %v2893, %v3533
    %v3662 = vsel %vm3022, %v2894, %v3534
    %v3663 = vsel %vm3023, %v2895, %v3535
    %v3664 = vsel %vm3024, %v2896, %v3536
    %v3665 = vsel %vm3025, %v2897, %v3537
    %v3666 = vsel %vm3026, %v2898, %v3538
    %v3667 = vsel %vm3027, %v2899, %v3539
    %v3668 = vsel %vm3028, %v2900, %v3540
    %v3669 = vsel %vm3029, %v2901, %v3541
    %v3670 = vsel %vm3030, %v2902, %v3542
    %v3671 = vsel %vm3031, %v2903, %v3543
    %v3672 = vsel %vm3032, %v2904, %v3544
    %v3673 = vsel %vm3033, %v2905, %v3545
    %v3674 = vsel %vm3034, %v2906, %v3546
    %v3675 = vsel %vm3035, %v2907, %v3547
    %v3676 = vsel %vm3036, %v2908, %v3548
    %v3677 = vsel %vm3037, %v2909, %v3549
    %v3678 = vsel %vm3038, %v2910, %v3550
    %v3679 = vsel %vm3039, %v2911, %v3551
    %v3680 = vsel %vm3040, %v2912, %v3552
    %v3681 = vsel %vm3041, %v2913, %v3553
    %v3682 = vsel %vm3042, %v2914, %v3554
    %v3683 = vsel %vm3043, %v2915, %v3555
    %v3684 = vsel %vm3044, %v2916, %v3556
    %v3685 = vsel %vm3045, %v2917, %v3557
    %v3686 = vsel %vm3046, %v2918, %v3558
    %v3687 = vsel %vm3047, %v2919, %v3559
    %v3688 = vsel %vm3048, %v2920, %v3560
    %v3689 = vsel %vm3049, %v2921, %v3561
    %v3690 = vsel %vm3050, %v2922, %v3562
    %v3691 = vsel %vm3051, %v2923, %v3563
    %v3692 = vsel %vm3052, %v2924, %v3564
    %v3693 = vsel %vm3053, %v2925, %v3565
    %v3694 = vsel %vm3054, %v2926, %v3566
    %v3695 = vsel %vm3055, %v2927, %v3567
    %v3696 = vsel %vm3056, %v2928, %v3568
    %v3697 = vsel %vm3057, %v2929, %v3569
    %v3698 = vsel %vm3058, %v2930, %v3570
    %v3699 = vsel %vm3059, %v2931, %v3571
    %v3700 = vsel %vm3060, %v2932, %v3572
    %v3701 = vsel %vm3061, %v2933, %v3573
    %v3702 = vsel %vm3062, %v2934, %v3574
    %v3703 = vsel %vm3063, %v2935, %v3575
    %v3704 = vsel %vm3064, %v2936, %v3576
    %v3705 = vsel %vm3065, %v2937, %v3577
    %v3706 = vsel %vm3066, %v2938, %v3578
    %v3707 = vsel %vm3067, %v2939, %v3579
    %v3708 = vsel %vm3068, %v2940, %v3580
    %v3709 = vsel %vm3069, %v2941, %v3581
    %v3710 = vsel %vm3070, %v2942, %v3582
    %v3711 = vsel %vm3071, %v2943, %v3583
    %vm3712 = vcmask 15360
    %3713 = vst.msk [vmem:[#allocation2] sm:$0xff] %vm3712, %v3584
    %3714 = vst.msk [vmem:[#allocation2 + $0x8] sm:$0xff] %vm3712, %v3585
    %3715 = vst.msk [vmem:[#allocation2 + $0x10] sm:$0xff] %vm3712, %v3586
    %3716 = vst.msk [vmem:[#allocation2 + $0x18] sm:$0xff] %vm3712, %v3587
    %3717 = vst.msk [vmem:[#allocation2 + $0x20] sm:$0xff] %vm3712, %v3588
    %3718 = vst.msk [vmem:[#allocation2 + $0x28] sm:$0xff] %vm3712, %v3589
    %3719 = vst.msk [vmem:[#allocation2 + $0x30] sm:$0xff] %vm3712, %v3590
    %3720 = vst.msk [vmem:[#allocation2 + $0x38] sm:$0xff] %vm3712, %v3591
    %3721 = vst.msk [vmem:[#allocation2 + $0x40] sm:$0xff] %vm3712, %v3592
    %3722 = vst.msk [vmem:[#allocation2 + $0x48] sm:$0xff] %vm3712, %v3593
    %3723 = vst.msk [vmem:[#allocation2 + $0x50] sm:$0xff] %vm3712, %v3594
    %3724 = vst.msk [vmem:[#allocation2 + $0x58] sm:$0xff] %vm3712, %v3595
    %3725 = vst.msk [vmem:[#allocation2 + $0x60] sm:$0xff] %vm3712, %v3596
    %3726 = vst.msk [vmem:[#allocation2 + $0x68] sm:$0xff] %vm3712, %v3597
    %3727 = vst.msk [vmem:[#allocation2 + $0x70] sm:$0xff] %vm3712, %v3598
    %3728 = vst.msk [vmem:[#allocation2 + $0x78] sm:$0xff] %vm3712, %v3599
    %3729 = vst.msk [vmem:[#allocation2 + $0x80] sm:$0xff] %vm3712, %v3600
    %3730 = vst.msk [vmem:[#allocation2 + $0x88] sm:$0xff] %vm3712, %v3601
    %3731 = vst.msk [vmem:[#allocation2 + $0x90] sm:$0xff] %vm3712, %v3602
    %3732 = vst.msk [vmem:[#allocation2 + $0x98] sm:$0xff] %vm3712, %v3603
    %3733 = vst.msk [vmem:[#allocation2 + $0xa0] sm:$0xff] %vm3712, %v3604
    %3734 = vst.msk [vmem:[#allocation2 + $0xa8] sm:$0xff] %vm3712, %v3605
    %3735 = vst.msk [vmem:[#allocation2 + $0xb0] sm:$0xff] %vm3712, %v3606
    %3736 = vst.msk [vmem:[#allocation2 + $0xb8] sm:$0xff] %vm3712, %v3607
    %3737 = vst.msk [vmem:[#allocation2 + $0xc0] sm:$0xff] %vm3712, %v3608
    %3738 = vst.msk [vmem:[#allocation2 + $0xc8] sm:$0xff] %vm3712, %v3609
    %3739 = vst.msk [vmem:[#allocation2 + $0xd0] sm:$0xff] %vm3712, %v3610
    %3740 = vst.msk [vmem:[#allocation2 + $0xd8] sm:$0xff] %vm3712, %v3611
    %3741 = vst.msk [vmem:[#allocation2 + $0xe0] sm:$0xff] %vm3712, %v3612
    %3742 = vst.msk [vmem:[#allocation2 + $0xe8] sm:$0xff] %vm3712, %v3613
    %3743 = vst.msk [vmem:[#allocation2 + $0xf0] sm:$0xff] %vm3712, %v3614
    %3744 = vst.msk [vmem:[#allocation2 + $0xf8] sm:$0xff] %vm3712, %v3615
    %3777 = vrot.lane.b32.xlu0 %v3616, 2
    %v3778 = vpop.permute.xlu0 %3777
    %3779 = vrot.lane.b32.xlu0 %v3617, 2
    %v3780 = vpop.permute.xlu0 %3779
    %3781 = vrot.lane.b32.xlu0 %v3618, 2
    %v3782 = vpop.permute.xlu0 %3781
    %3783 = vrot.lane.b32.xlu0 %v3619, 2
    %v3784 = vpop.permute.xlu0 %3783
    %3785 = vrot.lane.b32.xlu0 %v3620, 2
    %v3786 = vpop.permute.xlu0 %3785
    %3787 = vrot.lane.b32.xlu0 %v3621, 2
    %v3788 = vpop.permute.xlu0 %3787
    %3789 = vrot.lane.b32.xlu0 %v3622, 2
    %v3790 = vpop.permute.xlu0 %3789
    %3791 = vrot.lane.b32.xlu0 %v3623, 2
    %v3792 = vpop.permute.xlu0 %3791
    %3793 = vrot.lane.b32.xlu0 %v3624, 2
    %v3794 = vpop.permute.xlu0 %3793
    %3795 = vrot.lane.b32.xlu0 %v3625, 2
    %v3796 = vpop.permute.xlu0 %3795
    %3797 = vrot.lane.b32.xlu0 %v3626, 2
    %v3798 = vpop.permute.xlu0 %3797
    %3799 = vrot.lane.b32.xlu0 %v3627, 2
    %v3800 = vpop.permute.xlu0 %3799
    %3801 = vrot.lane.b32.xlu0 %v3628, 2
    %v3802 = vpop.permute.xlu0 %3801
    %3803 = vrot.lane.b32.xlu0 %v3629, 2
    %v3804 = vpop.permute.xlu0 %3803
    %3805 = vrot.lane.b32.xlu0 %v3630, 2
    %v3806 = vpop.permute.xlu0 %3805
    %3807 = vrot.lane.b32.xlu0 %v3631, 2
    %v3808 = vpop.permute.xlu0 %3807
    %3809 = vrot.lane.b32.xlu0 %v3632, 2
    %v3810 = vpop.permute.xlu0 %3809
    %3811 = vrot.lane.b32.xlu0 %v3633, 2
    %v3812 = vpop.permute.xlu0 %3811
    %3813 = vrot.lane.b32.xlu0 %v3634, 2
    %v3814 = vpop.permute.xlu0 %3813
    %3815 = vrot.lane.b32.xlu0 %v3635, 2
    %v3816 = vpop.permute.xlu0 %3815
    %3817 = vrot.lane.b32.xlu0 %v3636, 2
    %v3818 = vpop.permute.xlu0 %3817
    %3819 = vrot.lane.b32.xlu0 %v3637, 2
    %v3820 = vpop.permute.xlu0 %3819
    %3821 = vrot.lane.b32.xlu0 %v3638, 2
    %v3822 = vpop.permute.xlu0 %3821
    %3823 = vrot.lane.b32.xlu0 %v3639, 2
    %v3824 = vpop.permute.xlu0 %3823
    %3825 = vrot.lane.b32.xlu0 %v3640, 2
    %v3826 = vpop.permute.xlu0 %3825
    %3827 = vrot.lane.b32.xlu0 %v3641, 2
    %v3828 = vpop.permute.xlu0 %3827
    %3829 = vrot.lane.b32.xlu0 %v3642, 2
    %v3830 = vpop.permute.xlu0 %3829
    %3831 = vrot.lane.b32.xlu0 %v3643, 2
    %v3832 = vpop.permute.xlu0 %3831
    %3833 = vrot.lane.b32.xlu0 %v3644, 2
    %v3834 = vpop.permute.xlu0 %3833
    %3835 = vrot.lane.b32.xlu0 %v3645, 2
    %v3836 = vpop.permute.xlu0 %3835
    %3837 = vrot.lane.b32.xlu0 %v3646, 2
    %v3838 = vpop.permute.xlu0 %3837
    %3839 = vrot.lane.b32.xlu0 %v3647, 2
    %v3840 = vpop.permute.xlu0 %3839
    %vm3873 = vcmask 31760
    %3874 = vst.msk [vmem:[#allocation2] sm:$0xff] %vm3873, %v3778
    %3875 = vst.msk [vmem:[#allocation2 + $0x8] sm:$0xff] %vm3873, %v3780
    %3876 = vst.msk [vmem:[#allocation2 + $0x10] sm:$0xff] %vm3873, %v3782
    %3877 = vst.msk [vmem:[#allocation2 + $0x18] sm:$0xff] %vm3873, %v3784
    %3878 = vst.msk [vmem:[#allocation2 + $0x20] sm:$0xff] %vm3873, %v3786
    %3879 = vst.msk [vmem:[#allocation2 + $0x28] sm:$0xff] %vm3873, %v3788
    %3880 = vst.msk [vmem:[#allocation2 + $0x30] sm:$0xff] %vm3873, %v3790
    %3881 = vst.msk [vmem:[#allocation2 + $0x38] sm:$0xff] %vm3873, %v3792
    %3882 = vst.msk [vmem:[#allocation2 + $0x40] sm:$0xff] %vm3873, %v3794
    %3883 = vst.msk [vmem:[#allocation2 + $0x48] sm:$0xff] %vm3873, %v3796
    %3884 = vst.msk [vmem:[#allocation2 + $0x50] sm:$0xff] %vm3873, %v3798
    %3885 = vst.msk [vmem:[#allocation2 + $0x58] sm:$0xff] %vm3873, %v3800
    %3886 = vst.msk [vmem:[#allocation2 + $0x60] sm:$0xff] %vm3873, %v3802
    %3887 = vst.msk [vmem:[#allocation2 + $0x68] sm:$0xff] %vm3873, %v3804
    %3888 = vst.msk [vmem:[#allocation2 + $0x70] sm:$0xff] %vm3873, %v3806
    %3889 = vst.msk [vmem:[#allocation2 + $0x78] sm:$0xff] %vm3873, %v3808
    %3890 = vst.msk [vmem:[#allocation2 + $0x80] sm:$0xff] %vm3873, %v3810
    %3891 = vst.msk [vmem:[#allocation2 + $0x88] sm:$0xff] %vm3873, %v3812
    %3892 = vst.msk [vmem:[#allocation2 + $0x90] sm:$0xff] %vm3873, %v3814
    %3893 = vst.msk [vmem:[#allocation2 + $0x98] sm:$0xff] %vm3873, %v3816
    %3894 = vst.msk [vmem:[#allocation2 + $0xa0] sm:$0xff] %vm3873, %v3818
    %3895 = vst.msk [vmem:[#allocation2 + $0xa8] sm:$0xff] %vm3873, %v3820
    %3896 = vst.msk [vmem:[#allocation2 + $0xb0] sm:$0xff] %vm3873, %v3822
    %3897 = vst.msk [vmem:[#allocation2 + $0xb8] sm:$0xff] %vm3873, %v3824
    %3898 = vst.msk [vmem:[#allocation2 + $0xc0] sm:$0xff] %vm3873, %v3826
    %3899 = vst.msk [vmem:[#allocation2 + $0xc8] sm:$0xff] %vm3873, %v3828
    %3900 = vst.msk [vmem:[#allocation2 + $0xd0] sm:$0xff] %vm3873, %v3830
    %3901 = vst.msk [vmem:[#allocation2 + $0xd8] sm:$0xff] %vm3873, %v3832
    %3902 = vst.msk [vmem:[#allocation2 + $0xe0] sm:$0xff] %vm3873, %v3834
    %3903 = vst.msk [vmem:[#allocation2 + $0xe8] sm:$0xff] %vm3873, %v3836
    %3904 = vst.msk [vmem:[#allocation2 + $0xf0] sm:$0xff] %vm3873, %v3838
    %3905 = vst.msk [vmem:[#allocation2 + $0xf8] sm:$0xff] %vm3873, %v3840
    %3938 = vrot.lane.b32.xlu0 %v3648, 4
    %v3939 = vpop.permute.xlu0 %3938
    %3940 = vrot.lane.b32.xlu0 %v3649, 4
    %v3941 = vpop.permute.xlu0 %3940
    %3942 = vrot.lane.b32.xlu0 %v3650, 4
    %v3943 = vpop.permute.xlu0 %3942
    %3944 = vrot.lane.b32.xlu0 %v3651, 4
    %v3945 = vpop.permute.xlu0 %3944
    %3946 = vrot.lane.b32.xlu0 %v3652, 4
    %v3947 = vpop.permute.xlu0 %3946
    %3948 = vrot.lane.b32.xlu0 %v3653, 4
    %v3949 = vpop.permute.xlu0 %3948
    %3950 = vrot.lane.b32.xlu0 %v3654, 4
    %v3951 = vpop.permute.xlu0 %3950
    %3952 = vrot.lane.b32.xlu0 %v3655, 4
    %v3953 = vpop.permute.xlu0 %3952
    %3954 = vrot.lane.b32.xlu0 %v3656, 4
    %v3955 = vpop.permute.xlu0 %3954
    %3956 = vrot.lane.b32.xlu0 %v3657, 4
    %v3957 = vpop.permute.xlu0 %3956
    %3958 = vrot.lane.b32.xlu0 %v3658, 4
    %v3959 = vpop.permute.xlu0 %3958
    %3960 = vrot.lane.b32.xlu0 %v3659, 4
    %v3961 = vpop.permute.xlu0 %3960
    %3962 = vrot.lane.b32.xlu0 %v3660, 4
    %v3963 = vpop.permute.xlu0 %3962
    %3964 = vrot.lane.b32.xlu0 %v3661, 4
    %v3965 = vpop.permute.xlu0 %3964
    %3966 = vrot.lane.b32.xlu0 %v3662, 4
    %v3967 = vpop.permute.xlu0 %3966
    %3968 = vrot.lane.b32.xlu0 %v3663, 4
    %v3969 = vpop.permute.xlu0 %3968
    %3970 = vrot.lane.b32.xlu0 %v3664, 4
    %v3971 = vpop.permute.xlu0 %3970
    %3972 = vrot.lane.b32.xlu0 %v3665, 4
    %v3973 = vpop.permute.xlu0 %3972
    %3974 = vrot.lane.b32.xlu0 %v3666, 4
    %v3975 = vpop.permute.xlu0 %3974
    %3976 = vrot.lane.b32.xlu0 %v3667, 4
    %v3977 = vpop.permute.xlu0 %3976
    %3978 = vrot.lane.b32.xlu0 %v3668, 4
    %v3979 = vpop.permute.xlu0 %3978
    %3980 = vrot.lane.b32.xlu0 %v3669, 4
    %v3981 = vpop.permute.xlu0 %3980
    %3982 = vrot.lane.b32.xlu0 %v3670, 4
    %v3983 = vpop.permute.xlu0 %3982
    %3984 = vrot.lane.b32.xlu0 %v3671, 4
    %v3985 = vpop.permute.xlu0 %3984
    %3986 = vrot.lane.b32.xlu0 %v3672, 4
    %v3987 = vpop.permute.xlu0 %3986
    %3988 = vrot.lane.b32.xlu0 %v3673, 4
    %v3989 = vpop.permute.xlu0 %3988
    %3990 = vrot.lane.b32.xlu0 %v3674, 4
    %v3991 = vpop.permute.xlu0 %3990
    %3992 = vrot.lane.b32.xlu0 %v3675, 4
    %v3993 = vpop.permute.xlu0 %3992
    %3994 = vrot.lane.b32.xlu0 %v3676, 4
    %v3995 = vpop.permute.xlu0 %3994
    %3996 = vrot.lane.b32.xlu0 %v3677, 4
    %v3997 = vpop.permute.xlu0 %3996
    %3998 = vrot.lane.b32.xlu0 %v3678, 4
    %v3999 = vpop.permute.xlu0 %3998
    %4000 = vrot.lane.b32.xlu0 %v3679, 4
    %v4001 = vpop.permute.xlu0 %4000
    %vm4034 = vcmask 48160
    %4035 = vst.msk [vmem:[#allocation2] sm:$0xff] %vm4034, %v3939
    %4036 = vst.msk [vmem:[#allocation2 + $0x8] sm:$0xff] %vm4034, %v3941
    %4037 = vst.msk [vmem:[#allocation2 + $0x10] sm:$0xff] %vm4034, %v3943
    %4038 = vst.msk [vmem:[#allocation2 + $0x18] sm:$0xff] %vm4034, %v3945
    %4039 = vst.msk [vmem:[#allocation2 + $0x20] sm:$0xff] %vm4034, %v3947
    %4040 = vst.msk [vmem:[#allocation2 + $0x28] sm:$0xff] %vm4034, %v3949
    %4041 = vst.msk [vmem:[#allocation2 + $0x30] sm:$0xff] %vm4034, %v3951
    %4042 = vst.msk [vmem:[#allocation2 + $0x38] sm:$0xff] %vm4034, %v3953
    %4043 = vst.msk [vmem:[#allocation2 + $0x40] sm:$0xff] %vm4034, %v3955
    %4044 = vst.msk [vmem:[#allocation2 + $0x48] sm:$0xff] %vm4034, %v3957
    %4045 = vst.msk [vmem:[#allocation2 + $0x50] sm:$0xff] %vm4034, %v3959
    %4046 = vst.msk [vmem:[#allocation2 + $0x58] sm:$0xff] %vm4034, %v3961
    %4047 = vst.msk [vmem:[#allocation2 + $0x60] sm:$0xff] %vm4034, %v3963
    %4048 = vst.msk [vmem:[#allocation2 + $0x68] sm:$0xff] %vm4034, %v3965
    %4049 = vst.msk [vmem:[#allocation2 + $0x70] sm:$0xff] %vm4034, %v3967
    %4050 = vst.msk [vmem:[#allocation2 + $0x78] sm:$0xff] %vm4034, %v3969
    %4051 = vst.msk [vmem:[#allocation2 + $0x80] sm:$0xff] %vm4034, %v3971
    %4052 = vst.msk [vmem:[#allocation2 + $0x88] sm:$0xff] %vm4034, %v3973
    %4053 = vst.msk [vmem:[#allocation2 + $0x90] sm:$0xff] %vm4034, %v3975
    %4054 = vst.msk [vmem:[#allocation2 + $0x98] sm:$0xff] %vm4034, %v3977
    %4055 = vst.msk [vmem:[#allocation2 + $0xa0] sm:$0xff] %vm4034, %v3979
    %4056 = vst.msk [vmem:[#allocation2 + $0xa8] sm:$0xff] %vm4034, %v3981
    %4057 = vst.msk [vmem:[#allocation2 + $0xb0] sm:$0xff] %vm4034, %v3983
    %4058 = vst.msk [vmem:[#allocation2 + $0xb8] sm:$0xff] %vm4034, %v3985
    %4059 = vst.msk [vmem:[#allocation2 + $0xc0] sm:$0xff] %vm4034, %v3987
    %4060 = vst.msk [vmem:[#allocation2 + $0xc8] sm:$0xff] %vm4034, %v3989
    %4061 = vst.msk [vmem:[#allocation2 + $0xd0] sm:$0xff] %vm4034, %v3991
    %4062 = vst.msk [vmem:[#allocation2 + $0xd8] sm:$0xff] %vm4034, %v3993
    %4063 = vst.msk [vmem:[#allocation2 + $0xe0] sm:$0xff] %vm4034, %v3995
    %4064 = vst.msk [vmem:[#allocation2 + $0xe8] sm:$0xff] %vm4034, %v3997
    %4065 = vst.msk [vmem:[#allocation2 + $0xf0] sm:$0xff] %vm4034, %v3999
    %4066 = vst.msk [vmem:[#allocation2 + $0xf8] sm:$0xff] %vm4034, %v4001
    %4099 = vrot.lane.b32.xlu0 %v3680, 6
    %v4100 = vpop.permute.xlu0 %4099
    %4101 = vrot.lane.b32.xlu0 %v3681, 6
    %v4102 = vpop.permute.xlu0 %4101
    %4103 = vrot.lane.b32.xlu0 %v3682, 6
    %v4104 = vpop.permute.xlu0 %4103
    %4105 = vrot.lane.b32.xlu0 %v3683, 6
    %v4106 = vpop.permute.xlu0 %4105
    %4107 = vrot.lane.b32.xlu0 %v3684, 6
    %v4108 = vpop.permute.xlu0 %4107
    %4109 = vrot.lane.b32.xlu0 %v3685, 6
    %v4110 = vpop.permute.xlu0 %4109
    %4111 = vrot.lane.b32.xlu0 %v3686, 6
    %v4112 = vpop.permute.xlu0 %4111
    %4113 = vrot.lane.b32.xlu0 %v3687, 6
    %v4114 = vpop.permute.xlu0 %4113
    %4115 = vrot.lane.b32.xlu0 %v3688, 6
    %v4116 = vpop.permute.xlu0 %4115
    %4117 = vrot.lane.b32.xlu0 %v3689, 6
    %v4118 = vpop.permute.xlu0 %4117
    %4119 = vrot.lane.b32.xlu0 %v3690, 6
    %v4120 = vpop.permute.xlu0 %4119
    %4121 = vrot.lane.b32.xlu0 %v3691, 6
    %v4122 = vpop.permute.xlu0 %4121
    %4123 = vrot.lane.b32.xlu0 %v3692, 6
    %v4124 = vpop.permute.xlu0 %4123
    %4125 = vrot.lane.b32.xlu0 %v3693, 6
    %v4126 = vpop.permute.xlu0 %4125
    %4127 = vrot.lane.b32.xlu0 %v3694, 6
    %v4128 = vpop.permute.xlu0 %4127
    %4129 = vrot.lane.b32.xlu0 %v3695, 6
    %v4130 = vpop.permute.xlu0 %4129
    %4131 = vrot.lane.b32.xlu0 %v3696, 6
    %v4132 = vpop.permute.xlu0 %4131
    %4133 = vrot.lane.b32.xlu0 %v3697, 6
    %v4134 = vpop.permute.xlu0 %4133
    %4135 = vrot.lane.b32.xlu0 %v3698, 6
    %v4136 = vpop.permute.xlu0 %4135
    %4137 = vrot.lane.b32.xlu0 %v3699, 6
    %v4138 = vpop.permute.xlu0 %4137
    %4139 = vrot.lane.b32.xlu0 %v3700, 6
    %v4140 = vpop.permute.xlu0 %4139
    %4141 = vrot.lane.b32.xlu0 %v3701, 6
    %v4142 = vpop.permute.xlu0 %4141
    %4143 = vrot.lane.b32.xlu0 %v3702, 6
    %v4144 = vpop.permute.xlu0 %4143
    %4145 = vrot.lane.b32.xlu0 %v3703, 6
    %v4146 = vpop.permute.xlu0 %4145
    %4147 = vrot.lane.b32.xlu0 %v3704, 6
    %v4148 = vpop.permute.xlu0 %4147
    %4149 = vrot.lane.b32.xlu0 %v3705, 6
    %v4150 = vpop.permute.xlu0 %4149
    %4151 = vrot.lane.b32.xlu0 %v3706, 6
    %v4152 = vpop.permute.xlu0 %4151
    %4153 = vrot.lane.b32.xlu0 %v3707, 6
    %v4154 = vpop.permute.xlu0 %4153
    %4155 = vrot.lane.b32.xlu0 %v3708, 6
    %v4156 = vpop.permute.xlu0 %4155
    %4157 = vrot.lane.b32.xlu0 %v3709, 6
    %v4158 = vpop.permute.xlu0 %4157
    %4159 = vrot.lane.b32.xlu0 %v3710, 6
    %v4160 = vpop.permute.xlu0 %4159
    %4161 = vrot.lane.b32.xlu0 %v3711, 6
    %v4162 = vpop.permute.xlu0 %4161
    %vm4195 = vcmask 64560
    %4196 = vst.msk [vmem:[#allocation2] sm:$0xff] %vm4195, %v4100
    %4197 = vst.msk [vmem:[#allocation2 + $0x8] sm:$0xff] %vm4195, %v4102
    %4198 = vst.msk [vmem:[#allocation2 + $0x10] sm:$0xff] %vm4195, %v4104
    %4199 = vst.msk [vmem:[#allocation2 + $0x18] sm:$0xff] %vm4195, %v4106
    %4200 = vst.msk [vmem:[#allocation2 + $0x20] sm:$0xff] %vm4195, %v4108
    %4201 = vst.msk [vmem:[#allocation2 + $0x28] sm:$0xff] %vm4195, %v4110
    %4202 = vst.msk [vmem:[#allocation2 + $0x30] sm:$0xff] %vm4195, %v4112
    %4203 = vst.msk [vmem:[#allocation2 + $0x38] sm:$0xff] %vm4195, %v4114
    %4204 = vst.msk [vmem:[#allocation2 + $0x40] sm:$0xff] %vm4195, %v4116
    %4205 = vst.msk [vmem:[#allocation2 + $0x48] sm:$0xff] %vm4195, %v4118
    %4206 = vst.msk [vmem:[#allocation2 + $0x50] sm:$0xff] %vm4195, %v4120
    %4207 = vst.msk [vmem:[#allocation2 + $0x58] sm:$0xff] %vm4195, %v4122
    %4208 = vst.msk [vmem:[#allocation2 + $0x60] sm:$0xff] %vm4195, %v4124
    %4209 = vst.msk [vmem:[#allocation2 + $0x68] sm:$0xff] %vm4195, %v4126
    %4210 = vst.msk [vmem:[#allocation2 + $0x70] sm:$0xff] %vm4195, %v4128
    %4211 = vst.msk [vmem:[#allocation2 + $0x78] sm:$0xff] %vm4195, %v4130
    %4212 = vst.msk [vmem:[#allocation2 + $0x80] sm:$0xff] %vm4195, %v4132
    %4213 = vst.msk [vmem:[#allocation2 + $0x88] sm:$0xff] %vm4195, %v4134
    %4214 = vst.msk [vmem:[#allocation2 + $0x90] sm:$0xff] %vm4195, %v4136
    %4215 = vst.msk [vmem:[#allocation2 + $0x98] sm:$0xff] %vm4195, %v4138
    %4216 = vst.msk [vmem:[#allocation2 + $0xa0] sm:$0xff] %vm4195, %v4140
    %4217 = vst.msk [vmem:[#allocation2 + $0xa8] sm:$0xff] %vm4195, %v4142
    %4218 = vst.msk [vmem:[#allocation2 + $0xb0] sm:$0xff] %vm4195, %v4144
    %4219 = vst.msk [vmem:[#allocation2 + $0xb8] sm:$0xff] %vm4195, %v4146
    %4220 = vst.msk [vmem:[#allocation2 + $0xc0] sm:$0xff] %vm4195, %v4148
    %4221 = vst.msk [vmem:[#allocation2 + $0xc8] sm:$0xff] %vm4195, %v4150
    %4222 = vst.msk [vmem:[#allocation2 + $0xd0] sm:$0xff] %vm4195, %v4152
    %4223 = vst.msk [vmem:[#allocation2 + $0xd8] sm:$0xff] %vm4195, %v4154
    %4224 = vst.msk [vmem:[#allocation2 + $0xe0] sm:$0xff] %vm4195, %v4156
    %4225 = vst.msk [vmem:[#allocation2 + $0xe8] sm:$0xff] %vm4195, %v4158
    %4226 = vst.msk [vmem:[#allocation2 + $0xf0] sm:$0xff] %vm4195, %v4160
    %4227 = vst.msk [vmem:[#allocation2 + $0xf8] sm:$0xff] %vm4195, %v4162
    %v4228 = vld [vmem:[#allocation2] sm:$0xff]
    %v4229 = vld [vmem:[#allocation2 + $0x8] sm:$0xff]
    %v4230 = vld [vmem:[#allocation2 + $0x10] sm:$0xff]
    %v4231 = vld [vmem:[#allocation2 + $0x18] sm:$0xff]
    %v4232 = vld [vmem:[#allocation2 + $0x20] sm:$0xff]
    %v4233 = vld [vmem:[#allocation2 + $0x28] sm:$0xff]
    %v4234 = vld [vmem:[#allocation2 + $0x30] sm:$0xff]
    %v4235 = vld [vmem:[#allocation2 + $0x38] sm:$0xff]
    %v4236 = vld [vmem:[#allocation2 + $0x40] sm:$0xff]
    %v4237 = vld [vmem:[#allocation2 + $0x48] sm:$0xff]
    %v4238 = vld [vmem:[#allocation2 + $0x50] sm:$0xff]
    %v4239 = vld [vmem:[#allocation2 + $0x58] sm:$0xff]
    %v4240 = vld [vmem:[#allocation2 + $0x60] sm:$0xff]
    %v4241 = vld [vmem:[#allocation2 + $0x68] sm:$0xff]
    %v4242 = vld [vmem:[#allocation2 + $0x70] sm:$0xff]
    %v4243 = vld [vmem:[#allocation2 + $0x78] sm:$0xff]
    %v4244 = vld [vmem:[#allocation2 + $0x80] sm:$0xff]
    %v4245 = vld [vmem:[#allocation2 + $0x88] sm:$0xff]
    %v4246 = vld [vmem:[#allocation2 + $0x90] sm:$0xff]
    %v4247 = vld [vmem:[#allocation2 + $0x98] sm:$0xff]
    %v4248 = vld [vmem:[#allocation2 + $0xa0] sm:$0xff]
    %v4249 = vld [vmem:[#allocation2 + $0xa8] sm:$0xff]
    %v4250 = vld [vmem:[#allocation2 + $0xb0] sm:$0xff]
    %v4251 = vld [vmem:[#allocation2 + $0xb8] sm:$0xff]
    %v4252 = vld [vmem:[#allocation2 + $0xc0] sm:$0xff]
    %v4253 = vld [vmem:[#allocation2 + $0xc8] sm:$0xff]
    %v4254 = vld [vmem:[#allocation2 + $0xd0] sm:$0xff]
    %v4255 = vld [vmem:[#allocation2 + $0xd8] sm:$0xff]
    %v4256 = vld [vmem:[#allocation2 + $0xe0] sm:$0xff]
    %v4257 = vld [vmem:[#allocation2 + $0xe8] sm:$0xff]
    %v4258 = vld [vmem:[#allocation2 + $0xf0] sm:$0xff]
    %v4259 = vld [vmem:[#allocation2 + $0xf8] sm:$0xff]
    %v4260 = vld [vmem:[#allocation9] sm:$0xff]
    %v4261 = vld [vmem:[#allocation9 + $0x8] sm:$0xff]
    %v4262 = vld [vmem:[#allocation9 + $0x10] sm:$0xff]
    %v4263 = vld [vmem:[#allocation9 + $0x18] sm:$0xff]
    %v4264 = vld [vmem:[#allocation9 + $0x20] sm:$0xff]
    %v4265 = vld [vmem:[#allocation9 + $0x28] sm:$0xff]
    %v4266 = vld [vmem:[#allocation9 + $0x30] sm:$0xff]
    %v4267 = vld [vmem:[#allocation9 + $0x38] sm:$0xff]
    %v4268 = vld [vmem:[#allocation9 + $0x40] sm:$0xff]
    %v4269 = vld [vmem:[#allocation9 + $0x48] sm:$0xff]
    %v4270 = vld [vmem:[#allocation9 + $0x50] sm:$0xff]
    %v4271 = vld [vmem:[#allocation9 + $0x58] sm:$0xff]
    %v4272 = vld [vmem:[#allocation9 + $0x60] sm:$0xff]
    %v4273 = vld [vmem:[#allocation9 + $0x68] sm:$0xff]
    %v4274 = vld [vmem:[#allocation9 + $0x70] sm:$0xff]
    %v4275 = vld [vmem:[#allocation9 + $0x78] sm:$0xff]
    %v4276 = vld [vmem:[#allocation9 + $0x80] sm:$0xff]
    %v4277 = vld [vmem:[#allocation9 + $0x88] sm:$0xff]
    %v4278 = vld [vmem:[#allocation9 + $0x90] sm:$0xff]
    %v4279 = vld [vmem:[#allocation9 + $0x98] sm:$0xff]
    %v4280 = vld [vmem:[#allocation9 + $0xa0] sm:$0xff]
    %v4281 = vld [vmem:[#allocation9 + $0xa8] sm:$0xff]
    %v4282 = vld [vmem:[#allocation9 + $0xb0] sm:$0xff]
    %v4283 = vld [vmem:[#allocation9 + $0xb8] sm:$0xff]
    %v4284 = vld [vmem:[#allocation9 + $0xc0] sm:$0xff]
    %v4285 = vld [vmem:[#allocation9 + $0xc8] sm:$0xff]
    %v4286 = vld [vmem:[#allocation9 + $0xd0] sm:$0xff]
    %v4287 = vld [vmem:[#allocation9 + $0xd8] sm:$0xff]
    %v4288 = vld [vmem:[#allocation9 + $0xe0] sm:$0xff]
    %v4289 = vld [vmem:[#allocation9 + $0xe8] sm:$0xff]
    %v4290 = vld [vmem:[#allocation9 + $0xf0] sm:$0xff]
    %v4291 = vld [vmem:[#allocation9 + $0xf8] sm:$0xff]
    %v4292 = vld [vmem:[#allocation9 + $0x100] sm:$0xff]
    %v4293 = vld [vmem:[#allocation9 + $0x108] sm:$0xff]
    %v4294 = vld [vmem:[#allocation9 + $0x110] sm:$0xff]
    %v4295 = vld [vmem:[#allocation9 + $0x118] sm:$0xff]
    %v4296 = vld [vmem:[#allocation9 + $0x120] sm:$0xff]
    %v4297 = vld [vmem:[#allocation9 + $0x128] sm:$0xff]
    %v4298 = vld [vmem:[#allocation9 + $0x130] sm:$0xff]
    %v4299 = vld [vmem:[#allocation9 + $0x138] sm:$0xff]
    %v4300 = vld [vmem:[#allocation9 + $0x140] sm:$0xff]
    %v4301 = vld [vmem:[#allocation9 + $0x148] sm:$0xff]
    %v4302 = vld [vmem:[#allocation9 + $0x150] sm:$0xff]
    %v4303 = vld [vmem:[#allocation9 + $0x158] sm:$0xff]
    %v4304 = vld [vmem:[#allocation9 + $0x160] sm:$0xff]
    %v4305 = vld [vmem:[#allocation9 + $0x168] sm:$0xff]
    %v4306 = vld [vmem:[#allocation9 + $0x170] sm:$0xff]
    %v4307 = vld [vmem:[#allocation9 + $0x178] sm:$0xff]
    %v4308 = vld [vmem:[#allocation9 + $0x180] sm:$0xff]
    %v4309 = vld [vmem:[#allocation9 + $0x188] sm:$0xff]
    %v4310 = vld [vmem:[#allocation9 + $0x190] sm:$0xff]
    %v4311 = vld [vmem:[#allocation9 + $0x198] sm:$0xff]
    %v4312 = vld [vmem:[#allocation9 + $0x1a0] sm:$0xff]
    %v4313 = vld [vmem:[#allocation9 + $0x1a8] sm:$0xff]
    %v4314 = vld [vmem:[#allocation9 + $0x1b0] sm:$0xff]
    %v4315 = vld [vmem:[#allocation9 + $0x1b8] sm:$0xff]
    %v4316 = vld [vmem:[#allocation9 + $0x1c0] sm:$0xff]
    %v4317 = vld [vmem:[#allocation9 + $0x1c8] sm:$0xff]
    %v4318 = vld [vmem:[#allocation9 + $0x1d0] sm:$0xff]
    %v4319 = vld [vmem:[#allocation9 + $0x1d8] sm:$0xff]
    %v4320 = vld [vmem:[#allocation9 + $0x1e0] sm:$0xff]
    %v4321 = vld [vmem:[#allocation9 + $0x1e8] sm:$0xff]
    %v4322 = vld [vmem:[#allocation9 + $0x1f0] sm:$0xff]
    %v4323 = vld [vmem:[#allocation9 + $0x1f8] sm:$0xff]
    %v4324 = vld [vmem:[#allocation9 + $0x200] sm:$0xff]
    %v4325 = vld [vmem:[#allocation9 + $0x208] sm:$0xff]
    %v4326 = vld [vmem:[#allocation9 + $0x210] sm:$0xff]
    %v4327 = vld [vmem:[#allocation9 + $0x218] sm:$0xff]
    %v4328 = vld [vmem:[#allocation9 + $0x220] sm:$0xff]
    %v4329 = vld [vmem:[#allocation9 + $0x228] sm:$0xff]
    %v4330 = vld [vmem:[#allocation9 + $0x230] sm:$0xff]
    %v4331 = vld [vmem:[#allocation9 + $0x238] sm:$0xff]
    %v4332 = vld [vmem:[#allocation9 + $0x240] sm:$0xff]
    %v4333 = vld [vmem:[#allocation9 + $0x248] sm:$0xff]
    %v4334 = vld [vmem:[#allocation9 + $0x250] sm:$0xff]
    %v4335 = vld [vmem:[#allocation9 + $0x258] sm:$0xff]
    %v4336 = vld [vmem:[#allocation9 + $0x260] sm:$0xff]
    %v4337 = vld [vmem:[#allocation9 + $0x268] sm:$0xff]
    %v4338 = vld [vmem:[#allocation9 + $0x270] sm:$0xff]
    %v4339 = vld [vmem:[#allocation9 + $0x278] sm:$0xff]
    %v4340 = vld [vmem:[#allocation9 + $0x280] sm:$0xff]
    %v4341 = vld [vmem:[#allocation9 + $0x288] sm:$0xff]
    %v4342 = vld [vmem:[#allocation9 + $0x290] sm:$0xff]
    %v4343 = vld [vmem:[#allocation9 + $0x298] sm:$0xff]
    %v4344 = vld [vmem:[#allocation9 + $0x2a0] sm:$0xff]
    %v4345 = vld [vmem:[#allocation9 + $0x2a8] sm:$0xff]
    %v4346 = vld [vmem:[#allocation9 + $0x2b0] sm:$0xff]
    %v4347 = vld [vmem:[#allocation9 + $0x2b8] sm:$0xff]
    %v4348 = vld [vmem:[#allocation9 + $0x2c0] sm:$0xff]
    %v4349 = vld [vmem:[#allocation9 + $0x2c8] sm:$0xff]
    %v4350 = vld [vmem:[#allocation9 + $0x2d0] sm:$0xff]
    %v4351 = vld [vmem:[#allocation9 + $0x2d8] sm:$0xff]
    %v4352 = vld [vmem:[#allocation9 + $0x2e0] sm:$0xff]
    %v4353 = vld [vmem:[#allocation9 + $0x2e8] sm:$0xff]
    %v4354 = vld [vmem:[#allocation9 + $0x2f0] sm:$0xff]
    %v4355 = vld [vmem:[#allocation9 + $0x2f8] sm:$0xff]
    %v4356 = vld [vmem:[#allocation9 + $0x300] sm:$0xff]
    %v4357 = vld [vmem:[#allocation9 + $0x308] sm:$0xff]
    %v4358 = vld [vmem:[#allocation9 + $0x310] sm:$0xff]
    %v4359 = vld [vmem:[#allocation9 + $0x318] sm:$0xff]
    %v4360 = vld [vmem:[#allocation9 + $0x320] sm:$0xff]
    %v4361 = vld [vmem:[#allocation9 + $0x328] sm:$0xff]
    %v4362 = vld [vmem:[#allocation9 + $0x330] sm:$0xff]
    %v4363 = vld [vmem:[#allocation9 + $0x338] sm:$0xff]
    %v4364 = vld [vmem:[#allocation9 + $0x340] sm:$0xff]
    %v4365 = vld [vmem:[#allocation9 + $0x348] sm:$0xff]
    %v4366 = vld [vmem:[#allocation9 + $0x350] sm:$0xff]
    %v4367 = vld [vmem:[#allocation9 + $0x358] sm:$0xff]
    %v4368 = vld [vmem:[#allocation9 + $0x360] sm:$0xff]
    %v4369 = vld [vmem:[#allocation9 + $0x368] sm:$0xff]
    %v4370 = vld [vmem:[#allocation9 + $0x370] sm:$0xff]
    %v4371 = vld [vmem:[#allocation9 + $0x378] sm:$0xff]
    %v4372 = vld [vmem:[#allocation9 + $0x380] sm:$0xff]
    %v4373 = vld [vmem:[#allocation9 + $0x388] sm:$0xff]
    %v4374 = vld [vmem:[#allocation9 + $0x390] sm:$0xff]
    %v4375 = vld [vmem:[#allocation9 + $0x398] sm:$0xff]
    %v4376 = vld [vmem:[#allocation9 + $0x3a0] sm:$0xff]
    %v4377 = vld [vmem:[#allocation9 + $0x3a8] sm:$0xff]
    %v4378 = vld [vmem:[#allocation9 + $0x3b0] sm:$0xff]
    %v4379 = vld [vmem:[#allocation9 + $0x3b8] sm:$0xff]
    %v4380 = vld [vmem:[#allocation9 + $0x3c0] sm:$0xff]
    %v4381 = vld [vmem:[#allocation9 + $0x3c8] sm:$0xff]
    %v4382 = vld [vmem:[#allocation9 + $0x3d0] sm:$0xff]
    %v4383 = vld [vmem:[#allocation9 + $0x3d8] sm:$0xff]
    %v4384 = vld [vmem:[#allocation9 + $0x3e0] sm:$0xff]
    %v4385 = vld [vmem:[#allocation9 + $0x3e8] sm:$0xff]
    %v4386 = vld [vmem:[#allocation9 + $0x3f0] sm:$0xff]
    %v4387 = vld [vmem:[#allocation9 + $0x3f8] sm:$0xff]
    %v4388 = vld [vmem:[#allocation10] sm:$0xff]
    %v4389 = vld [vmem:[#allocation10 + $0x8] sm:$0xff]
    %v4390 = vld [vmem:[#allocation10 + $0x10] sm:$0xff]
    %v4391 = vld [vmem:[#allocation10 + $0x18] sm:$0xff]
    %v4392 = vld [vmem:[#allocation10 + $0x20] sm:$0xff]
    %v4393 = vld [vmem:[#allocation10 + $0x28] sm:$0xff]
    %v4394 = vld [vmem:[#allocation10 + $0x30] sm:$0xff]
    %v4395 = vld [vmem:[#allocation10 + $0x38] sm:$0xff]
    %v4396 = vld [vmem:[#allocation10 + $0x40] sm:$0xff]
    %v4397 = vld [vmem:[#allocation10 + $0x48] sm:$0xff]
    %v4398 = vld [vmem:[#allocation10 + $0x50] sm:$0xff]
    %v4399 = vld [vmem:[#allocation10 + $0x58] sm:$0xff]
    %v4400 = vld [vmem:[#allocation10 + $0x60] sm:$0xff]
    %v4401 = vld [vmem:[#allocation10 + $0x68] sm:$0xff]
    %v4402 = vld [vmem:[#allocation10 + $0x70] sm:$0xff]
    %v4403 = vld [vmem:[#allocation10 + $0x78] sm:$0xff]
    %v4404 = vld [vmem:[#allocation10 + $0x80] sm:$0xff]
    %v4405 = vld [vmem:[#allocation10 + $0x88] sm:$0xff]
    %v4406 = vld [vmem:[#allocation10 + $0x90] sm:$0xff]
    %v4407 = vld [vmem:[#allocation10 + $0x98] sm:$0xff]
    %v4408 = vld [vmem:[#allocation10 + $0xa0] sm:$0xff]
    %v4409 = vld [vmem:[#allocation10 + $0xa8] sm:$0xff]
    %v4410 = vld [vmem:[#allocation10 + $0xb0] sm:$0xff]
    %v4411 = vld [vmem:[#allocation10 + $0xb8] sm:$0xff]
    %v4412 = vld [vmem:[#allocation10 + $0xc0] sm:$0xff]
    %v4413 = vld [vmem:[#allocation10 + $0xc8] sm:$0xff]
    %v4414 = vld [vmem:[#allocation10 + $0xd0] sm:$0xff]
    %v4415 = vld [vmem:[#allocation10 + $0xd8] sm:$0xff]
    %v4416 = vld [vmem:[#allocation10 + $0xe0] sm:$0xff]
    %v4417 = vld [vmem:[#allocation10 + $0xe8] sm:$0xff]
    %v4418 = vld [vmem:[#allocation10 + $0xf0] sm:$0xff]
    %v4419 = vld [vmem:[#allocation10 + $0xf8] sm:$0xff]
    %v4420 = vld [vmem:[#allocation10 + $0x100] sm:$0xff]
    %v4421 = vld [vmem:[#allocation10 + $0x108] sm:$0xff]
    %v4422 = vld [vmem:[#allocation10 + $0x110] sm:$0xff]
    %v4423 = vld [vmem:[#allocation10 + $0x118] sm:$0xff]
    %v4424 = vld [vmem:[#allocation10 + $0x120] sm:$0xff]
    %v4425 = vld [vmem:[#allocation10 + $0x128] sm:$0xff]
    %v4426 = vld [vmem:[#allocation10 + $0x130] sm:$0xff]
    %v4427 = vld [vmem:[#allocation10 + $0x138] sm:$0xff]
    %v4428 = vld [vmem:[#allocation10 + $0x140] sm:$0xff]
    %v4429 = vld [vmem:[#allocation10 + $0x148] sm:$0xff]
    %v4430 = vld [vmem:[#allocation10 + $0x150] sm:$0xff]
    %v4431 = vld [vmem:[#allocation10 + $0x158] sm:$0xff]
    %v4432 = vld [vmem:[#allocation10 + $0x160] sm:$0xff]
    %v4433 = vld [vmem:[#allocation10 + $0x168] sm:$0xff]
    %v4434 = vld [vmem:[#allocation10 + $0x170] sm:$0xff]
    %v4435 = vld [vmem:[#allocation10 + $0x178] sm:$0xff]
    %v4436 = vld [vmem:[#allocation10 + $0x180] sm:$0xff]
    %v4437 = vld [vmem:[#allocation10 + $0x188] sm:$0xff]
    %v4438 = vld [vmem:[#allocation10 + $0x190] sm:$0xff]
    %v4439 = vld [vmem:[#allocation10 + $0x198] sm:$0xff]
    %v4440 = vld [vmem:[#allocation10 + $0x1a0] sm:$0xff]
    %v4441 = vld [vmem:[#allocation10 + $0x1a8] sm:$0xff]
    %v4442 = vld [vmem:[#allocation10 + $0x1b0] sm:$0xff]
    %v4443 = vld [vmem:[#allocation10 + $0x1b8] sm:$0xff]
    %v4444 = vld [vmem:[#allocation10 + $0x1c0] sm:$0xff]
    %v4445 = vld [vmem:[#allocation10 + $0x1c8] sm:$0xff]
    %v4446 = vld [vmem:[#allocation10 + $0x1d0] sm:$0xff]
    %v4447 = vld [vmem:[#allocation10 + $0x1d8] sm:$0xff]
    %v4448 = vld [vmem:[#allocation10 + $0x1e0] sm:$0xff]
    %v4449 = vld [vmem:[#allocation10 + $0x1e8] sm:$0xff]
    %v4450 = vld [vmem:[#allocation10 + $0x1f0] sm:$0xff]
    %v4451 = vld [vmem:[#allocation10 + $0x1f8] sm:$0xff]
    %4453 = vset.pattern.permute.xlu0 0
    %4454 = vperm.xlu0 %4453, %v4388
    %v4455 = vpop.permute.xlu0 %4454
    %4458 = vset.pattern.permute.xlu0 0
    %4459 = vperm.xlu0 %4458, %v4389
    %v4460 = vpop.permute.xlu0 %4459
    %4463 = vset.pattern.permute.xlu0 0
    %4464 = vperm.xlu0 %4463, %v4390
    %v4465 = vpop.permute.xlu0 %4464
    %4468 = vset.pattern.permute.xlu0 0
    %4469 = vperm.xlu0 %4468, %v4391
    %v4470 = vpop.permute.xlu0 %4469
    %4473 = vset.pattern.permute.xlu0 0
    %4474 = vperm.xlu0 %4473, %v4392
    %v4475 = vpop.permute.xlu0 %4474
    %4478 = vset.pattern.permute.xlu0 0
    %4479 = vperm.xlu0 %4478, %v4393
    %v4480 = vpop.permute.xlu0 %4479
    %4483 = vset.pattern.permute.xlu0 0
    %4484 = vperm.xlu0 %4483, %v4394
    %v4485 = vpop.permute.xlu0 %4484
    %4488 = vset.pattern.permute.xlu0 0
    %4489 = vperm.xlu0 %4488, %v4395
    %v4490 = vpop.permute.xlu0 %4489
    %4493 = vset.pattern.permute.xlu0 0
    %4494 = vperm.xlu0 %4493, %v4396
    %v4495 = vpop.permute.xlu0 %4494
    %4498 = vset.pattern.permute.xlu0 0
    %4499 = vperm.xlu0 %4498, %v4397
    %v4500 = vpop.permute.xlu0 %4499
    %4503 = vset.pattern.permute.xlu0 0
    %4504 = vperm.xlu0 %4503, %v4398
    %v4505 = vpop.permute.xlu0 %4504
    %4508 = vset.pattern.permute.xlu0 0
    %4509 = vperm.xlu0 %4508, %v4399
    %v4510 = vpop.permute.xlu0 %4509
    %4513 = vset.pattern.permute.xlu0 0
    %4514 = vperm.xlu0 %4513, %v4400
    %v4515 = vpop.permute.xlu0 %4514
    %4518 = vset.pattern.permute.xlu0 0
    %4519 = vperm.xlu0 %4518, %v4401
    %v4520 = vpop.permute.xlu0 %4519
    %4523 = vset.pattern.permute.xlu0 0
    %4524 = vperm.xlu0 %4523, %v4402
    %v4525 = vpop.permute.xlu0 %4524
    %4528 = vset.pattern.permute.xlu0 0
    %4529 = vperm.xlu0 %4528, %v4403
    %v4530 = vpop.permute.xlu0 %4529
    %4533 = vset.pattern.permute.xlu0 0
    %4534 = vperm.xlu0 %4533, %v4404
    %v4535 = vpop.permute.xlu0 %4534
    %4538 = vset.pattern.permute.xlu0 0
    %4539 = vperm.xlu0 %4538, %v4405
    %v4540 = vpop.permute.xlu0 %4539
    %4543 = vset.pattern.permute.xlu0 0
    %4544 = vperm.xlu0 %4543, %v4406
    %v4545 = vpop.permute.xlu0 %4544
    %4548 = vset.pattern.permute.xlu0 0
    %4549 = vperm.xlu0 %4548, %v4407
    %v4550 = vpop.permute.xlu0 %4549
    %4553 = vset.pattern.permute.xlu0 0
    %4554 = vperm.xlu0 %4553, %v4408
    %v4555 = vpop.permute.xlu0 %4554
    %4558 = vset.pattern.permute.xlu0 0
    %4559 = vperm.xlu0 %4558, %v4409
    %v4560 = vpop.permute.xlu0 %4559
    %4563 = vset.pattern.permute.xlu0 0
    %4564 = vperm.xlu0 %4563, %v4410
    %v4565 = vpop.permute.xlu0 %4564
    %4568 = vset.pattern.permute.xlu0 0
    %4569 = vperm.xlu0 %4568, %v4411
    %v4570 = vpop.permute.xlu0 %4569
    %4573 = vset.pattern.permute.xlu0 0
    %4574 = vperm.xlu0 %4573, %v4412
    %v4575 = vpop.permute.xlu0 %4574
    %4578 = vset.pattern.permute.xlu0 0
    %4579 = vperm.xlu0 %4578, %v4413
    %v4580 = vpop.permute.xlu0 %4579
    %4583 = vset.pattern.permute.xlu0 0
    %4584 = vperm.xlu0 %4583, %v4414
    %v4585 = vpop.permute.xlu0 %4584
    %4588 = vset.pattern.permute.xlu0 0
    %4589 = vperm.xlu0 %4588, %v4415
    %v4590 = vpop.permute.xlu0 %4589
    %4593 = vset.pattern.permute.xlu0 0
    %4594 = vperm.xlu0 %4593, %v4416
    %v4595 = vpop.permute.xlu0 %4594
    %4598 = vset.pattern.permute.xlu0 0
    %4599 = vperm.xlu0 %4598, %v4417
    %v4600 = vpop.permute.xlu0 %4599
    %4603 = vset.pattern.permute.xlu0 0
    %4604 = vperm.xlu0 %4603, %v4418
    %v4605 = vpop.permute.xlu0 %4604
    %4608 = vset.pattern.permute.xlu0 0
    %4609 = vperm.xlu0 %4608, %v4419
    %v4610 = vpop.permute.xlu0 %4609
    %4613 = vset.pattern.permute.xlu0 0
    %4614 = vperm.xlu0 %4613, %v4420
    %v4615 = vpop.permute.xlu0 %4614
    %4618 = vset.pattern.permute.xlu0 0
    %4619 = vperm.xlu0 %4618, %v4421
    %v4620 = vpop.permute.xlu0 %4619
    %4623 = vset.pattern.permute.xlu0 0
    %4624 = vperm.xlu0 %4623, %v4422
    %v4625 = vpop.permute.xlu0 %4624
    %4628 = vset.pattern.permute.xlu0 0
    %4629 = vperm.xlu0 %4628, %v4423
    %v4630 = vpop.permute.xlu0 %4629
    %4633 = vset.pattern.permute.xlu0 0
    %4634 = vperm.xlu0 %4633, %v4424
    %v4635 = vpop.permute.xlu0 %4634
    %4638 = vset.pattern.permute.xlu0 0
    %4639 = vperm.xlu0 %4638, %v4425
    %v4640 = vpop.permute.xlu0 %4639
    %4643 = vset.pattern.permute.xlu0 0
    %4644 = vperm.xlu0 %4643, %v4426
    %v4645 = vpop.permute.xlu0 %4644
    %4648 = vset.pattern.permute.xlu0 0
    %4649 = vperm.xlu0 %4648, %v4427
    %v4650 = vpop.permute.xlu0 %4649
    %4653 = vset.pattern.permute.xlu0 0
    %4654 = vperm.xlu0 %4653, %v4428
    %v4655 = vpop.permute.xlu0 %4654
    %4658 = vset.pattern.permute.xlu0 0
    %4659 = vperm.xlu0 %4658, %v4429
    %v4660 = vpop.permute.xlu0 %4659
    %4663 = vset.pattern.permute.xlu0 0
    %4664 = vperm.xlu0 %4663, %v4430
    %v4665 = vpop.permute.xlu0 %4664
    %4668 = vset.pattern.permute.xlu0 0
    %4669 = vperm.xlu0 %4668, %v4431
    %v4670 = vpop.permute.xlu0 %4669
    %4673 = vset.pattern.permute.xlu0 0
    %4674 = vperm.xlu0 %4673, %v4432
    %v4675 = vpop.permute.xlu0 %4674
    %4678 = vset.pattern.permute.xlu0 0
    %4679 = vperm.xlu0 %4678, %v4433
    %v4680 = vpop.permute.xlu0 %4679
    %4683 = vset.pattern.permute.xlu0 0
    %4684 = vperm.xlu0 %4683, %v4434
    %v4685 = vpop.permute.xlu0 %4684
    %4688 = vset.pattern.permute.xlu0 0
    %4689 = vperm.xlu0 %4688, %v4435
    %v4690 = vpop.permute.xlu0 %4689
    %4693 = vset.pattern.permute.xlu0 0
    %4694 = vperm.xlu0 %4693, %v4436
    %v4695 = vpop.permute.xlu0 %4694
    %4698 = vset.pattern.permute.xlu0 0
    %4699 = vperm.xlu0 %4698, %v4437
    %v4700 = vpop.permute.xlu0 %4699
    %4703 = vset.pattern.permute.xlu0 0
    %4704 = vperm.xlu0 %4703, %v4438
    %v4705 = vpop.permute.xlu0 %4704
    %4708 = vset.pattern.permute.xlu0 0
    %4709 = vperm.xlu0 %4708, %v4439
    %v4710 = vpop.permute.xlu0 %4709
    %4713 = vset.pattern.permute.xlu0 0
    %4714 = vperm.xlu0 %4713, %v4440
    %v4715 = vpop.permute.xlu0 %4714
    %4718 = vset.pattern.permute.xlu0 0
    %4719 = vperm.xlu0 %4718, %v4441
    %v4720 = vpop.permute.xlu0 %4719
    %4723 = vset.pattern.permute.xlu0 0
    %4724 = vperm.xlu0 %4723, %v4442
    %v4725 = vpop.permute.xlu0 %4724
    %4728 = vset.pattern.permute.xlu0 0
    %4729 = vperm.xlu0 %4728, %v4443
    %v4730 = vpop.permute.xlu0 %4729
    %4733 = vset.pattern.permute.xlu0 0
    %4734 = vperm.xlu0 %4733, %v4444
    %v4735 = vpop.permute.xlu0 %4734
    %4738 = vset.pattern.permute.xlu0 0
    %4739 = vperm.xlu0 %4738, %v4445
    %v4740 = vpop.permute.xlu0 %4739
    %4743 = vset.pattern.permute.xlu0 0
    %4744 = vperm.xlu0 %4743, %v4446
    %v4745 = vpop.permute.xlu0 %4744
    %4748 = vset.pattern.permute.xlu0 0
    %4749 = vperm.xlu0 %4748, %v4447
    %v4750 = vpop.permute.xlu0 %4749
    %4753 = vset.pattern.permute.xlu0 0
    %4754 = vperm.xlu0 %4753, %v4448
    %v4755 = vpop.permute.xlu0 %4754
    %4758 = vset.pattern.permute.xlu0 0
    %4759 = vperm.xlu0 %4758, %v4449
    %v4760 = vpop.permute.xlu0 %4759
    %4763 = vset.pattern.permute.xlu0 0
    %4764 = vperm.xlu0 %4763, %v4450
    %v4765 = vpop.permute.xlu0 %4764
    %4768 = vset.pattern.permute.xlu0 0
    %4769 = vperm.xlu0 %4768, %v4451
    %v4770 = vpop.permute.xlu0 %4769
    %4772 = vmatprep.subr.mxu0 0.0
    %4773 = vmatpush1.msra.mxu0 %v4243
    %4774 = vmatprep.subr.mxu0 0.0
    %4775 = vmatpush1.msra.mxu0 %v4242
    %4776 = vmatprep.subr.mxu0 0.0
    %4777 = vmatpush1.msra.mxu0 %v4241
    %4778 = vmatprep.subr.mxu0 0.0
    %4779 = vmatpush1.msra.mxu0 %v4240
    %4780 = vmatprep.subr.mxu0 0.0
    %4781 = vmatpush1.msra.mxu0 %v4239
    %4782 = vmatprep.subr.mxu0 0.0
    %4783 = vmatpush1.msra.mxu0 %v4238
    %4784 = vmatprep.subr.mxu0 0.0
    %4785 = vmatpush1.msra.mxu0 %v4237
    %4786 = vmatprep.subr.mxu0 0.0
    %4787 = vmatpush1.msra.mxu0 %v4236
    %4788 = vmatprep.subr.mxu0 0.0
    %4789 = vmatpush1.msra.mxu0 %v4235
    %4790 = vmatprep.subr.mxu0 0.0
    %4791 = vmatpush1.msra.mxu0 %v4234
    %4792 = vmatprep.subr.mxu0 0.0
    %4793 = vmatpush1.msra.mxu0 %v4233
    %4794 = vmatprep.subr.mxu0 0.0
    %4795 = vmatpush1.msra.mxu0 %v4232
    %4796 = vmatprep.subr.mxu0 0.0
    %4797 = vmatpush1.msra.mxu0 %v4231
    %4798 = vmatprep.subr.mxu0 0.0
    %4799 = vmatpush1.msra.mxu0 %v4230
    %4800 = vmatprep.subr.mxu0 0.0
    %4801 = vmatpush1.msra.mxu0 %v4229
    %4802 = vmatprep.subr.mxu0 0.0
    %4803 = vmatpush1.msra.mxu0 %v4228
    %4804 = vmatprep.subr.mxu0 0.0
    %4805 = vmatpush2.msra.mxu0 %v4259
    %4806 = vmatprep.subr.mxu0 0.0
    %4807 = vmatpush2.msra.mxu0 %v4258
    %4808 = vmatprep.subr.mxu0 0.0
    %4809 = vmatpush2.msra.mxu0 %v4257
    %4810 = vmatprep.subr.mxu0 0.0
    %4811 = vmatpush2.msra.mxu0 %v4256
    %4812 = vmatprep.subr.mxu0 0.0
    %4813 = vmatpush2.msra.mxu0 %v4255
    %4814 = vmatprep.subr.mxu0 0.0
    %4815 = vmatpush2.msra.mxu0 %v4254
    %4816 = vmatprep.subr.mxu0 0.0
    %4817 = vmatpush2.msra.mxu0 %v4253
    %4818 = vmatprep.subr.mxu0 0.0
    %4819 = vmatpush2.msra.mxu0 %v4252
    %4820 = vmatprep.subr.mxu0 0.0
    %4821 = vmatpush2.msra.mxu0 %v4251
    %4822 = vmatprep.subr.mxu0 0.0
    %4823 = vmatpush2.msra.mxu0 %v4250
    %4824 = vmatprep.subr.mxu0 0.0
    %4825 = vmatpush2.msra.mxu0 %v4249
    %4826 = vmatprep.subr.mxu0 0.0
    %4827 = vmatpush2.msra.mxu0 %v4248
    %4828 = vmatprep.subr.mxu0 0.0
    %4829 = vmatpush2.msra.mxu0 %v4247
    %4830 = vmatprep.subr.mxu0 0.0
    %4831 = vmatpush2.msra.mxu0 %v4246
    %4832 = vmatprep.subr.mxu0 0.0
    %4833 = vmatpush2.msra.mxu0 %v4245
    %4834 = vmatprep.subr.mxu0 0.0
    %4835 = vmatpush2.msra.mxu0 %v4244
    %4836 = vmatprep.mubr.f32.mxu0 %v4261
    %4837 = vmatmul.mubr.f32.gmra.mxu0 %v4260
    %v4838 = vpop.f32.mrf.mxu0
    %v4839 = vadd.f32 %v4455, %v4838
    %v4840 = vpop.f32.mrf.mxu0
    %4841 = vmatprep.mubr.f32.mxu0 %v4263
    %4842 = vmatmul.mubr.f32.gmra.mxu0 %v4262
    %v4843 = vpop.f32.mrf.mxu0
    %v4844 = vadd.f32 %v4460, %v4843
    %v4845 = vpop.f32.mrf.mxu0
    %4846 = vmatprep.mubr.f32.mxu0 %v4265
    %4847 = vmatmul.mubr.f32.gmra.mxu0 %v4264
    %v4848 = vpop.f32.mrf.mxu0
    %v4849 = vadd.f32 %v4465, %v4848
    %v4850 = vpop.f32.mrf.mxu0
    %4851 = vmatprep.mubr.f32.mxu0 %v4267
    %4852 = vmatmul.mubr.f32.gmra.mxu0 %v4266
    %v4853 = vpop.f32.mrf.mxu0
    %v4854 = vadd.f32 %v4470, %v4853
    %v4855 = vpop.f32.mrf.mxu0
    %4856 = vmatprep.mubr.f32.mxu0 %v4269
    %4857 = vmatmul.mubr.f32.gmra.mxu0 %v4268
    %v4858 = vpop.f32.mrf.mxu0
    %v4859 = vadd.f32 %v4475, %v4858
    %v4860 = vpop.f32.mrf.mxu0
    %4861 = vmatprep.mubr.f32.mxu0 %v4271
    %4862 = vmatmul.mubr.f32.gmra.mxu0 %v4270
    %v4863 = vpop.f32.mrf.mxu0
    %v4864 = vadd.f32 %v4480, %v4863
    %v4865 = vpop.f32.mrf.mxu0
    %4866 = vmatprep.mubr.f32.mxu0 %v4273
    %4867 = vmatmul.mubr.f32.gmra.mxu0 %v4272
    %v4868 = vpop.f32.mrf.mxu0
    %v4869 = vadd.f32 %v4485, %v4868
    %v4870 = vpop.f32.mrf.mxu0
    %4871 = vmatprep.mubr.f32.mxu0 %v4275
    %4872 = vmatmul.mubr.f32.gmra.mxu0 %v4274
    %v4873 = vpop.f32.mrf.mxu0
    %v4874 = vadd.f32 %v4490, %v4873
    %v4875 = vpop.f32.mrf.mxu0
    %4876 = vmatprep.mubr.f32.mxu0 %v4277
    %4877 = vmatmul.mubr.f32.gmra.mxu0 %v4276
    %v4878 = vpop.f32.mrf.mxu0
    %v4879 = vadd.f32 %v4495, %v4878
    %v4880 = vpop.f32.mrf.mxu0
    %4881 = vmatprep.mubr.f32.mxu0 %v4279
    %4882 = vmatmul.mubr.f32.gmra.mxu0 %v4278
    %v4883 = vpop.f32.mrf.mxu0
    %v4884 = vadd.f32 %v4500, %v4883
    %v4885 = vpop.f32.mrf.mxu0
    %4886 = vmatprep.mubr.f32.mxu0 %v4281
    %4887 = vmatmul.mubr.f32.gmra.mxu0 %v4280
    %v4888 = vpop.f32.mrf.mxu0
    %v4889 = vadd.f32 %v4505, %v4888
    %v4890 = vpop.f32.mrf.mxu0
    %4891 = vmatprep.mubr.f32.mxu0 %v4283
    %4892 = vmatmul.mubr.f32.gmra.mxu0 %v4282
    %v4893 = vpop.f32.mrf.mxu0
    %v4894 = vadd.f32 %v4510, %v4893
    %v4895 = vpop.f32.mrf.mxu0
    %4896 = vmatprep.mubr.f32.mxu0 %v4285
    %4897 = vmatmul.mubr.f32.gmra.mxu0 %v4284
    %v4898 = vpop.f32.mrf.mxu0
    %v4899 = vadd.f32 %v4515, %v4898
    %v4900 = vpop.f32.mrf.mxu0
    %4901 = vmatprep.mubr.f32.mxu0 %v4287
    %4902 = vmatmul.mubr.f32.gmra.mxu0 %v4286
    %v4903 = vpop.f32.mrf.mxu0
    %v4904 = vadd.f32 %v4520, %v4903
    %v4905 = vpop.f32.mrf.mxu0
    %4906 = vmatprep.mubr.f32.mxu0 %v4289
    %4907 = vmatmul.mubr.f32.gmra.mxu0 %v4288
    %v4908 = vpop.f32.mrf.mxu0
    %v4909 = vadd.f32 %v4525, %v4908
    %v4910 = vpop.f32.mrf.mxu0
    %4911 = vmatprep.mubr.f32.mxu0 %v4291
    %4912 = vmatmul.mubr.f32.gmra.mxu0 %v4290
    %v4913 = vpop.f32.mrf.mxu0
    %v4914 = vadd.f32 %v4530, %v4913
    %v4915 = vpop.f32.mrf.mxu0
    %4916 = vmatprep.mubr.f32.mxu0 %v4293
    %4917 = vmatmul.mubr.f32.gmra.mxu0 %v4292
    %v4918 = vpop.f32.mrf.mxu0
    %v4919 = vadd.f32 %v4535, %v4918
    %v4920 = vpop.f32.mrf.mxu0
    %4921 = vmatprep.mubr.f32.mxu0 %v4295
    %4922 = vmatmul.mubr.f32.gmra.mxu0 %v4294
    %v4923 = vpop.f32.mrf.mxu0
    %v4924 = vadd.f32 %v4540, %v4923
    %v4925 = vpop.f32.mrf.mxu0
    %4926 = vmatprep.mubr.f32.mxu0 %v4297
    %4927 = vmatmul.mubr.f32.gmra.mxu0 %v4296
    %v4928 = vpop.f32.mrf.mxu0
    %v4929 = vadd.f32 %v4545, %v4928
    %v4930 = vpop.f32.mrf.mxu0
    %4931 = vmatprep.mubr.f32.mxu0 %v4299
    %4932 = vmatmul.mubr.f32.gmra.mxu0 %v4298
    %v4933 = vpop.f32.mrf.mxu0
    %v4934 = vadd.f32 %v4550, %v4933
    %v4935 = vpop.f32.mrf.mxu0
    %4936 = vmatprep.mubr.f32.mxu0 %v4301
    %4937 = vmatmul.mubr.f32.gmra.mxu0 %v4300
    %v4938 = vpop.f32.mrf.mxu0
    %v4939 = vadd.f32 %v4555, %v4938
    %v4940 = vpop.f32.mrf.mxu0
    %4941 = vmatprep.mubr.f32.mxu0 %v4303
    %4942 = vmatmul.mubr.f32.gmra.mxu0 %v4302
    %v4943 = vpop.f32.mrf.mxu0
    %v4944 = vadd.f32 %v4560, %v4943
    %v4945 = vpop.f32.mrf.mxu0
    %4946 = vmatprep.mubr.f32.mxu0 %v4305
    %4947 = vmatmul.mubr.f32.gmra.mxu0 %v4304
    %v4948 = vpop.f32.mrf.mxu0
    %v4949 = vadd.f32 %v4565, %v4948
    %v4950 = vpop.f32.mrf.mxu0
    %4951 = vmatprep.mubr.f32.mxu0 %v4307
    %4952 = vmatmul.mubr.f32.gmra.mxu0 %v4306
    %v4953 = vpop.f32.mrf.mxu0
    %v4954 = vadd.f32 %v4570, %v4953
    %v4955 = vpop.f32.mrf.mxu0
    %4956 = vmatprep.mubr.f32.mxu0 %v4309
    %4957 = vmatmul.mubr.f32.gmra.mxu0 %v4308
    %v4958 = vpop.f32.mrf.mxu0
    %v4959 = vadd.f32 %v4575, %v4958
    %v4960 = vpop.f32.mrf.mxu0
    %4961 = vmatprep.mubr.f32.mxu0 %v4311
    %4962 = vmatmul.mubr.f32.gmra.mxu0 %v4310
    %v4963 = vpop.f32.mrf.mxu0
    %v4964 = vadd.f32 %v4580, %v4963
    %v4965 = vpop.f32.mrf.mxu0
    %4966 = vmatprep.mubr.f32.mxu0 %v4313
    %4967 = vmatmul.mubr.f32.gmra.mxu0 %v4312
    %v4968 = vpop.f32.mrf.mxu0
    %v4969 = vadd.f32 %v4585, %v4968
    %v4970 = vpop.f32.mrf.mxu0
    %4971 = vmatprep.mubr.f32.mxu0 %v4315
    %4972 = vmatmul.mubr.f32.gmra.mxu0 %v4314
    %v4973 = vpop.f32.mrf.mxu0
    %v4974 = vadd.f32 %v4590, %v4973
    %v4975 = vpop.f32.mrf.mxu0
    %4976 = vmatprep.mubr.f32.mxu0 %v4317
    %4977 = vmatmul.mubr.f32.gmra.mxu0 %v4316
    %v4978 = vpop.f32.mrf.mxu0
    %v4979 = vadd.f32 %v4595, %v4978
    %v4980 = vpop.f32.mrf.mxu0
    %4981 = vmatprep.mubr.f32.mxu0 %v4319
    %4982 = vmatmul.mubr.f32.gmra.mxu0 %v4318
    %v4983 = vpop.f32.mrf.mxu0
    %v4984 = vadd.f32 %v4600, %v4983
    %v4985 = vpop.f32.mrf.mxu0
    %4986 = vmatprep.mubr.f32.mxu0 %v4321
    %4987 = vmatmul.mubr.f32.gmra.mxu0 %v4320
    %v4988 = vpop.f32.mrf.mxu0
    %v4989 = vadd.f32 %v4605, %v4988
    %v4990 = vpop.f32.mrf.mxu0
    %4991 = vmatprep.mubr.f32.mxu0 %v4323
    %4992 = vmatmul.mubr.f32.gmra.mxu0 %v4322
    %v4993 = vpop.f32.mrf.mxu0
    %v4994 = vadd.f32 %v4610, %v4993
    %v4995 = vpop.f32.mrf.mxu0
    %4996 = vmatprep.mubr.f32.mxu0 %v4325
    %4997 = vmatmul.mubr.f32.gmra.mxu0 %v4324
    %v4998 = vpop.f32.mrf.mxu0
    %v4999 = vadd.f32 %v4615, %v4998
    %v5000 = vpop.f32.mrf.mxu0
    %5001 = vmatprep.mubr.f32.mxu0 %v4327
    %5002 = vmatmul.mubr.f32.gmra.mxu0 %v4326
    %v5003 = vpop.f32.mrf.mxu0
    %v5004 = vadd.f32 %v4620, %v5003
    %v5005 = vpop.f32.mrf.mxu0
    %5006 = vmatprep.mubr.f32.mxu0 %v4329
    %5007 = vmatmul.mubr.f32.gmra.mxu0 %v4328
    %v5008 = vpop.f32.mrf.mxu0
    %v5009 = vadd.f32 %v4625, %v5008
    %v5010 = vpop.f32.mrf.mxu0
    %5011 = vmatprep.mubr.f32.mxu0 %v4331
    %5012 = vmatmul.mubr.f32.gmra.mxu0 %v4330
    %v5013 = vpop.f32.mrf.mxu0
    %v5014 = vadd.f32 %v4630, %v5013
    %v5015 = vpop.f32.mrf.mxu0
    %5016 = vmatprep.mubr.f32.mxu0 %v4333
    %5017 = vmatmul.mubr.f32.gmra.mxu0 %v4332
    %v5018 = vpop.f32.mrf.mxu0
    %v5019 = vadd.f32 %v4635, %v5018
    %v5020 = vpop.f32.mrf.mxu0
    %5021 = vmatprep.mubr.f32.mxu0 %v4335
    %5022 = vmatmul.mubr.f32.gmra.mxu0 %v4334
    %v5023 = vpop.f32.mrf.mxu0
    %v5024 = vadd.f32 %v4640, %v5023
    %v5025 = vpop.f32.mrf.mxu0
    %5026 = vmatprep.mubr.f32.mxu0 %v4337
    %5027 = vmatmul.mubr.f32.gmra.mxu0 %v4336
    %v5028 = vpop.f32.mrf.mxu0
    %v5029 = vadd.f32 %v4645, %v5028
    %v5030 = vpop.f32.mrf.mxu0
    %5031 = vmatprep.mubr.f32.mxu0 %v4339
    %5032 = vmatmul.mubr.f32.gmra.mxu0 %v4338
    %v5033 = vpop.f32.mrf.mxu0
    %v5034 = vadd.f32 %v4650, %v5033
    %v5035 = vpop.f32.mrf.mxu0
    %5036 = vmatprep.mubr.f32.mxu0 %v4341
    %5037 = vmatmul.mubr.f32.gmra.mxu0 %v4340
    %v5038 = vpop.f32.mrf.mxu0
    %v5039 = vadd.f32 %v4655, %v5038
    %v5040 = vpop.f32.mrf.mxu0
    %5041 = vmatprep.mubr.f32.mxu0 %v4343
    %5042 = vmatmul.mubr.f32.gmra.mxu0 %v4342
    %v5043 = vpop.f32.mrf.mxu0
    %v5044 = vadd.f32 %v4660, %v5043
    %v5045 = vpop.f32.mrf.mxu0
    %5046 = vmatprep.mubr.f32.mxu0 %v4345
    %5047 = vmatmul.mubr.f32.gmra.mxu0 %v4344
    %v5048 = vpop.f32.mrf.mxu0
    %v5049 = vadd.f32 %v4665, %v5048
    %v5050 = vpop.f32.mrf.mxu0
    %5051 = vmatprep.mubr.f32.mxu0 %v4347
    %5052 = vmatmul.mubr.f32.gmra.mxu0 %v4346
    %v5053 = vpop.f32.mrf.mxu0
    %v5054 = vadd.f32 %v4670, %v5053
    %v5055 = vpop.f32.mrf.mxu0
    %5056 = vmatprep.mubr.f32.mxu0 %v4349
    %5057 = vmatmul.mubr.f32.gmra.mxu0 %v4348
    %v5058 = vpop.f32.mrf.mxu0
    %v5059 = vadd.f32 %v4675, %v5058
    %v5060 = vpop.f32.mrf.mxu0
    %5061 = vmatprep.mubr.f32.mxu0 %v4351
    %5062 = vmatmul.mubr.f32.gmra.mxu0 %v4350
    %v5063 = vpop.f32.mrf.mxu0
    %v5064 = vadd.f32 %v4680, %v5063
    %v5065 = vpop.f32.mrf.mxu0
    %5066 = vmatprep.mubr.f32.mxu0 %v4353
    %5067 = vmatmul.mubr.f32.gmra.mxu0 %v4352
    %v5068 = vpop.f32.mrf.mxu0
    %v5069 = vadd.f32 %v4685, %v5068
    %v5070 = vpop.f32.mrf.mxu0
    %5071 = vmatprep.mubr.f32.mxu0 %v4355
    %5072 = vmatmul.mubr.f32.gmra.mxu0 %v4354
    %v5073 = vpop.f32.mrf.mxu0
    %v5074 = vadd.f32 %v4690, %v5073
    %v5075 = vpop.f32.mrf.mxu0
    %5076 = vmatprep.mubr.f32.mxu0 %v4357
    %5077 = vmatmul.mubr.f32.gmra.mxu0 %v4356
    %v5078 = vpop.f32.mrf.mxu0
    %v5079 = vadd.f32 %v4695, %v5078
    %v5080 = vpop.f32.mrf.mxu0
    %5081 = vmatprep.mubr.f32.mxu0 %v4359
    %5082 = vmatmul.mubr.f32.gmra.mxu0 %v4358
    %v5083 = vpop.f32.mrf.mxu0
    %v5084 = vadd.f32 %v4700, %v5083
    %v5085 = vpop.f32.mrf.mxu0
    %5086 = vmatprep.mubr.f32.mxu0 %v4361
    %5087 = vmatmul.mubr.f32.gmra.mxu0 %v4360
    %v5088 = vpop.f32.mrf.mxu0
    %v5089 = vadd.f32 %v4705, %v5088
    %v5090 = vpop.f32.mrf.mxu0
    %5091 = vmatprep.mubr.f32.mxu0 %v4363
    %5092 = vmatmul.mubr.f32.gmra.mxu0 %v4362
    %v5093 = vpop.f32.mrf.mxu0
    %v5094 = vadd.f32 %v4710, %v5093
    %v5095 = vpop.f32.mrf.mxu0
    %5096 = vmatprep.mubr.f32.mxu0 %v4365
    %5097 = vmatmul.mubr.f32.gmra.mxu0 %v4364
    %v5098 = vpop.f32.mrf.mxu0
    %v5099 = vadd.f32 %v4715, %v5098
    %v5100 = vpop.f32.mrf.mxu0
    %5101 = vmatprep.mubr.f32.mxu0 %v4367
    %5102 = vmatmul.mubr.f32.gmra.mxu0 %v4366
    %v5103 = vpop.f32.mrf.mxu0
    %v5104 = vadd.f32 %v4720, %v5103
    %v5105 = vpop.f32.mrf.mxu0
    %5106 = vmatprep.mubr.f32.mxu0 %v4369
    %5107 = vmatmul.mubr.f32.gmra.mxu0 %v4368
    %v5108 = vpop.f32.mrf.mxu0
    %v5109 = vadd.f32 %v4725, %v5108
    %v5110 = vpop.f32.mrf.mxu0
    %5111 = vmatprep.mubr.f32.mxu0 %v4371
    %5112 = vmatmul.mubr.f32.gmra.mxu0 %v4370
    %v5113 = vpop.f32.mrf.mxu0
    %v5114 = vadd.f32 %v4730, %v5113
    %v5115 = vpop.f32.mrf.mxu0
    %5116 = vmatprep.mubr.f32.mxu0 %v4373
    %5117 = vmatmul.mubr.f32.gmra.mxu0 %v4372
    %v5118 = vpop.f32.mrf.mxu0
    %v5119 = vadd.f32 %v4735, %v5118
    %v5120 = vpop.f32.mrf.mxu0
    %5121 = vmatprep.mubr.f32.mxu0 %v4375
    %5122 = vmatmul.mubr.f32.gmra.mxu0 %v4374
    %v5123 = vpop.f32.mrf.mxu0
    %v5124 = vadd.f32 %v4740, %v5123
    %v5125 = vpop.f32.mrf.mxu0
    %5126 = vmatprep.mubr.f32.mxu0 %v4377
    %5127 = vmatmul.mubr.f32.gmra.mxu0 %v4376
    %v5128 = vpop.f32.mrf.mxu0
    %v5129 = vadd.f32 %v4745, %v5128
    %v5130 = vpop.f32.mrf.mxu0
    %5131 = vmatprep.mubr.f32.mxu0 %v4379
    %5132 = vmatmul.mubr.f32.gmra.mxu0 %v4378
    %v5133 = vpop.f32.mrf.mxu0
    %v5134 = vadd.f32 %v4750, %v5133
    %v5135 = vpop.f32.mrf.mxu0
    %5136 = vmatprep.mubr.f32.mxu0 %v4381
    %5137 = vmatmul.mubr.f32.gmra.mxu0 %v4380
    %v5138 = vpop.f32.mrf.mxu0
    %v5139 = vadd.f32 %v4755, %v5138
    %v5140 = vpop.f32.mrf.mxu0
    %5141 = vmatprep.mubr.f32.mxu0 %v4383
    %5142 = vmatmul.mubr.f32.gmra.mxu0 %v4382
    %v5143 = vpop.f32.mrf.mxu0
    %v5144 = vadd.f32 %v4760, %v5143
    %v5145 = vpop.f32.mrf.mxu0
    %5146 = vmatprep.mubr.f32.mxu0 %v4385
    %5147 = vmatmul.mubr.f32.gmra.mxu0 %v4384
    %v5148 = vpop.f32.mrf.mxu0
    %v5149 = vadd.f32 %v4765, %v5148
    %v5150 = vpop.f32.mrf.mxu0
    %5151 = vmatprep.mubr.f32.mxu0 %v4387
    %5152 = vmatmul.mubr.f32.gmra.mxu0 %v4386
    %v5153 = vpop.f32.mrf.mxu0
    %v5154 = vadd.f32 %v4770, %v5153
    %v5155 = vpop.f32.mrf.mxu0
    %5156 = vdwg.mxu0
    %vm5157 = vcmp.gt.f32.partialorder %v4839, 0.0
    %vm5158 = vcmp.gt.f32.partialorder %v4844, 0.0
    %vm5159 = vcmp.gt.f32.partialorder %v4849, 0.0
    %vm5160 = vcmp.gt.f32.partialorder %v4854, 0.0
    %vm5161 = vcmp.gt.f32.partialorder %v4859, 0.0
    %vm5162 = vcmp.gt.f32.partialorder %v4864, 0.0
    %vm5163 = vcmp.gt.f32.partialorder %v4869, 0.0
    %vm5164 = vcmp.gt.f32.partialorder %v4874, 0.0
    %vm5165 = vcmp.gt.f32.partialorder %v4879, 0.0
    %vm5166 = vcmp.gt.f32.partialorder %v4884, 0.0
    %vm5167 = vcmp.gt.f32.partialorder %v4889, 0.0
    %vm5168 = vcmp.gt.f32.partialorder %v4894, 0.0
    %vm5169 = vcmp.gt.f32.partialorder %v4899, 0.0
    %vm5170 = vcmp.gt.f32.partialorder %v4904, 0.0
    %vm5171 = vcmp.gt.f32.partialorder %v4909, 0.0
    %vm5172 = vcmp.gt.f32.partialorder %v4914, 0.0
    %vm5173 = vcmp.gt.f32.partialorder %v4919, 0.0
    %vm5174 = vcmp.gt.f32.partialorder %v4924, 0.0
    %vm5175 = vcmp.gt.f32.partialorder %v4929, 0.0
    %vm5176 = vcmp.gt.f32.partialorder %v4934, 0.0
    %vm5177 = vcmp.gt.f32.partialorder %v4939, 0.0
    %vm5178 = vcmp.gt.f32.partialorder %v4944, 0.0
    %vm5179 = vcmp.gt.f32.partialorder %v4949, 0.0
    %vm5180 = vcmp.gt.f32.partialorder %v4954, 0.0
    %vm5181 = vcmp.gt.f32.partialorder %v4959, 0.0
    %vm5182 = vcmp.gt.f32.partialorder %v4964, 0.0
    %vm5183 = vcmp.gt.f32.partialorder %v4969, 0.0
    %vm5184 = vcmp.gt.f32.partialorder %v4974, 0.0
    %vm5185 = vcmp.gt.f32.partialorder %v4979, 0.0
    %vm5186 = vcmp.gt.f32.partialorder %v4984, 0.0
    %vm5187 = vcmp.gt.f32.partialorder %v4989, 0.0
    %vm5188 = vcmp.gt.f32.partialorder %v4994, 0.0
    %vm5189 = vcmp.gt.f32.partialorder %v4999, 0.0
    %vm5190 = vcmp.gt.f32.partialorder %v5004, 0.0
    %vm5191 = vcmp.gt.f32.partialorder %v5009, 0.0
    %vm5192 = vcmp.gt.f32.partialorder %v5014, 0.0
    %vm5193 = vcmp.gt.f32.partialorder %v5019, 0.0
    %vm5194 = vcmp.gt.f32.partialorder %v5024, 0.0
    %vm5195 = vcmp.gt.f32.partialorder %v5029, 0.0
    %vm5196 = vcmp.gt.f32.partialorder %v5034, 0.0
    %vm5197 = vcmp.gt.f32.partialorder %v5039, 0.0
    %vm5198 = vcmp.gt.f32.partialorder %v5044, 0.0
    %vm5199 = vcmp.gt.f32.partialorder %v5049, 0.0
    %vm5200 = vcmp.gt.f32.partialorder %v5054, 0.0
    %vm5201 = vcmp.gt.f32.partialorder %v5059, 0.0
    %vm5202 = vcmp.gt.f32.partialorder %v5064, 0.0
    %vm5203 = vcmp.gt.f32.partialorder %v5069, 0.0
    %vm5204 = vcmp.gt.f32.partialorder %v5074, 0.0
    %vm5205 = vcmp.gt.f32.partialorder %v5079, 0.0
    %vm5206 = vcmp.gt.f32.partialorder %v5084, 0.0
    %vm5207 = vcmp.gt.f32.partialorder %v5089, 0.0
    %vm5208 = vcmp.gt.f32.partialorder %v5094, 0.0
    %vm5209 = vcmp.gt.f32.partialorder %v5099, 0.0
    %vm5210 = vcmp.gt.f32.partialorder %v5104, 0.0
    %vm5211 = vcmp.gt.f32.partialorder %v5109, 0.0
    %vm5212 = vcmp.gt.f32.partialorder %v5114, 0.0
    %vm5213 = vcmp.gt.f32.partialorder %v5119, 0.0
    %vm5214 = vcmp.gt.f32.partialorder %v5124, 0.0
    %vm5215 = vcmp.gt.f32.partialorder %v5129, 0.0
    %vm5216 = vcmp.gt.f32.partialorder %v5134, 0.0
    %vm5217 = vcmp.gt.f32.partialorder %v5139, 0.0
    %vm5218 = vcmp.gt.f32.partialorder %v5144, 0.0
    %vm5219 = vcmp.gt.f32.partialorder %v5149, 0.0
    %vm5220 = vcmp.gt.f32.partialorder %v5154, 0.0
    %v5221 = vmin.f32 %v4839, 0.0
    %v5222 = vmin.f32 %v4844, 0.0
    %v5223 = vmin.f32 %v4849, 0.0
    %v5224 = vmin.f32 %v4854, 0.0
    %v5225 = vmin.f32 %v4859, 0.0
    %v5226 = vmin.f32 %v4864, 0.0
    %v5227 = vmin.f32 %v4869, 0.0
    %v5228 = vmin.f32 %v4874, 0.0
    %v5229 = vmin.f32 %v4879, 0.0
    %v5230 = vmin.f32 %v4884, 0.0
    %v5231 = vmin.f32 %v4889, 0.0
    %v5232 = vmin.f32 %v4894, 0.0
    %v5233 = vmin.f32 %v4899, 0.0
    %v5234 = vmin.f32 %v4904, 0.0
    %v5235 = vmin.f32 %v4909, 0.0
    %v5236 = vmin.f32 %v4914, 0.0
    %v5237 = vmin.f32 %v4919, 0.0
    %v5238 = vmin.f32 %v4924, 0.0
    %v5239 = vmin.f32 %v4929, 0.0
    %v5240 = vmin.f32 %v4934, 0.0
    %v5241 = vmin.f32 %v4939, 0.0
    %v5242 = vmin.f32 %v4944, 0.0
    %v5243 = vmin.f32 %v4949, 0.0
    %v5244 = vmin.f32 %v4954, 0.0
    %v5245 = vmin.f32 %v4959, 0.0
    %v5246 = vmin.f32 %v4964, 0.0
    %v5247 = vmin.f32 %v4969, 0.0
    %v5248 = vmin.f32 %v4974, 0.0
    %v5249 = vmin.f32 %v4979, 0.0
    %v5250 = vmin.f32 %v4984, 0.0
    %v5251 = vmin.f32 %v4989, 0.0
    %v5252 = vmin.f32 %v4994, 0.0
    %v5253 = vmin.f32 %v4999, 0.0
    %v5254 = vmin.f32 %v5004, 0.0
    %v5255 = vmin.f32 %v5009, 0.0
    %v5256 = vmin.f32 %v5014, 0.0
    %v5257 = vmin.f32 %v5019, 0.0
    %v5258 = vmin.f32 %v5024, 0.0
    %v5259 = vmin.f32 %v5029, 0.0
    %v5260 = vmin.f32 %v5034, 0.0
    %v5261 = vmin.f32 %v5039, 0.0
    %v5262 = vmin.f32 %v5044, 0.0
    %v5263 = vmin.f32 %v5049, 0.0
    %v5264 = vmin.f32 %v5054, 0.0
    %v5265 = vmin.f32 %v5059, 0.0
    %v5266 = vmin.f32 %v5064, 0.0
    %v5267 = vmin.f32 %v5069, 0.0
    %v5268 = vmin.f32 %v5074, 0.0
    %v5269 = vmin.f32 %v5079, 0.0
    %v5270 = vmin.f32 %v5084, 0.0
    %v5271 = vmin.f32 %v5089, 0.0
    %v5272 = vmin.f32 %v5094, 0.0
    %v5273 = vmin.f32 %v5099, 0.0
    %v5274 = vmin.f32 %v5104, 0.0
    %v5275 = vmin.f32 %v5109, 0.0
    %v5276 = vmin.f32 %v5114, 0.0
    %v5277 = vmin.f32 %v5119, 0.0
    %v5278 = vmin.f32 %v5124, 0.0
    %v5279 = vmin.f32 %v5129, 0.0
    %v5280 = vmin.f32 %v5134, 0.0
    %v5281 = vmin.f32 %v5139, 0.0
    %v5282 = vmin.f32 %v5144, 0.0
    %v5283 = vmin.f32 %v5149, 0.0
    %v5284 = vmin.f32 %v5154, 0.0
    %v5285 = vmul.f32 %v5221, 1.442695
    %v5286 = vpow.pop %v5285
    %v5287 = vmul.f32 %v5222, 1.442695
    %v5288 = vpow.pop %v5287
    %v5289 = vmul.f32 %v5223, 1.442695
    %v5290 = vpow.pop %v5289
    %v5291 = vmul.f32 %v5224, 1.442695
    %v5292 = vpow.pop %v5291
    %v5293 = vmul.f32 %v5225, 1.442695
    %v5294 = vpow.pop %v5293
    %v5295 = vmul.f32 %v5226, 1.442695
    %v5296 = vpow.pop %v5295
    %v5297 = vmul.f32 %v5227, 1.442695
    %v5298 = vpow.pop %v5297
    %v5299 = vmul.f32 %v5228, 1.442695
    %v5300 = vpow.pop %v5299
    %v5301 = vmul.f32 %v5229, 1.442695
    %v5302 = vpow.pop %v5301
    %v5303 = vmul.f32 %v5230, 1.442695
    %v5304 = vpow.pop %v5303
    %v5305 = vmul.f32 %v5231, 1.442695
    %v5306 = vpow.pop %v5305
    %v5307 = vmul.f32 %v5232, 1.442695
    %v5308 = vpow.pop %v5307
    %v5309 = vmul.f32 %v5233, 1.442695
    %v5310 = vpow.pop %v5309
    %v5311 = vmul.f32 %v5234, 1.442695
    %v5312 = vpow.pop %v5311
    %v5313 = vmul.f32 %v5235, 1.442695
    %v5314 = vpow.pop %v5313
    %v5315 = vmul.f32 %v5236, 1.442695
    %v5316 = vpow.pop %v5315
    %v5317 = vmul.f32 %v5237, 1.442695
    %v5318 = vpow.pop %v5317
    %v5319 = vmul.f32 %v5238, 1.442695
    %v5320 = vpow.pop %v5319
    %v5321 = vmul.f32 %v5239, 1.442695
    %v5322 = vpow.pop %v5321
    %v5323 = vmul.f32 %v5240, 1.442695
    %v5324 = vpow.pop %v5323
    %v5325 = vmul.f32 %v5241, 1.442695
    %v5326 = vpow.pop %v5325
    %v5327 = vmul.f32 %v5242, 1.442695
    %v5328 = vpow.pop %v5327
    %v5329 = vmul.f32 %v5243, 1.442695
    %v5330 = vpow.pop %v5329
    %v5331 = vmul.f32 %v5244, 1.442695
    %v5332 = vpow.pop %v5331
    %v5333 = vmul.f32 %v5245, 1.442695
    %v5334 = vpow.pop %v5333
    %v5335 = vmul.f32 %v5246, 1.442695
    %v5336 = vpow.pop %v5335
    %v5337 = vmul.f32 %v5247, 1.442695
    %v5338 = vpow.pop %v5337
    %v5339 = vmul.f32 %v5248, 1.442695
    %v5340 = vpow.pop %v5339
    %v5341 = vmul.f32 %v5249, 1.442695
    %v5342 = vpow.pop %v5341
    %v5343 = vmul.f32 %v5250, 1.442695
    %v5344 = vpow.pop %v5343
    %v5345 = vmul.f32 %v5251, 1.442695
    %v5346 = vpow.pop %v5345
    %v5347 = vmul.f32 %v5252, 1.442695
    %v5348 = vpow.pop %v5347
    %v5349 = vmul.f32 %v5253, 1.442695
    %v5350 = vpow.pop %v5349
    %v5351 = vmul.f32 %v5254, 1.442695
    %v5352 = vpow.pop %v5351
    %v5353 = vmul.f32 %v5255, 1.442695
    %v5354 = vpow.pop %v5353
    %v5355 = vmul.f32 %v5256, 1.442695
    %v5356 = vpow.pop %v5355
    %v5357 = vmul.f32 %v5257, 1.442695
    %v5358 = vpow.pop %v5357
    %v5359 = vmul.f32 %v5258, 1.442695
    %v5360 = vpow.pop %v5359
    %v5361 = vmul.f32 %v5259, 1.442695
    %v5362 = vpow.pop %v5361
    %v5363 = vmul.f32 %v5260, 1.442695
    %v5364 = vpow.pop %v5363
    %v5365 = vmul.f32 %v5261, 1.442695
    %v5366 = vpow.pop %v5365
    %v5367 = vmul.f32 %v5262, 1.442695
    %v5368 = vpow.pop %v5367
    %v5369 = vmul.f32 %v5263, 1.442695
    %v5370 = vpow.pop %v5369
    %v5371 = vmul.f32 %v5264, 1.442695
    %v5372 = vpow.pop %v5371
    %v5373 = vmul.f32 %v5265, 1.442695
    %v5374 = vpow.pop %v5373
    %v5375 = vmul.f32 %v5266, 1.442695
    %v5376 = vpow.pop %v5375
    %v5377 = vmul.f32 %v5267, 1.442695
    %v5378 = vpow.pop %v5377
    %v5379 = vmul.f32 %v5268, 1.442695
    %v5380 = vpow.pop %v5379
    %v5381 = vmul.f32 %v5269, 1.442695
    %v5382 = vpow.pop %v5381
    %v5383 = vmul.f32 %v5270, 1.442695
    %v5384 = vpow.pop %v5383
    %v5385 = vmul.f32 %v5271, 1.442695
    %v5386 = vpow.pop %v5385
    %v5387 = vmul.f32 %v5272, 1.442695
    %v5388 = vpow.pop %v5387
    %v5389 = vmul.f32 %v5273, 1.442695
    %v5390 = vpow.pop %v5389
    %v5391 = vmul.f32 %v5274, 1.442695
    %v5392 = vpow.pop %v5391
    %v5393 = vmul.f32 %v5275, 1.442695
    %v5394 = vpow.pop %v5393
    %v5395 = vmul.f32 %v5276, 1.442695
    %v5396 = vpow.pop %v5395
    %v5397 = vmul.f32 %v5277, 1.442695
    %v5398 = vpow.pop %v5397
    %v5399 = vmul.f32 %v5278, 1.442695
    %v5400 = vpow.pop %v5399
    %v5401 = vmul.f32 %v5279, 1.442695
    %v5402 = vpow.pop %v5401
    %v5403 = vmul.f32 %v5280, 1.442695
    %v5404 = vpow.pop %v5403
    %v5405 = vmul.f32 %v5281, 1.442695
    %v5406 = vpow.pop %v5405
    %v5407 = vmul.f32 %v5282, 1.442695
    %v5408 = vpow.pop %v5407
    %v5409 = vmul.f32 %v5283, 1.442695
    %v5410 = vpow.pop %v5409
    %v5411 = vmul.f32 %v5284, 1.442695
    %v5412 = vpow.pop %v5411
    %v5413 = vsub.f32 %v5286, 1.0
    %v5414 = vsub.f32 %v5288, 1.0
    %v5415 = vsub.f32 %v5290, 1.0
    %v5416 = vsub.f32 %v5292, 1.0
    %v5417 = vsub.f32 %v5294, 1.0
    %v5418 = vsub.f32 %v5296, 1.0
    %v5419 = vsub.f32 %v5298, 1.0
    %v5420 = vsub.f32 %v5300, 1.0
    %v5421 = vsub.f32 %v5302, 1.0
    %v5422 = vsub.f32 %v5304, 1.0
    %v5423 = vsub.f32 %v5306, 1.0
    %v5424 = vsub.f32 %v5308, 1.0
    %v5425 = vsub.f32 %v5310, 1.0
    %v5426 = vsub.f32 %v5312, 1.0
    %v5427 = vsub.f32 %v5314, 1.0
    %v5428 = vsub.f32 %v5316, 1.0
    %v5429 = vsub.f32 %v5318, 1.0
    %v5430 = vsub.f32 %v5320, 1.0
    %v5431 = vsub.f32 %v5322, 1.0
    %v5432 = vsub.f32 %v5324, 1.0
    %v5433 = vsub.f32 %v5326, 1.0
    %v5434 = vsub.f32 %v5328, 1.0
    %v5435 = vsub.f32 %v5330, 1.0
    %v5436 = vsub.f32 %v5332, 1.0
    %v5437 = vsub.f32 %v5334, 1.0
    %v5438 = vsub.f32 %v5336, 1.0
    %v5439 = vsub.f32 %v5338, 1.0
    %v5440 = vsub.f32 %v5340, 1.0
    %v5441 = vsub.f32 %v5342, 1.0
    %v5442 = vsub.f32 %v5344, 1.0
    %v5443 = vsub.f32 %v5346, 1.0
    %v5444 = vsub.f32 %v5348, 1.0
    %v5445 = vsub.f32 %v5350, 1.0
    %v5446 = vsub.f32 %v5352, 1.0
    %v5447 = vsub.f32 %v5354, 1.0
    %v5448 = vsub.f32 %v5356, 1.0
    %v5449 = vsub.f32 %v5358, 1.0
    %v5450 = vsub.f32 %v5360, 1.0
    %v5451 = vsub.f32 %v5362, 1.0
    %v5452 = vsub.f32 %v5364, 1.0
    %v5453 = vsub.f32 %v5366, 1.0
    %v5454 = vsub.f32 %v5368, 1.0
    %v5455 = vsub.f32 %v5370, 1.0
    %v5456 = vsub.f32 %v5372, 1.0
    %v5457 = vsub.f32 %v5374, 1.0
    %v5458 = vsub.f32 %v5376, 1.0
    %v5459 = vsub.f32 %v5378, 1.0
    %v5460 = vsub.f32 %v5380, 1.0
    %v5461 = vsub.f32 %v5382, 1.0
    %v5462 = vsub.f32 %v5384, 1.0
    %v5463 = vsub.f32 %v5386, 1.0
    %v5464 = vsub.f32 %v5388, 1.0
    %v5465 = vsub.f32 %v5390, 1.0
    %v5466 = vsub.f32 %v5392, 1.0
    %v5467 = vsub.f32 %v5394, 1.0
    %v5468 = vsub.f32 %v5396, 1.0
    %v5469 = vsub.f32 %v5398, 1.0
    %v5470 = vsub.f32 %v5400, 1.0
    %v5471 = vsub.f32 %v5402, 1.0
    %v5472 = vsub.f32 %v5404, 1.0
    %v5473 = vsub.f32 %v5406, 1.0
    %v5474 = vsub.f32 %v5408, 1.0
    %v5475 = vsub.f32 %v5410, 1.0
    %v5476 = vsub.f32 %v5412, 1.0
    %v5477 = vsel %vm5157, %v4839, %v5413
    %v5478 = vsel %vm5158, %v4844, %v5414
    %v5479 = vsel %vm5159, %v4849, %v5415
    %v5480 = vsel %vm5160, %v4854, %v5416
    %v5481 = vsel %vm5161, %v4859, %v5417
    %v5482 = vsel %vm5162, %v4864, %v5418
    %v5483 = vsel %vm5163, %v4869, %v5419
    %v5484 = vsel %vm5164, %v4874, %v5420
    %v5485 = vsel %vm5165, %v4879, %v5421
    %v5486 = vsel %vm5166, %v4884, %v5422
    %v5487 = vsel %vm5167, %v4889, %v5423
    %v5488 = vsel %vm5168, %v4894, %v5424
    %v5489 = vsel %vm5169, %v4899, %v5425
    %v5490 = vsel %vm5170, %v4904, %v5426
    %v5491 = vsel %vm5171, %v4909, %v5427
    %v5492 = vsel %vm5172, %v4914, %v5428
    %v5493 = vsel %vm5173, %v4919, %v5429
    %v5494 = vsel %vm5174, %v4924, %v5430
    %v5495 = vsel %vm5175, %v4929, %v5431
    %v5496 = vsel %vm5176, %v4934, %v5432
    %v5497 = vsel %vm5177, %v4939, %v5433
    %v5498 = vsel %vm5178, %v4944, %v5434
    %v5499 = vsel %vm5179, %v4949, %v5435
    %v5500 = vsel %vm5180, %v4954, %v5436
    %v5501 = vsel %vm5181, %v4959, %v5437
    %v5502 = vsel %vm5182, %v4964, %v5438
    %v5503 = vsel %vm5183, %v4969, %v5439
    %v5504 = vsel %vm5184, %v4974, %v5440
    %v5505 = vsel %vm5185, %v4979, %v5441
    %v5506 = vsel %vm5186, %v4984, %v5442
    %v5507 = vsel %vm5187, %v4989, %v5443
    %v5508 = vsel %vm5188, %v4994, %v5444
    %v5509 = vsel %vm5189, %v4999, %v5445
    %v5510 = vsel %vm5190, %v5004, %v5446
    %v5511 = vsel %vm5191, %v5009, %v5447
    %v5512 = vsel %vm5192, %v5014, %v5448
    %v5513 = vsel %vm5193, %v5019, %v5449
    %v5514 = vsel %vm5194, %v5024, %v5450
    %v5515 = vsel %vm5195, %v5029, %v5451
    %v5516 = vsel %vm5196, %v5034, %v5452
    %v5517 = vsel %vm5197, %v5039, %v5453
    %v5518 = vsel %vm5198, %v5044, %v5454
    %v5519 = vsel %vm5199, %v5049, %v5455
    %v5520 = vsel %vm5200, %v5054, %v5456
    %v5521 = vsel %vm5201, %v5059, %v5457
    %v5522 = vsel %vm5202, %v5064, %v5458
    %v5523 = vsel %vm5203, %v5069, %v5459
    %v5524 = vsel %vm5204, %v5074, %v5460
    %v5525 = vsel %vm5205, %v5079, %v5461
    %v5526 = vsel %vm5206, %v5084, %v5462
    %v5527 = vsel %vm5207, %v5089, %v5463
    %v5528 = vsel %vm5208, %v5094, %v5464
    %v5529 = vsel %vm5209, %v5099, %v5465
    %v5530 = vsel %vm5210, %v5104, %v5466
    %v5531 = vsel %vm5211, %v5109, %v5467
    %v5532 = vsel %vm5212, %v5114, %v5468
    %v5533 = vsel %vm5213, %v5119, %v5469
    %v5534 = vsel %vm5214, %v5124, %v5470
    %v5535 = vsel %vm5215, %v5129, %v5471
    %v5536 = vsel %vm5216, %v5134, %v5472
    %v5537 = vsel %vm5217, %v5139, %v5473
    %v5538 = vsel %vm5218, %v5144, %v5474
    %v5539 = vsel %vm5219, %v5149, %v5475
    %v5540 = vsel %vm5220, %v5154, %v5476
    %vm5541 = vcmask 64512
    %5542 = vst.msk [vmem:[#allocation3] sm:$0xff] %vm5541, %v5477
    %5543 = vst.msk [vmem:[#allocation3 + $0x8] sm:$0xff] %vm5541, %v5478
    %5544 = vst.msk [vmem:[#allocation3 + $0x10] sm:$0xff] %vm5541, %v5479
    %5545 = vst.msk [vmem:[#allocation3 + $0x18] sm:$0xff] %vm5541, %v5480
    %5546 = vst.msk [vmem:[#allocation3 + $0x20] sm:$0xff] %vm5541, %v5481
    %5547 = vst.msk [vmem:[#allocation3 + $0x28] sm:$0xff] %vm5541, %v5482
    %5548 = vst.msk [vmem:[#allocation3 + $0x30] sm:$0xff] %vm5541, %v5483
    %5549 = vst.msk [vmem:[#allocation3 + $0x38] sm:$0xff] %vm5541, %v5484
    %5550 = vst.msk [vmem:[#allocation3 + $0x40] sm:$0xff] %vm5541, %v5485
    %5551 = vst.msk [vmem:[#allocation3 + $0x48] sm:$0xff] %vm5541, %v5486
    %5552 = vst.msk [vmem:[#allocation3 + $0x50] sm:$0xff] %vm5541, %v5487
    %5553 = vst.msk [vmem:[#allocation3 + $0x58] sm:$0xff] %vm5541, %v5488
    %5554 = vst.msk [vmem:[#allocation3 + $0x60] sm:$0xff] %vm5541, %v5489
    %5555 = vst.msk [vmem:[#allocation3 + $0x68] sm:$0xff] %vm5541, %v5490
    %5556 = vst.msk [vmem:[#allocation3 + $0x70] sm:$0xff] %vm5541, %v5491
    %5557 = vst.msk [vmem:[#allocation3 + $0x78] sm:$0xff] %vm5541, %v5492
    %5558 = vst.msk [vmem:[#allocation3 + $0x80] sm:$0xff] %vm5541, %v5493
    %5559 = vst.msk [vmem:[#allocation3 + $0x88] sm:$0xff] %vm5541, %v5494
    %5560 = vst.msk [vmem:[#allocation3 + $0x90] sm:$0xff] %vm5541, %v5495
    %5561 = vst.msk [vmem:[#allocation3 + $0x98] sm:$0xff] %vm5541, %v5496
    %5562 = vst.msk [vmem:[#allocation3 + $0xa0] sm:$0xff] %vm5541, %v5497
    %5563 = vst.msk [vmem:[#allocation3 + $0xa8] sm:$0xff] %vm5541, %v5498
    %5564 = vst.msk [vmem:[#allocation3 + $0xb0] sm:$0xff] %vm5541, %v5499
    %5565 = vst.msk [vmem:[#allocation3 + $0xb8] sm:$0xff] %vm5541, %v5500
    %5566 = vst.msk [vmem:[#allocation3 + $0xc0] sm:$0xff] %vm5541, %v5501
    %5567 = vst.msk [vmem:[#allocation3 + $0xc8] sm:$0xff] %vm5541, %v5502
    %5568 = vst.msk [vmem:[#allocation3 + $0xd0] sm:$0xff] %vm5541, %v5503
    %5569 = vst.msk [vmem:[#allocation3 + $0xd8] sm:$0xff] %vm5541, %v5504
    %5570 = vst.msk [vmem:[#allocation3 + $0xe0] sm:$0xff] %vm5541, %v5505
    %5571 = vst.msk [vmem:[#allocation3 + $0xe8] sm:$0xff] %vm5541, %v5506
    %5572 = vst.msk [vmem:[#allocation3 + $0xf0] sm:$0xff] %vm5541, %v5507
    %5573 = vst.msk [vmem:[#allocation3 + $0xf8] sm:$0xff] %vm5541, %v5508
    %5606 = vrot.lane.b32.xlu0 %v5509, 8
    %v5607 = vpop.permute.xlu0 %5606
    %5608 = vrot.lane.b32.xlu0 %v5510, 8
    %v5609 = vpop.permute.xlu0 %5608
    %5610 = vrot.lane.b32.xlu0 %v5511, 8
    %v5611 = vpop.permute.xlu0 %5610
    %5612 = vrot.lane.b32.xlu0 %v5512, 8
    %v5613 = vpop.permute.xlu0 %5612
    %5614 = vrot.lane.b32.xlu0 %v5513, 8
    %v5615 = vpop.permute.xlu0 %5614
    %5616 = vrot.lane.b32.xlu0 %v5514, 8
    %v5617 = vpop.permute.xlu0 %5616
    %5618 = vrot.lane.b32.xlu0 %v5515, 8
    %v5619 = vpop.permute.xlu0 %5618
    %5620 = vrot.lane.b32.xlu0 %v5516, 8
    %v5621 = vpop.permute.xlu0 %5620
    %5622 = vrot.lane.b32.xlu0 %v5517, 8
    %v5623 = vpop.permute.xlu0 %5622
    %5624 = vrot.lane.b32.xlu0 %v5518, 8
    %v5625 = vpop.permute.xlu0 %5624
    %5626 = vrot.lane.b32.xlu0 %v5519, 8
    %v5627 = vpop.permute.xlu0 %5626
    %5628 = vrot.lane.b32.xlu0 %v5520, 8
    %v5629 = vpop.permute.xlu0 %5628
    %5630 = vrot.lane.b32.xlu0 %v5521, 8
    %v5631 = vpop.permute.xlu0 %5630
    %5632 = vrot.lane.b32.xlu0 %v5522, 8
    %v5633 = vpop.permute.xlu0 %5632
    %5634 = vrot.lane.b32.xlu0 %v5523, 8
    %v5635 = vpop.permute.xlu0 %5634
    %5636 = vrot.lane.b32.xlu0 %v5524, 8
    %v5637 = vpop.permute.xlu0 %5636
    %5638 = vrot.lane.b32.xlu0 %v5525, 8
    %v5639 = vpop.permute.xlu0 %5638
    %5640 = vrot.lane.b32.xlu0 %v5526, 8
    %v5641 = vpop.permute.xlu0 %5640
    %5642 = vrot.lane.b32.xlu0 %v5527, 8
    %v5643 = vpop.permute.xlu0 %5642
    %5644 = vrot.lane.b32.xlu0 %v5528, 8
    %v5645 = vpop.permute.xlu0 %5644
    %5646 = vrot.lane.b32.xlu0 %v5529, 8
    %v5647 = vpop.permute.xlu0 %5646
    %5648 = vrot.lane.b32.xlu0 %v5530, 8
    %v5649 = vpop.permute.xlu0 %5648
    %5650 = vrot.lane.b32.xlu0 %v5531, 8
    %v5651 = vpop.permute.xlu0 %5650
    %5652 = vrot.lane.b32.xlu0 %v5532, 8
    %v5653 = vpop.permute.xlu0 %5652
    %5654 = vrot.lane.b32.xlu0 %v5533, 8
    %v5655 = vpop.permute.xlu0 %5654
    %5656 = vrot.lane.b32.xlu0 %v5534, 8
    %v5657 = vpop.permute.xlu0 %5656
    %5658 = vrot.lane.b32.xlu0 %v5535, 8
    %v5659 = vpop.permute.xlu0 %5658
    %5660 = vrot.lane.b32.xlu0 %v5536, 8
    %v5661 = vpop.permute.xlu0 %5660
    %5662 = vrot.lane.b32.xlu0 %v5537, 8
    %v5663 = vpop.permute.xlu0 %5662
    %5664 = vrot.lane.b32.xlu0 %v5538, 8
    %v5665 = vpop.permute.xlu0 %5664
    %5666 = vrot.lane.b32.xlu0 %v5539, 8
    %v5667 = vpop.permute.xlu0 %5666
    %5668 = vrot.lane.b32.xlu0 %v5540, 8
    %v5669 = vpop.permute.xlu0 %5668
    %vm5702 = vcmask 130112
    %5703 = vst.msk [vmem:[#allocation3] sm:$0xff] %vm5702, %v5607
    %5704 = vst.msk [vmem:[#allocation3 + $0x8] sm:$0xff] %vm5702, %v5609
    %5705 = vst.msk [vmem:[#allocation3 + $0x10] sm:$0xff] %vm5702, %v5611
    %5706 = vst.msk [vmem:[#allocation3 + $0x18] sm:$0xff] %vm5702, %v5613
    %5707 = vst.msk [vmem:[#allocation3 + $0x20] sm:$0xff] %vm5702, %v5615
    %5708 = vst.msk [vmem:[#allocation3 + $0x28] sm:$0xff] %vm5702, %v5617
    %5709 = vst.msk [vmem:[#allocation3 + $0x30] sm:$0xff] %vm5702, %v5619
    %5710 = vst.msk [vmem:[#allocation3 + $0x38] sm:$0xff] %vm5702, %v5621
    %5711 = vst.msk [vmem:[#allocation3 + $0x40] sm:$0xff] %vm5702, %v5623
    %5712 = vst.msk [vmem:[#allocation3 + $0x48] sm:$0xff] %vm5702, %v5625
    %5713 = vst.msk [vmem:[#allocation3 + $0x50] sm:$0xff] %vm5702, %v5627
    %5714 = vst.msk [vmem:[#allocation3 + $0x58] sm:$0xff] %vm5702, %v5629
    %5715 = vst.msk [vmem:[#allocation3 + $0x60] sm:$0xff] %vm5702, %v5631
    %5716 = vst.msk [vmem:[#allocation3 + $0x68] sm:$0xff] %vm5702, %v5633
    %5717 = vst.msk [vmem:[#allocation3 + $0x70] sm:$0xff] %vm5702, %v5635
    %5718 = vst.msk [vmem:[#allocation3 + $0x78] sm:$0xff] %vm5702, %v5637
    %5719 = vst.msk [vmem:[#allocation3 + $0x80] sm:$0xff] %vm5702, %v5639
    %5720 = vst.msk [vmem:[#allocation3 + $0x88] sm:$0xff] %vm5702, %v5641
    %5721 = vst.msk [vmem:[#allocation3 + $0x90] sm:$0xff] %vm5702, %v5643
    %5722 = vst.msk [vmem:[#allocation3 + $0x98] sm:$0xff] %vm5702, %v5645
    %5723 = vst.msk [vmem:[#allocation3 + $0xa0] sm:$0xff] %vm5702, %v5647
    %5724 = vst.msk [vmem:[#allocation3 + $0xa8] sm:$0xff] %vm5702, %v5649
    %5725 = vst.msk [vmem:[#allocation3 + $0xb0] sm:$0xff] %vm5702, %v5651
    %5726 = vst.msk [vmem:[#allocation3 + $0xb8] sm:$0xff] %vm5702, %v5653
    %5727 = vst.msk [vmem:[#allocation3 + $0xc0] sm:$0xff] %vm5702, %v5655
    %5728 = vst.msk [vmem:[#allocation3 + $0xc8] sm:$0xff] %vm5702, %v5657
    %5729 = vst.msk [vmem:[#allocation3 + $0xd0] sm:$0xff] %vm5702, %v5659
    %5730 = vst.msk [vmem:[#allocation3 + $0xd8] sm:$0xff] %vm5702, %v5661
    %5731 = vst.msk [vmem:[#allocation3 + $0xe0] sm:$0xff] %vm5702, %v5663
    %5732 = vst.msk [vmem:[#allocation3 + $0xe8] sm:$0xff] %vm5702, %v5665
    %5733 = vst.msk [vmem:[#allocation3 + $0xf0] sm:$0xff] %vm5702, %v5667
    %5734 = vst.msk [vmem:[#allocation3 + $0xf8] sm:$0xff] %vm5702, %v5669
    %v5735 = vld [vmem:[#allocation3] sm:$0xff]
    %v5736 = vld [vmem:[#allocation3 + $0x8] sm:$0xff]
    %v5737 = vld [vmem:[#allocation3 + $0x10] sm:$0xff]
    %v5738 = vld [vmem:[#allocation3 + $0x18] sm:$0xff]
    %v5739 = vld [vmem:[#allocation3 + $0x20] sm:$0xff]
    %v5740 = vld [vmem:[#allocation3 + $0x28] sm:$0xff]
    %v5741 = vld [vmem:[#allocation3 + $0x30] sm:$0xff]
    %v5742 = vld [vmem:[#allocation3 + $0x38] sm:$0xff]
    %v5743 = vld [vmem:[#allocation3 + $0x40] sm:$0xff]
    %v5744 = vld [vmem:[#allocation3 + $0x48] sm:$0xff]
    %v5745 = vld [vmem:[#allocation3 + $0x50] sm:$0xff]
    %v5746 = vld [vmem:[#allocation3 + $0x58] sm:$0xff]
    %v5747 = vld [vmem:[#allocation3 + $0x60] sm:$0xff]
    %v5748 = vld [vmem:[#allocation3 + $0x68] sm:$0xff]
    %v5749 = vld [vmem:[#allocation3 + $0x70] sm:$0xff]
    %v5750 = vld [vmem:[#allocation3 + $0x78] sm:$0xff]
    %v5751 = vld [vmem:[#allocation3 + $0x80] sm:$0xff]
    %v5752 = vld [vmem:[#allocation3 + $0x88] sm:$0xff]
    %v5753 = vld [vmem:[#allocation3 + $0x90] sm:$0xff]
    %v5754 = vld [vmem:[#allocation3 + $0x98] sm:$0xff]
    %v5755 = vld [vmem:[#allocation3 + $0xa0] sm:$0xff]
    %v5756 = vld [vmem:[#allocation3 + $0xa8] sm:$0xff]
    %v5757 = vld [vmem:[#allocation3 + $0xb0] sm:$0xff]
    %v5758 = vld [vmem:[#allocation3 + $0xb8] sm:$0xff]
    %v5759 = vld [vmem:[#allocation3 + $0xc0] sm:$0xff]
    %v5760 = vld [vmem:[#allocation3 + $0xc8] sm:$0xff]
    %v5761 = vld [vmem:[#allocation3 + $0xd0] sm:$0xff]
    %v5762 = vld [vmem:[#allocation3 + $0xd8] sm:$0xff]
    %v5763 = vld [vmem:[#allocation3 + $0xe0] sm:$0xff]
    %v5764 = vld [vmem:[#allocation3 + $0xe8] sm:$0xff]
    %v5765 = vld [vmem:[#allocation3 + $0xf0] sm:$0xff]
    %v5766 = vld [vmem:[#allocation3 + $0xf8] sm:$0xff]
    %v5767 = vld [vmem:[#allocation12] sm:$0xff]
    %v5768 = vld [vmem:[#allocation12 + $0x8] sm:$0xff]
    %v5769 = vld [vmem:[#allocation12 + $0x10] sm:$0xff]
    %v5770 = vld [vmem:[#allocation12 + $0x18] sm:$0xff]
    %v5771 = vld [vmem:[#allocation12 + $0x20] sm:$0xff]
    %v5772 = vld [vmem:[#allocation12 + $0x28] sm:$0xff]
    %v5773 = vld [vmem:[#allocation12 + $0x30] sm:$0xff]
    %v5774 = vld [vmem:[#allocation12 + $0x38] sm:$0xff]
    %v5775 = vld [vmem:[#allocation12 + $0x40] sm:$0xff]
    %v5776 = vld [vmem:[#allocation12 + $0x48] sm:$0xff]
    %v5777 = vld [vmem:[#allocation12 + $0x50] sm:$0xff]
    %v5778 = vld [vmem:[#allocation12 + $0x58] sm:$0xff]
    %v5779 = vld [vmem:[#allocation12 + $0x60] sm:$0xff]
    %v5780 = vld [vmem:[#allocation12 + $0x68] sm:$0xff]
    %v5781 = vld [vmem:[#allocation12 + $0x70] sm:$0xff]
    %v5782 = vld [vmem:[#allocation12 + $0x78] sm:$0xff]
    %v5783 = vld [vmem:[#allocation12 + $0x80] sm:$0xff]
    %v5784 = vld [vmem:[#allocation12 + $0x88] sm:$0xff]
    %v5785 = vld [vmem:[#allocation12 + $0x90] sm:$0xff]
    %v5786 = vld [vmem:[#allocation12 + $0x98] sm:$0xff]
    %v5787 = vld [vmem:[#allocation12 + $0xa0] sm:$0xff]
    %v5788 = vld [vmem:[#allocation12 + $0xa8] sm:$0xff]
    %v5789 = vld [vmem:[#allocation12 + $0xb0] sm:$0xff]
    %v5790 = vld [vmem:[#allocation12 + $0xb8] sm:$0xff]
    %v5791 = vld [vmem:[#allocation12 + $0xc0] sm:$0xff]
    %v5792 = vld [vmem:[#allocation12 + $0xc8] sm:$0xff]
    %v5793 = vld [vmem:[#allocation12 + $0xd0] sm:$0xff]
    %v5794 = vld [vmem:[#allocation12 + $0xd8] sm:$0xff]
    %v5795 = vld [vmem:[#allocation12 + $0xe0] sm:$0xff]
    %v5796 = vld [vmem:[#allocation12 + $0xe8] sm:$0xff]
    %v5797 = vld [vmem:[#allocation12 + $0xf0] sm:$0xff]
    %v5798 = vld [vmem:[#allocation12 + $0xf8] sm:$0xff]
    %v5799 = vld [vmem:[#allocation12 + $0x100] sm:$0xff]
    %v5800 = vld [vmem:[#allocation12 + $0x108] sm:$0xff]
    %v5801 = vld [vmem:[#allocation12 + $0x110] sm:$0xff]
    %v5802 = vld [vmem:[#allocation12 + $0x118] sm:$0xff]
    %v5803 = vld [vmem:[#allocation12 + $0x120] sm:$0xff]
    %v5804 = vld [vmem:[#allocation12 + $0x128] sm:$0xff]
    %v5805 = vld [vmem:[#allocation12 + $0x130] sm:$0xff]
    %v5806 = vld [vmem:[#allocation12 + $0x138] sm:$0xff]
    %v5807 = vld [vmem:[#allocation12 + $0x140] sm:$0xff]
    %v5808 = vld [vmem:[#allocation12 + $0x148] sm:$0xff]
    %v5809 = vld [vmem:[#allocation12 + $0x150] sm:$0xff]
    %v5810 = vld [vmem:[#allocation12 + $0x158] sm:$0xff]
    %v5811 = vld [vmem:[#allocation12 + $0x160] sm:$0xff]
    %v5812 = vld [vmem:[#allocation12 + $0x168] sm:$0xff]
    %v5813 = vld [vmem:[#allocation12 + $0x170] sm:$0xff]
    %v5814 = vld [vmem:[#allocation12 + $0x178] sm:$0xff]
    %v5815 = vld [vmem:[#allocation12 + $0x180] sm:$0xff]
    %v5816 = vld [vmem:[#allocation12 + $0x188] sm:$0xff]
    %v5817 = vld [vmem:[#allocation12 + $0x190] sm:$0xff]
    %v5818 = vld [vmem:[#allocation12 + $0x198] sm:$0xff]
    %v5819 = vld [vmem:[#allocation12 + $0x1a0] sm:$0xff]
    %v5820 = vld [vmem:[#allocation12 + $0x1a8] sm:$0xff]
    %v5821 = vld [vmem:[#allocation12 + $0x1b0] sm:$0xff]
    %v5822 = vld [vmem:[#allocation12 + $0x1b8] sm:$0xff]
    %v5823 = vld [vmem:[#allocation12 + $0x1c0] sm:$0xff]
    %v5824 = vld [vmem:[#allocation12 + $0x1c8] sm:$0xff]
    %v5825 = vld [vmem:[#allocation12 + $0x1d0] sm:$0xff]
    %v5826 = vld [vmem:[#allocation12 + $0x1d8] sm:$0xff]
    %v5827 = vld [vmem:[#allocation12 + $0x1e0] sm:$0xff]
    %v5828 = vld [vmem:[#allocation12 + $0x1e8] sm:$0xff]
    %v5829 = vld [vmem:[#allocation12 + $0x1f0] sm:$0xff]
    %v5830 = vld [vmem:[#allocation12 + $0x1f8] sm:$0xff]
    %v5831 = vld [vmem:[#allocation12 + $0x200] sm:$0xff]
    %v5832 = vld [vmem:[#allocation12 + $0x208] sm:$0xff]
    %v5833 = vld [vmem:[#allocation12 + $0x210] sm:$0xff]
    %v5834 = vld [vmem:[#allocation12 + $0x218] sm:$0xff]
    %v5835 = vld [vmem:[#allocation12 + $0x220] sm:$0xff]
    %v5836 = vld [vmem:[#allocation12 + $0x228] sm:$0xff]
    %v5837 = vld [vmem:[#allocation12 + $0x230] sm:$0xff]
    %v5838 = vld [vmem:[#allocation12 + $0x238] sm:$0xff]
    %v5839 = vld [vmem:[#allocation12 + $0x240] sm:$0xff]
    %v5840 = vld [vmem:[#allocation12 + $0x248] sm:$0xff]
    %v5841 = vld [vmem:[#allocation12 + $0x250] sm:$0xff]
    %v5842 = vld [vmem:[#allocation12 + $0x258] sm:$0xff]
    %v5843 = vld [vmem:[#allocation12 + $0x260] sm:$0xff]
    %v5844 = vld [vmem:[#allocation12 + $0x268] sm:$0xff]
    %v5845 = vld [vmem:[#allocation12 + $0x270] sm:$0xff]
    %v5846 = vld [vmem:[#allocation12 + $0x278] sm:$0xff]
    %v5847 = vld [vmem:[#allocation12 + $0x280] sm:$0xff]
    %v5848 = vld [vmem:[#allocation12 + $0x288] sm:$0xff]
    %v5849 = vld [vmem:[#allocation12 + $0x290] sm:$0xff]
    %v5850 = vld [vmem:[#allocation12 + $0x298] sm:$0xff]
    %v5851 = vld [vmem:[#allocation12 + $0x2a0] sm:$0xff]
    %v5852 = vld [vmem:[#allocation12 + $0x2a8] sm:$0xff]
    %v5853 = vld [vmem:[#allocation12 + $0x2b0] sm:$0xff]
    %v5854 = vld [vmem:[#allocation12 + $0x2b8] sm:$0xff]
    %v5855 = vld [vmem:[#allocation12 + $0x2c0] sm:$0xff]
    %v5856 = vld [vmem:[#allocation12 + $0x2c8] sm:$0xff]
    %v5857 = vld [vmem:[#allocation12 + $0x2d0] sm:$0xff]
    %v5858 = vld [vmem:[#allocation12 + $0x2d8] sm:$0xff]
    %v5859 = vld [vmem:[#allocation12 + $0x2e0] sm:$0xff]
    %v5860 = vld [vmem:[#allocation12 + $0x2e8] sm:$0xff]
    %v5861 = vld [vmem:[#allocation12 + $0x2f0] sm:$0xff]
    %v5862 = vld [vmem:[#allocation12 + $0x2f8] sm:$0xff]
    %v5863 = vld [vmem:[#allocation12 + $0x300] sm:$0xff]
    %v5864 = vld [vmem:[#allocation12 + $0x308] sm:$0xff]
    %v5865 = vld [vmem:[#allocation12 + $0x310] sm:$0xff]
    %v5866 = vld [vmem:[#allocation12 + $0x318] sm:$0xff]
    %v5867 = vld [vmem:[#allocation12 + $0x320] sm:$0xff]
    %v5868 = vld [vmem:[#allocation12 + $0x328] sm:$0xff]
    %v5869 = vld [vmem:[#allocation12 + $0x330] sm:$0xff]
    %v5870 = vld [vmem:[#allocation12 + $0x338] sm:$0xff]
    %v5871 = vld [vmem:[#allocation12 + $0x340] sm:$0xff]
    %v5872 = vld [vmem:[#allocation12 + $0x348] sm:$0xff]
    %v5873 = vld [vmem:[#allocation12 + $0x350] sm:$0xff]
    %v5874 = vld [vmem:[#allocation12 + $0x358] sm:$0xff]
    %v5875 = vld [vmem:[#allocation12 + $0x360] sm:$0xff]
    %v5876 = vld [vmem:[#allocation12 + $0x368] sm:$0xff]
    %v5877 = vld [vmem:[#allocation12 + $0x370] sm:$0xff]
    %v5878 = vld [vmem:[#allocation12 + $0x378] sm:$0xff]
    %v5879 = vld [vmem:[#allocation12 + $0x380] sm:$0xff]
    %v5880 = vld [vmem:[#allocation12 + $0x388] sm:$0xff]
    %v5881 = vld [vmem:[#allocation12 + $0x390] sm:$0xff]
    %v5882 = vld [vmem:[#allocation12 + $0x398] sm:$0xff]
    %v5883 = vld [vmem:[#allocation12 + $0x3a0] sm:$0xff]
    %v5884 = vld [vmem:[#allocation12 + $0x3a8] sm:$0xff]
    %v5885 = vld [vmem:[#allocation12 + $0x3b0] sm:$0xff]
    %v5886 = vld [vmem:[#allocation12 + $0x3b8] sm:$0xff]
    %v5887 = vld [vmem:[#allocation12 + $0x3c0] sm:$0xff]
    %v5888 = vld [vmem:[#allocation12 + $0x3c8] sm:$0xff]
    %v5889 = vld [vmem:[#allocation12 + $0x3d0] sm:$0xff]
    %v5890 = vld [vmem:[#allocation12 + $0x3d8] sm:$0xff]
    %v5891 = vld [vmem:[#allocation12 + $0x3e0] sm:$0xff]
    %v5892 = vld [vmem:[#allocation12 + $0x3e8] sm:$0xff]
    %v5893 = vld [vmem:[#allocation12 + $0x3f0] sm:$0xff]
    %v5894 = vld [vmem:[#allocation12 + $0x3f8] sm:$0xff]
    %v5895 = vld [vmem:[#allocation13] sm:$0xff]
    %v5896 = vld [vmem:[#allocation13 + $0x8] sm:$0xff]
    %v5897 = vld [vmem:[#allocation13 + $0x10] sm:$0xff]
    %v5898 = vld [vmem:[#allocation13 + $0x18] sm:$0xff]
    %v5899 = vld [vmem:[#allocation13 + $0x20] sm:$0xff]
    %v5900 = vld [vmem:[#allocation13 + $0x28] sm:$0xff]
    %v5901 = vld [vmem:[#allocation13 + $0x30] sm:$0xff]
    %v5902 = vld [vmem:[#allocation13 + $0x38] sm:$0xff]
    %v5903 = vld [vmem:[#allocation13 + $0x40] sm:$0xff]
    %v5904 = vld [vmem:[#allocation13 + $0x48] sm:$0xff]
    %v5905 = vld [vmem:[#allocation13 + $0x50] sm:$0xff]
    %v5906 = vld [vmem:[#allocation13 + $0x58] sm:$0xff]
    %v5907 = vld [vmem:[#allocation13 + $0x60] sm:$0xff]
    %v5908 = vld [vmem:[#allocation13 + $0x68] sm:$0xff]
    %v5909 = vld [vmem:[#allocation13 + $0x70] sm:$0xff]
    %v5910 = vld [vmem:[#allocation13 + $0x78] sm:$0xff]
    %v5911 = vld [vmem:[#allocation13 + $0x80] sm:$0xff]
    %v5912 = vld [vmem:[#allocation13 + $0x88] sm:$0xff]
    %v5913 = vld [vmem:[#allocation13 + $0x90] sm:$0xff]
    %v5914 = vld [vmem:[#allocation13 + $0x98] sm:$0xff]
    %v5915 = vld [vmem:[#allocation13 + $0xa0] sm:$0xff]
    %v5916 = vld [vmem:[#allocation13 + $0xa8] sm:$0xff]
    %v5917 = vld [vmem:[#allocation13 + $0xb0] sm:$0xff]
    %v5918 = vld [vmem:[#allocation13 + $0xb8] sm:$0xff]
    %v5919 = vld [vmem:[#allocation13 + $0xc0] sm:$0xff]
    %v5920 = vld [vmem:[#allocation13 + $0xc8] sm:$0xff]
    %v5921 = vld [vmem:[#allocation13 + $0xd0] sm:$0xff]
    %v5922 = vld [vmem:[#allocation13 + $0xd8] sm:$0xff]
    %v5923 = vld [vmem:[#allocation13 + $0xe0] sm:$0xff]
    %v5924 = vld [vmem:[#allocation13 + $0xe8] sm:$0xff]
    %v5925 = vld [vmem:[#allocation13 + $0xf0] sm:$0xff]
    %v5926 = vld [vmem:[#allocation13 + $0xf8] sm:$0xff]
    %v5927 = vld [vmem:[#allocation13 + $0x100] sm:$0xff]
    %v5928 = vld [vmem:[#allocation13 + $0x108] sm:$0xff]
    %v5929 = vld [vmem:[#allocation13 + $0x110] sm:$0xff]
    %v5930 = vld [vmem:[#allocation13 + $0x118] sm:$0xff]
    %v5931 = vld [vmem:[#allocation13 + $0x120] sm:$0xff]
    %v5932 = vld [vmem:[#allocation13 + $0x128] sm:$0xff]
    %v5933 = vld [vmem:[#allocation13 + $0x130] sm:$0xff]
    %v5934 = vld [vmem:[#allocation13 + $0x138] sm:$0xff]
    %v5935 = vld [vmem:[#allocation13 + $0x140] sm:$0xff]
    %v5936 = vld [vmem:[#allocation13 + $0x148] sm:$0xff]
    %v5937 = vld [vmem:[#allocation13 + $0x150] sm:$0xff]
    %v5938 = vld [vmem:[#allocation13 + $0x158] sm:$0xff]
    %v5939 = vld [vmem:[#allocation13 + $0x160] sm:$0xff]
    %v5940 = vld [vmem:[#allocation13 + $0x168] sm:$0xff]
    %v5941 = vld [vmem:[#allocation13 + $0x170] sm:$0xff]
    %v5942 = vld [vmem:[#allocation13 + $0x178] sm:$0xff]
    %v5943 = vld [vmem:[#allocation13 + $0x180] sm:$0xff]
    %v5944 = vld [vmem:[#allocation13 + $0x188] sm:$0xff]
    %v5945 = vld [vmem:[#allocation13 + $0x190] sm:$0xff]
    %v5946 = vld [vmem:[#allocation13 + $0x198] sm:$0xff]
    %v5947 = vld [vmem:[#allocation13 + $0x1a0] sm:$0xff]
    %v5948 = vld [vmem:[#allocation13 + $0x1a8] sm:$0xff]
    %v5949 = vld [vmem:[#allocation13 + $0x1b0] sm:$0xff]
    %v5950 = vld [vmem:[#allocation13 + $0x1b8] sm:$0xff]
    %v5951 = vld [vmem:[#allocation13 + $0x1c0] sm:$0xff]
    %v5952 = vld [vmem:[#allocation13 + $0x1c8] sm:$0xff]
    %v5953 = vld [vmem:[#allocation13 + $0x1d0] sm:$0xff]
    %v5954 = vld [vmem:[#allocation13 + $0x1d8] sm:$0xff]
    %v5955 = vld [vmem:[#allocation13 + $0x1e0] sm:$0xff]
    %v5956 = vld [vmem:[#allocation13 + $0x1e8] sm:$0xff]
    %v5957 = vld [vmem:[#allocation13 + $0x1f0] sm:$0xff]
    %v5958 = vld [vmem:[#allocation13 + $0x1f8] sm:$0xff]
    %5960 = vset.pattern.permute.xlu0 0
    %5961 = vperm.xlu0 %5960, %v5895
    %v5962 = vpop.permute.xlu0 %5961
    %5965 = vset.pattern.permute.xlu0 0
    %5966 = vperm.xlu0 %5965, %v5896
    %v5967 = vpop.permute.xlu0 %5966
    %5970 = vset.pattern.permute.xlu0 0
    %5971 = vperm.xlu0 %5970, %v5897
    %v5972 = vpop.permute.xlu0 %5971
    %5975 = vset.pattern.permute.xlu0 0
    %5976 = vperm.xlu0 %5975, %v5898
    %v5977 = vpop.permute.xlu0 %5976
    %5980 = vset.pattern.permute.xlu0 0
    %5981 = vperm.xlu0 %5980, %v5899
    %v5982 = vpop.permute.xlu0 %5981
    %5985 = vset.pattern.permute.xlu0 0
    %5986 = vperm.xlu0 %5985, %v5900
    %v5987 = vpop.permute.xlu0 %5986
    %5990 = vset.pattern.permute.xlu0 0
    %5991 = vperm.xlu0 %5990, %v5901
    %v5992 = vpop.permute.xlu0 %5991
    %5995 = vset.pattern.permute.xlu0 0
    %5996 = vperm.xlu0 %5995, %v5902
    %v5997 = vpop.permute.xlu0 %5996
    %6000 = vset.pattern.permute.xlu0 0
    %6001 = vperm.xlu0 %6000, %v5903
    %v6002 = vpop.permute.xlu0 %6001
    %6005 = vset.pattern.permute.xlu0 0
    %6006 = vperm.xlu0 %6005, %v5904
    %v6007 = vpop.permute.xlu0 %6006
    %6010 = vset.pattern.permute.xlu0 0
    %6011 = vperm.xlu0 %6010, %v5905
    %v6012 = vpop.permute.xlu0 %6011
    %6015 = vset.pattern.permute.xlu0 0
    %6016 = vperm.xlu0 %6015, %v5906
    %v6017 = vpop.permute.xlu0 %6016
    %6020 = vset.pattern.permute.xlu0 0
    %6021 = vperm.xlu0 %6020, %v5907
    %v6022 = vpop.permute.xlu0 %6021
    %6025 = vset.pattern.permute.xlu0 0
    %6026 = vperm.xlu0 %6025, %v5908
    %v6027 = vpop.permute.xlu0 %6026
    %6030 = vset.pattern.permute.xlu0 0
    %6031 = vperm.xlu0 %6030, %v5909
    %v6032 = vpop.permute.xlu0 %6031
    %6035 = vset.pattern.permute.xlu0 0
    %6036 = vperm.xlu0 %6035, %v5910
    %v6037 = vpop.permute.xlu0 %6036
    %6040 = vset.pattern.permute.xlu0 0
    %6041 = vperm.xlu0 %6040, %v5911
    %v6042 = vpop.permute.xlu0 %6041
    %6045 = vset.pattern.permute.xlu0 0
    %6046 = vperm.xlu0 %6045, %v5912
    %v6047 = vpop.permute.xlu0 %6046
    %6050 = vset.pattern.permute.xlu0 0
    %6051 = vperm.xlu0 %6050, %v5913
    %v6052 = vpop.permute.xlu0 %6051
    %6055 = vset.pattern.permute.xlu0 0
    %6056 = vperm.xlu0 %6055, %v5914
    %v6057 = vpop.permute.xlu0 %6056
    %6060 = vset.pattern.permute.xlu0 0
    %6061 = vperm.xlu0 %6060, %v5915
    %v6062 = vpop.permute.xlu0 %6061
    %6065 = vset.pattern.permute.xlu0 0
    %6066 = vperm.xlu0 %6065, %v5916
    %v6067 = vpop.permute.xlu0 %6066
    %6070 = vset.pattern.permute.xlu0 0
    %6071 = vperm.xlu0 %6070, %v5917
    %v6072 = vpop.permute.xlu0 %6071
    %6075 = vset.pattern.permute.xlu0 0
    %6076 = vperm.xlu0 %6075, %v5918
    %v6077 = vpop.permute.xlu0 %6076
    %6080 = vset.pattern.permute.xlu0 0
    %6081 = vperm.xlu0 %6080, %v5919
    %v6082 = vpop.permute.xlu0 %6081
    %6085 = vset.pattern.permute.xlu0 0
    %6086 = vperm.xlu0 %6085, %v5920
    %v6087 = vpop.permute.xlu0 %6086
    %6090 = vset.pattern.permute.xlu0 0
    %6091 = vperm.xlu0 %6090, %v5921
    %v6092 = vpop.permute.xlu0 %6091
    %6095 = vset.pattern.permute.xlu0 0
    %6096 = vperm.xlu0 %6095, %v5922
    %v6097 = vpop.permute.xlu0 %6096
    %6100 = vset.pattern.permute.xlu0 0
    %6101 = vperm.xlu0 %6100, %v5923
    %v6102 = vpop.permute.xlu0 %6101
    %6105 = vset.pattern.permute.xlu0 0
    %6106 = vperm.xlu0 %6105, %v5924
    %v6107 = vpop.permute.xlu0 %6106
    %6110 = vset.pattern.permute.xlu0 0
    %6111 = vperm.xlu0 %6110, %v5925
    %v6112 = vpop.permute.xlu0 %6111
    %6115 = vset.pattern.permute.xlu0 0
    %6116 = vperm.xlu0 %6115, %v5926
    %v6117 = vpop.permute.xlu0 %6116
    %6120 = vset.pattern.permute.xlu0 0
    %6121 = vperm.xlu0 %6120, %v5927
    %v6122 = vpop.permute.xlu0 %6121
    %6125 = vset.pattern.permute.xlu0 0
    %6126 = vperm.xlu0 %6125, %v5928
    %v6127 = vpop.permute.xlu0 %6126
    %6130 = vset.pattern.permute.xlu0 0
    %6131 = vperm.xlu0 %6130, %v5929
    %v6132 = vpop.permute.xlu0 %6131
    %6135 = vset.pattern.permute.xlu0 0
    %6136 = vperm.xlu0 %6135, %v5930
    %v6137 = vpop.permute.xlu0 %6136
    %6140 = vset.pattern.permute.xlu0 0
    %6141 = vperm.xlu0 %6140, %v5931
    %v6142 = vpop.permute.xlu0 %6141
    %6145 = vset.pattern.permute.xlu0 0
    %6146 = vperm.xlu0 %6145, %v5932
    %v6147 = vpop.permute.xlu0 %6146
    %6150 = vset.pattern.permute.xlu0 0
    %6151 = vperm.xlu0 %6150, %v5933
    %v6152 = vpop.permute.xlu0 %6151
    %6155 = vset.pattern.permute.xlu0 0
    %6156 = vperm.xlu0 %6155, %v5934
    %v6157 = vpop.permute.xlu0 %6156
    %6160 = vset.pattern.permute.xlu0 0
    %6161 = vperm.xlu0 %6160, %v5935
    %v6162 = vpop.permute.xlu0 %6161
    %6165 = vset.pattern.permute.xlu0 0
    %6166 = vperm.xlu0 %6165, %v5936
    %v6167 = vpop.permute.xlu0 %6166
    %6170 = vset.pattern.permute.xlu0 0
    %6171 = vperm.xlu0 %6170, %v5937
    %v6172 = vpop.permute.xlu0 %6171
    %6175 = vset.pattern.permute.xlu0 0
    %6176 = vperm.xlu0 %6175, %v5938
    %v6177 = vpop.permute.xlu0 %6176
    %6180 = vset.pattern.permute.xlu0 0
    %6181 = vperm.xlu0 %6180, %v5939
    %v6182 = vpop.permute.xlu0 %6181
    %6185 = vset.pattern.permute.xlu0 0
    %6186 = vperm.xlu0 %6185, %v5940
    %v6187 = vpop.permute.xlu0 %6186
    %6190 = vset.pattern.permute.xlu0 0
    %6191 = vperm.xlu0 %6190, %v5941
    %v6192 = vpop.permute.xlu0 %6191
    %6195 = vset.pattern.permute.xlu0 0
    %6196 = vperm.xlu0 %6195, %v5942
    %v6197 = vpop.permute.xlu0 %6196
    %6200 = vset.pattern.permute.xlu0 0
    %6201 = vperm.xlu0 %6200, %v5943
    %v6202 = vpop.permute.xlu0 %6201
    %6205 = vset.pattern.permute.xlu0 0
    %6206 = vperm.xlu0 %6205, %v5944
    %v6207 = vpop.permute.xlu0 %6206
    %6210 = vset.pattern.permute.xlu0 0
    %6211 = vperm.xlu0 %6210, %v5945
    %v6212 = vpop.permute.xlu0 %6211
    %6215 = vset.pattern.permute.xlu0 0
    %6216 = vperm.xlu0 %6215, %v5946
    %v6217 = vpop.permute.xlu0 %6216
    %6220 = vset.pattern.permute.xlu0 0
    %6221 = vperm.xlu0 %6220, %v5947
    %v6222 = vpop.permute.xlu0 %6221
    %6225 = vset.pattern.permute.xlu0 0
    %6226 = vperm.xlu0 %6225, %v5948
    %v6227 = vpop.permute.xlu0 %6226
    %6230 = vset.pattern.permute.xlu0 0
    %6231 = vperm.xlu0 %6230, %v5949
    %v6232 = vpop.permute.xlu0 %6231
    %6235 = vset.pattern.permute.xlu0 0
    %6236 = vperm.xlu0 %6235, %v5950
    %v6237 = vpop.permute.xlu0 %6236
    %6240 = vset.pattern.permute.xlu0 0
    %6241 = vperm.xlu0 %6240, %v5951
    %v6242 = vpop.permute.xlu0 %6241
    %6245 = vset.pattern.permute.xlu0 0
    %6246 = vperm.xlu0 %6245, %v5952
    %v6247 = vpop.permute.xlu0 %6246
    %6250 = vset.pattern.permute.xlu0 0
    %6251 = vperm.xlu0 %6250, %v5953
    %v6252 = vpop.permute.xlu0 %6251
    %6255 = vset.pattern.permute.xlu0 0
    %6256 = vperm.xlu0 %6255, %v5954
    %v6257 = vpop.permute.xlu0 %6256
    %6260 = vset.pattern.permute.xlu0 0
    %6261 = vperm.xlu0 %6260, %v5955
    %v6262 = vpop.permute.xlu0 %6261
    %6265 = vset.pattern.permute.xlu0 0
    %6266 = vperm.xlu0 %6265, %v5956
    %v6267 = vpop.permute.xlu0 %6266
    %6270 = vset.pattern.permute.xlu0 0
    %6271 = vperm.xlu0 %6270, %v5957
    %v6272 = vpop.permute.xlu0 %6271
    %6275 = vset.pattern.permute.xlu0 0
    %6276 = vperm.xlu0 %6275, %v5958
    %v6277 = vpop.permute.xlu0 %6276
    %6279 = vmatprep.subr.mxu0 0.0
    %6280 = vmatpush1.msra.mxu0 %v5750
    %6281 = vmatprep.subr.mxu0 0.0
    %6282 = vmatpush1.msra.mxu0 %v5749
    %6283 = vmatprep.subr.mxu0 0.0
    %6284 = vmatpush1.msra.mxu0 %v5748
    %6285 = vmatprep.subr.mxu0 0.0
    %6286 = vmatpush1.msra.mxu0 %v5747
    %6287 = vmatprep.subr.mxu0 0.0
    %6288 = vmatpush1.msra.mxu0 %v5746
    %6289 = vmatprep.subr.mxu0 0.0
    %6290 = vmatpush1.msra.mxu0 %v5745
    %6291 = vmatprep.subr.mxu0 0.0
    %6292 = vmatpush1.msra.mxu0 %v5744
    %6293 = vmatprep.subr.mxu0 0.0
    %6294 = vmatpush1.msra.mxu0 %v5743
    %6295 = vmatprep.subr.mxu0 0.0
    %6296 = vmatpush1.msra.mxu0 %v5742
    %6297 = vmatprep.subr.mxu0 0.0
    %6298 = vmatpush1.msra.mxu0 %v5741
    %6299 = vmatprep.subr.mxu0 0.0
    %6300 = vmatpush1.msra.mxu0 %v5740
    %6301 = vmatprep.subr.mxu0 0.0
    %6302 = vmatpush1.msra.mxu0 %v5739
    %6303 = vmatprep.subr.mxu0 0.0
    %6304 = vmatpush1.msra.mxu0 %v5738
    %6305 = vmatprep.subr.mxu0 0.0
    %6306 = vmatpush1.msra.mxu0 %v5737
    %6307 = vmatprep.subr.mxu0 0.0
    %6308 = vmatpush1.msra.mxu0 %v5736
    %6309 = vmatprep.subr.mxu0 0.0
    %6310 = vmatpush1.msra.mxu0 %v5735
    %6311 = vmatprep.subr.mxu0 0.0
    %6312 = vmatpush2.msra.mxu0 %v5766
    %6313 = vmatprep.subr.mxu0 0.0
    %6314 = vmatpush2.msra.mxu0 %v5765
    %6315 = vmatprep.subr.mxu0 0.0
    %6316 = vmatpush2.msra.mxu0 %v5764
    %6317 = vmatprep.subr.mxu0 0.0
    %6318 = vmatpush2.msra.mxu0 %v5763
    %6319 = vmatprep.subr.mxu0 0.0
    %6320 = vmatpush2.msra.mxu0 %v5762
    %6321 = vmatprep.subr.mxu0 0.0
    %6322 = vmatpush2.msra.mxu0 %v5761
    %6323 = vmatprep.subr.mxu0 0.0
    %6324 = vmatpush2.msra.mxu0 %v5760
    %6325 = vmatprep.subr.mxu0 0.0
    %6326 = vmatpush2.msra.mxu0 %v5759
    %6327 = vmatprep.subr.mxu0 0.0
    %6328 = vmatpush2.msra.mxu0 %v5758
    %6329 = vmatprep.subr.mxu0 0.0
    %6330 = vmatpush2.msra.mxu0 %v5757
    %6331 = vmatprep.subr.mxu0 0.0
    %6332 = vmatpush2.msra.mxu0 %v5756
    %6333 = vmatprep.subr.mxu0 0.0
    %6334 = vmatpush2.msra.mxu0 %v5755
    %6335 = vmatprep.subr.mxu0 0.0
    %6336 = vmatpush2.msra.mxu0 %v5754
    %6337 = vmatprep.subr.mxu0 0.0
    %6338 = vmatpush2.msra.mxu0 %v5753
    %6339 = vmatprep.subr.mxu0 0.0
    %6340 = vmatpush2.msra.mxu0 %v5752
    %6341 = vmatprep.subr.mxu0 0.0
    %6342 = vmatpush2.msra.mxu0 %v5751
    %6343 = vmatprep.mubr.f32.mxu0 %v5768
    %6344 = vmatmul.mubr.f32.gmra.mxu0 %v5767
    %v6345 = vpop.f32.mrf.mxu0
    %v6346 = vadd.f32 %v5962, %v6345
    %v6347 = vpop.f32.mrf.mxu0
    %6348 = vmatprep.mubr.f32.mxu0 %v5770
    %6349 = vmatmul.mubr.f32.gmra.mxu0 %v5769
    %v6350 = vpop.f32.mrf.mxu0
    %v6351 = vadd.f32 %v5967, %v6350
    %v6352 = vpop.f32.mrf.mxu0
    %6353 = vmatprep.mubr.f32.mxu0 %v5772
    %6354 = vmatmul.mubr.f32.gmra.mxu0 %v5771
    %v6355 = vpop.f32.mrf.mxu0
    %v6356 = vadd.f32 %v5972, %v6355
    %v6357 = vpop.f32.mrf.mxu0
    %6358 = vmatprep.mubr.f32.mxu0 %v5774
    %6359 = vmatmul.mubr.f32.gmra.mxu0 %v5773
    %v6360 = vpop.f32.mrf.mxu0
    %v6361 = vadd.f32 %v5977, %v6360
    %v6362 = vpop.f32.mrf.mxu0
    %6363 = vmatprep.mubr.f32.mxu0 %v5776
    %6364 = vmatmul.mubr.f32.gmra.mxu0 %v5775
    %v6365 = vpop.f32.mrf.mxu0
    %v6366 = vadd.f32 %v5982, %v6365
    %v6367 = vpop.f32.mrf.mxu0
    %6368 = vmatprep.mubr.f32.mxu0 %v5778
    %6369 = vmatmul.mubr.f32.gmra.mxu0 %v5777
    %v6370 = vpop.f32.mrf.mxu0
    %v6371 = vadd.f32 %v5987, %v6370
    %v6372 = vpop.f32.mrf.mxu0
    %6373 = vmatprep.mubr.f32.mxu0 %v5780
    %6374 = vmatmul.mubr.f32.gmra.mxu0 %v5779
    %v6375 = vpop.f32.mrf.mxu0
    %v6376 = vadd.f32 %v5992, %v6375
    %v6377 = vpop.f32.mrf.mxu0
    %6378 = vmatprep.mubr.f32.mxu0 %v5782
    %6379 = vmatmul.mubr.f32.gmra.mxu0 %v5781
    %v6380 = vpop.f32.mrf.mxu0
    %v6381 = vadd.f32 %v5997, %v6380
    %v6382 = vpop.f32.mrf.mxu0
    %6383 = vmatprep.mubr.f32.mxu0 %v5784
    %6384 = vmatmul.mubr.f32.gmra.mxu0 %v5783
    %v6385 = vpop.f32.mrf.mxu0
    %v6386 = vadd.f32 %v6002, %v6385
    %v6387 = vpop.f32.mrf.mxu0
    %6388 = vmatprep.mubr.f32.mxu0 %v5786
    %6389 = vmatmul.mubr.f32.gmra.mxu0 %v5785
    %v6390 = vpop.f32.mrf.mxu0
    %v6391 = vadd.f32 %v6007, %v6390
    %v6392 = vpop.f32.mrf.mxu0
    %6393 = vmatprep.mubr.f32.mxu0 %v5788
    %6394 = vmatmul.mubr.f32.gmra.mxu0 %v5787
    %v6395 = vpop.f32.mrf.mxu0
    %v6396 = vadd.f32 %v6012, %v6395
    %v6397 = vpop.f32.mrf.mxu0
    %6398 = vmatprep.mubr.f32.mxu0 %v5790
    %6399 = vmatmul.mubr.f32.gmra.mxu0 %v5789
    %v6400 = vpop.f32.mrf.mxu0
    %v6401 = vadd.f32 %v6017, %v6400
    %v6402 = vpop.f32.mrf.mxu0
    %6403 = vmatprep.mubr.f32.mxu0 %v5792
    %6404 = vmatmul.mubr.f32.gmra.mxu0 %v5791
    %v6405 = vpop.f32.mrf.mxu0
    %v6406 = vadd.f32 %v6022, %v6405
    %v6407 = vpop.f32.mrf.mxu0
    %6408 = vmatprep.mubr.f32.mxu0 %v5794
    %6409 = vmatmul.mubr.f32.gmra.mxu0 %v5793
    %v6410 = vpop.f32.mrf.mxu0
    %v6411 = vadd.f32 %v6027, %v6410
    %v6412 = vpop.f32.mrf.mxu0
    %6413 = vmatprep.mubr.f32.mxu0 %v5796
    %6414 = vmatmul.mubr.f32.gmra.mxu0 %v5795
    %v6415 = vpop.f32.mrf.mxu0
    %v6416 = vadd.f32 %v6032, %v6415
    %v6417 = vpop.f32.mrf.mxu0
    %6418 = vmatprep.mubr.f32.mxu0 %v5798
    %6419 = vmatmul.mubr.f32.gmra.mxu0 %v5797
    %v6420 = vpop.f32.mrf.mxu0
    %v6421 = vadd.f32 %v6037, %v6420
    %v6422 = vpop.f32.mrf.mxu0
    %6423 = vmatprep.mubr.f32.mxu0 %v5800
    %6424 = vmatmul.mubr.f32.gmra.mxu0 %v5799
    %v6425 = vpop.f32.mrf.mxu0
    %v6426 = vadd.f32 %v6042, %v6425
    %v6427 = vpop.f32.mrf.mxu0
    %6428 = vmatprep.mubr.f32.mxu0 %v5802
    %6429 = vmatmul.mubr.f32.gmra.mxu0 %v5801
    %v6430 = vpop.f32.mrf.mxu0
    %v6431 = vadd.f32 %v6047, %v6430
    %v6432 = vpop.f32.mrf.mxu0
    %6433 = vmatprep.mubr.f32.mxu0 %v5804
    %6434 = vmatmul.mubr.f32.gmra.mxu0 %v5803
    %v6435 = vpop.f32.mrf.mxu0
    %v6436 = vadd.f32 %v6052, %v6435
    %v6437 = vpop.f32.mrf.mxu0
    %6438 = vmatprep.mubr.f32.mxu0 %v5806
    %6439 = vmatmul.mubr.f32.gmra.mxu0 %v5805
    %v6440 = vpop.f32.mrf.mxu0
    %v6441 = vadd.f32 %v6057, %v6440
    %v6442 = vpop.f32.mrf.mxu0
    %6443 = vmatprep.mubr.f32.mxu0 %v5808
    %6444 = vmatmul.mubr.f32.gmra.mxu0 %v5807
    %v6445 = vpop.f32.mrf.mxu0
    %v6446 = vadd.f32 %v6062, %v6445
    %v6447 = vpop.f32.mrf.mxu0
    %6448 = vmatprep.mubr.f32.mxu0 %v5810
    %6449 = vmatmul.mubr.f32.gmra.mxu0 %v5809
    %v6450 = vpop.f32.mrf.mxu0
    %v6451 = vadd.f32 %v6067, %v6450
    %v6452 = vpop.f32.mrf.mxu0
    %6453 = vmatprep.mubr.f32.mxu0 %v5812
    %6454 = vmatmul.mubr.f32.gmra.mxu0 %v5811
    %v6455 = vpop.f32.mrf.mxu0
    %v6456 = vadd.f32 %v6072, %v6455
    %v6457 = vpop.f32.mrf.mxu0
    %6458 = vmatprep.mubr.f32.mxu0 %v5814
    %6459 = vmatmul.mubr.f32.gmra.mxu0 %v5813
    %v6460 = vpop.f32.mrf.mxu0
    %v6461 = vadd.f32 %v6077, %v6460
    %v6462 = vpop.f32.mrf.mxu0
    %6463 = vmatprep.mubr.f32.mxu0 %v5816
    %6464 = vmatmul.mubr.f32.gmra.mxu0 %v5815
    %v6465 = vpop.f32.mrf.mxu0
    %v6466 = vadd.f32 %v6082, %v6465
    %v6467 = vpop.f32.mrf.mxu0
    %6468 = vmatprep.mubr.f32.mxu0 %v5818
    %6469 = vmatmul.mubr.f32.gmra.mxu0 %v5817
    %v6470 = vpop.f32.mrf.mxu0
    %v6471 = vadd.f32 %v6087, %v6470
    %v6472 = vpop.f32.mrf.mxu0
    %6473 = vmatprep.mubr.f32.mxu0 %v5820
    %6474 = vmatmul.mubr.f32.gmra.mxu0 %v5819
    %v6475 = vpop.f32.mrf.mxu0
    %v6476 = vadd.f32 %v6092, %v6475
    %v6477 = vpop.f32.mrf.mxu0
    %6478 = vmatprep.mubr.f32.mxu0 %v5822
    %6479 = vmatmul.mubr.f32.gmra.mxu0 %v5821
    %v6480 = vpop.f32.mrf.mxu0
    %v6481 = vadd.f32 %v6097, %v6480
    %v6482 = vpop.f32.mrf.mxu0
    %6483 = vmatprep.mubr.f32.mxu0 %v5824
    %6484 = vmatmul.mubr.f32.gmra.mxu0 %v5823
    %v6485 = vpop.f32.mrf.mxu0
    %v6486 = vadd.f32 %v6102, %v6485
    %v6487 = vpop.f32.mrf.mxu0
    %6488 = vmatprep.mubr.f32.mxu0 %v5826
    %6489 = vmatmul.mubr.f32.gmra.mxu0 %v5825
    %v6490 = vpop.f32.mrf.mxu0
    %v6491 = vadd.f32 %v6107, %v6490
    %v6492 = vpop.f32.mrf.mxu0
    %6493 = vmatprep.mubr.f32.mxu0 %v5828
    %6494 = vmatmul.mubr.f32.gmra.mxu0 %v5827
    %v6495 = vpop.f32.mrf.mxu0
    %v6496 = vadd.f32 %v6112, %v6495
    %v6497 = vpop.f32.mrf.mxu0
    %6498 = vmatprep.mubr.f32.mxu0 %v5830
    %6499 = vmatmul.mubr.f32.gmra.mxu0 %v5829
    %v6500 = vpop.f32.mrf.mxu0
    %v6501 = vadd.f32 %v6117, %v6500
    %v6502 = vpop.f32.mrf.mxu0
    %6503 = vmatprep.mubr.f32.mxu0 %v5832
    %6504 = vmatmul.mubr.f32.gmra.mxu0 %v5831
    %v6505 = vpop.f32.mrf.mxu0
    %v6506 = vadd.f32 %v6122, %v6505
    %v6507 = vpop.f32.mrf.mxu0
    %6508 = vmatprep.mubr.f32.mxu0 %v5834
    %6509 = vmatmul.mubr.f32.gmra.mxu0 %v5833
    %v6510 = vpop.f32.mrf.mxu0
    %v6511 = vadd.f32 %v6127, %v6510
    %v6512 = vpop.f32.mrf.mxu0
    %6513 = vmatprep.mubr.f32.mxu0 %v5836
    %6514 = vmatmul.mubr.f32.gmra.mxu0 %v5835
    %v6515 = vpop.f32.mrf.mxu0
    %v6516 = vadd.f32 %v6132, %v6515
    %v6517 = vpop.f32.mrf.mxu0
    %6518 = vmatprep.mubr.f32.mxu0 %v5838
    %6519 = vmatmul.mubr.f32.gmra.mxu0 %v5837
    %v6520 = vpop.f32.mrf.mxu0
    %v6521 = vadd.f32 %v6137, %v6520
    %v6522 = vpop.f32.mrf.mxu0
    %6523 = vmatprep.mubr.f32.mxu0 %v5840
    %6524 = vmatmul.mubr.f32.gmra.mxu0 %v5839
    %v6525 = vpop.f32.mrf.mxu0
    %v6526 = vadd.f32 %v6142, %v6525
    %v6527 = vpop.f32.mrf.mxu0
    %6528 = vmatprep.mubr.f32.mxu0 %v5842
    %6529 = vmatmul.mubr.f32.gmra.mxu0 %v5841
    %v6530 = vpop.f32.mrf.mxu0
    %v6531 = vadd.f32 %v6147, %v6530
    %v6532 = vpop.f32.mrf.mxu0
    %6533 = vmatprep.mubr.f32.mxu0 %v5844
    %6534 = vmatmul.mubr.f32.gmra.mxu0 %v5843
    %v6535 = vpop.f32.mrf.mxu0
    %v6536 = vadd.f32 %v6152, %v6535
    %v6537 = vpop.f32.mrf.mxu0
    %6538 = vmatprep.mubr.f32.mxu0 %v5846
    %6539 = vmatmul.mubr.f32.gmra.mxu0 %v5845
    %v6540 = vpop.f32.mrf.mxu0
    %v6541 = vadd.f32 %v6157, %v6540
    %v6542 = vpop.f32.mrf.mxu0
    %6543 = vmatprep.mubr.f32.mxu0 %v5848
    %6544 = vmatmul.mubr.f32.gmra.mxu0 %v5847
    %v6545 = vpop.f32.mrf.mxu0
    %v6546 = vadd.f32 %v6162, %v6545
    %v6547 = vpop.f32.mrf.mxu0
    %6548 = vmatprep.mubr.f32.mxu0 %v5850
    %6549 = vmatmul.mubr.f32.gmra.mxu0 %v5849
    %v6550 = vpop.f32.mrf.mxu0
    %v6551 = vadd.f32 %v6167, %v6550
    %v6552 = vpop.f32.mrf.mxu0
    %6553 = vmatprep.mubr.f32.mxu0 %v5852
    %6554 = vmatmul.mubr.f32.gmra.mxu0 %v5851
    %v6555 = vpop.f32.mrf.mxu0
    %v6556 = vadd.f32 %v6172, %v6555
    %v6557 = vpop.f32.mrf.mxu0
    %6558 = vmatprep.mubr.f32.mxu0 %v5854
    %6559 = vmatmul.mubr.f32.gmra.mxu0 %v5853
    %v6560 = vpop.f32.mrf.mxu0
    %v6561 = vadd.f32 %v6177, %v6560
    %v6562 = vpop.f32.mrf.mxu0
    %6563 = vmatprep.mubr.f32.mxu0 %v5856
    %6564 = vmatmul.mubr.f32.gmra.mxu0 %v5855
    %v6565 = vpop.f32.mrf.mxu0
    %v6566 = vadd.f32 %v6182, %v6565
    %v6567 = vpop.f32.mrf.mxu0
    %6568 = vmatprep.mubr.f32.mxu0 %v5858
    %6569 = vmatmul.mubr.f32.gmra.mxu0 %v5857
    %v6570 = vpop.f32.mrf.mxu0
    %v6571 = vadd.f32 %v6187, %v6570
    %v6572 = vpop.f32.mrf.mxu0
    %6573 = vmatprep.mubr.f32.mxu0 %v5860
    %6574 = vmatmul.mubr.f32.gmra.mxu0 %v5859
    %v6575 = vpop.f32.mrf.mxu0
    %v6576 = vadd.f32 %v6192, %v6575
    %v6577 = vpop.f32.mrf.mxu0
    %6578 = vmatprep.mubr.f32.mxu0 %v5862
    %6579 = vmatmul.mubr.f32.gmra.mxu0 %v5861
    %v6580 = vpop.f32.mrf.mxu0
    %v6581 = vadd.f32 %v6197, %v6580
    %v6582 = vpop.f32.mrf.mxu0
    %6583 = vmatprep.mubr.f32.mxu0 %v5864
    %6584 = vmatmul.mubr.f32.gmra.mxu0 %v5863
    %v6585 = vpop.f32.mrf.mxu0
    %v6586 = vadd.f32 %v6202, %v6585
    %v6587 = vpop.f32.mrf.mxu0
    %6588 = vmatprep.mubr.f32.mxu0 %v5866
    %6589 = vmatmul.mubr.f32.gmra.mxu0 %v5865
    %v6590 = vpop.f32.mrf.mxu0
    %v6591 = vadd.f32 %v6207, %v6590
    %v6592 = vpop.f32.mrf.mxu0
    %6593 = vmatprep.mubr.f32.mxu0 %v5868
    %6594 = vmatmul.mubr.f32.gmra.mxu0 %v5867
    %v6595 = vpop.f32.mrf.mxu0
    %v6596 = vadd.f32 %v6212, %v6595
    %v6597 = vpop.f32.mrf.mxu0
    %6598 = vmatprep.mubr.f32.mxu0 %v5870
    %6599 = vmatmul.mubr.f32.gmra.mxu0 %v5869
    %v6600 = vpop.f32.mrf.mxu0
    %v6601 = vadd.f32 %v6217, %v6600
    %v6602 = vpop.f32.mrf.mxu0
    %6603 = vmatprep.mubr.f32.mxu0 %v5872
    %6604 = vmatmul.mubr.f32.gmra.mxu0 %v5871
    %v6605 = vpop.f32.mrf.mxu0
    %v6606 = vadd.f32 %v6222, %v6605
    %v6607 = vpop.f32.mrf.mxu0
    %6608 = vmatprep.mubr.f32.mxu0 %v5874
    %6609 = vmatmul.mubr.f32.gmra.mxu0 %v5873
    %v6610 = vpop.f32.mrf.mxu0
    %v6611 = vadd.f32 %v6227, %v6610
    %v6612 = vpop.f32.mrf.mxu0
    %6613 = vmatprep.mubr.f32.mxu0 %v5876
    %6614 = vmatmul.mubr.f32.gmra.mxu0 %v5875
    %v6615 = vpop.f32.mrf.mxu0
    %v6616 = vadd.f32 %v6232, %v6615
    %v6617 = vpop.f32.mrf.mxu0
    %6618 = vmatprep.mubr.f32.mxu0 %v5878
    %6619 = vmatmul.mubr.f32.gmra.mxu0 %v5877
    %v6620 = vpop.f32.mrf.mxu0
    %v6621 = vadd.f32 %v6237, %v6620
    %v6622 = vpop.f32.mrf.mxu0
    %6623 = vmatprep.mubr.f32.mxu0 %v5880
    %6624 = vmatmul.mubr.f32.gmra.mxu0 %v5879
    %v6625 = vpop.f32.mrf.mxu0
    %v6626 = vadd.f32 %v6242, %v6625
    %v6627 = vpop.f32.mrf.mxu0
    %6628 = vmatprep.mubr.f32.mxu0 %v5882
    %6629 = vmatmul.mubr.f32.gmra.mxu0 %v5881
    %v6630 = vpop.f32.mrf.mxu0
    %v6631 = vadd.f32 %v6247, %v6630
    %v6632 = vpop.f32.mrf.mxu0
    %6633 = vmatprep.mubr.f32.mxu0 %v5884
    %6634 = vmatmul.mubr.f32.gmra.mxu0 %v5883
    %v6635 = vpop.f32.mrf.mxu0
    %v6636 = vadd.f32 %v6252, %v6635
    %v6637 = vpop.f32.mrf.mxu0
    %6638 = vmatprep.mubr.f32.mxu0 %v5886
    %6639 = vmatmul.mubr.f32.gmra.mxu0 %v5885
    %v6640 = vpop.f32.mrf.mxu0
    %v6641 = vadd.f32 %v6257, %v6640
    %v6642 = vpop.f32.mrf.mxu0
    %6643 = vmatprep.mubr.f32.mxu0 %v5888
    %6644 = vmatmul.mubr.f32.gmra.mxu0 %v5887
    %v6645 = vpop.f32.mrf.mxu0
    %v6646 = vadd.f32 %v6262, %v6645
    %v6647 = vpop.f32.mrf.mxu0
    %6648 = vmatprep.mubr.f32.mxu0 %v5890
    %6649 = vmatmul.mubr.f32.gmra.mxu0 %v5889
    %v6650 = vpop.f32.mrf.mxu0
    %v6651 = vadd.f32 %v6267, %v6650
    %v6652 = vpop.f32.mrf.mxu0
    %6653 = vmatprep.mubr.f32.mxu0 %v5892
    %6654 = vmatmul.mubr.f32.gmra.mxu0 %v5891
    %v6655 = vpop.f32.mrf.mxu0
    %v6656 = vadd.f32 %v6272, %v6655
    %v6657 = vpop.f32.mrf.mxu0
    %6658 = vmatprep.mubr.f32.mxu0 %v5894
    %6659 = vmatmul.mubr.f32.gmra.mxu0 %v5893
    %v6660 = vpop.f32.mrf.mxu0
    %v6661 = vadd.f32 %v6277, %v6660
    %v6662 = vpop.f32.mrf.mxu0
    %6663 = vdwg.mxu0
    %vm6664 = vcmp.gt.f32.partialorder %v6346, 0.0
    %vm6665 = vcmp.gt.f32.partialorder %v6351, 0.0
    %vm6666 = vcmp.gt.f32.partialorder %v6356, 0.0
    %vm6667 = vcmp.gt.f32.partialorder %v6361, 0.0
    %vm6668 = vcmp.gt.f32.partialorder %v6366, 0.0
    %vm6669 = vcmp.gt.f32.partialorder %v6371, 0.0
    %vm6670 = vcmp.gt.f32.partialorder %v6376, 0.0
    %vm6671 = vcmp.gt.f32.partialorder %v6381, 0.0
    %vm6672 = vcmp.gt.f32.partialorder %v6386, 0.0
    %vm6673 = vcmp.gt.f32.partialorder %v6391, 0.0
    %vm6674 = vcmp.gt.f32.partialorder %v6396, 0.0
    %vm6675 = vcmp.gt.f32.partialorder %v6401, 0.0
    %vm6676 = vcmp.gt.f32.partialorder %v6406, 0.0
    %vm6677 = vcmp.gt.f32.partialorder %v6411, 0.0
    %vm6678 = vcmp.gt.f32.partialorder %v6416, 0.0
    %vm6679 = vcmp.gt.f32.partialorder %v6421, 0.0
    %vm6680 = vcmp.gt.f32.partialorder %v6426, 0.0
    %vm6681 = vcmp.gt.f32.partialorder %v6431, 0.0
    %vm6682 = vcmp.gt.f32.partialorder %v6436, 0.0
    %vm6683 = vcmp.gt.f32.partialorder %v6441, 0.0
    %vm6684 = vcmp.gt.f32.partialorder %v6446, 0.0
    %vm6685 = vcmp.gt.f32.partialorder %v6451, 0.0
    %vm6686 = vcmp.gt.f32.partialorder %v6456, 0.0
    %vm6687 = vcmp.gt.f32.partialorder %v6461, 0.0
    %vm6688 = vcmp.gt.f32.partialorder %v6466, 0.0
    %vm6689 = vcmp.gt.f32.partialorder %v6471, 0.0
    %vm6690 = vcmp.gt.f32.partialorder %v6476, 0.0
    %vm6691 = vcmp.gt.f32.partialorder %v6481, 0.0
    %vm6692 = vcmp.gt.f32.partialorder %v6486, 0.0
    %vm6693 = vcmp.gt.f32.partialorder %v6491, 0.0
    %vm6694 = vcmp.gt.f32.partialorder %v6496, 0.0
    %vm6695 = vcmp.gt.f32.partialorder %v6501, 0.0
    %vm6696 = vcmp.gt.f32.partialorder %v6506, 0.0
    %vm6697 = vcmp.gt.f32.partialorder %v6511, 0.0
    %vm6698 = vcmp.gt.f32.partialorder %v6516, 0.0
    %vm6699 = vcmp.gt.f32.partialorder %v6521, 0.0
    %vm6700 = vcmp.gt.f32.partialorder %v6526, 0.0
    %vm6701 = vcmp.gt.f32.partialorder %v6531, 0.0
    %vm6702 = vcmp.gt.f32.partialorder %v6536, 0.0
    %vm6703 = vcmp.gt.f32.partialorder %v6541, 0.0
    %vm6704 = vcmp.gt.f32.partialorder %v6546, 0.0
    %vm6705 = vcmp.gt.f32.partialorder %v6551, 0.0
    %vm6706 = vcmp.gt.f32.partialorder %v6556, 0.0
    %vm6707 = vcmp.gt.f32.partialorder %v6561, 0.0
    %vm6708 = vcmp.gt.f32.partialorder %v6566, 0.0
    %vm6709 = vcmp.gt.f32.partialorder %v6571, 0.0
    %vm6710 = vcmp.gt.f32.partialorder %v6576, 0.0
    %vm6711 = vcmp.gt.f32.partialorder %v6581, 0.0
    %vm6712 = vcmp.gt.f32.partialorder %v6586, 0.0
    %vm6713 = vcmp.gt.f32.partialorder %v6591, 0.0
    %vm6714 = vcmp.gt.f32.partialorder %v6596, 0.0
    %vm6715 = vcmp.gt.f32.partialorder %v6601, 0.0
    %vm6716 = vcmp.gt.f32.partialorder %v6606, 0.0
    %vm6717 = vcmp.gt.f32.partialorder %v6611, 0.0
    %vm6718 = vcmp.gt.f32.partialorder %v6616, 0.0
    %vm6719 = vcmp.gt.f32.partialorder %v6621, 0.0
    %vm6720 = vcmp.gt.f32.partialorder %v6626, 0.0
    %vm6721 = vcmp.gt.f32.partialorder %v6631, 0.0
    %vm6722 = vcmp.gt.f32.partialorder %v6636, 0.0
    %vm6723 = vcmp.gt.f32.partialorder %v6641, 0.0
    %vm6724 = vcmp.gt.f32.partialorder %v6646, 0.0
    %vm6725 = vcmp.gt.f32.partialorder %v6651, 0.0
    %vm6726 = vcmp.gt.f32.partialorder %v6656, 0.0
    %vm6727 = vcmp.gt.f32.partialorder %v6661, 0.0
    %v6728 = vmin.f32 %v6346, 0.0
    %v6729 = vmin.f32 %v6351, 0.0
    %v6730 = vmin.f32 %v6356, 0.0
    %v6731 = vmin.f32 %v6361, 0.0
    %v6732 = vmin.f32 %v6366, 0.0
    %v6733 = vmin.f32 %v6371, 0.0
    %v6734 = vmin.f32 %v6376, 0.0
    %v6735 = vmin.f32 %v6381, 0.0
    %v6736 = vmin.f32 %v6386, 0.0
    %v6737 = vmin.f32 %v6391, 0.0
    %v6738 = vmin.f32 %v6396, 0.0
    %v6739 = vmin.f32 %v6401, 0.0
    %v6740 = vmin.f32 %v6406, 0.0
    %v6741 = vmin.f32 %v6411, 0.0
    %v6742 = vmin.f32 %v6416, 0.0
    %v6743 = vmin.f32 %v6421, 0.0
    %v6744 = vmin.f32 %v6426, 0.0
    %v6745 = vmin.f32 %v6431, 0.0
    %v6746 = vmin.f32 %v6436, 0.0
    %v6747 = vmin.f32 %v6441, 0.0
    %v6748 = vmin.f32 %v6446, 0.0
    %v6749 = vmin.f32 %v6451, 0.0
    %v6750 = vmin.f32 %v6456, 0.0
    %v6751 = vmin.f32 %v6461, 0.0
    %v6752 = vmin.f32 %v6466, 0.0
    %v6753 = vmin.f32 %v6471, 0.0
    %v6754 = vmin.f32 %v6476, 0.0
    %v6755 = vmin.f32 %v6481, 0.0
    %v6756 = vmin.f32 %v6486, 0.0
    %v6757 = vmin.f32 %v6491, 0.0
    %v6758 = vmin.f32 %v6496, 0.0
    %v6759 = vmin.f32 %v6501, 0.0
    %v6760 = vmin.f32 %v6506, 0.0
    %v6761 = vmin.f32 %v6511, 0.0
    %v6762 = vmin.f32 %v6516, 0.0
    %v6763 = vmin.f32 %v6521, 0.0
    %v6764 = vmin.f32 %v6526, 0.0
    %v6765 = vmin.f32 %v6531, 0.0
    %v6766 = vmin.f32 %v6536, 0.0
    %v6767 = vmin.f32 %v6541, 0.0
    %v6768 = vmin.f32 %v6546, 0.0
    %v6769 = vmin.f32 %v6551, 0.0
    %v6770 = vmin.f32 %v6556, 0.0
    %v6771 = vmin.f32 %v6561, 0.0
    %v6772 = vmin.f32 %v6566, 0.0
    %v6773 = vmin.f32 %v6571, 0.0
    %v6774 = vmin.f32 %v6576, 0.0
    %v6775 = vmin.f32 %v6581, 0.0
    %v6776 = vmin.f32 %v6586, 0.0
    %v6777 = vmin.f32 %v6591, 0.0
    %v6778 = vmin.f32 %v6596, 0.0
    %v6779 = vmin.f32 %v6601, 0.0
    %v6780 = vmin.f32 %v6606, 0.0
    %v6781 = vmin.f32 %v6611, 0.0
    %v6782 = vmin.f32 %v6616, 0.0
    %v6783 = vmin.f32 %v6621, 0.0
    %v6784 = vmin.f32 %v6626, 0.0
    %v6785 = vmin.f32 %v6631, 0.0
    %v6786 = vmin.f32 %v6636, 0.0
    %v6787 = vmin.f32 %v6641, 0.0
    %v6788 = vmin.f32 %v6646, 0.0
    %v6789 = vmin.f32 %v6651, 0.0
    %v6790 = vmin.f32 %v6656, 0.0
    %v6791 = vmin.f32 %v6661, 0.0
    %v6792 = vmul.f32 %v6728, 1.442695
    %v6793 = vpow.pop %v6792
    %v6794 = vmul.f32 %v6729, 1.442695
    %v6795 = vpow.pop %v6794
    %v6796 = vmul.f32 %v6730, 1.442695
    %v6797 = vpow.pop %v6796
    %v6798 = vmul.f32 %v6731, 1.442695
    %v6799 = vpow.pop %v6798
    %v6800 = vmul.f32 %v6732, 1.442695
    %v6801 = vpow.pop %v6800
    %v6802 = vmul.f32 %v6733, 1.442695
    %v6803 = vpow.pop %v6802
    %v6804 = vmul.f32 %v6734, 1.442695
    %v6805 = vpow.pop %v6804
    %v6806 = vmul.f32 %v6735, 1.442695
    %v6807 = vpow.pop %v6806
    %v6808 = vmul.f32 %v6736, 1.442695
    %v6809 = vpow.pop %v6808
    %v6810 = vmul.f32 %v6737, 1.442695
    %v6811 = vpow.pop %v6810
    %v6812 = vmul.f32 %v6738, 1.442695
    %v6813 = vpow.pop %v6812
    %v6814 = vmul.f32 %v6739, 1.442695
    %v6815 = vpow.pop %v6814
    %v6816 = vmul.f32 %v6740, 1.442695
    %v6817 = vpow.pop %v6816
    %v6818 = vmul.f32 %v6741, 1.442695
    %v6819 = vpow.pop %v6818
    %v6820 = vmul.f32 %v6742, 1.442695
    %v6821 = vpow.pop %v6820
    %v6822 = vmul.f32 %v6743, 1.442695
    %v6823 = vpow.pop %v6822
    %v6824 = vmul.f32 %v6744, 1.442695
    %v6825 = vpow.pop %v6824
    %v6826 = vmul.f32 %v6745, 1.442695
    %v6827 = vpow.pop %v6826
    %v6828 = vmul.f32 %v6746, 1.442695
    %v6829 = vpow.pop %v6828
    %v6830 = vmul.f32 %v6747, 1.442695
    %v6831 = vpow.pop %v6830
    %v6832 = vmul.f32 %v6748, 1.442695
    %v6833 = vpow.pop %v6832
    %v6834 = vmul.f32 %v6749, 1.442695
    %v6835 = vpow.pop %v6834
    %v6836 = vmul.f32 %v6750, 1.442695
    %v6837 = vpow.pop %v6836
    %v6838 = vmul.f32 %v6751, 1.442695
    %v6839 = vpow.pop %v6838
    %v6840 = vmul.f32 %v6752, 1.442695
    %v6841 = vpow.pop %v6840
    %v6842 = vmul.f32 %v6753, 1.442695
    %v6843 = vpow.pop %v6842
    %v6844 = vmul.f32 %v6754, 1.442695
    %v6845 = vpow.pop %v6844
    %v6846 = vmul.f32 %v6755, 1.442695
    %v6847 = vpow.pop %v6846
    %v6848 = vmul.f32 %v6756, 1.442695
    %v6849 = vpow.pop %v6848
    %v6850 = vmul.f32 %v6757, 1.442695
    %v6851 = vpow.pop %v6850
    %v6852 = vmul.f32 %v6758, 1.442695
    %v6853 = vpow.pop %v6852
    %v6854 = vmul.f32 %v6759, 1.442695
    %v6855 = vpow.pop %v6854
    %v6856 = vmul.f32 %v6760, 1.442695
    %v6857 = vpow.pop %v6856
    %v6858 = vmul.f32 %v6761, 1.442695
    %v6859 = vpow.pop %v6858
    %v6860 = vmul.f32 %v6762, 1.442695
    %v6861 = vpow.pop %v6860
    %v6862 = vmul.f32 %v6763, 1.442695
    %v6863 = vpow.pop %v6862
    %v6864 = vmul.f32 %v6764, 1.442695
    %v6865 = vpow.pop %v6864
    %v6866 = vmul.f32 %v6765, 1.442695
    %v6867 = vpow.pop %v6866
    %v6868 = vmul.f32 %v6766, 1.442695
    %v6869 = vpow.pop %v6868
    %v6870 = vmul.f32 %v6767, 1.442695
    %v6871 = vpow.pop %v6870
    %v6872 = vmul.f32 %v6768, 1.442695
    %v6873 = vpow.pop %v6872
    %v6874 = vmul.f32 %v6769, 1.442695
    %v6875 = vpow.pop %v6874
    %v6876 = vmul.f32 %v6770, 1.442695
    %v6877 = vpow.pop %v6876
    %v6878 = vmul.f32 %v6771, 1.442695
    %v6879 = vpow.pop %v6878
    %v6880 = vmul.f32 %v6772, 1.442695
    %v6881 = vpow.pop %v6880
    %v6882 = vmul.f32 %v6773, 1.442695
    %v6883 = vpow.pop %v6882
    %v6884 = vmul.f32 %v6774, 1.442695
    %v6885 = vpow.pop %v6884
    %v6886 = vmul.f32 %v6775, 1.442695
    %v6887 = vpow.pop %v6886
    %v6888 = vmul.f32 %v6776, 1.442695
    %v6889 = vpow.pop %v6888
    %v6890 = vmul.f32 %v6777, 1.442695
    %v6891 = vpow.pop %v6890
    %v6892 = vmul.f32 %v6778, 1.442695
    %v6893 = vpow.pop %v6892
    %v6894 = vmul.f32 %v6779, 1.442695
    %v6895 = vpow.pop %v6894
    %v6896 = vmul.f32 %v6780, 1.442695
    %v6897 = vpow.pop %v6896
    %v6898 = vmul.f32 %v6781, 1.442695
    %v6899 = vpow.pop %v6898
    %v6900 = vmul.f32 %v6782, 1.442695
    %v6901 = vpow.pop %v6900
    %v6902 = vmul.f32 %v6783, 1.442695
    %v6903 = vpow.pop %v6902
    %v6904 = vmul.f32 %v6784, 1.442695
    %v6905 = vpow.pop %v6904
    %v6906 = vmul.f32 %v6785, 1.442695
    %v6907 = vpow.pop %v6906
    %v6908 = vmul.f32 %v6786, 1.442695
    %v6909 = vpow.pop %v6908
    %v6910 = vmul.f32 %v6787, 1.442695
    %v6911 = vpow.pop %v6910
    %v6912 = vmul.f32 %v6788, 1.442695
    %v6913 = vpow.pop %v6912
    %v6914 = vmul.f32 %v6789, 1.442695
    %v6915 = vpow.pop %v6914
    %v6916 = vmul.f32 %v6790, 1.442695
    %v6917 = vpow.pop %v6916
    %v6918 = vmul.f32 %v6791, 1.442695
    %v6919 = vpow.pop %v6918
    %v6920 = vsub.f32 %v6793, 1.0
    %v6921 = vsub.f32 %v6795, 1.0
    %v6922 = vsub.f32 %v6797, 1.0
    %v6923 = vsub.f32 %v6799, 1.0
    %v6924 = vsub.f32 %v6801, 1.0
    %v6925 = vsub.f32 %v6803, 1.0
    %v6926 = vsub.f32 %v6805, 1.0
    %v6927 = vsub.f32 %v6807, 1.0
    %v6928 = vsub.f32 %v6809, 1.0
    %v6929 = vsub.f32 %v6811, 1.0
    %v6930 = vsub.f32 %v6813, 1.0
    %v6931 = vsub.f32 %v6815, 1.0
    %v6932 = vsub.f32 %v6817, 1.0
    %v6933 = vsub.f32 %v6819, 1.0
    %v6934 = vsub.f32 %v6821, 1.0
    %v6935 = vsub.f32 %v6823, 1.0
    %v6936 = vsub.f32 %v6825, 1.0
    %v6937 = vsub.f32 %v6827, 1.0
    %v6938 = vsub.f32 %v6829, 1.0
    %v6939 = vsub.f32 %v6831, 1.0
    %v6940 = vsub.f32 %v6833, 1.0
    %v6941 = vsub.f32 %v6835, 1.0
    %v6942 = vsub.f32 %v6837, 1.0
    %v6943 = vsub.f32 %v6839, 1.0
    %v6944 = vsub.f32 %v6841, 1.0
    %v6945 = vsub.f32 %v6843, 1.0
    %v6946 = vsub.f32 %v6845, 1.0
    %v6947 = vsub.f32 %v6847, 1.0
    %v6948 = vsub.f32 %v6849, 1.0
    %v6949 = vsub.f32 %v6851, 1.0
    %v6950 = vsub.f32 %v6853, 1.0
    %v6951 = vsub.f32 %v6855, 1.0
    %v6952 = vsub.f32 %v6857, 1.0
    %v6953 = vsub.f32 %v6859, 1.0
    %v6954 = vsub.f32 %v6861, 1.0
    %v6955 = vsub.f32 %v6863, 1.0
    %v6956 = vsub.f32 %v6865, 1.0
    %v6957 = vsub.f32 %v6867, 1.0
    %v6958 = vsub.f32 %v6869, 1.0
    %v6959 = vsub.f32 %v6871, 1.0
    %v6960 = vsub.f32 %v6873, 1.0
    %v6961 = vsub.f32 %v6875, 1.0
    %v6962 = vsub.f32 %v6877, 1.0
    %v6963 = vsub.f32 %v6879, 1.0
    %v6964 = vsub.f32 %v6881, 1.0
    %v6965 = vsub.f32 %v6883, 1.0
    %v6966 = vsub.f32 %v6885, 1.0
    %v6967 = vsub.f32 %v6887, 1.0
    %v6968 = vsub.f32 %v6889, 1.0
    %v6969 = vsub.f32 %v6891, 1.0
    %v6970 = vsub.f32 %v6893, 1.0
    %v6971 = vsub.f32 %v6895, 1.0
    %v6972 = vsub.f32 %v6897, 1.0
    %v6973 = vsub.f32 %v6899, 1.0
    %v6974 = vsub.f32 %v6901, 1.0
    %v6975 = vsub.f32 %v6903, 1.0
    %v6976 = vsub.f32 %v6905, 1.0
    %v6977 = vsub.f32 %v6907, 1.0
    %v6978 = vsub.f32 %v6909, 1.0
    %v6979 = vsub.f32 %v6911, 1.0
    %v6980 = vsub.f32 %v6913, 1.0
    %v6981 = vsub.f32 %v6915, 1.0
    %v6982 = vsub.f32 %v6917, 1.0
    %v6983 = vsub.f32 %v6919, 1.0
    %v6984 = vsel %vm6664, %v6346, %v6920
    %v6985 = vsel %vm6665, %v6351, %v6921
    %v6986 = vsel %vm6666, %v6356, %v6922
    %v6987 = vsel %vm6667, %v6361, %v6923
    %v6988 = vsel %vm6668, %v6366, %v6924
    %v6989 = vsel %vm6669, %v6371, %v6925
    %v6990 = vsel %vm6670, %v6376, %v6926
    %v6991 = vsel %vm6671, %v6381, %v6927
    %v6992 = vsel %vm6672, %v6386, %v6928
    %v6993 = vsel %vm6673, %v6391, %v6929
    %v6994 = vsel %vm6674, %v6396, %v6930
    %v6995 = vsel %vm6675, %v6401, %v6931
    %v6996 = vsel %vm6676, %v6406, %v6932
    %v6997 = vsel %vm6677, %v6411, %v6933
    %v6998 = vsel %vm6678, %v6416, %v6934
    %v6999 = vsel %vm6679, %v6421, %v6935
    %v7000 = vsel %vm6680, %v6426, %v6936
    %v7001 = vsel %vm6681, %v6431, %v6937
    %v7002 = vsel %vm6682, %v6436, %v6938
    %v7003 = vsel %vm6683, %v6441, %v6939
    %v7004 = vsel %vm6684, %v6446, %v6940
    %v7005 = vsel %vm6685, %v6451, %v6941
    %v7006 = vsel %vm6686, %v6456, %v6942
    %v7007 = vsel %vm6687, %v6461, %v6943
    %v7008 = vsel %vm6688, %v6466, %v6944
    %v7009 = vsel %vm6689, %v6471, %v6945
    %v7010 = vsel %vm6690, %v6476, %v6946
    %v7011 = vsel %vm6691, %v6481, %v6947
    %v7012 = vsel %vm6692, %v6486, %v6948
    %v7013 = vsel %vm6693, %v6491, %v6949
    %v7014 = vsel %vm6694, %v6496, %v6950
    %v7015 = vsel %vm6695, %v6501, %v6951
    %v7016 = vsel %vm6696, %v6506, %v6952
    %v7017 = vsel %vm6697, %v6511, %v6953
    %v7018 = vsel %vm6698, %v6516, %v6954
    %v7019 = vsel %vm6699, %v6521, %v6955
    %v7020 = vsel %vm6700, %v6526, %v6956
    %v7021 = vsel %vm6701, %v6531, %v6957
    %v7022 = vsel %vm6702, %v6536, %v6958
    %v7023 = vsel %vm6703, %v6541, %v6959
    %v7024 = vsel %vm6704, %v6546, %v6960
    %v7025 = vsel %vm6705, %v6551, %v6961
    %v7026 = vsel %vm6706, %v6556, %v6962
    %v7027 = vsel %vm6707, %v6561, %v6963
    %v7028 = vsel %vm6708, %v6566, %v6964
    %v7029 = vsel %vm6709, %v6571, %v6965
    %v7030 = vsel %vm6710, %v6576, %v6966
    %v7031 = vsel %vm6711, %v6581, %v6967
    %v7032 = vsel %vm6712, %v6586, %v6968
    %v7033 = vsel %vm6713, %v6591, %v6969
    %v7034 = vsel %vm6714, %v6596, %v6970
    %v7035 = vsel %vm6715, %v6601, %v6971
    %v7036 = vsel %vm6716, %v6606, %v6972
    %v7037 = vsel %vm6717, %v6611, %v6973
    %v7038 = vsel %vm6718, %v6616, %v6974
    %v7039 = vsel %vm6719, %v6621, %v6975
    %v7040 = vsel %vm6720, %v6626, %v6976
    %v7041 = vsel %vm6721, %v6631, %v6977
    %v7042 = vsel %vm6722, %v6636, %v6978
    %v7043 = vsel %vm6723, %v6641, %v6979
    %v7044 = vsel %vm6724, %v6646, %v6980
    %v7045 = vsel %vm6725, %v6651, %v6981
    %v7046 = vsel %vm6726, %v6656, %v6982
    %v7047 = vsel %vm6727, %v6661, %v6983
    %vm7048 = vcmask 130048
    %7049 = vst.msk [vmem:[#allocation2] sm:$0xff] %vm7048, %v6984
    %7050 = vst.msk [vmem:[#allocation2 + $0x8] sm:$0xff] %vm7048, %v6985
    %7051 = vst.msk [vmem:[#allocation2 + $0x10] sm:$0xff] %vm7048, %v6986
    %7052 = vst.msk [vmem:[#allocation2 + $0x18] sm:$0xff] %vm7048, %v6987
    %7053 = vst.msk [vmem:[#allocation2 + $0x20] sm:$0xff] %vm7048, %v6988
    %7054 = vst.msk [vmem:[#allocation2 + $0x28] sm:$0xff] %vm7048, %v6989
    %7055 = vst.msk [vmem:[#allocation2 + $0x30] sm:$0xff] %vm7048, %v6990
    %7056 = vst.msk [vmem:[#allocation2 + $0x38] sm:$0xff] %vm7048, %v6991
    %7057 = vst.msk [vmem:[#allocation2 + $0x40] sm:$0xff] %vm7048, %v6992
    %7058 = vst.msk [vmem:[#allocation2 + $0x48] sm:$0xff] %vm7048, %v6993
    %7059 = vst.msk [vmem:[#allocation2 + $0x50] sm:$0xff] %vm7048, %v6994
    %7060 = vst.msk [vmem:[#allocation2 + $0x58] sm:$0xff] %vm7048, %v6995
    %7061 = vst.msk [vmem:[#allocation2 + $0x60] sm:$0xff] %vm7048, %v6996
    %7062 = vst.msk [vmem:[#allocation2 + $0x68] sm:$0xff] %vm7048, %v6997
    %7063 = vst.msk [vmem:[#allocation2 + $0x70] sm:$0xff] %vm7048, %v6998
    %7064 = vst.msk [vmem:[#allocation2 + $0x78] sm:$0xff] %vm7048, %v6999
    %7065 = vst.msk [vmem:[#allocation2 + $0x80] sm:$0xff] %vm7048, %v7000
    %7066 = vst.msk [vmem:[#allocation2 + $0x88] sm:$0xff] %vm7048, %v7001
    %7067 = vst.msk [vmem:[#allocation2 + $0x90] sm:$0xff] %vm7048, %v7002
    %7068 = vst.msk [vmem:[#allocation2 + $0x98] sm:$0xff] %vm7048, %v7003
    %7069 = vst.msk [vmem:[#allocation2 + $0xa0] sm:$0xff] %vm7048, %v7004
    %7070 = vst.msk [vmem:[#allocation2 + $0xa8] sm:$0xff] %vm7048, %v7005
    %7071 = vst.msk [vmem:[#allocation2 + $0xb0] sm:$0xff] %vm7048, %v7006
    %7072 = vst.msk [vmem:[#allocation2 + $0xb8] sm:$0xff] %vm7048, %v7007
    %7073 = vst.msk [vmem:[#allocation2 + $0xc0] sm:$0xff] %vm7048, %v7008
    %7074 = vst.msk [vmem:[#allocation2 + $0xc8] sm:$0xff] %vm7048, %v7009
    %7075 = vst.msk [vmem:[#allocation2 + $0xd0] sm:$0xff] %vm7048, %v7010
    %7076 = vst.msk [vmem:[#allocation2 + $0xd8] sm:$0xff] %vm7048, %v7011
    %7077 = vst.msk [vmem:[#allocation2 + $0xe0] sm:$0xff] %vm7048, %v7012
    %7078 = vst.msk [vmem:[#allocation2 + $0xe8] sm:$0xff] %vm7048, %v7013
    %7079 = vst.msk [vmem:[#allocation2 + $0xf0] sm:$0xff] %vm7048, %v7014
    %7080 = vst.msk [vmem:[#allocation2 + $0xf8] sm:$0xff] %vm7048, %v7015
    %7113 = vrot.lane.b32.xlu0 %v7016, 16
    %v7114 = vpop.permute.xlu0 %7113
    %7115 = vrot.lane.b32.xlu0 %v7017, 16
    %v7116 = vpop.permute.xlu0 %7115
    %7117 = vrot.lane.b32.xlu0 %v7018, 16
    %v7118 = vpop.permute.xlu0 %7117
    %7119 = vrot.lane.b32.xlu0 %v7019, 16
    %v7120 = vpop.permute.xlu0 %7119
    %7121 = vrot.lane.b32.xlu0 %v7020, 16
    %v7122 = vpop.permute.xlu0 %7121
    %7123 = vrot.lane.b32.xlu0 %v7021, 16
    %v7124 = vpop.permute.xlu0 %7123
    %7125 = vrot.lane.b32.xlu0 %v7022, 16
    %v7126 = vpop.permute.xlu0 %7125
    %7127 = vrot.lane.b32.xlu0 %v7023, 16
    %v7128 = vpop.permute.xlu0 %7127
    %7129 = vrot.lane.b32.xlu0 %v7024, 16
    %v7130 = vpop.permute.xlu0 %7129
    %7131 = vrot.lane.b32.xlu0 %v7025, 16
    %v7132 = vpop.permute.xlu0 %7131
    %7133 = vrot.lane.b32.xlu0 %v7026, 16
    %v7134 = vpop.permute.xlu0 %7133
    %7135 = vrot.lane.b32.xlu0 %v7027, 16
    %v7136 = vpop.permute.xlu0 %7135
    %7137 = vrot.lane.b32.xlu0 %v7028, 16
    %v7138 = vpop.permute.xlu0 %7137
    %7139 = vrot.lane.b32.xlu0 %v7029, 16
    %v7140 = vpop.permute.xlu0 %7139
    %7141 = vrot.lane.b32.xlu0 %v7030, 16
    %v7142 = vpop.permute.xlu0 %7141
    %7143 = vrot.lane.b32.xlu0 %v7031, 16
    %v7144 = vpop.permute.xlu0 %7143
    %7145 = vrot.lane.b32.xlu0 %v7032, 16
    %v7146 = vpop.permute.xlu0 %7145
    %7147 = vrot.lane.b32.xlu0 %v7033, 16
    %v7148 = vpop.permute.xlu0 %7147
    %7149 = vrot.lane.b32.xlu0 %v7034, 16
    %v7150 = vpop.permute.xlu0 %7149
    %7151 = vrot.lane.b32.xlu0 %v7035, 16
    %v7152 = vpop.permute.xlu0 %7151
    %7153 = vrot.lane.b32.xlu0 %v7036, 16
    %v7154 = vpop.permute.xlu0 %7153
    %7155 = vrot.lane.b32.xlu0 %v7037, 16
    %v7156 = vpop.permute.xlu0 %7155
    %7157 = vrot.lane.b32.xlu0 %v7038, 16
    %v7158 = vpop.permute.xlu0 %7157
    %7159 = vrot.lane.b32.xlu0 %v7039, 16
    %v7160 = vpop.permute.xlu0 %7159
    %7161 = vrot.lane.b32.xlu0 %v7040, 16
    %v7162 = vpop.permute.xlu0 %7161
    %7163 = vrot.lane.b32.xlu0 %v7041, 16
    %v7164 = vpop.permute.xlu0 %7163
    %7165 = vrot.lane.b32.xlu0 %v7042, 16
    %v7166 = vpop.permute.xlu0 %7165
    %7167 = vrot.lane.b32.xlu0 %v7043, 16
    %v7168 = vpop.permute.xlu0 %7167
    %7169 = vrot.lane.b32.xlu0 %v7044, 16
    %v7170 = vpop.permute.xlu0 %7169
    %7171 = vrot.lane.b32.xlu0 %v7045, 16
    %v7172 = vpop.permute.xlu0 %7171
    %7173 = vrot.lane.b32.xlu0 %v7046, 16
    %v7174 = vpop.permute.xlu0 %7173
    %7175 = vrot.lane.b32.xlu0 %v7047, 16
    %v7176 = vpop.permute.xlu0 %7175
    %vm7209 = vcmask 261248
    %7210 = vst.msk [vmem:[#allocation2] sm:$0xff] %vm7209, %v7114
    %7211 = vst.msk [vmem:[#allocation2 + $0x8] sm:$0xff] %vm7209, %v7116
    %7212 = vst.msk [vmem:[#allocation2 + $0x10] sm:$0xff] %vm7209, %v7118
    %7213 = vst.msk [vmem:[#allocation2 + $0x18] sm:$0xff] %vm7209, %v7120
    %7214 = vst.msk [vmem:[#allocation2 + $0x20] sm:$0xff] %vm7209, %v7122
    %7215 = vst.msk [vmem:[#allocation2 + $0x28] sm:$0xff] %vm7209, %v7124
    %7216 = vst.msk [vmem:[#allocation2 + $0x30] sm:$0xff] %vm7209, %v7126
    %7217 = vst.msk [vmem:[#allocation2 + $0x38] sm:$0xff] %vm7209, %v7128
    %7218 = vst.msk [vmem:[#allocation2 + $0x40] sm:$0xff] %vm7209, %v7130
    %7219 = vst.msk [vmem:[#allocation2 + $0x48] sm:$0xff] %vm7209, %v7132
    %7220 = vst.msk [vmem:[#allocation2 + $0x50] sm:$0xff] %vm7209, %v7134
    %7221 = vst.msk [vmem:[#allocation2 + $0x58] sm:$0xff] %vm7209, %v7136
    %7222 = vst.msk [vmem:[#allocation2 + $0x60] sm:$0xff] %vm7209, %v7138
    %7223 = vst.msk [vmem:[#allocation2 + $0x68] sm:$0xff] %vm7209, %v7140
    %7224 = vst.msk [vmem:[#allocation2 + $0x70] sm:$0xff] %vm7209, %v7142
    %7225 = vst.msk [vmem:[#allocation2 + $0x78] sm:$0xff] %vm7209, %v7144
    %7226 = vst.msk [vmem:[#allocation2 + $0x80] sm:$0xff] %vm7209, %v7146
    %7227 = vst.msk [vmem:[#allocation2 + $0x88] sm:$0xff] %vm7209, %v7148
    %7228 = vst.msk [vmem:[#allocation2 + $0x90] sm:$0xff] %vm7209, %v7150
    %7229 = vst.msk [vmem:[#allocation2 + $0x98] sm:$0xff] %vm7209, %v7152
    %7230 = vst.msk [vmem:[#allocation2 + $0xa0] sm:$0xff] %vm7209, %v7154
    %7231 = vst.msk [vmem:[#allocation2 + $0xa8] sm:$0xff] %vm7209, %v7156
    %7232 = vst.msk [vmem:[#allocation2 + $0xb0] sm:$0xff] %vm7209, %v7158
    %7233 = vst.msk [vmem:[#allocation2 + $0xb8] sm:$0xff] %vm7209, %v7160
    %7234 = vst.msk [vmem:[#allocation2 + $0xc0] sm:$0xff] %vm7209, %v7162
    %7235 = vst.msk [vmem:[#allocation2 + $0xc8] sm:$0xff] %vm7209, %v7164
    %7236 = vst.msk [vmem:[#allocation2 + $0xd0] sm:$0xff] %vm7209, %v7166
    %7237 = vst.msk [vmem:[#allocation2 + $0xd8] sm:$0xff] %vm7209, %v7168
    %7238 = vst.msk [vmem:[#allocation2 + $0xe0] sm:$0xff] %vm7209, %v7170
    %7239 = vst.msk [vmem:[#allocation2 + $0xe8] sm:$0xff] %vm7209, %v7172
    %7240 = vst.msk [vmem:[#allocation2 + $0xf0] sm:$0xff] %vm7209, %v7174
    %7241 = vst.msk [vmem:[#allocation2 + $0xf8] sm:$0xff] %vm7209, %v7176
    %v7242 = vld [vmem:[#allocation2] sm:$0xff]
    %v7243 = vld [vmem:[#allocation2 + $0x8] sm:$0xff]
    %v7244 = vld [vmem:[#allocation2 + $0x10] sm:$0xff]
    %v7245 = vld [vmem:[#allocation2 + $0x18] sm:$0xff]
    %v7246 = vld [vmem:[#allocation2 + $0x20] sm:$0xff]
    %v7247 = vld [vmem:[#allocation2 + $0x28] sm:$0xff]
    %v7248 = vld [vmem:[#allocation2 + $0x30] sm:$0xff]
    %v7249 = vld [vmem:[#allocation2 + $0x38] sm:$0xff]
    %v7250 = vld [vmem:[#allocation2 + $0x40] sm:$0xff]
    %v7251 = vld [vmem:[#allocation2 + $0x48] sm:$0xff]
    %v7252 = vld [vmem:[#allocation2 + $0x50] sm:$0xff]
    %v7253 = vld [vmem:[#allocation2 + $0x58] sm:$0xff]
    %v7254 = vld [vmem:[#allocation2 + $0x60] sm:$0xff]
    %v7255 = vld [vmem:[#allocation2 + $0x68] sm:$0xff]
    %v7256 = vld [vmem:[#allocation2 + $0x70] sm:$0xff]
    %v7257 = vld [vmem:[#allocation2 + $0x78] sm:$0xff]
    %v7258 = vld [vmem:[#allocation2 + $0x80] sm:$0xff]
    %v7259 = vld [vmem:[#allocation2 + $0x88] sm:$0xff]
    %v7260 = vld [vmem:[#allocation2 + $0x90] sm:$0xff]
    %v7261 = vld [vmem:[#allocation2 + $0x98] sm:$0xff]
    %v7262 = vld [vmem:[#allocation2 + $0xa0] sm:$0xff]
    %v7263 = vld [vmem:[#allocation2 + $0xa8] sm:$0xff]
    %v7264 = vld [vmem:[#allocation2 + $0xb0] sm:$0xff]
    %v7265 = vld [vmem:[#allocation2 + $0xb8] sm:$0xff]
    %v7266 = vld [vmem:[#allocation2 + $0xc0] sm:$0xff]
    %v7267 = vld [vmem:[#allocation2 + $0xc8] sm:$0xff]
    %v7268 = vld [vmem:[#allocation2 + $0xd0] sm:$0xff]
    %v7269 = vld [vmem:[#allocation2 + $0xd8] sm:$0xff]
    %v7270 = vld [vmem:[#allocation2 + $0xe0] sm:$0xff]
    %v7271 = vld [vmem:[#allocation2 + $0xe8] sm:$0xff]
    %v7272 = vld [vmem:[#allocation2 + $0xf0] sm:$0xff]
    %v7273 = vld [vmem:[#allocation2 + $0xf8] sm:$0xff]
    %v7274 = vld [vmem:[#allocation15] sm:$0xff]
    %v7275 = vld [vmem:[#allocation15 + $0x8] sm:$0xff]
    %v7276 = vld [vmem:[#allocation15 + $0x10] sm:$0xff]
    %v7277 = vld [vmem:[#allocation15 + $0x18] sm:$0xff]
    %v7278 = vld [vmem:[#allocation15 + $0x20] sm:$0xff]
    %v7279 = vld [vmem:[#allocation15 + $0x28] sm:$0xff]
    %v7280 = vld [vmem:[#allocation15 + $0x30] sm:$0xff]
    %v7281 = vld [vmem:[#allocation15 + $0x38] sm:$0xff]
    %v7282 = vld [vmem:[#allocation15 + $0x40] sm:$0xff]
    %v7283 = vld [vmem:[#allocation15 + $0x48] sm:$0xff]
    %v7284 = vld [vmem:[#allocation15 + $0x50] sm:$0xff]
    %v7285 = vld [vmem:[#allocation15 + $0x58] sm:$0xff]
    %v7286 = vld [vmem:[#allocation15 + $0x60] sm:$0xff]
    %v7287 = vld [vmem:[#allocation15 + $0x68] sm:$0xff]
    %v7288 = vld [vmem:[#allocation15 + $0x70] sm:$0xff]
    %v7289 = vld [vmem:[#allocation15 + $0x78] sm:$0xff]
    %v7290 = vld [vmem:[#allocation15 + $0x80] sm:$0xff]
    %v7291 = vld [vmem:[#allocation15 + $0x88] sm:$0xff]
    %v7292 = vld [vmem:[#allocation15 + $0x90] sm:$0xff]
    %v7293 = vld [vmem:[#allocation15 + $0x98] sm:$0xff]
    %v7294 = vld [vmem:[#allocation15 + $0xa0] sm:$0xff]
    %v7295 = vld [vmem:[#allocation15 + $0xa8] sm:$0xff]
    %v7296 = vld [vmem:[#allocation15 + $0xb0] sm:$0xff]
    %v7297 = vld [vmem:[#allocation15 + $0xb8] sm:$0xff]
    %v7298 = vld [vmem:[#allocation15 + $0xc0] sm:$0xff]
    %v7299 = vld [vmem:[#allocation15 + $0xc8] sm:$0xff]
    %v7300 = vld [vmem:[#allocation15 + $0xd0] sm:$0xff]
    %v7301 = vld [vmem:[#allocation15 + $0xd8] sm:$0xff]
    %v7302 = vld [vmem:[#allocation15 + $0xe0] sm:$0xff]
    %v7303 = vld [vmem:[#allocation15 + $0xe8] sm:$0xff]
    %v7304 = vld [vmem:[#allocation15 + $0xf0] sm:$0xff]
    %v7305 = vld [vmem:[#allocation15 + $0xf8] sm:$0xff]
    %v7306 = vld [vmem:[#allocation15 + $0x100] sm:$0xff]
    %v7307 = vld [vmem:[#allocation15 + $0x108] sm:$0xff]
    %v7308 = vld [vmem:[#allocation15 + $0x110] sm:$0xff]
    %v7309 = vld [vmem:[#allocation15 + $0x118] sm:$0xff]
    %v7310 = vld [vmem:[#allocation15 + $0x120] sm:$0xff]
    %v7311 = vld [vmem:[#allocation15 + $0x128] sm:$0xff]
    %v7312 = vld [vmem:[#allocation15 + $0x130] sm:$0xff]
    %v7313 = vld [vmem:[#allocation15 + $0x138] sm:$0xff]
    %v7314 = vld [vmem:[#allocation15 + $0x140] sm:$0xff]
    %v7315 = vld [vmem:[#allocation15 + $0x148] sm:$0xff]
    %v7316 = vld [vmem:[#allocation15 + $0x150] sm:$0xff]
    %v7317 = vld [vmem:[#allocation15 + $0x158] sm:$0xff]
    %v7318 = vld [vmem:[#allocation15 + $0x160] sm:$0xff]
    %v7319 = vld [vmem:[#allocation15 + $0x168] sm:$0xff]
    %v7320 = vld [vmem:[#allocation15 + $0x170] sm:$0xff]
    %v7321 = vld [vmem:[#allocation15 + $0x178] sm:$0xff]
    %v7322 = vld [vmem:[#allocation15 + $0x180] sm:$0xff]
    %v7323 = vld [vmem:[#allocation15 + $0x188] sm:$0xff]
    %v7324 = vld [vmem:[#allocation15 + $0x190] sm:$0xff]
    %v7325 = vld [vmem:[#allocation15 + $0x198] sm:$0xff]
    %v7326 = vld [vmem:[#allocation15 + $0x1a0] sm:$0xff]
    %v7327 = vld [vmem:[#allocation15 + $0x1a8] sm:$0xff]
    %v7328 = vld [vmem:[#allocation15 + $0x1b0] sm:$0xff]
    %v7329 = vld [vmem:[#allocation15 + $0x1b8] sm:$0xff]
    %v7330 = vld [vmem:[#allocation15 + $0x1c0] sm:$0xff]
    %v7331 = vld [vmem:[#allocation15 + $0x1c8] sm:$0xff]
    %v7332 = vld [vmem:[#allocation15 + $0x1d0] sm:$0xff]
    %v7333 = vld [vmem:[#allocation15 + $0x1d8] sm:$0xff]
    %v7334 = vld [vmem:[#allocation15 + $0x1e0] sm:$0xff]
    %v7335 = vld [vmem:[#allocation15 + $0x1e8] sm:$0xff]
    %v7336 = vld [vmem:[#allocation15 + $0x1f0] sm:$0xff]
    %v7337 = vld [vmem:[#allocation15 + $0x1f8] sm:$0xff]
    %v7338 = vld [vmem:[#allocation15 + $0x200] sm:$0xff]
    %v7339 = vld [vmem:[#allocation15 + $0x208] sm:$0xff]
    %v7340 = vld [vmem:[#allocation15 + $0x210] sm:$0xff]
    %v7341 = vld [vmem:[#allocation15 + $0x218] sm:$0xff]
    %v7342 = vld [vmem:[#allocation15 + $0x220] sm:$0xff]
    %v7343 = vld [vmem:[#allocation15 + $0x228] sm:$0xff]
    %v7344 = vld [vmem:[#allocation15 + $0x230] sm:$0xff]
    %v7345 = vld [vmem:[#allocation15 + $0x238] sm:$0xff]
    %v7346 = vld [vmem:[#allocation15 + $0x240] sm:$0xff]
    %v7347 = vld [vmem:[#allocation15 + $0x248] sm:$0xff]
    %v7348 = vld [vmem:[#allocation15 + $0x250] sm:$0xff]
    %v7349 = vld [vmem:[#allocation15 + $0x258] sm:$0xff]
    %v7350 = vld [vmem:[#allocation15 + $0x260] sm:$0xff]
    %v7351 = vld [vmem:[#allocation15 + $0x268] sm:$0xff]
    %v7352 = vld [vmem:[#allocation15 + $0x270] sm:$0xff]
    %v7353 = vld [vmem:[#allocation15 + $0x278] sm:$0xff]
    %v7354 = vld [vmem:[#allocation15 + $0x280] sm:$0xff]
    %v7355 = vld [vmem:[#allocation15 + $0x288] sm:$0xff]
    %v7356 = vld [vmem:[#allocation15 + $0x290] sm:$0xff]
    %v7357 = vld [vmem:[#allocation15 + $0x298] sm:$0xff]
    %v7358 = vld [vmem:[#allocation15 + $0x2a0] sm:$0xff]
    %v7359 = vld [vmem:[#allocation15 + $0x2a8] sm:$0xff]
    %v7360 = vld [vmem:[#allocation15 + $0x2b0] sm:$0xff]
    %v7361 = vld [vmem:[#allocation15 + $0x2b8] sm:$0xff]
    %v7362 = vld [vmem:[#allocation15 + $0x2c0] sm:$0xff]
    %v7363 = vld [vmem:[#allocation15 + $0x2c8] sm:$0xff]
    %v7364 = vld [vmem:[#allocation15 + $0x2d0] sm:$0xff]
    %v7365 = vld [vmem:[#allocation15 + $0x2d8] sm:$0xff]
    %v7366 = vld [vmem:[#allocation15 + $0x2e0] sm:$0xff]
    %v7367 = vld [vmem:[#allocation15 + $0x2e8] sm:$0xff]
    %v7368 = vld [vmem:[#allocation15 + $0x2f0] sm:$0xff]
    %v7369 = vld [vmem:[#allocation15 + $0x2f8] sm:$0xff]
    %v7370 = vld [vmem:[#allocation15 + $0x300] sm:$0xff]
    %v7371 = vld [vmem:[#allocation15 + $0x308] sm:$0xff]
    %v7372 = vld [vmem:[#allocation15 + $0x310] sm:$0xff]
    %v7373 = vld [vmem:[#allocation15 + $0x318] sm:$0xff]
    %v7374 = vld [vmem:[#allocation15 + $0x320] sm:$0xff]
    %v7375 = vld [vmem:[#allocation15 + $0x328] sm:$0xff]
    %v7376 = vld [vmem:[#allocation15 + $0x330] sm:$0xff]
    %v7377 = vld [vmem:[#allocation15 + $0x338] sm:$0xff]
    %v7378 = vld [vmem:[#allocation15 + $0x340] sm:$0xff]
    %v7379 = vld [vmem:[#allocation15 + $0x348] sm:$0xff]
    %v7380 = vld [vmem:[#allocation15 + $0x350] sm:$0xff]
    %v7381 = vld [vmem:[#allocation15 + $0x358] sm:$0xff]
    %v7382 = vld [vmem:[#allocation15 + $0x360] sm:$0xff]
    %v7383 = vld [vmem:[#allocation15 + $0x368] sm:$0xff]
    %v7384 = vld [vmem:[#allocation15 + $0x370] sm:$0xff]
    %v7385 = vld [vmem:[#allocation15 + $0x378] sm:$0xff]
    %v7386 = vld [vmem:[#allocation15 + $0x380] sm:$0xff]
    %v7387 = vld [vmem:[#allocation15 + $0x388] sm:$0xff]
    %v7388 = vld [vmem:[#allocation15 + $0x390] sm:$0xff]
    %v7389 = vld [vmem:[#allocation15 + $0x398] sm:$0xff]
    %v7390 = vld [vmem:[#allocation15 + $0x3a0] sm:$0xff]
    %v7391 = vld [vmem:[#allocation15 + $0x3a8] sm:$0xff]
    %v7392 = vld [vmem:[#allocation15 + $0x3b0] sm:$0xff]
    %v7393 = vld [vmem:[#allocation15 + $0x3b8] sm:$0xff]
    %v7394 = vld [vmem:[#allocation15 + $0x3c0] sm:$0xff]
    %v7395 = vld [vmem:[#allocation15 + $0x3c8] sm:$0xff]
    %v7396 = vld [vmem:[#allocation15 + $0x3d0] sm:$0xff]
    %v7397 = vld [vmem:[#allocation15 + $0x3d8] sm:$0xff]
    %v7398 = vld [vmem:[#allocation15 + $0x3e0] sm:$0xff]
    %v7399 = vld [vmem:[#allocation15 + $0x3e8] sm:$0xff]
    %v7400 = vld [vmem:[#allocation15 + $0x3f0] sm:$0xff]
    %v7401 = vld [vmem:[#allocation15 + $0x3f8] sm:$0xff]
    %v7402 = vld [vmem:[#allocation16] sm:$0xff]
    %v7403 = vld [vmem:[#allocation16 + $0x8] sm:$0xff]
    %v7404 = vld [vmem:[#allocation16 + $0x10] sm:$0xff]
    %v7405 = vld [vmem:[#allocation16 + $0x18] sm:$0xff]
    %v7406 = vld [vmem:[#allocation16 + $0x20] sm:$0xff]
    %v7407 = vld [vmem:[#allocation16 + $0x28] sm:$0xff]
    %v7408 = vld [vmem:[#allocation16 + $0x30] sm:$0xff]
    %v7409 = vld [vmem:[#allocation16 + $0x38] sm:$0xff]
    %v7410 = vld [vmem:[#allocation16 + $0x40] sm:$0xff]
    %v7411 = vld [vmem:[#allocation16 + $0x48] sm:$0xff]
    %v7412 = vld [vmem:[#allocation16 + $0x50] sm:$0xff]
    %v7413 = vld [vmem:[#allocation16 + $0x58] sm:$0xff]
    %v7414 = vld [vmem:[#allocation16 + $0x60] sm:$0xff]
    %v7415 = vld [vmem:[#allocation16 + $0x68] sm:$0xff]
    %v7416 = vld [vmem:[#allocation16 + $0x70] sm:$0xff]
    %v7417 = vld [vmem:[#allocation16 + $0x78] sm:$0xff]
    %v7418 = vld [vmem:[#allocation16 + $0x80] sm:$0xff]
    %v7419 = vld [vmem:[#allocation16 + $0x88] sm:$0xff]
    %v7420 = vld [vmem:[#allocation16 + $0x90] sm:$0xff]
    %v7421 = vld [vmem:[#allocation16 + $0x98] sm:$0xff]
    %v7422 = vld [vmem:[#allocation16 + $0xa0] sm:$0xff]
    %v7423 = vld [vmem:[#allocation16 + $0xa8] sm:$0xff]
    %v7424 = vld [vmem:[#allocation16 + $0xb0] sm:$0xff]
    %v7425 = vld [vmem:[#allocation16 + $0xb8] sm:$0xff]
    %v7426 = vld [vmem:[#allocation16 + $0xc0] sm:$0xff]
    %v7427 = vld [vmem:[#allocation16 + $0xc8] sm:$0xff]
    %v7428 = vld [vmem:[#allocation16 + $0xd0] sm:$0xff]
    %v7429 = vld [vmem:[#allocation16 + $0xd8] sm:$0xff]
    %v7430 = vld [vmem:[#allocation16 + $0xe0] sm:$0xff]
    %v7431 = vld [vmem:[#allocation16 + $0xe8] sm:$0xff]
    %v7432 = vld [vmem:[#allocation16 + $0xf0] sm:$0xff]
    %v7433 = vld [vmem:[#allocation16 + $0xf8] sm:$0xff]
    %v7434 = vld [vmem:[#allocation16 + $0x100] sm:$0xff]
    %v7435 = vld [vmem:[#allocation16 + $0x108] sm:$0xff]
    %v7436 = vld [vmem:[#allocation16 + $0x110] sm:$0xff]
    %v7437 = vld [vmem:[#allocation16 + $0x118] sm:$0xff]
    %v7438 = vld [vmem:[#allocation16 + $0x120] sm:$0xff]
    %v7439 = vld [vmem:[#allocation16 + $0x128] sm:$0xff]
    %v7440 = vld [vmem:[#allocation16 + $0x130] sm:$0xff]
    %v7441 = vld [vmem:[#allocation16 + $0x138] sm:$0xff]
    %v7442 = vld [vmem:[#allocation16 + $0x140] sm:$0xff]
    %v7443 = vld [vmem:[#allocation16 + $0x148] sm:$0xff]
    %v7444 = vld [vmem:[#allocation16 + $0x150] sm:$0xff]
    %v7445 = vld [vmem:[#allocation16 + $0x158] sm:$0xff]
    %v7446 = vld [vmem:[#allocation16 + $0x160] sm:$0xff]
    %v7447 = vld [vmem:[#allocation16 + $0x168] sm:$0xff]
    %v7448 = vld [vmem:[#allocation16 + $0x170] sm:$0xff]
    %v7449 = vld [vmem:[#allocation16 + $0x178] sm:$0xff]
    %v7450 = vld [vmem:[#allocation16 + $0x180] sm:$0xff]
    %v7451 = vld [vmem:[#allocation16 + $0x188] sm:$0xff]
    %v7452 = vld [vmem:[#allocation16 + $0x190] sm:$0xff]
    %v7453 = vld [vmem:[#allocation16 + $0x198] sm:$0xff]
    %v7454 = vld [vmem:[#allocation16 + $0x1a0] sm:$0xff]
    %v7455 = vld [vmem:[#allocation16 + $0x1a8] sm:$0xff]
    %v7456 = vld [vmem:[#allocation16 + $0x1b0] sm:$0xff]
    %v7457 = vld [vmem:[#allocation16 + $0x1b8] sm:$0xff]
    %v7458 = vld [vmem:[#allocation16 + $0x1c0] sm:$0xff]
    %v7459 = vld [vmem:[#allocation16 + $0x1c8] sm:$0xff]
    %v7460 = vld [vmem:[#allocation16 + $0x1d0] sm:$0xff]
    %v7461 = vld [vmem:[#allocation16 + $0x1d8] sm:$0xff]
    %v7462 = vld [vmem:[#allocation16 + $0x1e0] sm:$0xff]
    %v7463 = vld [vmem:[#allocation16 + $0x1e8] sm:$0xff]
    %v7464 = vld [vmem:[#allocation16 + $0x1f0] sm:$0xff]
    %v7465 = vld [vmem:[#allocation16 + $0x1f8] sm:$0xff]
    %7467 = vset.pattern.permute.xlu0 0
    %7468 = vperm.xlu0 %7467, %v7402
    %v7469 = vpop.permute.xlu0 %7468
    %7472 = vset.pattern.permute.xlu0 0
    %7473 = vperm.xlu0 %7472, %v7403
    %v7474 = vpop.permute.xlu0 %7473
    %7477 = vset.pattern.permute.xlu0 0
    %7478 = vperm.xlu0 %7477, %v7404
    %v7479 = vpop.permute.xlu0 %7478
    %7482 = vset.pattern.permute.xlu0 0
    %7483 = vperm.xlu0 %7482, %v7405
    %v7484 = vpop.permute.xlu0 %7483
    %7487 = vset.pattern.permute.xlu0 0
    %7488 = vperm.xlu0 %7487, %v7406
    %v7489 = vpop.permute.xlu0 %7488
    %7492 = vset.pattern.permute.xlu0 0
    %7493 = vperm.xlu0 %7492, %v7407
    %v7494 = vpop.permute.xlu0 %7493
    %7497 = vset.pattern.permute.xlu0 0
    %7498 = vperm.xlu0 %7497, %v7408
    %v7499 = vpop.permute.xlu0 %7498
    %7502 = vset.pattern.permute.xlu0 0
    %7503 = vperm.xlu0 %7502, %v7409
    %v7504 = vpop.permute.xlu0 %7503
    %7507 = vset.pattern.permute.xlu0 0
    %7508 = vperm.xlu0 %7507, %v7410
    %v7509 = vpop.permute.xlu0 %7508
    %7512 = vset.pattern.permute.xlu0 0
    %7513 = vperm.xlu0 %7512, %v7411
    %v7514 = vpop.permute.xlu0 %7513
    %7517 = vset.pattern.permute.xlu0 0
    %7518 = vperm.xlu0 %7517, %v7412
    %v7519 = vpop.permute.xlu0 %7518
    %7522 = vset.pattern.permute.xlu0 0
    %7523 = vperm.xlu0 %7522, %v7413
    %v7524 = vpop.permute.xlu0 %7523
    %7527 = vset.pattern.permute.xlu0 0
    %7528 = vperm.xlu0 %7527, %v7414
    %v7529 = vpop.permute.xlu0 %7528
    %7532 = vset.pattern.permute.xlu0 0
    %7533 = vperm.xlu0 %7532, %v7415
    %v7534 = vpop.permute.xlu0 %7533
    %7537 = vset.pattern.permute.xlu0 0
    %7538 = vperm.xlu0 %7537, %v7416
    %v7539 = vpop.permute.xlu0 %7538
    %7542 = vset.pattern.permute.xlu0 0
    %7543 = vperm.xlu0 %7542, %v7417
    %v7544 = vpop.permute.xlu0 %7543
    %7547 = vset.pattern.permute.xlu0 0
    %7548 = vperm.xlu0 %7547, %v7418
    %v7549 = vpop.permute.xlu0 %7548
    %7552 = vset.pattern.permute.xlu0 0
    %7553 = vperm.xlu0 %7552, %v7419
    %v7554 = vpop.permute.xlu0 %7553
    %7557 = vset.pattern.permute.xlu0 0
    %7558 = vperm.xlu0 %7557, %v7420
    %v7559 = vpop.permute.xlu0 %7558
    %7562 = vset.pattern.permute.xlu0 0
    %7563 = vperm.xlu0 %7562, %v7421
    %v7564 = vpop.permute.xlu0 %7563
    %7567 = vset.pattern.permute.xlu0 0
    %7568 = vperm.xlu0 %7567, %v7422
    %v7569 = vpop.permute.xlu0 %7568
    %7572 = vset.pattern.permute.xlu0 0
    %7573 = vperm.xlu0 %7572, %v7423
    %v7574 = vpop.permute.xlu0 %7573
    %7577 = vset.pattern.permute.xlu0 0
    %7578 = vperm.xlu0 %7577, %v7424
    %v7579 = vpop.permute.xlu0 %7578
    %7582 = vset.pattern.permute.xlu0 0
    %7583 = vperm.xlu0 %7582, %v7425
    %v7584 = vpop.permute.xlu0 %7583
    %7587 = vset.pattern.permute.xlu0 0
    %7588 = vperm.xlu0 %7587, %v7426
    %v7589 = vpop.permute.xlu0 %7588
    %7592 = vset.pattern.permute.xlu0 0
    %7593 = vperm.xlu0 %7592, %v7427
    %v7594 = vpop.permute.xlu0 %7593
    %7597 = vset.pattern.permute.xlu0 0
    %7598 = vperm.xlu0 %7597, %v7428
    %v7599 = vpop.permute.xlu0 %7598
    %7602 = vset.pattern.permute.xlu0 0
    %7603 = vperm.xlu0 %7602, %v7429
    %v7604 = vpop.permute.xlu0 %7603
    %7607 = vset.pattern.permute.xlu0 0
    %7608 = vperm.xlu0 %7607, %v7430
    %v7609 = vpop.permute.xlu0 %7608
    %7612 = vset.pattern.permute.xlu0 0
    %7613 = vperm.xlu0 %7612, %v7431
    %v7614 = vpop.permute.xlu0 %7613
    %7617 = vset.pattern.permute.xlu0 0
    %7618 = vperm.xlu0 %7617, %v7432
    %v7619 = vpop.permute.xlu0 %7618
    %7622 = vset.pattern.permute.xlu0 0
    %7623 = vperm.xlu0 %7622, %v7433
    %v7624 = vpop.permute.xlu0 %7623
    %7627 = vset.pattern.permute.xlu0 0
    %7628 = vperm.xlu0 %7627, %v7434
    %v7629 = vpop.permute.xlu0 %7628
    %7632 = vset.pattern.permute.xlu0 0
    %7633 = vperm.xlu0 %7632, %v7435
    %v7634 = vpop.permute.xlu0 %7633
    %7637 = vset.pattern.permute.xlu0 0
    %7638 = vperm.xlu0 %7637, %v7436
    %v7639 = vpop.permute.xlu0 %7638
    %7642 = vset.pattern.permute.xlu0 0
    %7643 = vperm.xlu0 %7642, %v7437
    %v7644 = vpop.permute.xlu0 %7643
    %7647 = vset.pattern.permute.xlu0 0
    %7648 = vperm.xlu0 %7647, %v7438
    %v7649 = vpop.permute.xlu0 %7648
    %7652 = vset.pattern.permute.xlu0 0
    %7653 = vperm.xlu0 %7652, %v7439
    %v7654 = vpop.permute.xlu0 %7653
    %7657 = vset.pattern.permute.xlu0 0
    %7658 = vperm.xlu0 %7657, %v7440
    %v7659 = vpop.permute.xlu0 %7658
    %7662 = vset.pattern.permute.xlu0 0
    %7663 = vperm.xlu0 %7662, %v7441
    %v7664 = vpop.permute.xlu0 %7663
    %7667 = vset.pattern.permute.xlu0 0
    %7668 = vperm.xlu0 %7667, %v7442
    %v7669 = vpop.permute.xlu0 %7668
    %7672 = vset.pattern.permute.xlu0 0
    %7673 = vperm.xlu0 %7672, %v7443
    %v7674 = vpop.permute.xlu0 %7673
    %7677 = vset.pattern.permute.xlu0 0
    %7678 = vperm.xlu0 %7677, %v7444
    %v7679 = vpop.permute.xlu0 %7678
    %7682 = vset.pattern.permute.xlu0 0
    %7683 = vperm.xlu0 %7682, %v7445
    %v7684 = vpop.permute.xlu0 %7683
    %7687 = vset.pattern.permute.xlu0 0
    %7688 = vperm.xlu0 %7687, %v7446
    %v7689 = vpop.permute.xlu0 %7688
    %7692 = vset.pattern.permute.xlu0 0
    %7693 = vperm.xlu0 %7692, %v7447
    %v7694 = vpop.permute.xlu0 %7693
    %7697 = vset.pattern.permute.xlu0 0
    %7698 = vperm.xlu0 %7697, %v7448
    %v7699 = vpop.permute.xlu0 %7698
    %7702 = vset.pattern.permute.xlu0 0
    %7703 = vperm.xlu0 %7702, %v7449
    %v7704 = vpop.permute.xlu0 %7703
    %7707 = vset.pattern.permute.xlu0 0
    %7708 = vperm.xlu0 %7707, %v7450
    %v7709 = vpop.permute.xlu0 %7708
    %7712 = vset.pattern.permute.xlu0 0
    %7713 = vperm.xlu0 %7712, %v7451
    %v7714 = vpop.permute.xlu0 %7713
    %7717 = vset.pattern.permute.xlu0 0
    %7718 = vperm.xlu0 %7717, %v7452
    %v7719 = vpop.permute.xlu0 %7718
    %7722 = vset.pattern.permute.xlu0 0
    %7723 = vperm.xlu0 %7722, %v7453
    %v7724 = vpop.permute.xlu0 %7723
    %7727 = vset.pattern.permute.xlu0 0
    %7728 = vperm.xlu0 %7727, %v7454
    %v7729 = vpop.permute.xlu0 %7728
    %7732 = vset.pattern.permute.xlu0 0
    %7733 = vperm.xlu0 %7732, %v7455
    %v7734 = vpop.permute.xlu0 %7733
    %7737 = vset.pattern.permute.xlu0 0
    %7738 = vperm.xlu0 %7737, %v7456
    %v7739 = vpop.permute.xlu0 %7738
    %7742 = vset.pattern.permute.xlu0 0
    %7743 = vperm.xlu0 %7742, %v7457
    %v7744 = vpop.permute.xlu0 %7743
    %7747 = vset.pattern.permute.xlu0 0
    %7748 = vperm.xlu0 %7747, %v7458
    %v7749 = vpop.permute.xlu0 %7748
    %7752 = vset.pattern.permute.xlu0 0
    %7753 = vperm.xlu0 %7752, %v7459
    %v7754 = vpop.permute.xlu0 %7753
    %7757 = vset.pattern.permute.xlu0 0
    %7758 = vperm.xlu0 %7757, %v7460
    %v7759 = vpop.permute.xlu0 %7758
    %7762 = vset.pattern.permute.xlu0 0
    %7763 = vperm.xlu0 %7762, %v7461
    %v7764 = vpop.permute.xlu0 %7763
    %7767 = vset.pattern.permute.xlu0 0
    %7768 = vperm.xlu0 %7767, %v7462
    %v7769 = vpop.permute.xlu0 %7768
    %7772 = vset.pattern.permute.xlu0 0
    %7773 = vperm.xlu0 %7772, %v7463
    %v7774 = vpop.permute.xlu0 %7773
    %7777 = vset.pattern.permute.xlu0 0
    %7778 = vperm.xlu0 %7777, %v7464
    %v7779 = vpop.permute.xlu0 %7778
    %7782 = vset.pattern.permute.xlu0 0
    %7783 = vperm.xlu0 %7782, %v7465
    %v7784 = vpop.permute.xlu0 %7783
    %7786 = vmatprep.subr.mxu0 0.0
    %7787 = vmatpush1.msra.mxu0 %v7257
    %7788 = vmatprep.subr.mxu0 0.0
    %7789 = vmatpush1.msra.mxu0 %v7256
    %7790 = vmatprep.subr.mxu0 0.0
    %7791 = vmatpush1.msra.mxu0 %v7255
    %7792 = vmatprep.subr.mxu0 0.0
    %7793 = vmatpush1.msra.mxu0 %v7254
    %7794 = vmatprep.subr.mxu0 0.0
    %7795 = vmatpush1.msra.mxu0 %v7253
    %7796 = vmatprep.subr.mxu0 0.0
    %7797 = vmatpush1.msra.mxu0 %v7252
    %7798 = vmatprep.subr.mxu0 0.0
    %7799 = vmatpush1.msra.mxu0 %v7251
    %7800 = vmatprep.subr.mxu0 0.0
    %7801 = vmatpush1.msra.mxu0 %v7250
    %7802 = vmatprep.subr.mxu0 0.0
    %7803 = vmatpush1.msra.mxu0 %v7249
    %7804 = vmatprep.subr.mxu0 0.0
    %7805 = vmatpush1.msra.mxu0 %v7248
    %7806 = vmatprep.subr.mxu0 0.0
    %7807 = vmatpush1.msra.mxu0 %v7247
    %7808 = vmatprep.subr.mxu0 0.0
    %7809 = vmatpush1.msra.mxu0 %v7246
    %7810 = vmatprep.subr.mxu0 0.0
    %7811 = vmatpush1.msra.mxu0 %v7245
    %7812 = vmatprep.subr.mxu0 0.0
    %7813 = vmatpush1.msra.mxu0 %v7244
    %7814 = vmatprep.subr.mxu0 0.0
    %7815 = vmatpush1.msra.mxu0 %v7243
    %7816 = vmatprep.subr.mxu0 0.0
    %7817 = vmatpush1.msra.mxu0 %v7242
    %7818 = vmatprep.subr.mxu0 0.0
    %7819 = vmatpush2.msra.mxu0 %v7273
    %7820 = vmatprep.subr.mxu0 0.0
    %7821 = vmatpush2.msra.mxu0 %v7272
    %7822 = vmatprep.subr.mxu0 0.0
    %7823 = vmatpush2.msra.mxu0 %v7271
    %7824 = vmatprep.subr.mxu0 0.0
    %7825 = vmatpush2.msra.mxu0 %v7270
    %7826 = vmatprep.subr.mxu0 0.0
    %7827 = vmatpush2.msra.mxu0 %v7269
    %7828 = vmatprep.subr.mxu0 0.0
    %7829 = vmatpush2.msra.mxu0 %v7268
    %7830 = vmatprep.subr.mxu0 0.0
    %7831 = vmatpush2.msra.mxu0 %v7267
    %7832 = vmatprep.subr.mxu0 0.0
    %7833 = vmatpush2.msra.mxu0 %v7266
    %7834 = vmatprep.subr.mxu0 0.0
    %7835 = vmatpush2.msra.mxu0 %v7265
    %7836 = vmatprep.subr.mxu0 0.0
    %7837 = vmatpush2.msra.mxu0 %v7264
    %7838 = vmatprep.subr.mxu0 0.0
    %7839 = vmatpush2.msra.mxu0 %v7263
    %7840 = vmatprep.subr.mxu0 0.0
    %7841 = vmatpush2.msra.mxu0 %v7262
    %7842 = vmatprep.subr.mxu0 0.0
    %7843 = vmatpush2.msra.mxu0 %v7261
    %7844 = vmatprep.subr.mxu0 0.0
    %7845 = vmatpush2.msra.mxu0 %v7260
    %7846 = vmatprep.subr.mxu0 0.0
    %7847 = vmatpush2.msra.mxu0 %v7259
    %7848 = vmatprep.subr.mxu0 0.0
    %7849 = vmatpush2.msra.mxu0 %v7258
    %7850 = vmatprep.mubr.f32.mxu0 %v7275
    %7851 = vmatmul.mubr.f32.gmra.mxu0 %v7274
    %v7852 = vpop.f32.mrf.mxu0
    %v7853 = vadd.f32 %v7469, %v7852
    %v7854 = vpop.f32.mrf.mxu0
    %7855 = vmatprep.mubr.f32.mxu0 %v7277
    %7856 = vmatmul.mubr.f32.gmra.mxu0 %v7276
    %v7857 = vpop.f32.mrf.mxu0
    %v7858 = vadd.f32 %v7474, %v7857
    %v7859 = vpop.f32.mrf.mxu0
    %7860 = vmatprep.mubr.f32.mxu0 %v7279
    %7861 = vmatmul.mubr.f32.gmra.mxu0 %v7278
    %v7862 = vpop.f32.mrf.mxu0
    %v7863 = vadd.f32 %v7479, %v7862
    %v7864 = vpop.f32.mrf.mxu0
    %7865 = vmatprep.mubr.f32.mxu0 %v7281
    %7866 = vmatmul.mubr.f32.gmra.mxu0 %v7280
    %v7867 = vpop.f32.mrf.mxu0
    %v7868 = vadd.f32 %v7484, %v7867
    %v7869 = vpop.f32.mrf.mxu0
    %7870 = vmatprep.mubr.f32.mxu0 %v7283
    %7871 = vmatmul.mubr.f32.gmra.mxu0 %v7282
    %v7872 = vpop.f32.mrf.mxu0
    %v7873 = vadd.f32 %v7489, %v7872
    %v7874 = vpop.f32.mrf.mxu0
    %7875 = vmatprep.mubr.f32.mxu0 %v7285
    %7876 = vmatmul.mubr.f32.gmra.mxu0 %v7284
    %v7877 = vpop.f32.mrf.mxu0
    %v7878 = vadd.f32 %v7494, %v7877
    %v7879 = vpop.f32.mrf.mxu0
    %7880 = vmatprep.mubr.f32.mxu0 %v7287
    %7881 = vmatmul.mubr.f32.gmra.mxu0 %v7286
    %v7882 = vpop.f32.mrf.mxu0
    %v7883 = vadd.f32 %v7499, %v7882
    %v7884 = vpop.f32.mrf.mxu0
    %7885 = vmatprep.mubr.f32.mxu0 %v7289
    %7886 = vmatmul.mubr.f32.gmra.mxu0 %v7288
    %v7887 = vpop.f32.mrf.mxu0
    %v7888 = vadd.f32 %v7504, %v7887
    %v7889 = vpop.f32.mrf.mxu0
    %7890 = vmatprep.mubr.f32.mxu0 %v7291
    %7891 = vmatmul.mubr.f32.gmra.mxu0 %v7290
    %v7892 = vpop.f32.mrf.mxu0
    %v7893 = vadd.f32 %v7509, %v7892
    %v7894 = vpop.f32.mrf.mxu0
    %7895 = vmatprep.mubr.f32.mxu0 %v7293
    %7896 = vmatmul.mubr.f32.gmra.mxu0 %v7292
    %v7897 = vpop.f32.mrf.mxu0
    %v7898 = vadd.f32 %v7514, %v7897
    %v7899 = vpop.f32.mrf.mxu0
    %7900 = vmatprep.mubr.f32.mxu0 %v7295
    %7901 = vmatmul.mubr.f32.gmra.mxu0 %v7294
    %v7902 = vpop.f32.mrf.mxu0
    %v7903 = vadd.f32 %v7519, %v7902
    %v7904 = vpop.f32.mrf.mxu0
    %7905 = vmatprep.mubr.f32.mxu0 %v7297
    %7906 = vmatmul.mubr.f32.gmra.mxu0 %v7296
    %v7907 = vpop.f32.mrf.mxu0
    %v7908 = vadd.f32 %v7524, %v7907
    %v7909 = vpop.f32.mrf.mxu0
    %7910 = vmatprep.mubr.f32.mxu0 %v7299
    %7911 = vmatmul.mubr.f32.gmra.mxu0 %v7298
    %v7912 = vpop.f32.mrf.mxu0
    %v7913 = vadd.f32 %v7529, %v7912
    %v7914 = vpop.f32.mrf.mxu0
    %7915 = vmatprep.mubr.f32.mxu0 %v7301
    %7916 = vmatmul.mubr.f32.gmra.mxu0 %v7300
    %v7917 = vpop.f32.mrf.mxu0
    %v7918 = vadd.f32 %v7534, %v7917
    %v7919 = vpop.f32.mrf.mxu0
    %7920 = vmatprep.mubr.f32.mxu0 %v7303
    %7921 = vmatmul.mubr.f32.gmra.mxu0 %v7302
    %v7922 = vpop.f32.mrf.mxu0
    %v7923 = vadd.f32 %v7539, %v7922
    %v7924 = vpop.f32.mrf.mxu0
    %7925 = vmatprep.mubr.f32.mxu0 %v7305
    %7926 = vmatmul.mubr.f32.gmra.mxu0 %v7304
    %v7927 = vpop.f32.mrf.mxu0
    %v7928 = vadd.f32 %v7544, %v7927
    %v7929 = vpop.f32.mrf.mxu0
    %7930 = vmatprep.mubr.f32.mxu0 %v7307
    %7931 = vmatmul.mubr.f32.gmra.mxu0 %v7306
    %v7932 = vpop.f32.mrf.mxu0
    %v7933 = vadd.f32 %v7549, %v7932
    %v7934 = vpop.f32.mrf.mxu0
    %7935 = vmatprep.mubr.f32.mxu0 %v7309
    %7936 = vmatmul.mubr.f32.gmra.mxu0 %v7308
    %v7937 = vpop.f32.mrf.mxu0
    %v7938 = vadd.f32 %v7554, %v7937
    %v7939 = vpop.f32.mrf.mxu0
    %7940 = vmatprep.mubr.f32.mxu0 %v7311
    %7941 = vmatmul.mubr.f32.gmra.mxu0 %v7310
    %v7942 = vpop.f32.mrf.mxu0
    %v7943 = vadd.f32 %v7559, %v7942
    %v7944 = vpop.f32.mrf.mxu0
    %7945 = vmatprep.mubr.f32.mxu0 %v7313
    %7946 = vmatmul.mubr.f32.gmra.mxu0 %v7312
    %v7947 = vpop.f32.mrf.mxu0
    %v7948 = vadd.f32 %v7564, %v7947
    %v7949 = vpop.f32.mrf.mxu0
    %7950 = vmatprep.mubr.f32.mxu0 %v7315
    %7951 = vmatmul.mubr.f32.gmra.mxu0 %v7314
    %v7952 = vpop.f32.mrf.mxu0
    %v7953 = vadd.f32 %v7569, %v7952
    %v7954 = vpop.f32.mrf.mxu0
    %7955 = vmatprep.mubr.f32.mxu0 %v7317
    %7956 = vmatmul.mubr.f32.gmra.mxu0 %v7316
    %v7957 = vpop.f32.mrf.mxu0
    %v7958 = vadd.f32 %v7574, %v7957
    %v7959 = vpop.f32.mrf.mxu0
    %7960 = vmatprep.mubr.f32.mxu0 %v7319
    %7961 = vmatmul.mubr.f32.gmra.mxu0 %v7318
    %v7962 = vpop.f32.mrf.mxu0
    %v7963 = vadd.f32 %v7579, %v7962
    %v7964 = vpop.f32.mrf.mxu0
    %7965 = vmatprep.mubr.f32.mxu0 %v7321
    %7966 = vmatmul.mubr.f32.gmra.mxu0 %v7320
    %v7967 = vpop.f32.mrf.mxu0
    %v7968 = vadd.f32 %v7584, %v7967
    %v7969 = vpop.f32.mrf.mxu0
    %7970 = vmatprep.mubr.f32.mxu0 %v7323
    %7971 = vmatmul.mubr.f32.gmra.mxu0 %v7322
    %v7972 = vpop.f32.mrf.mxu0
    %v7973 = vadd.f32 %v7589, %v7972
    %v7974 = vpop.f32.mrf.mxu0
    %7975 = vmatprep.mubr.f32.mxu0 %v7325
    %7976 = vmatmul.mubr.f32.gmra.mxu0 %v7324
    %v7977 = vpop.f32.mrf.mxu0
    %v7978 = vadd.f32 %v7594, %v7977
    %v7979 = vpop.f32.mrf.mxu0
    %7980 = vmatprep.mubr.f32.mxu0 %v7327
    %7981 = vmatmul.mubr.f32.gmra.mxu0 %v7326
    %v7982 = vpop.f32.mrf.mxu0
    %v7983 = vadd.f32 %v7599, %v7982
    %v7984 = vpop.f32.mrf.mxu0
    %7985 = vmatprep.mubr.f32.mxu0 %v7329
    %7986 = vmatmul.mubr.f32.gmra.mxu0 %v7328
    %v7987 = vpop.f32.mrf.mxu0
    %v7988 = vadd.f32 %v7604, %v7987
    %v7989 = vpop.f32.mrf.mxu0
    %7990 = vmatprep.mubr.f32.mxu0 %v7331
    %7991 = vmatmul.mubr.f32.gmra.mxu0 %v7330
    %v7992 = vpop.f32.mrf.mxu0
    %v7993 = vadd.f32 %v7609, %v7992
    %v7994 = vpop.f32.mrf.mxu0
    %7995 = vmatprep.mubr.f32.mxu0 %v7333
    %7996 = vmatmul.mubr.f32.gmra.mxu0 %v7332
    %v7997 = vpop.f32.mrf.mxu0
    %v7998 = vadd.f32 %v7614, %v7997
    %v7999 = vpop.f32.mrf.mxu0
    %8000 = vmatprep.mubr.f32.mxu0 %v7335
    %8001 = vmatmul.mubr.f32.gmra.mxu0 %v7334
    %v8002 = vpop.f32.mrf.mxu0
    %v8003 = vadd.f32 %v7619, %v8002
    %v8004 = vpop.f32.mrf.mxu0
    %8005 = vmatprep.mubr.f32.mxu0 %v7337
    %8006 = vmatmul.mubr.f32.gmra.mxu0 %v7336
    %v8007 = vpop.f32.mrf.mxu0
    %v8008 = vadd.f32 %v7624, %v8007
    %v8009 = vpop.f32.mrf.mxu0
    %8010 = vmatprep.mubr.f32.mxu0 %v7339
    %8011 = vmatmul.mubr.f32.gmra.mxu0 %v7338
    %v8012 = vpop.f32.mrf.mxu0
    %v8013 = vadd.f32 %v7629, %v8012
    %v8014 = vpop.f32.mrf.mxu0
    %8015 = vmatprep.mubr.f32.mxu0 %v7341
    %8016 = vmatmul.mubr.f32.gmra.mxu0 %v7340
    %v8017 = vpop.f32.mrf.mxu0
    %v8018 = vadd.f32 %v7634, %v8017
    %v8019 = vpop.f32.mrf.mxu0
    %8020 = vmatprep.mubr.f32.mxu0 %v7343
    %8021 = vmatmul.mubr.f32.gmra.mxu0 %v7342
    %v8022 = vpop.f32.mrf.mxu0
    %v8023 = vadd.f32 %v7639, %v8022
    %v8024 = vpop.f32.mrf.mxu0
    %8025 = vmatprep.mubr.f32.mxu0 %v7345
    %8026 = vmatmul.mubr.f32.gmra.mxu0 %v7344
    %v8027 = vpop.f32.mrf.mxu0
    %v8028 = vadd.f32 %v7644, %v8027
    %v8029 = vpop.f32.mrf.mxu0
    %8030 = vmatprep.mubr.f32.mxu0 %v7347
    %8031 = vmatmul.mubr.f32.gmra.mxu0 %v7346
    %v8032 = vpop.f32.mrf.mxu0
    %v8033 = vadd.f32 %v7649, %v8032
    %v8034 = vpop.f32.mrf.mxu0
    %8035 = vmatprep.mubr.f32.mxu0 %v7349
    %8036 = vmatmul.mubr.f32.gmra.mxu0 %v7348
    %v8037 = vpop.f32.mrf.mxu0
    %v8038 = vadd.f32 %v7654, %v8037
    %v8039 = vpop.f32.mrf.mxu0
    %8040 = vmatprep.mubr.f32.mxu0 %v7351
    %8041 = vmatmul.mubr.f32.gmra.mxu0 %v7350
    %v8042 = vpop.f32.mrf.mxu0
    %v8043 = vadd.f32 %v7659, %v8042
    %v8044 = vpop.f32.mrf.mxu0
    %8045 = vmatprep.mubr.f32.mxu0 %v7353
    %8046 = vmatmul.mubr.f32.gmra.mxu0 %v7352
    %v8047 = vpop.f32.mrf.mxu0
    %v8048 = vadd.f32 %v7664, %v8047
    %v8049 = vpop.f32.mrf.mxu0
    %8050 = vmatprep.mubr.f32.mxu0 %v7355
    %8051 = vmatmul.mubr.f32.gmra.mxu0 %v7354
    %v8052 = vpop.f32.mrf.mxu0
    %v8053 = vadd.f32 %v7669, %v8052
    %v8054 = vpop.f32.mrf.mxu0
    %8055 = vmatprep.mubr.f32.mxu0 %v7357
    %8056 = vmatmul.mubr.f32.gmra.mxu0 %v7356
    %v8057 = vpop.f32.mrf.mxu0
    %v8058 = vadd.f32 %v7674, %v8057
    %v8059 = vpop.f32.mrf.mxu0
    %8060 = vmatprep.mubr.f32.mxu0 %v7359
    %8061 = vmatmul.mubr.f32.gmra.mxu0 %v7358
    %v8062 = vpop.f32.mrf.mxu0
    %v8063 = vadd.f32 %v7679, %v8062
    %v8064 = vpop.f32.mrf.mxu0
    %8065 = vmatprep.mubr.f32.mxu0 %v7361
    %8066 = vmatmul.mubr.f32.gmra.mxu0 %v7360
    %v8067 = vpop.f32.mrf.mxu0
    %v8068 = vadd.f32 %v7684, %v8067
    %v8069 = vpop.f32.mrf.mxu0
    %8070 = vmatprep.mubr.f32.mxu0 %v7363
    %8071 = vmatmul.mubr.f32.gmra.mxu0 %v7362
    %v8072 = vpop.f32.mrf.mxu0
    %v8073 = vadd.f32 %v7689, %v8072
    %v8074 = vpop.f32.mrf.mxu0
    %8075 = vmatprep.mubr.f32.mxu0 %v7365
    %8076 = vmatmul.mubr.f32.gmra.mxu0 %v7364
    %v8077 = vpop.f32.mrf.mxu0
    %v8078 = vadd.f32 %v7694, %v8077
    %v8079 = vpop.f32.mrf.mxu0
    %8080 = vmatprep.mubr.f32.mxu0 %v7367
    %8081 = vmatmul.mubr.f32.gmra.mxu0 %v7366
    %v8082 = vpop.f32.mrf.mxu0
    %v8083 = vadd.f32 %v7699, %v8082
    %v8084 = vpop.f32.mrf.mxu0
    %8085 = vmatprep.mubr.f32.mxu0 %v7369
    %8086 = vmatmul.mubr.f32.gmra.mxu0 %v7368
    %v8087 = vpop.f32.mrf.mxu0
    %v8088 = vadd.f32 %v7704, %v8087
    %v8089 = vpop.f32.mrf.mxu0
    %8090 = vmatprep.mubr.f32.mxu0 %v7371
    %8091 = vmatmul.mubr.f32.gmra.mxu0 %v7370
    %v8092 = vpop.f32.mrf.mxu0
    %v8093 = vadd.f32 %v7709, %v8092
    %v8094 = vpop.f32.mrf.mxu0
    %8095 = vmatprep.mubr.f32.mxu0 %v7373
    %8096 = vmatmul.mubr.f32.gmra.mxu0 %v7372
    %v8097 = vpop.f32.mrf.mxu0
    %v8098 = vadd.f32 %v7714, %v8097
    %v8099 = vpop.f32.mrf.mxu0
    %8100 = vmatprep.mubr.f32.mxu0 %v7375
    %8101 = vmatmul.mubr.f32.gmra.mxu0 %v7374
    %v8102 = vpop.f32.mrf.mxu0
    %v8103 = vadd.f32 %v7719, %v8102
    %v8104 = vpop.f32.mrf.mxu0
    %8105 = vmatprep.mubr.f32.mxu0 %v7377
    %8106 = vmatmul.mubr.f32.gmra.mxu0 %v7376
    %v8107 = vpop.f32.mrf.mxu0
    %v8108 = vadd.f32 %v7724, %v8107
    %v8109 = vpop.f32.mrf.mxu0
    %8110 = vmatprep.mubr.f32.mxu0 %v7379
    %8111 = vmatmul.mubr.f32.gmra.mxu0 %v7378
    %v8112 = vpop.f32.mrf.mxu0
    %v8113 = vadd.f32 %v7729, %v8112
    %v8114 = vpop.f32.mrf.mxu0
    %8115 = vmatprep.mubr.f32.mxu0 %v7381
    %8116 = vmatmul.mubr.f32.gmra.mxu0 %v7380
    %v8117 = vpop.f32.mrf.mxu0
    %v8118 = vadd.f32 %v7734, %v8117
    %v8119 = vpop.f32.mrf.mxu0
    %8120 = vmatprep.mubr.f32.mxu0 %v7383
    %8121 = vmatmul.mubr.f32.gmra.mxu0 %v7382
    %v8122 = vpop.f32.mrf.mxu0
    %v8123 = vadd.f32 %v7739, %v8122
    %v8124 = vpop.f32.mrf.mxu0
    %8125 = vmatprep.mubr.f32.mxu0 %v7385
    %8126 = vmatmul.mubr.f32.gmra.mxu0 %v7384
    %v8127 = vpop.f32.mrf.mxu0
    %v8128 = vadd.f32 %v7744, %v8127
    %v8129 = vpop.f32.mrf.mxu0
    %8130 = vmatprep.mubr.f32.mxu0 %v7387
    %8131 = vmatmul.mubr.f32.gmra.mxu0 %v7386
    %v8132 = vpop.f32.mrf.mxu0
    %v8133 = vadd.f32 %v7749, %v8132
    %v8134 = vpop.f32.mrf.mxu0
    %8135 = vmatprep.mubr.f32.mxu0 %v7389
    %8136 = vmatmul.mubr.f32.gmra.mxu0 %v7388
    %v8137 = vpop.f32.mrf.mxu0
    %v8138 = vadd.f32 %v7754, %v8137
    %v8139 = vpop.f32.mrf.mxu0
    %8140 = vmatprep.mubr.f32.mxu0 %v7391
    %8141 = vmatmul.mubr.f32.gmra.mxu0 %v7390
    %v8142 = vpop.f32.mrf.mxu0
    %v8143 = vadd.f32 %v7759, %v8142
    %v8144 = vpop.f32.mrf.mxu0
    %8145 = vmatprep.mubr.f32.mxu0 %v7393
    %8146 = vmatmul.mubr.f32.gmra.mxu0 %v7392
    %v8147 = vpop.f32.mrf.mxu0
    %v8148 = vadd.f32 %v7764, %v8147
    %v8149 = vpop.f32.mrf.mxu0
    %8150 = vmatprep.mubr.f32.mxu0 %v7395
    %8151 = vmatmul.mubr.f32.gmra.mxu0 %v7394
    %v8152 = vpop.f32.mrf.mxu0
    %v8153 = vadd.f32 %v7769, %v8152
    %v8154 = vpop.f32.mrf.mxu0
    %8155 = vmatprep.mubr.f32.mxu0 %v7397
    %8156 = vmatmul.mubr.f32.gmra.mxu0 %v7396
    %v8157 = vpop.f32.mrf.mxu0
    %v8158 = vadd.f32 %v7774, %v8157
    %v8159 = vpop.f32.mrf.mxu0
    %8160 = vmatprep.mubr.f32.mxu0 %v7399
    %8161 = vmatmul.mubr.f32.gmra.mxu0 %v7398
    %v8162 = vpop.f32.mrf.mxu0
    %v8163 = vadd.f32 %v7779, %v8162
    %v8164 = vpop.f32.mrf.mxu0
    %8165 = vmatprep.mubr.f32.mxu0 %v7401
    %8166 = vmatmul.mubr.f32.gmra.mxu0 %v7400
    %v8167 = vpop.f32.mrf.mxu0
    %v8168 = vadd.f32 %v7784, %v8167
    %v8169 = vpop.f32.mrf.mxu0
    %8170 = vdwg.mxu0
    %vm8171 = vcmp.gt.f32.partialorder %v7853, 0.0
    %vm8172 = vcmp.gt.f32.partialorder %v7858, 0.0
    %vm8173 = vcmp.gt.f32.partialorder %v7863, 0.0
    %vm8174 = vcmp.gt.f32.partialorder %v7868, 0.0
    %vm8175 = vcmp.gt.f32.partialorder %v7873, 0.0
    %vm8176 = vcmp.gt.f32.partialorder %v7878, 0.0
    %vm8177 = vcmp.gt.f32.partialorder %v7883, 0.0
    %vm8178 = vcmp.gt.f32.partialorder %v7888, 0.0
    %vm8179 = vcmp.gt.f32.partialorder %v7893, 0.0
    %vm8180 = vcmp.gt.f32.partialorder %v7898, 0.0
    %vm8181 = vcmp.gt.f32.partialorder %v7903, 0.0
    %vm8182 = vcmp.gt.f32.partialorder %v7908, 0.0
    %vm8183 = vcmp.gt.f32.partialorder %v7913, 0.0
    %vm8184 = vcmp.gt.f32.partialorder %v7918, 0.0
    %vm8185 = vcmp.gt.f32.partialorder %v7923, 0.0
    %vm8186 = vcmp.gt.f32.partialorder %v7928, 0.0
    %vm8187 = vcmp.gt.f32.partialorder %v7933, 0.0
    %vm8188 = vcmp.gt.f32.partialorder %v7938, 0.0
    %vm8189 = vcmp.gt.f32.partialorder %v7943, 0.0
    %vm8190 = vcmp.gt.f32.partialorder %v7948, 0.0
    %vm8191 = vcmp.gt.f32.partialorder %v7953, 0.0
    %vm8192 = vcmp.gt.f32.partialorder %v7958, 0.0
    %vm8193 = vcmp.gt.f32.partialorder %v7963, 0.0
    %vm8194 = vcmp.gt.f32.partialorder %v7968, 0.0
    %vm8195 = vcmp.gt.f32.partialorder %v7973, 0.0
    %vm8196 = vcmp.gt.f32.partialorder %v7978, 0.0
    %vm8197 = vcmp.gt.f32.partialorder %v7983, 0.0
    %vm8198 = vcmp.gt.f32.partialorder %v7988, 0.0
    %vm8199 = vcmp.gt.f32.partialorder %v7993, 0.0
    %vm8200 = vcmp.gt.f32.partialorder %v7998, 0.0
    %vm8201 = vcmp.gt.f32.partialorder %v8003, 0.0
    %vm8202 = vcmp.gt.f32.partialorder %v8008, 0.0
    %vm8203 = vcmp.gt.f32.partialorder %v8013, 0.0
    %vm8204 = vcmp.gt.f32.partialorder %v8018, 0.0
    %vm8205 = vcmp.gt.f32.partialorder %v8023, 0.0
    %vm8206 = vcmp.gt.f32.partialorder %v8028, 0.0
    %vm8207 = vcmp.gt.f32.partialorder %v8033, 0.0
    %vm8208 = vcmp.gt.f32.partialorder %v8038, 0.0
    %vm8209 = vcmp.gt.f32.partialorder %v8043, 0.0
    %vm8210 = vcmp.gt.f32.partialorder %v8048, 0.0
    %vm8211 = vcmp.gt.f32.partialorder %v8053, 0.0
    %vm8212 = vcmp.gt.f32.partialorder %v8058, 0.0
    %vm8213 = vcmp.gt.f32.partialorder %v8063, 0.0
    %vm8214 = vcmp.gt.f32.partialorder %v8068, 0.0
    %vm8215 = vcmp.gt.f32.partialorder %v8073, 0.0
    %vm8216 = vcmp.gt.f32.partialorder %v8078, 0.0
    %vm8217 = vcmp.gt.f32.partialorder %v8083, 0.0
    %vm8218 = vcmp.gt.f32.partialorder %v8088, 0.0
    %vm8219 = vcmp.gt.f32.partialorder %v8093, 0.0
    %vm8220 = vcmp.gt.f32.partialorder %v8098, 0.0
    %vm8221 = vcmp.gt.f32.partialorder %v8103, 0.0
    %vm8222 = vcmp.gt.f32.partialorder %v8108, 0.0
    %vm8223 = vcmp.gt.f32.partialorder %v8113, 0.0
    %vm8224 = vcmp.gt.f32.partialorder %v8118, 0.0
    %vm8225 = vcmp.gt.f32.partialorder %v8123, 0.0
    %vm8226 = vcmp.gt.f32.partialorder %v8128, 0.0
    %vm8227 = vcmp.gt.f32.partialorder %v8133, 0.0
    %vm8228 = vcmp.gt.f32.partialorder %v8138, 0.0
    %vm8229 = vcmp.gt.f32.partialorder %v8143, 0.0
    %vm8230 = vcmp.gt.f32.partialorder %v8148, 0.0
    %vm8231 = vcmp.gt.f32.partialorder %v8153, 0.0
    %vm8232 = vcmp.gt.f32.partialorder %v8158, 0.0
    %vm8233 = vcmp.gt.f32.partialorder %v8163, 0.0
    %vm8234 = vcmp.gt.f32.partialorder %v8168, 0.0
    %v8235 = vmin.f32 %v7853, 0.0
    %v8236 = vmin.f32 %v7858, 0.0
    %v8237 = vmin.f32 %v7863, 0.0
    %v8238 = vmin.f32 %v7868, 0.0
    %v8239 = vmin.f32 %v7873, 0.0
    %v8240 = vmin.f32 %v7878, 0.0
    %v8241 = vmin.f32 %v7883, 0.0
    %v8242 = vmin.f32 %v7888, 0.0
    %v8243 = vmin.f32 %v7893, 0.0
    %v8244 = vmin.f32 %v7898, 0.0
    %v8245 = vmin.f32 %v7903, 0.0
    %v8246 = vmin.f32 %v7908, 0.0
    %v8247 = vmin.f32 %v7913, 0.0
    %v8248 = vmin.f32 %v7918, 0.0
    %v8249 = vmin.f32 %v7923, 0.0
    %v8250 = vmin.f32 %v7928, 0.0
    %v8251 = vmin.f32 %v7933, 0.0
    %v8252 = vmin.f32 %v7938, 0.0
    %v8253 = vmin.f32 %v7943, 0.0
    %v8254 = vmin.f32 %v7948, 0.0
    %v8255 = vmin.f32 %v7953, 0.0
    %v8256 = vmin.f32 %v7958, 0.0
    %v8257 = vmin.f32 %v7963, 0.0
    %v8258 = vmin.f32 %v7968, 0.0
    %v8259 = vmin.f32 %v7973, 0.0
    %v8260 = vmin.f32 %v7978, 0.0
    %v8261 = vmin.f32 %v7983, 0.0
    %v8262 = vmin.f32 %v7988, 0.0
    %v8263 = vmin.f32 %v7993, 0.0
    %v8264 = vmin.f32 %v7998, 0.0
    %v8265 = vmin.f32 %v8003, 0.0
    %v8266 = vmin.f32 %v8008, 0.0
    %v8267 = vmin.f32 %v8013, 0.0
    %v8268 = vmin.f32 %v8018, 0.0
    %v8269 = vmin.f32 %v8023, 0.0
    %v8270 = vmin.f32 %v8028, 0.0
    %v8271 = vmin.f32 %v8033, 0.0
    %v8272 = vmin.f32 %v8038, 0.0
    %v8273 = vmin.f32 %v8043, 0.0
    %v8274 = vmin.f32 %v8048, 0.0
    %v8275 = vmin.f32 %v8053, 0.0
    %v8276 = vmin.f32 %v8058, 0.0
    %v8277 = vmin.f32 %v8063, 0.0
    %v8278 = vmin.f32 %v8068, 0.0
    %v8279 = vmin.f32 %v8073, 0.0
    %v8280 = vmin.f32 %v8078, 0.0
    %v8281 = vmin.f32 %v8083, 0.0
    %v8282 = vmin.f32 %v8088, 0.0
    %v8283 = vmin.f32 %v8093, 0.0
    %v8284 = vmin.f32 %v8098, 0.0
    %v8285 = vmin.f32 %v8103, 0.0
    %v8286 = vmin.f32 %v8108, 0.0
    %v8287 = vmin.f32 %v8113, 0.0
    %v8288 = vmin.f32 %v8118, 0.0
    %v8289 = vmin.f32 %v8123, 0.0
    %v8290 = vmin.f32 %v8128, 0.0
    %v8291 = vmin.f32 %v8133, 0.0
    %v8292 = vmin.f32 %v8138, 0.0
    %v8293 = vmin.f32 %v8143, 0.0
    %v8294 = vmin.f32 %v8148, 0.0
    %v8295 = vmin.f32 %v8153, 0.0
    %v8296 = vmin.f32 %v8158, 0.0
    %v8297 = vmin.f32 %v8163, 0.0
    %v8298 = vmin.f32 %v8168, 0.0
    %v8299 = vmul.f32 %v8235, 1.442695
    %v8300 = vpow.pop %v8299
    %v8301 = vmul.f32 %v8236, 1.442695
    %v8302 = vpow.pop %v8301
    %v8303 = vmul.f32 %v8237, 1.442695
    %v8304 = vpow.pop %v8303
    %v8305 = vmul.f32 %v8238, 1.442695
    %v8306 = vpow.pop %v8305
    %v8307 = vmul.f32 %v8239, 1.442695
    %v8308 = vpow.pop %v8307
    %v8309 = vmul.f32 %v8240, 1.442695
    %v8310 = vpow.pop %v8309
    %v8311 = vmul.f32 %v8241, 1.442695
    %v8312 = vpow.pop %v8311
    %v8313 = vmul.f32 %v8242, 1.442695
    %v8314 = vpow.pop %v8313
    %v8315 = vmul.f32 %v8243, 1.442695
    %v8316 = vpow.pop %v8315
    %v8317 = vmul.f32 %v8244, 1.442695
    %v8318 = vpow.pop %v8317
    %v8319 = vmul.f32 %v8245, 1.442695
    %v8320 = vpow.pop %v8319
    %v8321 = vmul.f32 %v8246, 1.442695
    %v8322 = vpow.pop %v8321
    %v8323 = vmul.f32 %v8247, 1.442695
    %v8324 = vpow.pop %v8323
    %v8325 = vmul.f32 %v8248, 1.442695
    %v8326 = vpow.pop %v8325
    %v8327 = vmul.f32 %v8249, 1.442695
    %v8328 = vpow.pop %v8327
    %v8329 = vmul.f32 %v8250, 1.442695
    %v8330 = vpow.pop %v8329
    %v8331 = vmul.f32 %v8251, 1.442695
    %v8332 = vpow.pop %v8331
    %v8333 = vmul.f32 %v8252, 1.442695
    %v8334 = vpow.pop %v8333
    %v8335 = vmul.f32 %v8253, 1.442695
    %v8336 = vpow.pop %v8335
    %v8337 = vmul.f32 %v8254, 1.442695
    %v8338 = vpow.pop %v8337
    %v8339 = vmul.f32 %v8255, 1.442695
    %v8340 = vpow.pop %v8339
    %v8341 = vmul.f32 %v8256, 1.442695
    %v8342 = vpow.pop %v8341
    %v8343 = vmul.f32 %v8257, 1.442695
    %v8344 = vpow.pop %v8343
    %v8345 = vmul.f32 %v8258, 1.442695
    %v8346 = vpow.pop %v8345
    %v8347 = vmul.f32 %v8259, 1.442695
    %v8348 = vpow.pop %v8347
    %v8349 = vmul.f32 %v8260, 1.442695
    %v8350 = vpow.pop %v8349
    %v8351 = vmul.f32 %v8261, 1.442695
    %v8352 = vpow.pop %v8351
    %v8353 = vmul.f32 %v8262, 1.442695
    %v8354 = vpow.pop %v8353
    %v8355 = vmul.f32 %v8263, 1.442695
    %v8356 = vpow.pop %v8355
    %v8357 = vmul.f32 %v8264, 1.442695
    %v8358 = vpow.pop %v8357
    %v8359 = vmul.f32 %v8265, 1.442695
    %v8360 = vpow.pop %v8359
    %v8361 = vmul.f32 %v8266, 1.442695
    %v8362 = vpow.pop %v8361
    %v8363 = vmul.f32 %v8267, 1.442695
    %v8364 = vpow.pop %v8363
    %v8365 = vmul.f32 %v8268, 1.442695
    %v8366 = vpow.pop %v8365
    %v8367 = vmul.f32 %v8269, 1.442695
    %v8368 = vpow.pop %v8367
    %v8369 = vmul.f32 %v8270, 1.442695
    %v8370 = vpow.pop %v8369
    %v8371 = vmul.f32 %v8271, 1.442695
    %v8372 = vpow.pop %v8371
    %v8373 = vmul.f32 %v8272, 1.442695
    %v8374 = vpow.pop %v8373
    %v8375 = vmul.f32 %v8273, 1.442695
    %v8376 = vpow.pop %v8375
    %v8377 = vmul.f32 %v8274, 1.442695
    %v8378 = vpow.pop %v8377
    %v8379 = vmul.f32 %v8275, 1.442695
    %v8380 = vpow.pop %v8379
    %v8381 = vmul.f32 %v8276, 1.442695
    %v8382 = vpow.pop %v8381
    %v8383 = vmul.f32 %v8277, 1.442695
    %v8384 = vpow.pop %v8383
    %v8385 = vmul.f32 %v8278, 1.442695
    %v8386 = vpow.pop %v8385
    %v8387 = vmul.f32 %v8279, 1.442695
    %v8388 = vpow.pop %v8387
    %v8389 = vmul.f32 %v8280, 1.442695
    %v8390 = vpow.pop %v8389
    %v8391 = vmul.f32 %v8281, 1.442695
    %v8392 = vpow.pop %v8391
    %v8393 = vmul.f32 %v8282, 1.442695
    %v8394 = vpow.pop %v8393
    %v8395 = vmul.f32 %v8283, 1.442695
    %v8396 = vpow.pop %v8395
    %v8397 = vmul.f32 %v8284, 1.442695
    %v8398 = vpow.pop %v8397
    %v8399 = vmul.f32 %v8285, 1.442695
    %v8400 = vpow.pop %v8399
    %v8401 = vmul.f32 %v8286, 1.442695
    %v8402 = vpow.pop %v8401
    %v8403 = vmul.f32 %v8287, 1.442695
    %v8404 = vpow.pop %v8403
    %v8405 = vmul.f32 %v8288, 1.442695
    %v8406 = vpow.pop %v8405
    %v8407 = vmul.f32 %v8289, 1.442695
    %v8408 = vpow.pop %v8407
    %v8409 = vmul.f32 %v8290, 1.442695
    %v8410 = vpow.pop %v8409
    %v8411 = vmul.f32 %v8291, 1.442695
    %v8412 = vpow.pop %v8411
    %v8413 = vmul.f32 %v8292, 1.442695
    %v8414 = vpow.pop %v8413
    %v8415 = vmul.f32 %v8293, 1.442695
    %v8416 = vpow.pop %v8415
    %v8417 = vmul.f32 %v8294, 1.442695
    %v8418 = vpow.pop %v8417
    %v8419 = vmul.f32 %v8295, 1.442695
    %v8420 = vpow.pop %v8419
    %v8421 = vmul.f32 %v8296, 1.442695
    %v8422 = vpow.pop %v8421
    %v8423 = vmul.f32 %v8297, 1.442695
    %v8424 = vpow.pop %v8423
    %v8425 = vmul.f32 %v8298, 1.442695
    %v8426 = vpow.pop %v8425
    %v8427 = vsub.f32 %v8300, 1.0
    %v8428 = vsub.f32 %v8302, 1.0
    %v8429 = vsub.f32 %v8304, 1.0
    %v8430 = vsub.f32 %v8306, 1.0
    %v8431 = vsub.f32 %v8308, 1.0
    %v8432 = vsub.f32 %v8310, 1.0
    %v8433 = vsub.f32 %v8312, 1.0
    %v8434 = vsub.f32 %v8314, 1.0
    %v8435 = vsub.f32 %v8316, 1.0
    %v8436 = vsub.f32 %v8318, 1.0
    %v8437 = vsub.f32 %v8320, 1.0
    %v8438 = vsub.f32 %v8322, 1.0
    %v8439 = vsub.f32 %v8324, 1.0
    %v8440 = vsub.f32 %v8326, 1.0
    %v8441 = vsub.f32 %v8328, 1.0
    %v8442 = vsub.f32 %v8330, 1.0
    %v8443 = vsub.f32 %v8332, 1.0
    %v8444 = vsub.f32 %v8334, 1.0
    %v8445 = vsub.f32 %v8336, 1.0
    %v8446 = vsub.f32 %v8338, 1.0
    %v8447 = vsub.f32 %v8340, 1.0
    %v8448 = vsub.f32 %v8342, 1.0
    %v8449 = vsub.f32 %v8344, 1.0
    %v8450 = vsub.f32 %v8346, 1.0
    %v8451 = vsub.f32 %v8348, 1.0
    %v8452 = vsub.f32 %v8350, 1.0
    %v8453 = vsub.f32 %v8352, 1.0
    %v8454 = vsub.f32 %v8354, 1.0
    %v8455 = vsub.f32 %v8356, 1.0
    %v8456 = vsub.f32 %v8358, 1.0
    %v8457 = vsub.f32 %v8360, 1.0
    %v8458 = vsub.f32 %v8362, 1.0
    %v8459 = vsub.f32 %v8364, 1.0
    %v8460 = vsub.f32 %v8366, 1.0
    %v8461 = vsub.f32 %v8368, 1.0
    %v8462 = vsub.f32 %v8370, 1.0
    %v8463 = vsub.f32 %v8372, 1.0
    %v8464 = vsub.f32 %v8374, 1.0
    %v8465 = vsub.f32 %v8376, 1.0
    %v8466 = vsub.f32 %v8378, 1.0
    %v8467 = vsub.f32 %v8380, 1.0
    %v8468 = vsub.f32 %v8382, 1.0
    %v8469 = vsub.f32 %v8384, 1.0
    %v8470 = vsub.f32 %v8386, 1.0
    %v8471 = vsub.f32 %v8388, 1.0
    %v8472 = vsub.f32 %v8390, 1.0
    %v8473 = vsub.f32 %v8392, 1.0
    %v8474 = vsub.f32 %v8394, 1.0
    %v8475 = vsub.f32 %v8396, 1.0
    %v8476 = vsub.f32 %v8398, 1.0
    %v8477 = vsub.f32 %v8400, 1.0
    %v8478 = vsub.f32 %v8402, 1.0
    %v8479 = vsub.f32 %v8404, 1.0
    %v8480 = vsub.f32 %v8406, 1.0
    %v8481 = vsub.f32 %v8408, 1.0
    %v8482 = vsub.f32 %v8410, 1.0
    %v8483 = vsub.f32 %v8412, 1.0
    %v8484 = vsub.f32 %v8414, 1.0
    %v8485 = vsub.f32 %v8416, 1.0
    %v8486 = vsub.f32 %v8418, 1.0
    %v8487 = vsub.f32 %v8420, 1.0
    %v8488 = vsub.f32 %v8422, 1.0
    %v8489 = vsub.f32 %v8424, 1.0
    %v8490 = vsub.f32 %v8426, 1.0
    %v8491 = vsel %vm8171, %v7853, %v8427
    %v8492 = vsel %vm8172, %v7858, %v8428
    %v8493 = vsel %vm8173, %v7863, %v8429
    %v8494 = vsel %vm8174, %v7868, %v8430
    %v8495 = vsel %vm8175, %v7873, %v8431
    %v8496 = vsel %vm8176, %v7878, %v8432
    %v8497 = vsel %vm8177, %v7883, %v8433
    %v8498 = vsel %vm8178, %v7888, %v8434
    %v8499 = vsel %vm8179, %v7893, %v8435
    %v8500 = vsel %vm8180, %v7898, %v8436
    %v8501 = vsel %vm8181, %v7903, %v8437
    %v8502 = vsel %vm8182, %v7908, %v8438
    %v8503 = vsel %vm8183, %v7913, %v8439
    %v8504 = vsel %vm8184, %v7918, %v8440
    %v8505 = vsel %vm8185, %v7923, %v8441
    %v8506 = vsel %vm8186, %v7928, %v8442
    %v8507 = vsel %vm8187, %v7933, %v8443
    %v8508 = vsel %vm8188, %v7938, %v8444
    %v8509 = vsel %vm8189, %v7943, %v8445
    %v8510 = vsel %vm8190, %v7948, %v8446
    %v8511 = vsel %vm8191, %v7953, %v8447
    %v8512 = vsel %vm8192, %v7958, %v8448
    %v8513 = vsel %vm8193, %v7963, %v8449
    %v8514 = vsel %vm8194, %v7968, %v8450
    %v8515 = vsel %vm8195, %v7973, %v8451
    %v8516 = vsel %vm8196, %v7978, %v8452
    %v8517 = vsel %vm8197, %v7983, %v8453
    %v8518 = vsel %vm8198, %v7988, %v8454
    %v8519 = vsel %vm8199, %v7993, %v8455
    %v8520 = vsel %vm8200, %v7998, %v8456
    %v8521 = vsel %vm8201, %v8003, %v8457
    %v8522 = vsel %vm8202, %v8008, %v8458
    %v8523 = vsel %vm8203, %v8013, %v8459
    %v8524 = vsel %vm8204, %v8018, %v8460
    %v8525 = vsel %vm8205, %v8023, %v8461
    %v8526 = vsel %vm8206, %v8028, %v8462
    %v8527 = vsel %vm8207, %v8033, %v8463
    %v8528 = vsel %vm8208, %v8038, %v8464
    %v8529 = vsel %vm8209, %v8043, %v8465
    %v8530 = vsel %vm8210, %v8048, %v8466
    %v8531 = vsel %vm8211, %v8053, %v8467
    %v8532 = vsel %vm8212, %v8058, %v8468
    %v8533 = vsel %vm8213, %v8063, %v8469
    %v8534 = vsel %vm8214, %v8068, %v8470
    %v8535 = vsel %vm8215, %v8073, %v8471
    %v8536 = vsel %vm8216, %v8078, %v8472
    %v8537 = vsel %vm8217, %v8083, %v8473
    %v8538 = vsel %vm8218, %v8088, %v8474
    %v8539 = vsel %vm8219, %v8093, %v8475
    %v8540 = vsel %vm8220, %v8098, %v8476
    %v8541 = vsel %vm8221, %v8103, %v8477
    %v8542 = vsel %vm8222, %v8108, %v8478
    %v8543 = vsel %vm8223, %v8113, %v8479
    %v8544 = vsel %vm8224, %v8118, %v8480
    %v8545 = vsel %vm8225, %v8123, %v8481
    %v8546 = vsel %vm8226, %v8128, %v8482
    %v8547 = vsel %vm8227, %v8133, %v8483
    %v8548 = vsel %vm8228, %v8138, %v8484
    %v8549 = vsel %vm8229, %v8143, %v8485
    %v8550 = vsel %vm8230, %v8148, %v8486
    %v8551 = vsel %vm8231, %v8153, %v8487
    %v8552 = vsel %vm8232, %v8158, %v8488
    %v8553 = vsel %vm8233, %v8163, %v8489
    %v8554 = vsel %vm8234, %v8168, %v8490
    %vm8555 = vcmask 261120
    %8556 = vst.msk [vmem:[#allocation3] sm:$0xff] %vm8555, %v8491
    %8557 = vst.msk [vmem:[#allocation3 + $0x8] sm:$0xff] %vm8555, %v8492
    %8558 = vst.msk [vmem:[#allocation3 + $0x10] sm:$0xff] %vm8555, %v8493
    %8559 = vst.msk [vmem:[#allocation3 + $0x18] sm:$0xff] %vm8555, %v8494
    %8560 = vst.msk [vmem:[#allocation3 + $0x20] sm:$0xff] %vm8555, %v8495
    %8561 = vst.msk [vmem:[#allocation3 + $0x28] sm:$0xff] %vm8555, %v8496
    %8562 = vst.msk [vmem:[#allocation3 + $0x30] sm:$0xff] %vm8555, %v8497
    %8563 = vst.msk [vmem:[#allocation3 + $0x38] sm:$0xff] %vm8555, %v8498
    %8564 = vst.msk [vmem:[#allocation3 + $0x40] sm:$0xff] %vm8555, %v8499
    %8565 = vst.msk [vmem:[#allocation3 + $0x48] sm:$0xff] %vm8555, %v8500
    %8566 = vst.msk [vmem:[#allocation3 + $0x50] sm:$0xff] %vm8555, %v8501
    %8567 = vst.msk [vmem:[#allocation3 + $0x58] sm:$0xff] %vm8555, %v8502
    %8568 = vst.msk [vmem:[#allocation3 + $0x60] sm:$0xff] %vm8555, %v8503
    %8569 = vst.msk [vmem:[#allocation3 + $0x68] sm:$0xff] %vm8555, %v8504
    %8570 = vst.msk [vmem:[#allocation3 + $0x70] sm:$0xff] %vm8555, %v8505
    %8571 = vst.msk [vmem:[#allocation3 + $0x78] sm:$0xff] %vm8555, %v8506
    %8572 = vst.msk [vmem:[#allocation3 + $0x80] sm:$0xff] %vm8555, %v8507
    %8573 = vst.msk [vmem:[#allocation3 + $0x88] sm:$0xff] %vm8555, %v8508
    %8574 = vst.msk [vmem:[#allocation3 + $0x90] sm:$0xff] %vm8555, %v8509
    %8575 = vst.msk [vmem:[#allocation3 + $0x98] sm:$0xff] %vm8555, %v8510
    %8576 = vst.msk [vmem:[#allocation3 + $0xa0] sm:$0xff] %vm8555, %v8511
    %8577 = vst.msk [vmem:[#allocation3 + $0xa8] sm:$0xff] %vm8555, %v8512
    %8578 = vst.msk [vmem:[#allocation3 + $0xb0] sm:$0xff] %vm8555, %v8513
    %8579 = vst.msk [vmem:[#allocation3 + $0xb8] sm:$0xff] %vm8555, %v8514
    %8580 = vst.msk [vmem:[#allocation3 + $0xc0] sm:$0xff] %vm8555, %v8515
    %8581 = vst.msk [vmem:[#allocation3 + $0xc8] sm:$0xff] %vm8555, %v8516
    %8582 = vst.msk [vmem:[#allocation3 + $0xd0] sm:$0xff] %vm8555, %v8517
    %8583 = vst.msk [vmem:[#allocation3 + $0xd8] sm:$0xff] %vm8555, %v8518
    %8584 = vst.msk [vmem:[#allocation3 + $0xe0] sm:$0xff] %vm8555, %v8519
    %8585 = vst.msk [vmem:[#allocation3 + $0xe8] sm:$0xff] %vm8555, %v8520
    %8586 = vst.msk [vmem:[#allocation3 + $0xf0] sm:$0xff] %vm8555, %v8521
    %8587 = vst.msk [vmem:[#allocation3 + $0xf8] sm:$0xff] %vm8555, %v8522
    %8620 = vrot.lane.b32.xlu0 %v8523, 32
    %v8621 = vpop.permute.xlu0 %8620
    %8622 = vrot.lane.b32.xlu0 %v8524, 32
    %v8623 = vpop.permute.xlu0 %8622
    %8624 = vrot.lane.b32.xlu0 %v8525, 32
    %v8625 = vpop.permute.xlu0 %8624
    %8626 = vrot.lane.b32.xlu0 %v8526, 32
    %v8627 = vpop.permute.xlu0 %8626
    %8628 = vrot.lane.b32.xlu0 %v8527, 32
    %v8629 = vpop.permute.xlu0 %8628
    %8630 = vrot.lane.b32.xlu0 %v8528, 32
    %v8631 = vpop.permute.xlu0 %8630
    %8632 = vrot.lane.b32.xlu0 %v8529, 32
    %v8633 = vpop.permute.xlu0 %8632
    %8634 = vrot.lane.b32.xlu0 %v8530, 32
    %v8635 = vpop.permute.xlu0 %8634
    %8636 = vrot.lane.b32.xlu0 %v8531, 32
    %v8637 = vpop.permute.xlu0 %8636
    %8638 = vrot.lane.b32.xlu0 %v8532, 32
    %v8639 = vpop.permute.xlu0 %8638
    %8640 = vrot.lane.b32.xlu0 %v8533, 32
    %v8641 = vpop.permute.xlu0 %8640
    %8642 = vrot.lane.b32.xlu0 %v8534, 32
    %v8643 = vpop.permute.xlu0 %8642
    %8644 = vrot.lane.b32.xlu0 %v8535, 32
    %v8645 = vpop.permute.xlu0 %8644
    %8646 = vrot.lane.b32.xlu0 %v8536, 32
    %v8647 = vpop.permute.xlu0 %8646
    %8648 = vrot.lane.b32.xlu0 %v8537, 32
    %v8649 = vpop.permute.xlu0 %8648
    %8650 = vrot.lane.b32.xlu0 %v8538, 32
    %v8651 = vpop.permute.xlu0 %8650
    %8652 = vrot.lane.b32.xlu0 %v8539, 32
    %v8653 = vpop.permute.xlu0 %8652
    %8654 = vrot.lane.b32.xlu0 %v8540, 32
    %v8655 = vpop.permute.xlu0 %8654
    %8656 = vrot.lane.b32.xlu0 %v8541, 32
    %v8657 = vpop.permute.xlu0 %8656
    %8658 = vrot.lane.b32.xlu0 %v8542, 32
    %v8659 = vpop.permute.xlu0 %8658
    %8660 = vrot.lane.b32.xlu0 %v8543, 32
    %v8661 = vpop.permute.xlu0 %8660
    %8662 = vrot.lane.b32.xlu0 %v8544, 32
    %v8663 = vpop.permute.xlu0 %8662
    %8664 = vrot.lane.b32.xlu0 %v8545, 32
    %v8665 = vpop.permute.xlu0 %8664
    %8666 = vrot.lane.b32.xlu0 %v8546, 32
    %v8667 = vpop.permute.xlu0 %8666
    %8668 = vrot.lane.b32.xlu0 %v8547, 32
    %v8669 = vpop.permute.xlu0 %8668
    %8670 = vrot.lane.b32.xlu0 %v8548, 32
    %v8671 = vpop.permute.xlu0 %8670
    %8672 = vrot.lane.b32.xlu0 %v8549, 32
    %v8673 = vpop.permute.xlu0 %8672
    %8674 = vrot.lane.b32.xlu0 %v8550, 32
    %v8675 = vpop.permute.xlu0 %8674
    %8676 = vrot.lane.b32.xlu0 %v8551, 32
    %v8677 = vpop.permute.xlu0 %8676
    %8678 = vrot.lane.b32.xlu0 %v8552, 32
    %v8679 = vpop.permute.xlu0 %8678
    %8680 = vrot.lane.b32.xlu0 %v8553, 32
    %v8681 = vpop.permute.xlu0 %8680
    %8682 = vrot.lane.b32.xlu0 %v8554, 32
    %v8683 = vpop.permute.xlu0 %8682
    %vm8716 = vcmask 523520
    %8717 = vst.msk [vmem:[#allocation3] sm:$0xff] %vm8716, %v8621
    %8718 = vst.msk [vmem:[#allocation3 + $0x8] sm:$0xff] %vm8716, %v8623
    %8719 = vst.msk [vmem:[#allocation3 + $0x10] sm:$0xff] %vm8716, %v8625
    %8720 = vst.msk [vmem:[#allocation3 + $0x18] sm:$0xff] %vm8716, %v8627
    %8721 = vst.msk [vmem:[#allocation3 + $0x20] sm:$0xff] %vm8716, %v8629
    %8722 = vst.msk [vmem:[#allocation3 + $0x28] sm:$0xff] %vm8716, %v8631
    %8723 = vst.msk [vmem:[#allocation3 + $0x30] sm:$0xff] %vm8716, %v8633
    %8724 = vst.msk [vmem:[#allocation3 + $0x38] sm:$0xff] %vm8716, %v8635
    %8725 = vst.msk [vmem:[#allocation3 + $0x40] sm:$0xff] %vm8716, %v8637
    %8726 = vst.msk [vmem:[#allocation3 + $0x48] sm:$0xff] %vm8716, %v8639
    %8727 = vst.msk [vmem:[#allocation3 + $0x50] sm:$0xff] %vm8716, %v8641
    %8728 = vst.msk [vmem:[#allocation3 + $0x58] sm:$0xff] %vm8716, %v8643
    %8729 = vst.msk [vmem:[#allocation3 + $0x60] sm:$0xff] %vm8716, %v8645
    %8730 = vst.msk [vmem:[#allocation3 + $0x68] sm:$0xff] %vm8716, %v8647
    %8731 = vst.msk [vmem:[#allocation3 + $0x70] sm:$0xff] %vm8716, %v8649
    %8732 = vst.msk [vmem:[#allocation3 + $0x78] sm:$0xff] %vm8716, %v8651
    %8733 = vst.msk [vmem:[#allocation3 + $0x80] sm:$0xff] %vm8716, %v8653
    %8734 = vst.msk [vmem:[#allocation3 + $0x88] sm:$0xff] %vm8716, %v8655
    %8735 = vst.msk [vmem:[#allocation3 + $0x90] sm:$0xff] %vm8716, %v8657
    %8736 = vst.msk [vmem:[#allocation3 + $0x98] sm:$0xff] %vm8716, %v8659
    %8737 = vst.msk [vmem:[#allocation3 + $0xa0] sm:$0xff] %vm8716, %v8661
    %8738 = vst.msk [vmem:[#allocation3 + $0xa8] sm:$0xff] %vm8716, %v8663
    %8739 = vst.msk [vmem:[#allocation3 + $0xb0] sm:$0xff] %vm8716, %v8665
    %8740 = vst.msk [vmem:[#allocation3 + $0xb8] sm:$0xff] %vm8716, %v8667
    %8741 = vst.msk [vmem:[#allocation3 + $0xc0] sm:$0xff] %vm8716, %v8669
    %8742 = vst.msk [vmem:[#allocation3 + $0xc8] sm:$0xff] %vm8716, %v8671
    %8743 = vst.msk [vmem:[#allocation3 + $0xd0] sm:$0xff] %vm8716, %v8673
    %8744 = vst.msk [vmem:[#allocation3 + $0xd8] sm:$0xff] %vm8716, %v8675
    %8745 = vst.msk [vmem:[#allocation3 + $0xe0] sm:$0xff] %vm8716, %v8677
    %8746 = vst.msk [vmem:[#allocation3 + $0xe8] sm:$0xff] %vm8716, %v8679
    %8747 = vst.msk [vmem:[#allocation3 + $0xf0] sm:$0xff] %vm8716, %v8681
    %8748 = vst.msk [vmem:[#allocation3 + $0xf8] sm:$0xff] %vm8716, %v8683
    %v8749 = vld [vmem:[#allocation3] sm:$0xff]
    %v8750 = vld [vmem:[#allocation3 + $0x8] sm:$0xff]
    %v8751 = vld [vmem:[#allocation3 + $0x10] sm:$0xff]
    %v8752 = vld [vmem:[#allocation3 + $0x18] sm:$0xff]
    %v8753 = vld [vmem:[#allocation3 + $0x20] sm:$0xff]
    %v8754 = vld [vmem:[#allocation3 + $0x28] sm:$0xff]
    %v8755 = vld [vmem:[#allocation3 + $0x30] sm:$0xff]
    %v8756 = vld [vmem:[#allocation3 + $0x38] sm:$0xff]
    %v8757 = vld [vmem:[#allocation3 + $0x40] sm:$0xff]
    %v8758 = vld [vmem:[#allocation3 + $0x48] sm:$0xff]
    %v8759 = vld [vmem:[#allocation3 + $0x50] sm:$0xff]
    %v8760 = vld [vmem:[#allocation3 + $0x58] sm:$0xff]
    %v8761 = vld [vmem:[#allocation3 + $0x60] sm:$0xff]
    %v8762 = vld [vmem:[#allocation3 + $0x68] sm:$0xff]
    %v8763 = vld [vmem:[#allocation3 + $0x70] sm:$0xff]
    %v8764 = vld [vmem:[#allocation3 + $0x78] sm:$0xff]
    %v8765 = vld [vmem:[#allocation3 + $0x80] sm:$0xff]
    %v8766 = vld [vmem:[#allocation3 + $0x88] sm:$0xff]
    %v8767 = vld [vmem:[#allocation3 + $0x90] sm:$0xff]
    %v8768 = vld [vmem:[#allocation3 + $0x98] sm:$0xff]
    %v8769 = vld [vmem:[#allocation3 + $0xa0] sm:$0xff]
    %v8770 = vld [vmem:[#allocation3 + $0xa8] sm:$0xff]
    %v8771 = vld [vmem:[#allocation3 + $0xb0] sm:$0xff]
    %v8772 = vld [vmem:[#allocation3 + $0xb8] sm:$0xff]
    %v8773 = vld [vmem:[#allocation3 + $0xc0] sm:$0xff]
    %v8774 = vld [vmem:[#allocation3 + $0xc8] sm:$0xff]
    %v8775 = vld [vmem:[#allocation3 + $0xd0] sm:$0xff]
    %v8776 = vld [vmem:[#allocation3 + $0xd8] sm:$0xff]
    %v8777 = vld [vmem:[#allocation3 + $0xe0] sm:$0xff]
    %v8778 = vld [vmem:[#allocation3 + $0xe8] sm:$0xff]
    %v8779 = vld [vmem:[#allocation3 + $0xf0] sm:$0xff]
    %v8780 = vld [vmem:[#allocation3 + $0xf8] sm:$0xff]
    %v8781 = vld [vmem:[#allocation18] sm:$0xff]
    %v8782 = vld [vmem:[#allocation18 + $0x8] sm:$0xff]
    %v8783 = vld [vmem:[#allocation18 + $0x10] sm:$0xff]
    %v8784 = vld [vmem:[#allocation18 + $0x18] sm:$0xff]
    %v8785 = vld [vmem:[#allocation18 + $0x20] sm:$0xff]
    %v8786 = vld [vmem:[#allocation18 + $0x28] sm:$0xff]
    %v8787 = vld [vmem:[#allocation18 + $0x30] sm:$0xff]
    %v8788 = vld [vmem:[#allocation18 + $0x38] sm:$0xff]
    %v8789 = vld [vmem:[#allocation18 + $0x40] sm:$0xff]
    %v8790 = vld [vmem:[#allocation18 + $0x48] sm:$0xff]
    %v8791 = vld [vmem:[#allocation18 + $0x50] sm:$0xff]
    %v8792 = vld [vmem:[#allocation18 + $0x58] sm:$0xff]
    %v8793 = vld [vmem:[#allocation18 + $0x60] sm:$0xff]
    %v8794 = vld [vmem:[#allocation18 + $0x68] sm:$0xff]
    %v8795 = vld [vmem:[#allocation18 + $0x70] sm:$0xff]
    %v8796 = vld [vmem:[#allocation18 + $0x78] sm:$0xff]
    %v8797 = vld [vmem:[#allocation18 + $0x80] sm:$0xff]
    %v8798 = vld [vmem:[#allocation18 + $0x88] sm:$0xff]
    %v8799 = vld [vmem:[#allocation18 + $0x90] sm:$0xff]
    %v8800 = vld [vmem:[#allocation18 + $0x98] sm:$0xff]
    %v8801 = vld [vmem:[#allocation18 + $0xa0] sm:$0xff]
    %v8802 = vld [vmem:[#allocation18 + $0xa8] sm:$0xff]
    %v8803 = vld [vmem:[#allocation18 + $0xb0] sm:$0xff]
    %v8804 = vld [vmem:[#allocation18 + $0xb8] sm:$0xff]
    %v8805 = vld [vmem:[#allocation18 + $0xc0] sm:$0xff]
    %v8806 = vld [vmem:[#allocation18 + $0xc8] sm:$0xff]
    %v8807 = vld [vmem:[#allocation18 + $0xd0] sm:$0xff]
    %v8808 = vld [vmem:[#allocation18 + $0xd8] sm:$0xff]
    %v8809 = vld [vmem:[#allocation18 + $0xe0] sm:$0xff]
    %v8810 = vld [vmem:[#allocation18 + $0xe8] sm:$0xff]
    %v8811 = vld [vmem:[#allocation18 + $0xf0] sm:$0xff]
    %v8812 = vld [vmem:[#allocation18 + $0xf8] sm:$0xff]
    %v8813 = vld [vmem:[#allocation18 + $0x100] sm:$0xff]
    %v8814 = vld [vmem:[#allocation18 + $0x108] sm:$0xff]
    %v8815 = vld [vmem:[#allocation18 + $0x110] sm:$0xff]
    %v8816 = vld [vmem:[#allocation18 + $0x118] sm:$0xff]
    %v8817 = vld [vmem:[#allocation18 + $0x120] sm:$0xff]
    %v8818 = vld [vmem:[#allocation18 + $0x128] sm:$0xff]
    %v8819 = vld [vmem:[#allocation18 + $0x130] sm:$0xff]
    %v8820 = vld [vmem:[#allocation18 + $0x138] sm:$0xff]
    %v8821 = vld [vmem:[#allocation18 + $0x140] sm:$0xff]
    %v8822 = vld [vmem:[#allocation18 + $0x148] sm:$0xff]
    %v8823 = vld [vmem:[#allocation18 + $0x150] sm:$0xff]
    %v8824 = vld [vmem:[#allocation18 + $0x158] sm:$0xff]
    %v8825 = vld [vmem:[#allocation18 + $0x160] sm:$0xff]
    %v8826 = vld [vmem:[#allocation18 + $0x168] sm:$0xff]
    %v8827 = vld [vmem:[#allocation18 + $0x170] sm:$0xff]
    %v8828 = vld [vmem:[#allocation18 + $0x178] sm:$0xff]
    %v8829 = vld [vmem:[#allocation18 + $0x180] sm:$0xff]
    %v8830 = vld [vmem:[#allocation18 + $0x188] sm:$0xff]
    %v8831 = vld [vmem:[#allocation18 + $0x190] sm:$0xff]
    %v8832 = vld [vmem:[#allocation18 + $0x198] sm:$0xff]
    %v8833 = vld [vmem:[#allocation18 + $0x1a0] sm:$0xff]
    %v8834 = vld [vmem:[#allocation18 + $0x1a8] sm:$0xff]
    %v8835 = vld [vmem:[#allocation18 + $0x1b0] sm:$0xff]
    %v8836 = vld [vmem:[#allocation18 + $0x1b8] sm:$0xff]
    %v8837 = vld [vmem:[#allocation18 + $0x1c0] sm:$0xff]
    %v8838 = vld [vmem:[#allocation18 + $0x1c8] sm:$0xff]
    %v8839 = vld [vmem:[#allocation18 + $0x1d0] sm:$0xff]
    %v8840 = vld [vmem:[#allocation18 + $0x1d8] sm:$0xff]
    %v8841 = vld [vmem:[#allocation18 + $0x1e0] sm:$0xff]
    %v8842 = vld [vmem:[#allocation18 + $0x1e8] sm:$0xff]
    %v8843 = vld [vmem:[#allocation18 + $0x1f0] sm:$0xff]
    %v8844 = vld [vmem:[#allocation18 + $0x1f8] sm:$0xff]
    %v8845 = vld [vmem:[#allocation18 + $0x200] sm:$0xff]
    %v8846 = vld [vmem:[#allocation18 + $0x208] sm:$0xff]
    %v8847 = vld [vmem:[#allocation18 + $0x210] sm:$0xff]
    %v8848 = vld [vmem:[#allocation18 + $0x218] sm:$0xff]
    %v8849 = vld [vmem:[#allocation18 + $0x220] sm:$0xff]
    %v8850 = vld [vmem:[#allocation18 + $0x228] sm:$0xff]
    %v8851 = vld [vmem:[#allocation18 + $0x230] sm:$0xff]
    %v8852 = vld [vmem:[#allocation18 + $0x238] sm:$0xff]
    %v8853 = vld [vmem:[#allocation18 + $0x240] sm:$0xff]
    %v8854 = vld [vmem:[#allocation18 + $0x248] sm:$0xff]
    %v8855 = vld [vmem:[#allocation18 + $0x250] sm:$0xff]
    %v8856 = vld [vmem:[#allocation18 + $0x258] sm:$0xff]
    %v8857 = vld [vmem:[#allocation18 + $0x260] sm:$0xff]
    %v8858 = vld [vmem:[#allocation18 + $0x268] sm:$0xff]
    %v8859 = vld [vmem:[#allocation18 + $0x270] sm:$0xff]
    %v8860 = vld [vmem:[#allocation18 + $0x278] sm:$0xff]
    %v8861 = vld [vmem:[#allocation18 + $0x280] sm:$0xff]
    %v8862 = vld [vmem:[#allocation18 + $0x288] sm:$0xff]
    %v8863 = vld [vmem:[#allocation18 + $0x290] sm:$0xff]
    %v8864 = vld [vmem:[#allocation18 + $0x298] sm:$0xff]
    %v8865 = vld [vmem:[#allocation18 + $0x2a0] sm:$0xff]
    %v8866 = vld [vmem:[#allocation18 + $0x2a8] sm:$0xff]
    %v8867 = vld [vmem:[#allocation18 + $0x2b0] sm:$0xff]
    %v8868 = vld [vmem:[#allocation18 + $0x2b8] sm:$0xff]
    %v8869 = vld [vmem:[#allocation18 + $0x2c0] sm:$0xff]
    %v8870 = vld [vmem:[#allocation18 + $0x2c8] sm:$0xff]
    %v8871 = vld [vmem:[#allocation18 + $0x2d0] sm:$0xff]
    %v8872 = vld [vmem:[#allocation18 + $0x2d8] sm:$0xff]
    %v8873 = vld [vmem:[#allocation18 + $0x2e0] sm:$0xff]
    %v8874 = vld [vmem:[#allocation18 + $0x2e8] sm:$0xff]
    %v8875 = vld [vmem:[#allocation18 + $0x2f0] sm:$0xff]
    %v8876 = vld [vmem:[#allocation18 + $0x2f8] sm:$0xff]
    %v8877 = vld [vmem:[#allocation18 + $0x300] sm:$0xff]
    %v8878 = vld [vmem:[#allocation18 + $0x308] sm:$0xff]
    %v8879 = vld [vmem:[#allocation18 + $0x310] sm:$0xff]
    %v8880 = vld [vmem:[#allocation18 + $0x318] sm:$0xff]
    %v8881 = vld [vmem:[#allocation18 + $0x320] sm:$0xff]
    %v8882 = vld [vmem:[#allocation18 + $0x328] sm:$0xff]
    %v8883 = vld [vmem:[#allocation18 + $0x330] sm:$0xff]
    %v8884 = vld [vmem:[#allocation18 + $0x338] sm:$0xff]
    %v8885 = vld [vmem:[#allocation18 + $0x340] sm:$0xff]
    %v8886 = vld [vmem:[#allocation18 + $0x348] sm:$0xff]
    %v8887 = vld [vmem:[#allocation18 + $0x350] sm:$0xff]
    %v8888 = vld [vmem:[#allocation18 + $0x358] sm:$0xff]
    %v8889 = vld [vmem:[#allocation18 + $0x360] sm:$0xff]
    %v8890 = vld [vmem:[#allocation18 + $0x368] sm:$0xff]
    %v8891 = vld [vmem:[#allocation18 + $0x370] sm:$0xff]
    %v8892 = vld [vmem:[#allocation18 + $0x378] sm:$0xff]
    %v8893 = vld [vmem:[#allocation18 + $0x380] sm:$0xff]
    %v8894 = vld [vmem:[#allocation18 + $0x388] sm:$0xff]
    %v8895 = vld [vmem:[#allocation18 + $0x390] sm:$0xff]
    %v8896 = vld [vmem:[#allocation18 + $0x398] sm:$0xff]
    %v8897 = vld [vmem:[#allocation18 + $0x3a0] sm:$0xff]
    %v8898 = vld [vmem:[#allocation18 + $0x3a8] sm:$0xff]
    %v8899 = vld [vmem:[#allocation18 + $0x3b0] sm:$0xff]
    %v8900 = vld [vmem:[#allocation18 + $0x3b8] sm:$0xff]
    %v8901 = vld [vmem:[#allocation18 + $0x3c0] sm:$0xff]
    %v8902 = vld [vmem:[#allocation18 + $0x3c8] sm:$0xff]
    %v8903 = vld [vmem:[#allocation18 + $0x3d0] sm:$0xff]
    %v8904 = vld [vmem:[#allocation18 + $0x3d8] sm:$0xff]
    %v8905 = vld [vmem:[#allocation18 + $0x3e0] sm:$0xff]
    %v8906 = vld [vmem:[#allocation18 + $0x3e8] sm:$0xff]
    %v8907 = vld [vmem:[#allocation18 + $0x3f0] sm:$0xff]
    %v8908 = vld [vmem:[#allocation18 + $0x3f8] sm:$0xff]
    %v8909 = vld [vmem:[#allocation19] sm:$0xff]
    %v8910 = vld [vmem:[#allocation19 + $0x8] sm:$0xff]
    %v8911 = vld [vmem:[#allocation19 + $0x10] sm:$0xff]
    %v8912 = vld [vmem:[#allocation19 + $0x18] sm:$0xff]
    %v8913 = vld [vmem:[#allocation19 + $0x20] sm:$0xff]
    %v8914 = vld [vmem:[#allocation19 + $0x28] sm:$0xff]
    %v8915 = vld [vmem:[#allocation19 + $0x30] sm:$0xff]
    %v8916 = vld [vmem:[#allocation19 + $0x38] sm:$0xff]
    %v8917 = vld [vmem:[#allocation19 + $0x40] sm:$0xff]
    %v8918 = vld [vmem:[#allocation19 + $0x48] sm:$0xff]
    %v8919 = vld [vmem:[#allocation19 + $0x50] sm:$0xff]
    %v8920 = vld [vmem:[#allocation19 + $0x58] sm:$0xff]
    %v8921 = vld [vmem:[#allocation19 + $0x60] sm:$0xff]
    %v8922 = vld [vmem:[#allocation19 + $0x68] sm:$0xff]
    %v8923 = vld [vmem:[#allocation19 + $0x70] sm:$0xff]
    %v8924 = vld [vmem:[#allocation19 + $0x78] sm:$0xff]
    %v8925 = vld [vmem:[#allocation19 + $0x80] sm:$0xff]
    %v8926 = vld [vmem:[#allocation19 + $0x88] sm:$0xff]
    %v8927 = vld [vmem:[#allocation19 + $0x90] sm:$0xff]
    %v8928 = vld [vmem:[#allocation19 + $0x98] sm:$0xff]
    %v8929 = vld [vmem:[#allocation19 + $0xa0] sm:$0xff]
    %v8930 = vld [vmem:[#allocation19 + $0xa8] sm:$0xff]
    %v8931 = vld [vmem:[#allocation19 + $0xb0] sm:$0xff]
    %v8932 = vld [vmem:[#allocation19 + $0xb8] sm:$0xff]
    %v8933 = vld [vmem:[#allocation19 + $0xc0] sm:$0xff]
    %v8934 = vld [vmem:[#allocation19 + $0xc8] sm:$0xff]
    %v8935 = vld [vmem:[#allocation19 + $0xd0] sm:$0xff]
    %v8936 = vld [vmem:[#allocation19 + $0xd8] sm:$0xff]
    %v8937 = vld [vmem:[#allocation19 + $0xe0] sm:$0xff]
    %v8938 = vld [vmem:[#allocation19 + $0xe8] sm:$0xff]
    %v8939 = vld [vmem:[#allocation19 + $0xf0] sm:$0xff]
    %v8940 = vld [vmem:[#allocation19 + $0xf8] sm:$0xff]
    %v8941 = vld [vmem:[#allocation19 + $0x100] sm:$0xff]
    %v8942 = vld [vmem:[#allocation19 + $0x108] sm:$0xff]
    %v8943 = vld [vmem:[#allocation19 + $0x110] sm:$0xff]
    %v8944 = vld [vmem:[#allocation19 + $0x118] sm:$0xff]
    %v8945 = vld [vmem:[#allocation19 + $0x120] sm:$0xff]
    %v8946 = vld [vmem:[#allocation19 + $0x128] sm:$0xff]
    %v8947 = vld [vmem:[#allocation19 + $0x130] sm:$0xff]
    %v8948 = vld [vmem:[#allocation19 + $0x138] sm:$0xff]
    %v8949 = vld [vmem:[#allocation19 + $0x140] sm:$0xff]
    %v8950 = vld [vmem:[#allocation19 + $0x148] sm:$0xff]
    %v8951 = vld [vmem:[#allocation19 + $0x150] sm:$0xff]
    %v8952 = vld [vmem:[#allocation19 + $0x158] sm:$0xff]
    %v8953 = vld [vmem:[#allocation19 + $0x160] sm:$0xff]
    %v8954 = vld [vmem:[#allocation19 + $0x168] sm:$0xff]
    %v8955 = vld [vmem:[#allocation19 + $0x170] sm:$0xff]
    %v8956 = vld [vmem:[#allocation19 + $0x178] sm:$0xff]
    %v8957 = vld [vmem:[#allocation19 + $0x180] sm:$0xff]
    %v8958 = vld [vmem:[#allocation19 + $0x188] sm:$0xff]
    %v8959 = vld [vmem:[#allocation19 + $0x190] sm:$0xff]
    %v8960 = vld [vmem:[#allocation19 + $0x198] sm:$0xff]
    %v8961 = vld [vmem:[#allocation19 + $0x1a0] sm:$0xff]
    %v8962 = vld [vmem:[#allocation19 + $0x1a8] sm:$0xff]
    %v8963 = vld [vmem:[#allocation19 + $0x1b0] sm:$0xff]
    %v8964 = vld [vmem:[#allocation19 + $0x1b8] sm:$0xff]
    %v8965 = vld [vmem:[#allocation19 + $0x1c0] sm:$0xff]
    %v8966 = vld [vmem:[#allocation19 + $0x1c8] sm:$0xff]
    %v8967 = vld [vmem:[#allocation19 + $0x1d0] sm:$0xff]
    %v8968 = vld [vmem:[#allocation19 + $0x1d8] sm:$0xff]
    %v8969 = vld [vmem:[#allocation19 + $0x1e0] sm:$0xff]
    %v8970 = vld [vmem:[#allocation19 + $0x1e8] sm:$0xff]
    %v8971 = vld [vmem:[#allocation19 + $0x1f0] sm:$0xff]
    %v8972 = vld [vmem:[#allocation19 + $0x1f8] sm:$0xff]
    %8974 = vset.pattern.permute.xlu0 0
    %8975 = vperm.xlu0 %8974, %v8909
    %v8976 = vpop.permute.xlu0 %8975
    %8979 = vset.pattern.permute.xlu0 0
    %8980 = vperm.xlu0 %8979, %v8910
    %v8981 = vpop.permute.xlu0 %8980
    %8984 = vset.pattern.permute.xlu0 0
    %8985 = vperm.xlu0 %8984, %v8911
    %v8986 = vpop.permute.xlu0 %8985
    %8989 = vset.pattern.permute.xlu0 0
    %8990 = vperm.xlu0 %8989, %v8912
    %v8991 = vpop.permute.xlu0 %8990
    %8994 = vset.pattern.permute.xlu0 0
    %8995 = vperm.xlu0 %8994, %v8913
    %v8996 = vpop.permute.xlu0 %8995
    %8999 = vset.pattern.permute.xlu0 0
    %9000 = vperm.xlu0 %8999, %v8914
    %v9001 = vpop.permute.xlu0 %9000
    %9004 = vset.pattern.permute.xlu0 0
    %9005 = vperm.xlu0 %9004, %v8915
    %v9006 = vpop.permute.xlu0 %9005
    %9009 = vset.pattern.permute.xlu0 0
    %9010 = vperm.xlu0 %9009, %v8916
    %v9011 = vpop.permute.xlu0 %9010
    %9014 = vset.pattern.permute.xlu0 0
    %9015 = vperm.xlu0 %9014, %v8917
    %v9016 = vpop.permute.xlu0 %9015
    %9019 = vset.pattern.permute.xlu0 0
    %9020 = vperm.xlu0 %9019, %v8918
    %v9021 = vpop.permute.xlu0 %9020
    %9024 = vset.pattern.permute.xlu0 0
    %9025 = vperm.xlu0 %9024, %v8919
    %v9026 = vpop.permute.xlu0 %9025
    %9029 = vset.pattern.permute.xlu0 0
    %9030 = vperm.xlu0 %9029, %v8920
    %v9031 = vpop.permute.xlu0 %9030
    %9034 = vset.pattern.permute.xlu0 0
    %9035 = vperm.xlu0 %9034, %v8921
    %v9036 = vpop.permute.xlu0 %9035
    %9039 = vset.pattern.permute.xlu0 0
    %9040 = vperm.xlu0 %9039, %v8922
    %v9041 = vpop.permute.xlu0 %9040
    %9044 = vset.pattern.permute.xlu0 0
    %9045 = vperm.xlu0 %9044, %v8923
    %v9046 = vpop.permute.xlu0 %9045
    %9049 = vset.pattern.permute.xlu0 0
    %9050 = vperm.xlu0 %9049, %v8924
    %v9051 = vpop.permute.xlu0 %9050
    %9054 = vset.pattern.permute.xlu0 0
    %9055 = vperm.xlu0 %9054, %v8925
    %v9056 = vpop.permute.xlu0 %9055
    %9059 = vset.pattern.permute.xlu0 0
    %9060 = vperm.xlu0 %9059, %v8926
    %v9061 = vpop.permute.xlu0 %9060
    %9064 = vset.pattern.permute.xlu0 0
    %9065 = vperm.xlu0 %9064, %v8927
    %v9066 = vpop.permute.xlu0 %9065
    %9069 = vset.pattern.permute.xlu0 0
    %9070 = vperm.xlu0 %9069, %v8928
    %v9071 = vpop.permute.xlu0 %9070
    %9074 = vset.pattern.permute.xlu0 0
    %9075 = vperm.xlu0 %9074, %v8929
    %v9076 = vpop.permute.xlu0 %9075
    %9079 = vset.pattern.permute.xlu0 0
    %9080 = vperm.xlu0 %9079, %v8930
    %v9081 = vpop.permute.xlu0 %9080
    %9084 = vset.pattern.permute.xlu0 0
    %9085 = vperm.xlu0 %9084, %v8931
    %v9086 = vpop.permute.xlu0 %9085
    %9089 = vset.pattern.permute.xlu0 0
    %9090 = vperm.xlu0 %9089, %v8932
    %v9091 = vpop.permute.xlu0 %9090
    %9094 = vset.pattern.permute.xlu0 0
    %9095 = vperm.xlu0 %9094, %v8933
    %v9096 = vpop.permute.xlu0 %9095
    %9099 = vset.pattern.permute.xlu0 0
    %9100 = vperm.xlu0 %9099, %v8934
    %v9101 = vpop.permute.xlu0 %9100
    %9104 = vset.pattern.permute.xlu0 0
    %9105 = vperm.xlu0 %9104, %v8935
    %v9106 = vpop.permute.xlu0 %9105
    %9109 = vset.pattern.permute.xlu0 0
    %9110 = vperm.xlu0 %9109, %v8936
    %v9111 = vpop.permute.xlu0 %9110
    %9114 = vset.pattern.permute.xlu0 0
    %9115 = vperm.xlu0 %9114, %v8937
    %v9116 = vpop.permute.xlu0 %9115
    %9119 = vset.pattern.permute.xlu0 0
    %9120 = vperm.xlu0 %9119, %v8938
    %v9121 = vpop.permute.xlu0 %9120
    %9124 = vset.pattern.permute.xlu0 0
    %9125 = vperm.xlu0 %9124, %v8939
    %v9126 = vpop.permute.xlu0 %9125
    %9129 = vset.pattern.permute.xlu0 0
    %9130 = vperm.xlu0 %9129, %v8940
    %v9131 = vpop.permute.xlu0 %9130
    %9134 = vset.pattern.permute.xlu0 0
    %9135 = vperm.xlu0 %9134, %v8941
    %v9136 = vpop.permute.xlu0 %9135
    %9139 = vset.pattern.permute.xlu0 0
    %9140 = vperm.xlu0 %9139, %v8942
    %v9141 = vpop.permute.xlu0 %9140
    %9144 = vset.pattern.permute.xlu0 0
    %9145 = vperm.xlu0 %9144, %v8943
    %v9146 = vpop.permute.xlu0 %9145
    %9149 = vset.pattern.permute.xlu0 0
    %9150 = vperm.xlu0 %9149, %v8944
    %v9151 = vpop.permute.xlu0 %9150
    %9154 = vset.pattern.permute.xlu0 0
    %9155 = vperm.xlu0 %9154, %v8945
    %v9156 = vpop.permute.xlu0 %9155
    %9159 = vset.pattern.permute.xlu0 0
    %9160 = vperm.xlu0 %9159, %v8946
    %v9161 = vpop.permute.xlu0 %9160
    %9164 = vset.pattern.permute.xlu0 0
    %9165 = vperm.xlu0 %9164, %v8947
    %v9166 = vpop.permute.xlu0 %9165
    %9169 = vset.pattern.permute.xlu0 0
    %9170 = vperm.xlu0 %9169, %v8948
    %v9171 = vpop.permute.xlu0 %9170
    %9174 = vset.pattern.permute.xlu0 0
    %9175 = vperm.xlu0 %9174, %v8949
    %v9176 = vpop.permute.xlu0 %9175
    %9179 = vset.pattern.permute.xlu0 0
    %9180 = vperm.xlu0 %9179, %v8950
    %v9181 = vpop.permute.xlu0 %9180
    %9184 = vset.pattern.permute.xlu0 0
    %9185 = vperm.xlu0 %9184, %v8951
    %v9186 = vpop.permute.xlu0 %9185
    %9189 = vset.pattern.permute.xlu0 0
    %9190 = vperm.xlu0 %9189, %v8952
    %v9191 = vpop.permute.xlu0 %9190
    %9194 = vset.pattern.permute.xlu0 0
    %9195 = vperm.xlu0 %9194, %v8953
    %v9196 = vpop.permute.xlu0 %9195
    %9199 = vset.pattern.permute.xlu0 0
    %9200 = vperm.xlu0 %9199, %v8954
    %v9201 = vpop.permute.xlu0 %9200
    %9204 = vset.pattern.permute.xlu0 0
    %9205 = vperm.xlu0 %9204, %v8955
    %v9206 = vpop.permute.xlu0 %9205
    %9209 = vset.pattern.permute.xlu0 0
    %9210 = vperm.xlu0 %9209, %v8956
    %v9211 = vpop.permute.xlu0 %9210
    %9214 = vset.pattern.permute.xlu0 0
    %9215 = vperm.xlu0 %9214, %v8957
    %v9216 = vpop.permute.xlu0 %9215
    %9219 = vset.pattern.permute.xlu0 0
    %9220 = vperm.xlu0 %9219, %v8958
    %v9221 = vpop.permute.xlu0 %9220
    %9224 = vset.pattern.permute.xlu0 0
    %9225 = vperm.xlu0 %9224, %v8959
    %v9226 = vpop.permute.xlu0 %9225
    %9229 = vset.pattern.permute.xlu0 0
    %9230 = vperm.xlu0 %9229, %v8960
    %v9231 = vpop.permute.xlu0 %9230
    %9234 = vset.pattern.permute.xlu0 0
    %9235 = vperm.xlu0 %9234, %v8961
    %v9236 = vpop.permute.xlu0 %9235
    %9239 = vset.pattern.permute.xlu0 0
    %9240 = vperm.xlu0 %9239, %v8962
    %v9241 = vpop.permute.xlu0 %9240
    %9244 = vset.pattern.permute.xlu0 0
    %9245 = vperm.xlu0 %9244, %v8963
    %v9246 = vpop.permute.xlu0 %9245
    %9249 = vset.pattern.permute.xlu0 0
    %9250 = vperm.xlu0 %9249, %v8964
    %v9251 = vpop.permute.xlu0 %9250
    %9254 = vset.pattern.permute.xlu0 0
    %9255 = vperm.xlu0 %9254, %v8965
    %v9256 = vpop.permute.xlu0 %9255
    %9259 = vset.pattern.permute.xlu0 0
    %9260 = vperm.xlu0 %9259, %v8966
    %v9261 = vpop.permute.xlu0 %9260
    %9264 = vset.pattern.permute.xlu0 0
    %9265 = vperm.xlu0 %9264, %v8967
    %v9266 = vpop.permute.xlu0 %9265
    %9269 = vset.pattern.permute.xlu0 0
    %9270 = vperm.xlu0 %9269, %v8968
    %v9271 = vpop.permute.xlu0 %9270
    %9274 = vset.pattern.permute.xlu0 0
    %9275 = vperm.xlu0 %9274, %v8969
    %v9276 = vpop.permute.xlu0 %9275
    %9279 = vset.pattern.permute.xlu0 0
    %9280 = vperm.xlu0 %9279, %v8970
    %v9281 = vpop.permute.xlu0 %9280
    %9284 = vset.pattern.permute.xlu0 0
    %9285 = vperm.xlu0 %9284, %v8971
    %v9286 = vpop.permute.xlu0 %9285
    %9289 = vset.pattern.permute.xlu0 0
    %9290 = vperm.xlu0 %9289, %v8972
    %v9291 = vpop.permute.xlu0 %9290
    %9293 = vmatprep.subr.mxu0 0.0
    %9294 = vmatpush1.msra.mxu0 %v8764
    %9295 = vmatprep.subr.mxu0 0.0
    %9296 = vmatpush1.msra.mxu0 %v8763
    %9297 = vmatprep.subr.mxu0 0.0
    %9298 = vmatpush1.msra.mxu0 %v8762
    %9299 = vmatprep.subr.mxu0 0.0
    %9300 = vmatpush1.msra.mxu0 %v8761
    %9301 = vmatprep.subr.mxu0 0.0
    %9302 = vmatpush1.msra.mxu0 %v8760
    %9303 = vmatprep.subr.mxu0 0.0
    %9304 = vmatpush1.msra.mxu0 %v8759
    %9305 = vmatprep.subr.mxu0 0.0
    %9306 = vmatpush1.msra.mxu0 %v8758
    %9307 = vmatprep.subr.mxu0 0.0
    %9308 = vmatpush1.msra.mxu0 %v8757
    %9309 = vmatprep.subr.mxu0 0.0
    %9310 = vmatpush1.msra.mxu0 %v8756
    %9311 = vmatprep.subr.mxu0 0.0
    %9312 = vmatpush1.msra.mxu0 %v8755
    %9313 = vmatprep.subr.mxu0 0.0
    %9314 = vmatpush1.msra.mxu0 %v8754
    %9315 = vmatprep.subr.mxu0 0.0
    %9316 = vmatpush1.msra.mxu0 %v8753
    %9317 = vmatprep.subr.mxu0 0.0
    %9318 = vmatpush1.msra.mxu0 %v8752
    %9319 = vmatprep.subr.mxu0 0.0
    %9320 = vmatpush1.msra.mxu0 %v8751
    %9321 = vmatprep.subr.mxu0 0.0
    %9322 = vmatpush1.msra.mxu0 %v8750
    %9323 = vmatprep.subr.mxu0 0.0
    %9324 = vmatpush1.msra.mxu0 %v8749
    %9325 = vmatprep.subr.mxu0 0.0
    %9326 = vmatpush2.msra.mxu0 %v8780
    %9327 = vmatprep.subr.mxu0 0.0
    %9328 = vmatpush2.msra.mxu0 %v8779
    %9329 = vmatprep.subr.mxu0 0.0
    %9330 = vmatpush2.msra.mxu0 %v8778
    %9331 = vmatprep.subr.mxu0 0.0
    %9332 = vmatpush2.msra.mxu0 %v8777
    %9333 = vmatprep.subr.mxu0 0.0
    %9334 = vmatpush2.msra.mxu0 %v8776
    %9335 = vmatprep.subr.mxu0 0.0
    %9336 = vmatpush2.msra.mxu0 %v8775
    %9337 = vmatprep.subr.mxu0 0.0
    %9338 = vmatpush2.msra.mxu0 %v8774
    %9339 = vmatprep.subr.mxu0 0.0
    %9340 = vmatpush2.msra.mxu0 %v8773
    %9341 = vmatprep.subr.mxu0 0.0
    %9342 = vmatpush2.msra.mxu0 %v8772
    %9343 = vmatprep.subr.mxu0 0.0
    %9344 = vmatpush2.msra.mxu0 %v8771
    %9345 = vmatprep.subr.mxu0 0.0
    %9346 = vmatpush2.msra.mxu0 %v8770
    %9347 = vmatprep.subr.mxu0 0.0
    %9348 = vmatpush2.msra.mxu0 %v8769
    %9349 = vmatprep.subr.mxu0 0.0
    %9350 = vmatpush2.msra.mxu0 %v8768
    %9351 = vmatprep.subr.mxu0 0.0
    %9352 = vmatpush2.msra.mxu0 %v8767
    %9353 = vmatprep.subr.mxu0 0.0
    %9354 = vmatpush2.msra.mxu0 %v8766
    %9355 = vmatprep.subr.mxu0 0.0
    %9356 = vmatpush2.msra.mxu0 %v8765
    %9357 = vmatprep.mubr.f32.mxu0 %v8782
    %9358 = vmatmul.mubr.f32.gmra.mxu0 %v8781
    %v9359 = vpop.f32.mrf.mxu0
    %v9360 = vadd.f32 %v8976, %v9359
    %v9361 = vpop.f32.mrf.mxu0
    %9362 = vmatprep.mubr.f32.mxu0 %v8784
    %9363 = vmatmul.mubr.f32.gmra.mxu0 %v8783
    %v9364 = vpop.f32.mrf.mxu0
    %v9365 = vadd.f32 %v8981, %v9364
    %v9366 = vpop.f32.mrf.mxu0
    %9367 = vmatprep.mubr.f32.mxu0 %v8786
    %9368 = vmatmul.mubr.f32.gmra.mxu0 %v8785
    %v9369 = vpop.f32.mrf.mxu0
    %v9370 = vadd.f32 %v8986, %v9369
    %v9371 = vpop.f32.mrf.mxu0
    %9372 = vmatprep.mubr.f32.mxu0 %v8788
    %9373 = vmatmul.mubr.f32.gmra.mxu0 %v8787
    %v9374 = vpop.f32.mrf.mxu0
    %v9375 = vadd.f32 %v8991, %v9374
    %v9376 = vpop.f32.mrf.mxu0
    %9377 = vmatprep.mubr.f32.mxu0 %v8790
    %9378 = vmatmul.mubr.f32.gmra.mxu0 %v8789
    %v9379 = vpop.f32.mrf.mxu0
    %v9380 = vadd.f32 %v8996, %v9379
    %v9381 = vpop.f32.mrf.mxu0
    %9382 = vmatprep.mubr.f32.mxu0 %v8792
    %9383 = vmatmul.mubr.f32.gmra.mxu0 %v8791
    %v9384 = vpop.f32.mrf.mxu0
    %v9385 = vadd.f32 %v9001, %v9384
    %v9386 = vpop.f32.mrf.mxu0
    %9387 = vmatprep.mubr.f32.mxu0 %v8794
    %9388 = vmatmul.mubr.f32.gmra.mxu0 %v8793
    %v9389 = vpop.f32.mrf.mxu0
    %v9390 = vadd.f32 %v9006, %v9389
    %v9391 = vpop.f32.mrf.mxu0
    %9392 = vmatprep.mubr.f32.mxu0 %v8796
    %9393 = vmatmul.mubr.f32.gmra.mxu0 %v8795
    %v9394 = vpop.f32.mrf.mxu0
    %v9395 = vadd.f32 %v9011, %v9394
    %v9396 = vpop.f32.mrf.mxu0
    %9397 = vmatprep.mubr.f32.mxu0 %v8798
    %9398 = vmatmul.mubr.f32.gmra.mxu0 %v8797
    %v9399 = vpop.f32.mrf.mxu0
    %v9400 = vadd.f32 %v9016, %v9399
    %v9401 = vpop.f32.mrf.mxu0
    %9402 = vmatprep.mubr.f32.mxu0 %v8800
    %9403 = vmatmul.mubr.f32.gmra.mxu0 %v8799
    %v9404 = vpop.f32.mrf.mxu0
    %v9405 = vadd.f32 %v9021, %v9404
    %v9406 = vpop.f32.mrf.mxu0
    %9407 = vmatprep.mubr.f32.mxu0 %v8802
    %9408 = vmatmul.mubr.f32.gmra.mxu0 %v8801
    %v9409 = vpop.f32.mrf.mxu0
    %v9410 = vadd.f32 %v9026, %v9409
    %v9411 = vpop.f32.mrf.mxu0
    %9412 = vmatprep.mubr.f32.mxu0 %v8804
    %9413 = vmatmul.mubr.f32.gmra.mxu0 %v8803
    %v9414 = vpop.f32.mrf.mxu0
    %v9415 = vadd.f32 %v9031, %v9414
    %v9416 = vpop.f32.mrf.mxu0
    %9417 = vmatprep.mubr.f32.mxu0 %v8806
    %9418 = vmatmul.mubr.f32.gmra.mxu0 %v8805
    %v9419 = vpop.f32.mrf.mxu0
    %v9420 = vadd.f32 %v9036, %v9419
    %v9421 = vpop.f32.mrf.mxu0
    %9422 = vmatprep.mubr.f32.mxu0 %v8808
    %9423 = vmatmul.mubr.f32.gmra.mxu0 %v8807
    %v9424 = vpop.f32.mrf.mxu0
    %v9425 = vadd.f32 %v9041, %v9424
    %v9426 = vpop.f32.mrf.mxu0
    %9427 = vmatprep.mubr.f32.mxu0 %v8810
    %9428 = vmatmul.mubr.f32.gmra.mxu0 %v8809
    %v9429 = vpop.f32.mrf.mxu0
    %v9430 = vadd.f32 %v9046, %v9429
    %v9431 = vpop.f32.mrf.mxu0
    %9432 = vmatprep.mubr.f32.mxu0 %v8812
    %9433 = vmatmul.mubr.f32.gmra.mxu0 %v8811
    %v9434 = vpop.f32.mrf.mxu0
    %v9435 = vadd.f32 %v9051, %v9434
    %v9436 = vpop.f32.mrf.mxu0
    %9437 = vmatprep.mubr.f32.mxu0 %v8814
    %9438 = vmatmul.mubr.f32.gmra.mxu0 %v8813
    %v9439 = vpop.f32.mrf.mxu0
    %v9440 = vadd.f32 %v9056, %v9439
    %v9441 = vpop.f32.mrf.mxu0
    %9442 = vmatprep.mubr.f32.mxu0 %v8816
    %9443 = vmatmul.mubr.f32.gmra.mxu0 %v8815
    %v9444 = vpop.f32.mrf.mxu0
    %v9445 = vadd.f32 %v9061, %v9444
    %v9446 = vpop.f32.mrf.mxu0
    %9447 = vmatprep.mubr.f32.mxu0 %v8818
    %9448 = vmatmul.mubr.f32.gmra.mxu0 %v8817
    %v9449 = vpop.f32.mrf.mxu0
    %v9450 = vadd.f32 %v9066, %v9449
    %v9451 = vpop.f32.mrf.mxu0
    %9452 = vmatprep.mubr.f32.mxu0 %v8820
    %9453 = vmatmul.mubr.f32.gmra.mxu0 %v8819
    %v9454 = vpop.f32.mrf.mxu0
    %v9455 = vadd.f32 %v9071, %v9454
    %v9456 = vpop.f32.mrf.mxu0
    %9457 = vmatprep.mubr.f32.mxu0 %v8822
    %9458 = vmatmul.mubr.f32.gmra.mxu0 %v8821
    %v9459 = vpop.f32.mrf.mxu0
    %v9460 = vadd.f32 %v9076, %v9459
    %v9461 = vpop.f32.mrf.mxu0
    %9462 = vmatprep.mubr.f32.mxu0 %v8824
    %9463 = vmatmul.mubr.f32.gmra.mxu0 %v8823
    %v9464 = vpop.f32.mrf.mxu0
    %v9465 = vadd.f32 %v9081, %v9464
    %v9466 = vpop.f32.mrf.mxu0
    %9467 = vmatprep.mubr.f32.mxu0 %v8826
    %9468 = vmatmul.mubr.f32.gmra.mxu0 %v8825
    %v9469 = vpop.f32.mrf.mxu0
    %v9470 = vadd.f32 %v9086, %v9469
    %v9471 = vpop.f32.mrf.mxu0
    %9472 = vmatprep.mubr.f32.mxu0 %v8828
    %9473 = vmatmul.mubr.f32.gmra.mxu0 %v8827
    %v9474 = vpop.f32.mrf.mxu0
    %v9475 = vadd.f32 %v9091, %v9474
    %v9476 = vpop.f32.mrf.mxu0
    %9477 = vmatprep.mubr.f32.mxu0 %v8830
    %9478 = vmatmul.mubr.f32.gmra.mxu0 %v8829
    %v9479 = vpop.f32.mrf.mxu0
    %v9480 = vadd.f32 %v9096, %v9479
    %v9481 = vpop.f32.mrf.mxu0
    %9482 = vmatprep.mubr.f32.mxu0 %v8832
    %9483 = vmatmul.mubr.f32.gmra.mxu0 %v8831
    %v9484 = vpop.f32.mrf.mxu0
    %v9485 = vadd.f32 %v9101, %v9484
    %v9486 = vpop.f32.mrf.mxu0
    %9487 = vmatprep.mubr.f32.mxu0 %v8834
    %9488 = vmatmul.mubr.f32.gmra.mxu0 %v8833
    %v9489 = vpop.f32.mrf.mxu0
    %v9490 = vadd.f32 %v9106, %v9489
    %v9491 = vpop.f32.mrf.mxu0
    %9492 = vmatprep.mubr.f32.mxu0 %v8836
    %9493 = vmatmul.mubr.f32.gmra.mxu0 %v8835
    %v9494 = vpop.f32.mrf.mxu0
    %v9495 = vadd.f32 %v9111, %v9494
    %v9496 = vpop.f32.mrf.mxu0
    %9497 = vmatprep.mubr.f32.mxu0 %v8838
    %9498 = vmatmul.mubr.f32.gmra.mxu0 %v8837
    %v9499 = vpop.f32.mrf.mxu0
    %v9500 = vadd.f32 %v9116, %v9499
    %v9501 = vpop.f32.mrf.mxu0
    %9502 = vmatprep.mubr.f32.mxu0 %v8840
    %9503 = vmatmul.mubr.f32.gmra.mxu0 %v8839
    %v9504 = vpop.f32.mrf.mxu0
    %v9505 = vadd.f32 %v9121, %v9504
    %v9506 = vpop.f32.mrf.mxu0
    %9507 = vmatprep.mubr.f32.mxu0 %v8842
    %9508 = vmatmul.mubr.f32.gmra.mxu0 %v8841
    %v9509 = vpop.f32.mrf.mxu0
    %v9510 = vadd.f32 %v9126, %v9509
    %v9511 = vpop.f32.mrf.mxu0
    %9512 = vmatprep.mubr.f32.mxu0 %v8844
    %9513 = vmatmul.mubr.f32.gmra.mxu0 %v8843
    %v9514 = vpop.f32.mrf.mxu0
    %v9515 = vadd.f32 %v9131, %v9514
    %v9516 = vpop.f32.mrf.mxu0
    %9517 = vmatprep.mubr.f32.mxu0 %v8846
    %9518 = vmatmul.mubr.f32.gmra.mxu0 %v8845
    %v9519 = vpop.f32.mrf.mxu0
    %v9520 = vadd.f32 %v9136, %v9519
    %v9521 = vpop.f32.mrf.mxu0
    %9522 = vmatprep.mubr.f32.mxu0 %v8848
    %9523 = vmatmul.mubr.f32.gmra.mxu0 %v8847
    %v9524 = vpop.f32.mrf.mxu0
    %v9525 = vadd.f32 %v9141, %v9524
    %v9526 = vpop.f32.mrf.mxu0
    %9527 = vmatprep.mubr.f32.mxu0 %v8850
    %9528 = vmatmul.mubr.f32.gmra.mxu0 %v8849
    %v9529 = vpop.f32.mrf.mxu0
    %v9530 = vadd.f32 %v9146, %v9529
    %v9531 = vpop.f32.mrf.mxu0
    %9532 = vmatprep.mubr.f32.mxu0 %v8852
    %9533 = vmatmul.mubr.f32.gmra.mxu0 %v8851
    %v9534 = vpop.f32.mrf.mxu0
    %v9535 = vadd.f32 %v9151, %v9534
    %v9536 = vpop.f32.mrf.mxu0
    %9537 = vmatprep.mubr.f32.mxu0 %v8854
    %9538 = vmatmul.mubr.f32.gmra.mxu0 %v8853
    %v9539 = vpop.f32.mrf.mxu0
    %v9540 = vadd.f32 %v9156, %v9539
    %v9541 = vpop.f32.mrf.mxu0
    %9542 = vmatprep.mubr.f32.mxu0 %v8856
    %9543 = vmatmul.mubr.f32.gmra.mxu0 %v8855
    %v9544 = vpop.f32.mrf.mxu0
    %v9545 = vadd.f32 %v9161, %v9544
    %v9546 = vpop.f32.mrf.mxu0
    %9547 = vmatprep.mubr.f32.mxu0 %v8858
    %9548 = vmatmul.mubr.f32.gmra.mxu0 %v8857
    %v9549 = vpop.f32.mrf.mxu0
    %v9550 = vadd.f32 %v9166, %v9549
    %v9551 = vpop.f32.mrf.mxu0
    %9552 = vmatprep.mubr.f32.mxu0 %v8860
    %9553 = vmatmul.mubr.f32.gmra.mxu0 %v8859
    %v9554 = vpop.f32.mrf.mxu0
    %v9555 = vadd.f32 %v9171, %v9554
    %v9556 = vpop.f32.mrf.mxu0
    %9557 = vmatprep.mubr.f32.mxu0 %v8862
    %9558 = vmatmul.mubr.f32.gmra.mxu0 %v8861
    %v9559 = vpop.f32.mrf.mxu0
    %v9560 = vadd.f32 %v9176, %v9559
    %v9561 = vpop.f32.mrf.mxu0
    %9562 = vmatprep.mubr.f32.mxu0 %v8864
    %9563 = vmatmul.mubr.f32.gmra.mxu0 %v8863
    %v9564 = vpop.f32.mrf.mxu0
    %v9565 = vadd.f32 %v9181, %v9564
    %v9566 = vpop.f32.mrf.mxu0
    %9567 = vmatprep.mubr.f32.mxu0 %v8866
    %9568 = vmatmul.mubr.f32.gmra.mxu0 %v8865
    %v9569 = vpop.f32.mrf.mxu0
    %v9570 = vadd.f32 %v9186, %v9569
    %v9571 = vpop.f32.mrf.mxu0
    %9572 = vmatprep.mubr.f32.mxu0 %v8868
    %9573 = vmatmul.mubr.f32.gmra.mxu0 %v8867
    %v9574 = vpop.f32.mrf.mxu0
    %v9575 = vadd.f32 %v9191, %v9574
    %v9576 = vpop.f32.mrf.mxu0
    %9577 = vmatprep.mubr.f32.mxu0 %v8870
    %9578 = vmatmul.mubr.f32.gmra.mxu0 %v8869
    %v9579 = vpop.f32.mrf.mxu0
    %v9580 = vadd.f32 %v9196, %v9579
    %v9581 = vpop.f32.mrf.mxu0
    %9582 = vmatprep.mubr.f32.mxu0 %v8872
    %9583 = vmatmul.mubr.f32.gmra.mxu0 %v8871
    %v9584 = vpop.f32.mrf.mxu0
    %v9585 = vadd.f32 %v9201, %v9584
    %v9586 = vpop.f32.mrf.mxu0
    %9587 = vmatprep.mubr.f32.mxu0 %v8874
    %9588 = vmatmul.mubr.f32.gmra.mxu0 %v8873
    %v9589 = vpop.f32.mrf.mxu0
    %v9590 = vadd.f32 %v9206, %v9589
    %v9591 = vpop.f32.mrf.mxu0
    %9592 = vmatprep.mubr.f32.mxu0 %v8876
    %9593 = vmatmul.mubr.f32.gmra.mxu0 %v8875
    %v9594 = vpop.f32.mrf.mxu0
    %v9595 = vadd.f32 %v9211, %v9594
    %v9596 = vpop.f32.mrf.mxu0
    %9597 = vmatprep.mubr.f32.mxu0 %v8878
    %9598 = vmatmul.mubr.f32.gmra.mxu0 %v8877
    %v9599 = vpop.f32.mrf.mxu0
    %v9600 = vadd.f32 %v9216, %v9599
    %v9601 = vpop.f32.mrf.mxu0
    %9602 = vmatprep.mubr.f32.mxu0 %v8880
    %9603 = vmatmul.mubr.f32.gmra.mxu0 %v8879
    %v9604 = vpop.f32.mrf.mxu0
    %v9605 = vadd.f32 %v9221, %v9604
    %v9606 = vpop.f32.mrf.mxu0
    %9607 = vmatprep.mubr.f32.mxu0 %v8882
    %9608 = vmatmul.mubr.f32.gmra.mxu0 %v8881
    %v9609 = vpop.f32.mrf.mxu0
    %v9610 = vadd.f32 %v9226, %v9609
    %v9611 = vpop.f32.mrf.mxu0
    %9612 = vmatprep.mubr.f32.mxu0 %v8884
    %9613 = vmatmul.mubr.f32.gmra.mxu0 %v8883
    %v9614 = vpop.f32.mrf.mxu0
    %v9615 = vadd.f32 %v9231, %v9614
    %v9616 = vpop.f32.mrf.mxu0
    %9617 = vmatprep.mubr.f32.mxu0 %v8886
    %9618 = vmatmul.mubr.f32.gmra.mxu0 %v8885
    %v9619 = vpop.f32.mrf.mxu0
    %v9620 = vadd.f32 %v9236, %v9619
    %v9621 = vpop.f32.mrf.mxu0
    %9622 = vmatprep.mubr.f32.mxu0 %v8888
    %9623 = vmatmul.mubr.f32.gmra.mxu0 %v8887
    %v9624 = vpop.f32.mrf.mxu0
    %v9625 = vadd.f32 %v9241, %v9624
    %v9626 = vpop.f32.mrf.mxu0
    %9627 = vmatprep.mubr.f32.mxu0 %v8890
    %9628 = vmatmul.mubr.f32.gmra.mxu0 %v8889
    %v9629 = vpop.f32.mrf.mxu0
    %v9630 = vadd.f32 %v9246, %v9629
    %v9631 = vpop.f32.mrf.mxu0
    %9632 = vmatprep.mubr.f32.mxu0 %v8892
    %9633 = vmatmul.mubr.f32.gmra.mxu0 %v8891
    %v9634 = vpop.f32.mrf.mxu0
    %v9635 = vadd.f32 %v9251, %v9634
    %v9636 = vpop.f32.mrf.mxu0
    %9637 = vmatprep.mubr.f32.mxu0 %v8894
    %9638 = vmatmul.mubr.f32.gmra.mxu0 %v8893
    %v9639 = vpop.f32.mrf.mxu0
    %v9640 = vadd.f32 %v9256, %v9639
    %v9641 = vpop.f32.mrf.mxu0
    %9642 = vmatprep.mubr.f32.mxu0 %v8896
    %9643 = vmatmul.mubr.f32.gmra.mxu0 %v8895
    %v9644 = vpop.f32.mrf.mxu0
    %v9645 = vadd.f32 %v9261, %v9644
    %v9646 = vpop.f32.mrf.mxu0
    %9647 = vmatprep.mubr.f32.mxu0 %v8898
    %9648 = vmatmul.mubr.f32.gmra.mxu0 %v8897
    %v9649 = vpop.f32.mrf.mxu0
    %v9650 = vadd.f32 %v9266, %v9649
    %v9651 = vpop.f32.mrf.mxu0
    %9652 = vmatprep.mubr.f32.mxu0 %v8900
    %9653 = vmatmul.mubr.f32.gmra.mxu0 %v8899
    %v9654 = vpop.f32.mrf.mxu0
    %v9655 = vadd.f32 %v9271, %v9654
    %v9656 = vpop.f32.mrf.mxu0
    %9657 = vmatprep.mubr.f32.mxu0 %v8902
    %9658 = vmatmul.mubr.f32.gmra.mxu0 %v8901
    %v9659 = vpop.f32.mrf.mxu0
    %v9660 = vadd.f32 %v9276, %v9659
    %v9661 = vpop.f32.mrf.mxu0
    %9662 = vmatprep.mubr.f32.mxu0 %v8904
    %9663 = vmatmul.mubr.f32.gmra.mxu0 %v8903
    %v9664 = vpop.f32.mrf.mxu0
    %v9665 = vadd.f32 %v9281, %v9664
    %v9666 = vpop.f32.mrf.mxu0
    %9667 = vmatprep.mubr.f32.mxu0 %v8906
    %9668 = vmatmul.mubr.f32.gmra.mxu0 %v8905
    %v9669 = vpop.f32.mrf.mxu0
    %v9670 = vadd.f32 %v9286, %v9669
    %v9671 = vpop.f32.mrf.mxu0
    %9672 = vmatprep.mubr.f32.mxu0 %v8908
    %9673 = vmatmul.mubr.f32.gmra.mxu0 %v8907
    %v9674 = vpop.f32.mrf.mxu0
    %v9675 = vadd.f32 %v9291, %v9674
    %v9676 = vpop.f32.mrf.mxu0
    %9677 = vdwg.mxu0
    %vm9678 = vcmp.gt.f32.partialorder %v9360, 0.0
    %vm9679 = vcmp.gt.f32.partialorder %v9365, 0.0
    %vm9680 = vcmp.gt.f32.partialorder %v9370, 0.0
    %vm9681 = vcmp.gt.f32.partialorder %v9375, 0.0
    %vm9682 = vcmp.gt.f32.partialorder %v9380, 0.0
    %vm9683 = vcmp.gt.f32.partialorder %v9385, 0.0
    %vm9684 = vcmp.gt.f32.partialorder %v9390, 0.0
    %vm9685 = vcmp.gt.f32.partialorder %v9395, 0.0
    %vm9686 = vcmp.gt.f32.partialorder %v9400, 0.0
    %vm9687 = vcmp.gt.f32.partialorder %v9405, 0.0
    %vm9688 = vcmp.gt.f32.partialorder %v9410, 0.0
    %vm9689 = vcmp.gt.f32.partialorder %v9415, 0.0
    %vm9690 = vcmp.gt.f32.partialorder %v9420, 0.0
    %vm9691 = vcmp.gt.f32.partialorder %v9425, 0.0
    %vm9692 = vcmp.gt.f32.partialorder %v9430, 0.0
    %vm9693 = vcmp.gt.f32.partialorder %v9435, 0.0
    %vm9694 = vcmp.gt.f32.partialorder %v9440, 0.0
    %vm9695 = vcmp.gt.f32.partialorder %v9445, 0.0
    %vm9696 = vcmp.gt.f32.partialorder %v9450, 0.0
    %vm9697 = vcmp.gt.f32.partialorder %v9455, 0.0
    %vm9698 = vcmp.gt.f32.partialorder %v9460, 0.0
    %vm9699 = vcmp.gt.f32.partialorder %v9465, 0.0
    %vm9700 = vcmp.gt.f32.partialorder %v9470, 0.0
    %vm9701 = vcmp.gt.f32.partialorder %v9475, 0.0
    %vm9702 = vcmp.gt.f32.partialorder %v9480, 0.0
    %vm9703 = vcmp.gt.f32.partialorder %v9485, 0.0
    %vm9704 = vcmp.gt.f32.partialorder %v9490, 0.0
    %vm9705 = vcmp.gt.f32.partialorder %v9495, 0.0
    %vm9706 = vcmp.gt.f32.partialorder %v9500, 0.0
    %vm9707 = vcmp.gt.f32.partialorder %v9505, 0.0
    %vm9708 = vcmp.gt.f32.partialorder %v9510, 0.0
    %vm9709 = vcmp.gt.f32.partialorder %v9515, 0.0
    %vm9710 = vcmp.gt.f32.partialorder %v9520, 0.0
    %vm9711 = vcmp.gt.f32.partialorder %v9525, 0.0
    %vm9712 = vcmp.gt.f32.partialorder %v9530, 0.0
    %vm9713 = vcmp.gt.f32.partialorder %v9535, 0.0
    %vm9714 = vcmp.gt.f32.partialorder %v9540, 0.0
    %vm9715 = vcmp.gt.f32.partialorder %v9545, 0.0
    %vm9716 = vcmp.gt.f32.partialorder %v9550, 0.0
    %vm9717 = vcmp.gt.f32.partialorder %v9555, 0.0
    %vm9718 = vcmp.gt.f32.partialorder %v9560, 0.0
    %vm9719 = vcmp.gt.f32.partialorder %v9565, 0.0
    %vm9720 = vcmp.gt.f32.partialorder %v9570, 0.0
    %vm9721 = vcmp.gt.f32.partialorder %v9575, 0.0
    %vm9722 = vcmp.gt.f32.partialorder %v9580, 0.0
    %vm9723 = vcmp.gt.f32.partialorder %v9585, 0.0
    %vm9724 = vcmp.gt.f32.partialorder %v9590, 0.0
    %vm9725 = vcmp.gt.f32.partialorder %v9595, 0.0
    %vm9726 = vcmp.gt.f32.partialorder %v9600, 0.0
    %vm9727 = vcmp.gt.f32.partialorder %v9605, 0.0
    %vm9728 = vcmp.gt.f32.partialorder %v9610, 0.0
    %vm9729 = vcmp.gt.f32.partialorder %v9615, 0.0
    %vm9730 = vcmp.gt.f32.partialorder %v9620, 0.0
    %vm9731 = vcmp.gt.f32.partialorder %v9625, 0.0
    %vm9732 = vcmp.gt.f32.partialorder %v9630, 0.0
    %vm9733 = vcmp.gt.f32.partialorder %v9635, 0.0
    %vm9734 = vcmp.gt.f32.partialorder %v9640, 0.0
    %vm9735 = vcmp.gt.f32.partialorder %v9645, 0.0
    %vm9736 = vcmp.gt.f32.partialorder %v9650, 0.0
    %vm9737 = vcmp.gt.f32.partialorder %v9655, 0.0
    %vm9738 = vcmp.gt.f32.partialorder %v9660, 0.0
    %vm9739 = vcmp.gt.f32.partialorder %v9665, 0.0
    %vm9740 = vcmp.gt.f32.partialorder %v9670, 0.0
    %vm9741 = vcmp.gt.f32.partialorder %v9675, 0.0
    %v9742 = vmin.f32 %v9360, 0.0
    %v9743 = vmin.f32 %v9365, 0.0
    %v9744 = vmin.f32 %v9370, 0.0
    %v9745 = vmin.f32 %v9375, 0.0
    %v9746 = vmin.f32 %v9380, 0.0
    %v9747 = vmin.f32 %v9385, 0.0
    %v9748 = vmin.f32 %v9390, 0.0
    %v9749 = vmin.f32 %v9395, 0.0
    %v9750 = vmin.f32 %v9400, 0.0
    %v9751 = vmin.f32 %v9405, 0.0
    %v9752 = vmin.f32 %v9410, 0.0
    %v9753 = vmin.f32 %v9415, 0.0
    %v9754 = vmin.f32 %v9420, 0.0
    %v9755 = vmin.f32 %v9425, 0.0
    %v9756 = vmin.f32 %v9430, 0.0
    %v9757 = vmin.f32 %v9435, 0.0
    %v9758 = vmin.f32 %v9440, 0.0
    %v9759 = vmin.f32 %v9445, 0.0
    %v9760 = vmin.f32 %v9450, 0.0
    %v9761 = vmin.f32 %v9455, 0.0
    %v9762 = vmin.f32 %v9460, 0.0
    %v9763 = vmin.f32 %v9465, 0.0
    %v9764 = vmin.f32 %v9470, 0.0
    %v9765 = vmin.f32 %v9475, 0.0
    %v9766 = vmin.f32 %v9480, 0.0
    %v9767 = vmin.f32 %v9485, 0.0
    %v9768 = vmin.f32 %v9490, 0.0
    %v9769 = vmin.f32 %v9495, 0.0
    %v9770 = vmin.f32 %v9500, 0.0
    %v9771 = vmin.f32 %v9505, 0.0
    %v9772 = vmin.f32 %v9510, 0.0
    %v9773 = vmin.f32 %v9515, 0.0
    %v9774 = vmin.f32 %v9520, 0.0
    %v9775 = vmin.f32 %v9525, 0.0
    %v9776 = vmin.f32 %v9530, 0.0
    %v9777 = vmin.f32 %v9535, 0.0
    %v9778 = vmin.f32 %v9540, 0.0
    %v9779 = vmin.f32 %v9545, 0.0
    %v9780 = vmin.f32 %v9550, 0.0
    %v9781 = vmin.f32 %v9555, 0.0
    %v9782 = vmin.f32 %v9560, 0.0
    %v9783 = vmin.f32 %v9565, 0.0
    %v9784 = vmin.f32 %v9570, 0.0
    %v9785 = vmin.f32 %v9575, 0.0
    %v9786 = vmin.f32 %v9580, 0.0
    %v9787 = vmin.f32 %v9585, 0.0
    %v9788 = vmin.f32 %v9590, 0.0
    %v9789 = vmin.f32 %v9595, 0.0
    %v9790 = vmin.f32 %v9600, 0.0
    %v9791 = vmin.f32 %v9605, 0.0
    %v9792 = vmin.f32 %v9610, 0.0
    %v9793 = vmin.f32 %v9615, 0.0
    %v9794 = vmin.f32 %v9620, 0.0
    %v9795 = vmin.f32 %v9625, 0.0
    %v9796 = vmin.f32 %v9630, 0.0
    %v9797 = vmin.f32 %v9635, 0.0
    %v9798 = vmin.f32 %v9640, 0.0
    %v9799 = vmin.f32 %v9645, 0.0
    %v9800 = vmin.f32 %v9650, 0.0
    %v9801 = vmin.f32 %v9655, 0.0
    %v9802 = vmin.f32 %v9660, 0.0
    %v9803 = vmin.f32 %v9665, 0.0
    %v9804 = vmin.f32 %v9670, 0.0
    %v9805 = vmin.f32 %v9675, 0.0
    %v9806 = vmul.f32 %v9742, 1.442695
    %v9807 = vpow.pop %v9806
    %v9808 = vmul.f32 %v9743, 1.442695
    %v9809 = vpow.pop %v9808
    %v9810 = vmul.f32 %v9744, 1.442695
    %v9811 = vpow.pop %v9810
    %v9812 = vmul.f32 %v9745, 1.442695
    %v9813 = vpow.pop %v9812
    %v9814 = vmul.f32 %v9746, 1.442695
    %v9815 = vpow.pop %v9814
    %v9816 = vmul.f32 %v9747, 1.442695
    %v9817 = vpow.pop %v9816
    %v9818 = vmul.f32 %v9748, 1.442695
    %v9819 = vpow.pop %v9818
    %v9820 = vmul.f32 %v9749, 1.442695
    %v9821 = vpow.pop %v9820
    %v9822 = vmul.f32 %v9750, 1.442695
    %v9823 = vpow.pop %v9822
    %v9824 = vmul.f32 %v9751, 1.442695
    %v9825 = vpow.pop %v9824
    %v9826 = vmul.f32 %v9752, 1.442695
    %v9827 = vpow.pop %v9826
    %v9828 = vmul.f32 %v9753, 1.442695
    %v9829 = vpow.pop %v9828
    %v9830 = vmul.f32 %v9754, 1.442695
    %v9831 = vpow.pop %v9830
    %v9832 = vmul.f32 %v9755, 1.442695
    %v9833 = vpow.pop %v9832
    %v9834 = vmul.f32 %v9756, 1.442695
    %v9835 = vpow.pop %v9834
    %v9836 = vmul.f32 %v9757, 1.442695
    %v9837 = vpow.pop %v9836
    %v9838 = vmul.f32 %v9758, 1.442695
    %v9839 = vpow.pop %v9838
    %v9840 = vmul.f32 %v9759, 1.442695
    %v9841 = vpow.pop %v9840
    %v9842 = vmul.f32 %v9760, 1.442695
    %v9843 = vpow.pop %v9842
    %v9844 = vmul.f32 %v9761, 1.442695
    %v9845 = vpow.pop %v9844
    %v9846 = vmul.f32 %v9762, 1.442695
    %v9847 = vpow.pop %v9846
    %v9848 = vmul.f32 %v9763, 1.442695
    %v9849 = vpow.pop %v9848
    %v9850 = vmul.f32 %v9764, 1.442695
    %v9851 = vpow.pop %v9850
    %v9852 = vmul.f32 %v9765, 1.442695
    %v9853 = vpow.pop %v9852
    %v9854 = vmul.f32 %v9766, 1.442695
    %v9855 = vpow.pop %v9854
    %v9856 = vmul.f32 %v9767, 1.442695
    %v9857 = vpow.pop %v9856
    %v9858 = vmul.f32 %v9768, 1.442695
    %v9859 = vpow.pop %v9858
    %v9860 = vmul.f32 %v9769, 1.442695
    %v9861 = vpow.pop %v9860
    %v9862 = vmul.f32 %v9770, 1.442695
    %v9863 = vpow.pop %v9862
    %v9864 = vmul.f32 %v9771, 1.442695
    %v9865 = vpow.pop %v9864
    %v9866 = vmul.f32 %v9772, 1.442695
    %v9867 = vpow.pop %v9866
    %v9868 = vmul.f32 %v9773, 1.442695
    %v9869 = vpow.pop %v9868
    %v9870 = vmul.f32 %v9774, 1.442695
    %v9871 = vpow.pop %v9870
    %v9872 = vmul.f32 %v9775, 1.442695
    %v9873 = vpow.pop %v9872
    %v9874 = vmul.f32 %v9776, 1.442695
    %v9875 = vpow.pop %v9874
    %v9876 = vmul.f32 %v9777, 1.442695
    %v9877 = vpow.pop %v9876
    %v9878 = vmul.f32 %v9778, 1.442695
    %v9879 = vpow.pop %v9878
    %v9880 = vmul.f32 %v9779, 1.442695
    %v9881 = vpow.pop %v9880
    %v9882 = vmul.f32 %v9780, 1.442695
    %v9883 = vpow.pop %v9882
    %v9884 = vmul.f32 %v9781, 1.442695
    %v9885 = vpow.pop %v9884
    %v9886 = vmul.f32 %v9782, 1.442695
    %v9887 = vpow.pop %v9886
    %v9888 = vmul.f32 %v9783, 1.442695
    %v9889 = vpow.pop %v9888
    %v9890 = vmul.f32 %v9784, 1.442695
    %v9891 = vpow.pop %v9890
    %v9892 = vmul.f32 %v9785, 1.442695
    %v9893 = vpow.pop %v9892
    %v9894 = vmul.f32 %v9786, 1.442695
    %v9895 = vpow.pop %v9894
    %v9896 = vmul.f32 %v9787, 1.442695
    %v9897 = vpow.pop %v9896
    %v9898 = vmul.f32 %v9788, 1.442695
    %v9899 = vpow.pop %v9898
    %v9900 = vmul.f32 %v9789, 1.442695
    %v9901 = vpow.pop %v9900
    %v9902 = vmul.f32 %v9790, 1.442695
    %v9903 = vpow.pop %v9902
    %v9904 = vmul.f32 %v9791, 1.442695
    %v9905 = vpow.pop %v9904
    %v9906 = vmul.f32 %v9792, 1.442695
    %v9907 = vpow.pop %v9906
    %v9908 = vmul.f32 %v9793, 1.442695
    %v9909 = vpow.pop %v9908
    %v9910 = vmul.f32 %v9794, 1.442695
    %v9911 = vpow.pop %v9910
    %v9912 = vmul.f32 %v9795, 1.442695
    %v9913 = vpow.pop %v9912
    %v9914 = vmul.f32 %v9796, 1.442695
    %v9915 = vpow.pop %v9914
    %v9916 = vmul.f32 %v9797, 1.442695
    %v9917 = vpow.pop %v9916
    %v9918 = vmul.f32 %v9798, 1.442695
    %v9919 = vpow.pop %v9918
    %v9920 = vmul.f32 %v9799, 1.442695
    %v9921 = vpow.pop %v9920
    %v9922 = vmul.f32 %v9800, 1.442695
    %v9923 = vpow.pop %v9922
    %v9924 = vmul.f32 %v9801, 1.442695
    %v9925 = vpow.pop %v9924
    %v9926 = vmul.f32 %v9802, 1.442695
    %v9927 = vpow.pop %v9926
    %v9928 = vmul.f32 %v9803, 1.442695
    %v9929 = vpow.pop %v9928
    %v9930 = vmul.f32 %v9804, 1.442695
    %v9931 = vpow.pop %v9930
    %v9932 = vmul.f32 %v9805, 1.442695
    %v9933 = vpow.pop %v9932
    %v9934 = vsub.f32 %v9807, 1.0
    %v9935 = vsub.f32 %v9809, 1.0
    %v9936 = vsub.f32 %v9811, 1.0
    %v9937 = vsub.f32 %v9813, 1.0
    %v9938 = vsub.f32 %v9815, 1.0
    %v9939 = vsub.f32 %v9817, 1.0
    %v9940 = vsub.f32 %v9819, 1.0
    %v9941 = vsub.f32 %v9821, 1.0
    %v9942 = vsub.f32 %v9823, 1.0
    %v9943 = vsub.f32 %v9825, 1.0
    %v9944 = vsub.f32 %v9827, 1.0
    %v9945 = vsub.f32 %v9829, 1.0
    %v9946 = vsub.f32 %v9831, 1.0
    %v9947 = vsub.f32 %v9833, 1.0
    %v9948 = vsub.f32 %v9835, 1.0
    %v9949 = vsub.f32 %v9837, 1.0
    %v9950 = vsub.f32 %v9839, 1.0
    %v9951 = vsub.f32 %v9841, 1.0
    %v9952 = vsub.f32 %v9843, 1.0
    %v9953 = vsub.f32 %v9845, 1.0
    %v9954 = vsub.f32 %v9847, 1.0
    %v9955 = vsub.f32 %v9849, 1.0
    %v9956 = vsub.f32 %v9851, 1.0
    %v9957 = vsub.f32 %v9853, 1.0
    %v9958 = vsub.f32 %v9855, 1.0
    %v9959 = vsub.f32 %v9857, 1.0
    %v9960 = vsub.f32 %v9859, 1.0
    %v9961 = vsub.f32 %v9861, 1.0
    %v9962 = vsub.f32 %v9863, 1.0
    %v9963 = vsub.f32 %v9865, 1.0
    %v9964 = vsub.f32 %v9867, 1.0
    %v9965 = vsub.f32 %v9869, 1.0
    %v9966 = vsub.f32 %v9871, 1.0
    %v9967 = vsub.f32 %v9873, 1.0
    %v9968 = vsub.f32 %v9875, 1.0
    %v9969 = vsub.f32 %v9877, 1.0
    %v9970 = vsub.f32 %v9879, 1.0
    %v9971 = vsub.f32 %v9881, 1.0
    %v9972 = vsub.f32 %v9883, 1.0
    %v9973 = vsub.f32 %v9885, 1.0
    %v9974 = vsub.f32 %v9887, 1.0
    %v9975 = vsub.f32 %v9889, 1.0
    %v9976 = vsub.f32 %v9891, 1.0
    %v9977 = vsub.f32 %v9893, 1.0
    %v9978 = vsub.f32 %v9895, 1.0
    %v9979 = vsub.f32 %v9897, 1.0
    %v9980 = vsub.f32 %v9899, 1.0
    %v9981 = vsub.f32 %v9901, 1.0
    %v9982 = vsub.f32 %v9903, 1.0
    %v9983 = vsub.f32 %v9905, 1.0
    %v9984 = vsub.f32 %v9907, 1.0
    %v9985 = vsub.f32 %v9909, 1.0
    %v9986 = vsub.f32 %v9911, 1.0
    %v9987 = vsub.f32 %v9913, 1.0
    %v9988 = vsub.f32 %v9915, 1.0
    %v9989 = vsub.f32 %v9917, 1.0
    %v9990 = vsub.f32 %v9919, 1.0
    %v9991 = vsub.f32 %v9921, 1.0
    %v9992 = vsub.f32 %v9923, 1.0
    %v9993 = vsub.f32 %v9925, 1.0
    %v9994 = vsub.f32 %v9927, 1.0
    %v9995 = vsub.f32 %v9929, 1.0
    %v9996 = vsub.f32 %v9931, 1.0
    %v9997 = vsub.f32 %v9933, 1.0
    %v9998 = vsel %vm9678, %v9360, %v9934
    %v9999 = vsel %vm9679, %v9365, %v9935
    %v10000 = vsel %vm9680, %v9370, %v9936
    %v10001 = vsel %vm9681, %v9375, %v9937
    %v10002 = vsel %vm9682, %v9380, %v9938
    %v10003 = vsel %vm9683, %v9385, %v9939
    %v10004 = vsel %vm9684, %v9390, %v9940
    %v10005 = vsel %vm9685, %v9395, %v9941
    %v10006 = vsel %vm9686, %v9400, %v9942
    %v10007 = vsel %vm9687, %v9405, %v9943
    %v10008 = vsel %vm9688, %v9410, %v9944
    %v10009 = vsel %vm9689, %v9415, %v9945
    %v10010 = vsel %vm9690, %v9420, %v9946
    %v10011 = vsel %vm9691, %v9425, %v9947
    %v10012 = vsel %vm9692, %v9430, %v9948
    %v10013 = vsel %vm9693, %v9435, %v9949
    %v10014 = vsel %vm9694, %v9440, %v9950
    %v10015 = vsel %vm9695, %v9445, %v9951
    %v10016 = vsel %vm9696, %v9450, %v9952
    %v10017 = vsel %vm9697, %v9455, %v9953
    %v10018 = vsel %vm9698, %v9460, %v9954
    %v10019 = vsel %vm9699, %v9465, %v9955
    %v10020 = vsel %vm9700, %v9470, %v9956
    %v10021 = vsel %vm9701, %v9475, %v9957
    %v10022 = vsel %vm9702, %v9480, %v9958
    %v10023 = vsel %vm9703, %v9485, %v9959
    %v10024 = vsel %vm9704, %v9490, %v9960
    %v10025 = vsel %vm9705, %v9495, %v9961
    %v10026 = vsel %vm9706, %v9500, %v9962
    %v10027 = vsel %vm9707, %v9505, %v9963
    %v10028 = vsel %vm9708, %v9510, %v9964
    %v10029 = vsel %vm9709, %v9515, %v9965
    %v10030 = vsel %vm9710, %v9520, %v9966
    %v10031 = vsel %vm9711, %v9525, %v9967
    %v10032 = vsel %vm9712, %v9530, %v9968
    %v10033 = vsel %vm9713, %v9535, %v9969
    %v10034 = vsel %vm9714, %v9540, %v9970
    %v10035 = vsel %vm9715, %v9545, %v9971
    %v10036 = vsel %vm9716, %v9550, %v9972
    %v10037 = vsel %vm9717, %v9555, %v9973
    %v10038 = vsel %vm9718, %v9560, %v9974
    %v10039 = vsel %vm9719, %v9565, %v9975
    %v10040 = vsel %vm9720, %v9570, %v9976
    %v10041 = vsel %vm9721, %v9575, %v9977
    %v10042 = vsel %vm9722, %v9580, %v9978
    %v10043 = vsel %vm9723, %v9585, %v9979
    %v10044 = vsel %vm9724, %v9590, %v9980
    %v10045 = vsel %vm9725, %v9595, %v9981
    %v10046 = vsel %vm9726, %v9600, %v9982
    %v10047 = vsel %vm9727, %v9605, %v9983
    %v10048 = vsel %vm9728, %v9610, %v9984
    %v10049 = vsel %vm9729, %v9615, %v9985
    %v10050 = vsel %vm9730, %v9620, %v9986
    %v10051 = vsel %vm9731, %v9625, %v9987
    %v10052 = vsel %vm9732, %v9630, %v9988
    %v10053 = vsel %vm9733, %v9635, %v9989
    %v10054 = vsel %vm9734, %v9640, %v9990
    %v10055 = vsel %vm9735, %v9645, %v9991
    %v10056 = vsel %vm9736, %v9650, %v9992
    %v10057 = vsel %vm9737, %v9655, %v9993
    %v10058 = vsel %vm9738, %v9660, %v9994
    %v10059 = vsel %vm9739, %v9665, %v9995
    %v10060 = vsel %vm9740, %v9670, %v9996
    %v10061 = vsel %vm9741, %v9675, %v9997
    %vm10062 = vcmask 523264
    %10063 = vst.msk [vmem:[#allocation2] sm:$0xff] %vm10062, %v9998
    %10064 = vst.msk [vmem:[#allocation2 + $0x8] sm:$0xff] %vm10062, %v9999
    %10065 = vst.msk [vmem:[#allocation2 + $0x10] sm:$0xff] %vm10062, %v10000
    %10066 = vst.msk [vmem:[#allocation2 + $0x18] sm:$0xff] %vm10062, %v10001
    %10067 = vst.msk [vmem:[#allocation2 + $0x20] sm:$0xff] %vm10062, %v10002
    %10068 = vst.msk [vmem:[#allocation2 + $0x28] sm:$0xff] %vm10062, %v10003
    %10069 = vst.msk [vmem:[#allocation2 + $0x30] sm:$0xff] %vm10062, %v10004
    %10070 = vst.msk [vmem:[#allocation2 + $0x38] sm:$0xff] %vm10062, %v10005
    %10071 = vst.msk [vmem:[#allocation2 + $0x40] sm:$0xff] %vm10062, %v10006
    %10072 = vst.msk [vmem:[#allocation2 + $0x48] sm:$0xff] %vm10062, %v10007
    %10073 = vst.msk [vmem:[#allocation2 + $0x50] sm:$0xff] %vm10062, %v10008
    %10074 = vst.msk [vmem:[#allocation2 + $0x58] sm:$0xff] %vm10062, %v10009
    %10075 = vst.msk [vmem:[#allocation2 + $0x60] sm:$0xff] %vm10062, %v10010
    %10076 = vst.msk [vmem:[#allocation2 + $0x68] sm:$0xff] %vm10062, %v10011
    %10077 = vst.msk [vmem:[#allocation2 + $0x70] sm:$0xff] %vm10062, %v10012
    %10078 = vst.msk [vmem:[#allocation2 + $0x78] sm:$0xff] %vm10062, %v10013
    %10079 = vst.msk [vmem:[#allocation2 + $0x80] sm:$0xff] %vm10062, %v10014
    %10080 = vst.msk [vmem:[#allocation2 + $0x88] sm:$0xff] %vm10062, %v10015
    %10081 = vst.msk [vmem:[#allocation2 + $0x90] sm:$0xff] %vm10062, %v10016
    %10082 = vst.msk [vmem:[#allocation2 + $0x98] sm:$0xff] %vm10062, %v10017
    %10083 = vst.msk [vmem:[#allocation2 + $0xa0] sm:$0xff] %vm10062, %v10018
    %10084 = vst.msk [vmem:[#allocation2 + $0xa8] sm:$0xff] %vm10062, %v10019
    %10085 = vst.msk [vmem:[#allocation2 + $0xb0] sm:$0xff] %vm10062, %v10020
    %10086 = vst.msk [vmem:[#allocation2 + $0xb8] sm:$0xff] %vm10062, %v10021
    %10087 = vst.msk [vmem:[#allocation2 + $0xc0] sm:$0xff] %vm10062, %v10022
    %10088 = vst.msk [vmem:[#allocation2 + $0xc8] sm:$0xff] %vm10062, %v10023
    %10089 = vst.msk [vmem:[#allocation2 + $0xd0] sm:$0xff] %vm10062, %v10024
    %10090 = vst.msk [vmem:[#allocation2 + $0xd8] sm:$0xff] %vm10062, %v10025
    %10091 = vst.msk [vmem:[#allocation2 + $0xe0] sm:$0xff] %vm10062, %v10026
    %10092 = vst.msk [vmem:[#allocation2 + $0xe8] sm:$0xff] %vm10062, %v10027
    %10093 = vst.msk [vmem:[#allocation2 + $0xf0] sm:$0xff] %vm10062, %v10028
    %10094 = vst.msk [vmem:[#allocation2 + $0xf8] sm:$0xff] %vm10062, %v10029
    %10127 = vrot.lane.b32.xlu0 %v10030, 64
    %v10128 = vpop.permute.xlu0 %10127
    %10129 = vrot.lane.b32.xlu0 %v10031, 64
    %v10130 = vpop.permute.xlu0 %10129
    %10131 = vrot.lane.b32.xlu0 %v10032, 64
    %v10132 = vpop.permute.xlu0 %10131
    %10133 = vrot.lane.b32.xlu0 %v10033, 64
    %v10134 = vpop.permute.xlu0 %10133
    %10135 = vrot.lane.b32.xlu0 %v10034, 64
    %v10136 = vpop.permute.xlu0 %10135
    %10137 = vrot.lane.b32.xlu0 %v10035, 64
    %v10138 = vpop.permute.xlu0 %10137
    %10139 = vrot.lane.b32.xlu0 %v10036, 64
    %v10140 = vpop.permute.xlu0 %10139
    %10141 = vrot.lane.b32.xlu0 %v10037, 64
    %v10142 = vpop.permute.xlu0 %10141
    %10143 = vrot.lane.b32.xlu0 %v10038, 64
    %v10144 = vpop.permute.xlu0 %10143
    %10145 = vrot.lane.b32.xlu0 %v10039, 64
    %v10146 = vpop.permute.xlu0 %10145
    %10147 = vrot.lane.b32.xlu0 %v10040, 64
    %v10148 = vpop.permute.xlu0 %10147
    %10149 = vrot.lane.b32.xlu0 %v10041, 64
    %v10150 = vpop.permute.xlu0 %10149
    %10151 = vrot.lane.b32.xlu0 %v10042, 64
    %v10152 = vpop.permute.xlu0 %10151
    %10153 = vrot.lane.b32.xlu0 %v10043, 64
    %v10154 = vpop.permute.xlu0 %10153
    %10155 = vrot.lane.b32.xlu0 %v10044, 64
    %v10156 = vpop.permute.xlu0 %10155
    %10157 = vrot.lane.b32.xlu0 %v10045, 64
    %v10158 = vpop.permute.xlu0 %10157
    %10159 = vrot.lane.b32.xlu0 %v10046, 64
    %v10160 = vpop.permute.xlu0 %10159
    %10161 = vrot.lane.b32.xlu0 %v10047, 64
    %v10162 = vpop.permute.xlu0 %10161
    %10163 = vrot.lane.b32.xlu0 %v10048, 64
    %v10164 = vpop.permute.xlu0 %10163
    %10165 = vrot.lane.b32.xlu0 %v10049, 64
    %v10166 = vpop.permute.xlu0 %10165
    %10167 = vrot.lane.b32.xlu0 %v10050, 64
    %v10168 = vpop.permute.xlu0 %10167
    %10169 = vrot.lane.b32.xlu0 %v10051, 64
    %v10170 = vpop.permute.xlu0 %10169
    %10171 = vrot.lane.b32.xlu0 %v10052, 64
    %v10172 = vpop.permute.xlu0 %10171
    %10173 = vrot.lane.b32.xlu0 %v10053, 64
    %v10174 = vpop.permute.xlu0 %10173
    %10175 = vrot.lane.b32.xlu0 %v10054, 64
    %v10176 = vpop.permute.xlu0 %10175
    %10177 = vrot.lane.b32.xlu0 %v10055, 64
    %v10178 = vpop.permute.xlu0 %10177
    %10179 = vrot.lane.b32.xlu0 %v10056, 64
    %v10180 = vpop.permute.xlu0 %10179
    %10181 = vrot.lane.b32.xlu0 %v10057, 64
    %v10182 = vpop.permute.xlu0 %10181
    %10183 = vrot.lane.b32.xlu0 %v10058, 64
    %v10184 = vpop.permute.xlu0 %10183
    %10185 = vrot.lane.b32.xlu0 %v10059, 64
    %v10186 = vpop.permute.xlu0 %10185
    %10187 = vrot.lane.b32.xlu0 %v10060, 64
    %v10188 = vpop.permute.xlu0 %10187
    %10189 = vrot.lane.b32.xlu0 %v10061, 64
    %v10190 = vpop.permute.xlu0 %10189
    %vm10223 = vcmask 1048064
    %10224 = vst.msk [vmem:[#allocation2] sm:$0xff] %vm10223, %v10128
    %10225 = vst.msk [vmem:[#allocation2 + $0x8] sm:$0xff] %vm10223, %v10130
    %10226 = vst.msk [vmem:[#allocation2 + $0x10] sm:$0xff] %vm10223, %v10132
    %10227 = vst.msk [vmem:[#allocation2 + $0x18] sm:$0xff] %vm10223, %v10134
    %10228 = vst.msk [vmem:[#allocation2 + $0x20] sm:$0xff] %vm10223, %v10136
    %10229 = vst.msk [vmem:[#allocation2 + $0x28] sm:$0xff] %vm10223, %v10138
    %10230 = vst.msk [vmem:[#allocation2 + $0x30] sm:$0xff] %vm10223, %v10140
    %10231 = vst.msk [vmem:[#allocation2 + $0x38] sm:$0xff] %vm10223, %v10142
    %10232 = vst.msk [vmem:[#allocation2 + $0x40] sm:$0xff] %vm10223, %v10144
    %10233 = vst.msk [vmem:[#allocation2 + $0x48] sm:$0xff] %vm10223, %v10146
    %10234 = vst.msk [vmem:[#allocation2 + $0x50] sm:$0xff] %vm10223, %v10148
    %10235 = vst.msk [vmem:[#allocation2 + $0x58] sm:$0xff] %vm10223, %v10150
    %10236 = vst.msk [vmem:[#allocation2 + $0x60] sm:$0xff] %vm10223, %v10152
    %10237 = vst.msk [vmem:[#allocation2 + $0x68] sm:$0xff] %vm10223, %v10154
    %10238 = vst.msk [vmem:[#allocation2 + $0x70] sm:$0xff] %vm10223, %v10156
    %10239 = vst.msk [vmem:[#allocation2 + $0x78] sm:$0xff] %vm10223, %v10158
    %10240 = vst.msk [vmem:[#allocation2 + $0x80] sm:$0xff] %vm10223, %v10160
    %10241 = vst.msk [vmem:[#allocation2 + $0x88] sm:$0xff] %vm10223, %v10162
    %10242 = vst.msk [vmem:[#allocation2 + $0x90] sm:$0xff] %vm10223, %v10164
    %10243 = vst.msk [vmem:[#allocation2 + $0x98] sm:$0xff] %vm10223, %v10166
    %10244 = vst.msk [vmem:[#allocation2 + $0xa0] sm:$0xff] %vm10223, %v10168
    %10245 = vst.msk [vmem:[#allocation2 + $0xa8] sm:$0xff] %vm10223, %v10170
    %10246 = vst.msk [vmem:[#allocation2 + $0xb0] sm:$0xff] %vm10223, %v10172
    %10247 = vst.msk [vmem:[#allocation2 + $0xb8] sm:$0xff] %vm10223, %v10174
    %10248 = vst.msk [vmem:[#allocation2 + $0xc0] sm:$0xff] %vm10223, %v10176
    %10249 = vst.msk [vmem:[#allocation2 + $0xc8] sm:$0xff] %vm10223, %v10178
    %10250 = vst.msk [vmem:[#allocation2 + $0xd0] sm:$0xff] %vm10223, %v10180
    %10251 = vst.msk [vmem:[#allocation2 + $0xd8] sm:$0xff] %vm10223, %v10182
    %10252 = vst.msk [vmem:[#allocation2 + $0xe0] sm:$0xff] %vm10223, %v10184
    %10253 = vst.msk [vmem:[#allocation2 + $0xe8] sm:$0xff] %vm10223, %v10186
    %10254 = vst.msk [vmem:[#allocation2 + $0xf0] sm:$0xff] %vm10223, %v10188
    %10255 = vst.msk [vmem:[#allocation2 + $0xf8] sm:$0xff] %vm10223, %v10190
    %v10256 = vld [vmem:[#allocation2] sm:$0xff]
    %v10257 = vld [vmem:[#allocation2 + $0x8] sm:$0xff]
    %v10258 = vld [vmem:[#allocation2 + $0x10] sm:$0xff]
    %v10259 = vld [vmem:[#allocation2 + $0x18] sm:$0xff]
    %v10260 = vld [vmem:[#allocation2 + $0x20] sm:$0xff]
    %v10261 = vld [vmem:[#allocation2 + $0x28] sm:$0xff]
    %v10262 = vld [vmem:[#allocation2 + $0x30] sm:$0xff]
    %v10263 = vld [vmem:[#allocation2 + $0x38] sm:$0xff]
    %v10264 = vld [vmem:[#allocation2 + $0x40] sm:$0xff]
    %v10265 = vld [vmem:[#allocation2 + $0x48] sm:$0xff]
    %v10266 = vld [vmem:[#allocation2 + $0x50] sm:$0xff]
    %v10267 = vld [vmem:[#allocation2 + $0x58] sm:$0xff]
    %v10268 = vld [vmem:[#allocation2 + $0x60] sm:$0xff]
    %v10269 = vld [vmem:[#allocation2 + $0x68] sm:$0xff]
    %v10270 = vld [vmem:[#allocation2 + $0x70] sm:$0xff]
    %v10271 = vld [vmem:[#allocation2 + $0x78] sm:$0xff]
    %v10272 = vld [vmem:[#allocation2 + $0x80] sm:$0xff]
    %v10273 = vld [vmem:[#allocation2 + $0x88] sm:$0xff]
    %v10274 = vld [vmem:[#allocation2 + $0x90] sm:$0xff]
    %v10275 = vld [vmem:[#allocation2 + $0x98] sm:$0xff]
    %v10276 = vld [vmem:[#allocation2 + $0xa0] sm:$0xff]
    %v10277 = vld [vmem:[#allocation2 + $0xa8] sm:$0xff]
    %v10278 = vld [vmem:[#allocation2 + $0xb0] sm:$0xff]
    %v10279 = vld [vmem:[#allocation2 + $0xb8] sm:$0xff]
    %v10280 = vld [vmem:[#allocation2 + $0xc0] sm:$0xff]
    %v10281 = vld [vmem:[#allocation2 + $0xc8] sm:$0xff]
    %v10282 = vld [vmem:[#allocation2 + $0xd0] sm:$0xff]
    %v10283 = vld [vmem:[#allocation2 + $0xd8] sm:$0xff]
    %v10284 = vld [vmem:[#allocation2 + $0xe0] sm:$0xff]
    %v10285 = vld [vmem:[#allocation2 + $0xe8] sm:$0xff]
    %v10286 = vld [vmem:[#allocation2 + $0xf0] sm:$0xff]
    %v10287 = vld [vmem:[#allocation2 + $0xf8] sm:$0xff]
    %v10288 = vld [vmem:[#allocation21] sm:$0xff]
    %v10289 = vld [vmem:[#allocation21 + $0x8] sm:$0xff]
    %v10290 = vld [vmem:[#allocation21 + $0x10] sm:$0xff]
    %v10291 = vld [vmem:[#allocation21 + $0x18] sm:$0xff]
    %v10292 = vld [vmem:[#allocation21 + $0x20] sm:$0xff]
    %v10293 = vld [vmem:[#allocation21 + $0x28] sm:$0xff]
    %v10294 = vld [vmem:[#allocation21 + $0x30] sm:$0xff]
    %v10295 = vld [vmem:[#allocation21 + $0x38] sm:$0xff]
    %v10296 = vld [vmem:[#allocation21 + $0x40] sm:$0xff]
    %v10297 = vld [vmem:[#allocation21 + $0x48] sm:$0xff]
    %v10298 = vld [vmem:[#allocation21 + $0x50] sm:$0xff]
    %v10299 = vld [vmem:[#allocation21 + $0x58] sm:$0xff]
    %v10300 = vld [vmem:[#allocation21 + $0x60] sm:$0xff]
    %v10301 = vld [vmem:[#allocation21 + $0x68] sm:$0xff]
    %v10302 = vld [vmem:[#allocation21 + $0x70] sm:$0xff]
    %v10303 = vld [vmem:[#allocation21 + $0x78] sm:$0xff]
    %v10304 = vld [vmem:[#allocation21 + $0x80] sm:$0xff]
    %v10305 = vld [vmem:[#allocation21 + $0x88] sm:$0xff]
    %v10306 = vld [vmem:[#allocation21 + $0x90] sm:$0xff]
    %v10307 = vld [vmem:[#allocation21 + $0x98] sm:$0xff]
    %v10308 = vld [vmem:[#allocation21 + $0xa0] sm:$0xff]
    %v10309 = vld [vmem:[#allocation21 + $0xa8] sm:$0xff]
    %v10310 = vld [vmem:[#allocation21 + $0xb0] sm:$0xff]
    %v10311 = vld [vmem:[#allocation21 + $0xb8] sm:$0xff]
    %v10312 = vld [vmem:[#allocation21 + $0xc0] sm:$0xff]
    %v10313 = vld [vmem:[#allocation21 + $0xc8] sm:$0xff]
    %v10314 = vld [vmem:[#allocation21 + $0xd0] sm:$0xff]
    %v10315 = vld [vmem:[#allocation21 + $0xd8] sm:$0xff]
    %v10316 = vld [vmem:[#allocation21 + $0xe0] sm:$0xff]
    %v10317 = vld [vmem:[#allocation21 + $0xe8] sm:$0xff]
    %v10318 = vld [vmem:[#allocation21 + $0xf0] sm:$0xff]
    %v10319 = vld [vmem:[#allocation21 + $0xf8] sm:$0xff]
    %v10320 = vld [vmem:[#allocation21 + $0x100] sm:$0xff]
    %v10321 = vld [vmem:[#allocation21 + $0x108] sm:$0xff]
    %v10322 = vld [vmem:[#allocation21 + $0x110] sm:$0xff]
    %v10323 = vld [vmem:[#allocation21 + $0x118] sm:$0xff]
    %v10324 = vld [vmem:[#allocation21 + $0x120] sm:$0xff]
    %v10325 = vld [vmem:[#allocation21 + $0x128] sm:$0xff]
    %v10326 = vld [vmem:[#allocation21 + $0x130] sm:$0xff]
    %v10327 = vld [vmem:[#allocation21 + $0x138] sm:$0xff]
    %v10328 = vld [vmem:[#allocation21 + $0x140] sm:$0xff]
    %v10329 = vld [vmem:[#allocation21 + $0x148] sm:$0xff]
    %v10330 = vld [vmem:[#allocation21 + $0x150] sm:$0xff]
    %v10331 = vld [vmem:[#allocation21 + $0x158] sm:$0xff]
    %v10332 = vld [vmem:[#allocation21 + $0x160] sm:$0xff]
    %v10333 = vld [vmem:[#allocation21 + $0x168] sm:$0xff]
    %v10334 = vld [vmem:[#allocation21 + $0x170] sm:$0xff]
    %v10335 = vld [vmem:[#allocation21 + $0x178] sm:$0xff]
    %v10336 = vld [vmem:[#allocation21 + $0x180] sm:$0xff]
    %v10337 = vld [vmem:[#allocation21 + $0x188] sm:$0xff]
    %v10338 = vld [vmem:[#allocation21 + $0x190] sm:$0xff]
    %v10339 = vld [vmem:[#allocation21 + $0x198] sm:$0xff]
    %v10340 = vld [vmem:[#allocation21 + $0x1a0] sm:$0xff]
    %v10341 = vld [vmem:[#allocation21 + $0x1a8] sm:$0xff]
    %v10342 = vld [vmem:[#allocation21 + $0x1b0] sm:$0xff]
    %v10343 = vld [vmem:[#allocation21 + $0x1b8] sm:$0xff]
    %v10344 = vld [vmem:[#allocation21 + $0x1c0] sm:$0xff]
    %v10345 = vld [vmem:[#allocation21 + $0x1c8] sm:$0xff]
    %v10346 = vld [vmem:[#allocation21 + $0x1d0] sm:$0xff]
    %v10347 = vld [vmem:[#allocation21 + $0x1d8] sm:$0xff]
    %v10348 = vld [vmem:[#allocation21 + $0x1e0] sm:$0xff]
    %v10349 = vld [vmem:[#allocation21 + $0x1e8] sm:$0xff]
    %v10350 = vld [vmem:[#allocation21 + $0x1f0] sm:$0xff]
    %v10351 = vld [vmem:[#allocation21 + $0x1f8] sm:$0xff]
    %v10352 = vld [vmem:[%s14] sm:$0xff]
    %v10353 = vld [vmem:[%s14 + $0x8] sm:$0xff]
    %v10354 = vld [vmem:[%s14 + $0x10] sm:$0xff]
    %v10355 = vld [vmem:[%s14 + $0x18] sm:$0xff]
    %v10356 = vld [vmem:[%s14 + $0x20] sm:$0xff]
    %v10357 = vld [vmem:[%s14 + $0x28] sm:$0xff]
    %v10358 = vld [vmem:[%s14 + $0x30] sm:$0xff]
    %v10359 = vld [vmem:[%s14 + $0x38] sm:$0xff]
    %v10360 = vld [vmem:[%s14 + $0x40] sm:$0xff]
    %v10361 = vld [vmem:[%s14 + $0x48] sm:$0xff]
    %v10362 = vld [vmem:[%s14 + $0x50] sm:$0xff]
    %v10363 = vld [vmem:[%s14 + $0x58] sm:$0xff]
    %v10364 = vld [vmem:[%s14 + $0x60] sm:$0xff]
    %v10365 = vld [vmem:[%s14 + $0x68] sm:$0xff]
    %v10366 = vld [vmem:[%s14 + $0x70] sm:$0xff]
    %v10367 = vld [vmem:[%s14 + $0x78] sm:$0xff]
    %v10368 = vld [vmem:[%s14 + $0x80] sm:$0xff]
    %v10369 = vld [vmem:[%s14 + $0x88] sm:$0xff]
    %v10370 = vld [vmem:[%s14 + $0x90] sm:$0xff]
    %v10371 = vld [vmem:[%s14 + $0x98] sm:$0xff]
    %v10372 = vld [vmem:[%s14 + $0xa0] sm:$0xff]
    %v10373 = vld [vmem:[%s14 + $0xa8] sm:$0xff]
    %v10374 = vld [vmem:[%s14 + $0xb0] sm:$0xff]
    %v10375 = vld [vmem:[%s14 + $0xb8] sm:$0xff]
    %v10376 = vld [vmem:[%s14 + $0xc0] sm:$0xff]
    %v10377 = vld [vmem:[%s14 + $0xc8] sm:$0xff]
    %v10378 = vld [vmem:[%s14 + $0xd0] sm:$0xff]
    %v10379 = vld [vmem:[%s14 + $0xd8] sm:$0xff]
    %v10380 = vld [vmem:[%s14 + $0xe0] sm:$0xff]
    %v10381 = vld [vmem:[%s14 + $0xe8] sm:$0xff]
    %v10382 = vld [vmem:[%s14 + $0xf0] sm:$0xff]
    %v10383 = vld [vmem:[%s14 + $0xf8] sm:$0xff]
    %10385 = vset.pattern.permute.xlu0 0
    %10386 = vperm.xlu0 %10385, %v10352
    %v10387 = vpop.permute.xlu0 %10386
    %10390 = vset.pattern.permute.xlu0 0
    %10391 = vperm.xlu0 %10390, %v10353
    %v10392 = vpop.permute.xlu0 %10391
    %10395 = vset.pattern.permute.xlu0 0
    %10396 = vperm.xlu0 %10395, %v10354
    %v10397 = vpop.permute.xlu0 %10396
    %10400 = vset.pattern.permute.xlu0 0
    %10401 = vperm.xlu0 %10400, %v10355
    %v10402 = vpop.permute.xlu0 %10401
    %10405 = vset.pattern.permute.xlu0 0
    %10406 = vperm.xlu0 %10405, %v10356
    %v10407 = vpop.permute.xlu0 %10406
    %10410 = vset.pattern.permute.xlu0 0
    %10411 = vperm.xlu0 %10410, %v10357
    %v10412 = vpop.permute.xlu0 %10411
    %10415 = vset.pattern.permute.xlu0 0
    %10416 = vperm.xlu0 %10415, %v10358
    %v10417 = vpop.permute.xlu0 %10416
    %10420 = vset.pattern.permute.xlu0 0
    %10421 = vperm.xlu0 %10420, %v10359
    %v10422 = vpop.permute.xlu0 %10421
    %10425 = vset.pattern.permute.xlu0 0
    %10426 = vperm.xlu0 %10425, %v10360
    %v10427 = vpop.permute.xlu0 %10426
    %10430 = vset.pattern.permute.xlu0 0
    %10431 = vperm.xlu0 %10430, %v10361
    %v10432 = vpop.permute.xlu0 %10431
    %10435 = vset.pattern.permute.xlu0 0
    %10436 = vperm.xlu0 %10435, %v10362
    %v10437 = vpop.permute.xlu0 %10436
    %10440 = vset.pattern.permute.xlu0 0
    %10441 = vperm.xlu0 %10440, %v10363
    %v10442 = vpop.permute.xlu0 %10441
    %10445 = vset.pattern.permute.xlu0 0
    %10446 = vperm.xlu0 %10445, %v10364
    %v10447 = vpop.permute.xlu0 %10446
    %10450 = vset.pattern.permute.xlu0 0
    %10451 = vperm.xlu0 %10450, %v10365
    %v10452 = vpop.permute.xlu0 %10451
    %10455 = vset.pattern.permute.xlu0 0
    %10456 = vperm.xlu0 %10455, %v10366
    %v10457 = vpop.permute.xlu0 %10456
    %10460 = vset.pattern.permute.xlu0 0
    %10461 = vperm.xlu0 %10460, %v10367
    %v10462 = vpop.permute.xlu0 %10461
    %10465 = vset.pattern.permute.xlu0 0
    %10466 = vperm.xlu0 %10465, %v10368
    %v10467 = vpop.permute.xlu0 %10466
    %10470 = vset.pattern.permute.xlu0 0
    %10471 = vperm.xlu0 %10470, %v10369
    %v10472 = vpop.permute.xlu0 %10471
    %10475 = vset.pattern.permute.xlu0 0
    %10476 = vperm.xlu0 %10475, %v10370
    %v10477 = vpop.permute.xlu0 %10476
    %10480 = vset.pattern.permute.xlu0 0
    %10481 = vperm.xlu0 %10480, %v10371
    %v10482 = vpop.permute.xlu0 %10481
    %10485 = vset.pattern.permute.xlu0 0
    %10486 = vperm.xlu0 %10485, %v10372
    %v10487 = vpop.permute.xlu0 %10486
    %10490 = vset.pattern.permute.xlu0 0
    %10491 = vperm.xlu0 %10490, %v10373
    %v10492 = vpop.permute.xlu0 %10491
    %10495 = vset.pattern.permute.xlu0 0
    %10496 = vperm.xlu0 %10495, %v10374
    %v10497 = vpop.permute.xlu0 %10496
    %10500 = vset.pattern.permute.xlu0 0
    %10501 = vperm.xlu0 %10500, %v10375
    %v10502 = vpop.permute.xlu0 %10501
    %10505 = vset.pattern.permute.xlu0 0
    %10506 = vperm.xlu0 %10505, %v10376
    %v10507 = vpop.permute.xlu0 %10506
    %10510 = vset.pattern.permute.xlu0 0
    %10511 = vperm.xlu0 %10510, %v10377
    %v10512 = vpop.permute.xlu0 %10511
    %10515 = vset.pattern.permute.xlu0 0
    %10516 = vperm.xlu0 %10515, %v10378
    %v10517 = vpop.permute.xlu0 %10516
    %10520 = vset.pattern.permute.xlu0 0
    %10521 = vperm.xlu0 %10520, %v10379
    %v10522 = vpop.permute.xlu0 %10521
    %10525 = vset.pattern.permute.xlu0 0
    %10526 = vperm.xlu0 %10525, %v10380
    %v10527 = vpop.permute.xlu0 %10526
    %10530 = vset.pattern.permute.xlu0 0
    %10531 = vperm.xlu0 %10530, %v10381
    %v10532 = vpop.permute.xlu0 %10531
    %10535 = vset.pattern.permute.xlu0 0
    %10536 = vperm.xlu0 %10535, %v10382
    %v10537 = vpop.permute.xlu0 %10536
    %10540 = vset.pattern.permute.xlu0 0
    %10541 = vperm.xlu0 %10540, %v10383
    %v10542 = vpop.permute.xlu0 %10541
    %10544 = vmatprep.subr.mxu0 0.0
    %10545 = vmatpush1.msra.mxu0 %v10271
    %10546 = vmatprep.subr.mxu0 0.0
    %10547 = vmatpush1.msra.mxu0 %v10270
    %10548 = vmatprep.subr.mxu0 0.0
    %10549 = vmatpush1.msra.mxu0 %v10269
    %10550 = vmatprep.subr.mxu0 0.0
    %10551 = vmatpush1.msra.mxu0 %v10268
    %10552 = vmatprep.subr.mxu0 0.0
    %10553 = vmatpush1.msra.mxu0 %v10267
    %10554 = vmatprep.subr.mxu0 0.0
    %10555 = vmatpush1.msra.mxu0 %v10266
    %10556 = vmatprep.subr.mxu0 0.0
    %10557 = vmatpush1.msra.mxu0 %v10265
    %10558 = vmatprep.subr.mxu0 0.0
    %10559 = vmatpush1.msra.mxu0 %v10264
    %10560 = vmatprep.subr.mxu0 0.0
    %10561 = vmatpush1.msra.mxu0 %v10263
    %10562 = vmatprep.subr.mxu0 0.0
    %10563 = vmatpush1.msra.mxu0 %v10262
    %10564 = vmatprep.subr.mxu0 0.0
    %10565 = vmatpush1.msra.mxu0 %v10261
    %10566 = vmatprep.subr.mxu0 0.0
    %10567 = vmatpush1.msra.mxu0 %v10260
    %10568 = vmatprep.subr.mxu0 0.0
    %10569 = vmatpush1.msra.mxu0 %v10259
    %10570 = vmatprep.subr.mxu0 0.0
    %10571 = vmatpush1.msra.mxu0 %v10258
    %10572 = vmatprep.subr.mxu0 0.0
    %10573 = vmatpush1.msra.mxu0 %v10257
    %10574 = vmatprep.subr.mxu0 0.0
    %10575 = vmatpush1.msra.mxu0 %v10256
    %10576 = vmatprep.subr.mxu0 0.0
    %10577 = vmatpush2.msra.mxu0 %v10287
    %10578 = vmatprep.subr.mxu0 0.0
    %10579 = vmatpush2.msra.mxu0 %v10286
    %10580 = vmatprep.subr.mxu0 0.0
    %10581 = vmatpush2.msra.mxu0 %v10285
    %10582 = vmatprep.subr.mxu0 0.0
    %10583 = vmatpush2.msra.mxu0 %v10284
    %10584 = vmatprep.subr.mxu0 0.0
    %10585 = vmatpush2.msra.mxu0 %v10283
    %10586 = vmatprep.subr.mxu0 0.0
    %10587 = vmatpush2.msra.mxu0 %v10282
    %10588 = vmatprep.subr.mxu0 0.0
    %10589 = vmatpush2.msra.mxu0 %v10281
    %10590 = vmatprep.subr.mxu0 0.0
    %10591 = vmatpush2.msra.mxu0 %v10280
    %10592 = vmatprep.subr.mxu0 0.0
    %10593 = vmatpush2.msra.mxu0 %v10279
    %10594 = vmatprep.subr.mxu0 0.0
    %10595 = vmatpush2.msra.mxu0 %v10278
    %10596 = vmatprep.subr.mxu0 0.0
    %10597 = vmatpush2.msra.mxu0 %v10277
    %10598 = vmatprep.subr.mxu0 0.0
    %10599 = vmatpush2.msra.mxu0 %v10276
    %10600 = vmatprep.subr.mxu0 0.0
    %10601 = vmatpush2.msra.mxu0 %v10275
    %10602 = vmatprep.subr.mxu0 0.0
    %10603 = vmatpush2.msra.mxu0 %v10274
    %10604 = vmatprep.subr.mxu0 0.0
    %10605 = vmatpush2.msra.mxu0 %v10273
    %10606 = vmatprep.subr.mxu0 0.0
    %10607 = vmatpush2.msra.mxu0 %v10272
    %10608 = vmatprep.mubr.f32.mxu0 %v10289
    %10609 = vmatmul.mubr.f32.gmra.mxu0 %v10288
    %v10610 = vpop.f32.mrf.mxu0
    %v10611 = vadd.f32 %v10387, %v10610
    %v10612 = vpop.f32.mrf.mxu0
    %10613 = vmatprep.mubr.f32.mxu0 %v10291
    %10614 = vmatmul.mubr.f32.gmra.mxu0 %v10290
    %v10615 = vpop.f32.mrf.mxu0
    %v10616 = vadd.f32 %v10392, %v10615
    %v10617 = vpop.f32.mrf.mxu0
    %10618 = vmatprep.mubr.f32.mxu0 %v10293
    %10619 = vmatmul.mubr.f32.gmra.mxu0 %v10292
    %v10620 = vpop.f32.mrf.mxu0
    %v10621 = vadd.f32 %v10397, %v10620
    %v10622 = vpop.f32.mrf.mxu0
    %10623 = vmatprep.mubr.f32.mxu0 %v10295
    %10624 = vmatmul.mubr.f32.gmra.mxu0 %v10294
    %v10625 = vpop.f32.mrf.mxu0
    %v10626 = vadd.f32 %v10402, %v10625
    %v10627 = vpop.f32.mrf.mxu0
    %10628 = vmatprep.mubr.f32.mxu0 %v10297
    %10629 = vmatmul.mubr.f32.gmra.mxu0 %v10296
    %v10630 = vpop.f32.mrf.mxu0
    %v10631 = vadd.f32 %v10407, %v10630
    %v10632 = vpop.f32.mrf.mxu0
    %10633 = vmatprep.mubr.f32.mxu0 %v10299
    %10634 = vmatmul.mubr.f32.gmra.mxu0 %v10298
    %v10635 = vpop.f32.mrf.mxu0
    %v10636 = vadd.f32 %v10412, %v10635
    %v10637 = vpop.f32.mrf.mxu0
    %10638 = vmatprep.mubr.f32.mxu0 %v10301
    %10639 = vmatmul.mubr.f32.gmra.mxu0 %v10300
    %v10640 = vpop.f32.mrf.mxu0
    %v10641 = vadd.f32 %v10417, %v10640
    %v10642 = vpop.f32.mrf.mxu0
    %10643 = vmatprep.mubr.f32.mxu0 %v10303
    %10644 = vmatmul.mubr.f32.gmra.mxu0 %v10302
    %v10645 = vpop.f32.mrf.mxu0
    %v10646 = vadd.f32 %v10422, %v10645
    %v10647 = vpop.f32.mrf.mxu0
    %10648 = vmatprep.mubr.f32.mxu0 %v10305
    %10649 = vmatmul.mubr.f32.gmra.mxu0 %v10304
    %v10650 = vpop.f32.mrf.mxu0
    %v10651 = vadd.f32 %v10427, %v10650
    %v10652 = vpop.f32.mrf.mxu0
    %10653 = vmatprep.mubr.f32.mxu0 %v10307
    %10654 = vmatmul.mubr.f32.gmra.mxu0 %v10306
    %v10655 = vpop.f32.mrf.mxu0
    %v10656 = vadd.f32 %v10432, %v10655
    %v10657 = vpop.f32.mrf.mxu0
    %10658 = vmatprep.mubr.f32.mxu0 %v10309
    %10659 = vmatmul.mubr.f32.gmra.mxu0 %v10308
    %v10660 = vpop.f32.mrf.mxu0
    %v10661 = vadd.f32 %v10437, %v10660
    %v10662 = vpop.f32.mrf.mxu0
    %10663 = vmatprep.mubr.f32.mxu0 %v10311
    %10664 = vmatmul.mubr.f32.gmra.mxu0 %v10310
    %v10665 = vpop.f32.mrf.mxu0
    %v10666 = vadd.f32 %v10442, %v10665
    %v10667 = vpop.f32.mrf.mxu0
    %10668 = vmatprep.mubr.f32.mxu0 %v10313
    %10669 = vmatmul.mubr.f32.gmra.mxu0 %v10312
    %v10670 = vpop.f32.mrf.mxu0
    %v10671 = vadd.f32 %v10447, %v10670
    %v10672 = vpop.f32.mrf.mxu0
    %10673 = vmatprep.mubr.f32.mxu0 %v10315
    %10674 = vmatmul.mubr.f32.gmra.mxu0 %v10314
    %v10675 = vpop.f32.mrf.mxu0
    %v10676 = vadd.f32 %v10452, %v10675
    %v10677 = vpop.f32.mrf.mxu0
    %10678 = vmatprep.mubr.f32.mxu0 %v10317
    %10679 = vmatmul.mubr.f32.gmra.mxu0 %v10316
    %v10680 = vpop.f32.mrf.mxu0
    %v10681 = vadd.f32 %v10457, %v10680
    %v10682 = vpop.f32.mrf.mxu0
    %10683 = vmatprep.mubr.f32.mxu0 %v10319
    %10684 = vmatmul.mubr.f32.gmra.mxu0 %v10318
    %v10685 = vpop.f32.mrf.mxu0
    %v10686 = vadd.f32 %v10462, %v10685
    %v10687 = vpop.f32.mrf.mxu0
    %10688 = vmatprep.mubr.f32.mxu0 %v10321
    %10689 = vmatmul.mubr.f32.gmra.mxu0 %v10320
    %v10690 = vpop.f32.mrf.mxu0
    %v10691 = vadd.f32 %v10467, %v10690
    %v10692 = vpop.f32.mrf.mxu0
    %10693 = vmatprep.mubr.f32.mxu0 %v10323
    %10694 = vmatmul.mubr.f32.gmra.mxu0 %v10322
    %v10695 = vpop.f32.mrf.mxu0
    %v10696 = vadd.f32 %v10472, %v10695
    %v10697 = vpop.f32.mrf.mxu0
    %10698 = vmatprep.mubr.f32.mxu0 %v10325
    %10699 = vmatmul.mubr.f32.gmra.mxu0 %v10324
    %v10700 = vpop.f32.mrf.mxu0
    %v10701 = vadd.f32 %v10477, %v10700
    %v10702 = vpop.f32.mrf.mxu0
    %10703 = vmatprep.mubr.f32.mxu0 %v10327
    %10704 = vmatmul.mubr.f32.gmra.mxu0 %v10326
    %v10705 = vpop.f32.mrf.mxu0
    %v10706 = vadd.f32 %v10482, %v10705
    %v10707 = vpop.f32.mrf.mxu0
    %10708 = vmatprep.mubr.f32.mxu0 %v10329
    %10709 = vmatmul.mubr.f32.gmra.mxu0 %v10328
    %v10710 = vpop.f32.mrf.mxu0
    %v10711 = vadd.f32 %v10487, %v10710
    %v10712 = vpop.f32.mrf.mxu0
    %10713 = vmatprep.mubr.f32.mxu0 %v10331
    %10714 = vmatmul.mubr.f32.gmra.mxu0 %v10330
    %v10715 = vpop.f32.mrf.mxu0
    %v10716 = vadd.f32 %v10492, %v10715
    %v10717 = vpop.f32.mrf.mxu0
    %10718 = vmatprep.mubr.f32.mxu0 %v10333
    %10719 = vmatmul.mubr.f32.gmra.mxu0 %v10332
    %v10720 = vpop.f32.mrf.mxu0
    %v10721 = vadd.f32 %v10497, %v10720
    %v10722 = vpop.f32.mrf.mxu0
    %10723 = vmatprep.mubr.f32.mxu0 %v10335
    %10724 = vmatmul.mubr.f32.gmra.mxu0 %v10334
    %v10725 = vpop.f32.mrf.mxu0
    %v10726 = vadd.f32 %v10502, %v10725
    %v10727 = vpop.f32.mrf.mxu0
    %10728 = vmatprep.mubr.f32.mxu0 %v10337
    %10729 = vmatmul.mubr.f32.gmra.mxu0 %v10336
    %v10730 = vpop.f32.mrf.mxu0
    %v10731 = vadd.f32 %v10507, %v10730
    %v10732 = vpop.f32.mrf.mxu0
    %10733 = vmatprep.mubr.f32.mxu0 %v10339
    %10734 = vmatmul.mubr.f32.gmra.mxu0 %v10338
    %v10735 = vpop.f32.mrf.mxu0
    %v10736 = vadd.f32 %v10512, %v10735
    %v10737 = vpop.f32.mrf.mxu0
    %10738 = vmatprep.mubr.f32.mxu0 %v10341
    %10739 = vmatmul.mubr.f32.gmra.mxu0 %v10340
    %v10740 = vpop.f32.mrf.mxu0
    %v10741 = vadd.f32 %v10517, %v10740
    %v10742 = vpop.f32.mrf.mxu0
    %10743 = vmatprep.mubr.f32.mxu0 %v10343
    %10744 = vmatmul.mubr.f32.gmra.mxu0 %v10342
    %v10745 = vpop.f32.mrf.mxu0
    %v10746 = vadd.f32 %v10522, %v10745
    %v10747 = vpop.f32.mrf.mxu0
    %10748 = vmatprep.mubr.f32.mxu0 %v10345
    %10749 = vmatmul.mubr.f32.gmra.mxu0 %v10344
    %v10750 = vpop.f32.mrf.mxu0
    %v10751 = vadd.f32 %v10527, %v10750
    %v10752 = vpop.f32.mrf.mxu0
    %10753 = vmatprep.mubr.f32.mxu0 %v10347
    %10754 = vmatmul.mubr.f32.gmra.mxu0 %v10346
    %v10755 = vpop.f32.mrf.mxu0
    %v10756 = vadd.f32 %v10532, %v10755
    %v10757 = vpop.f32.mrf.mxu0
    %10758 = vmatprep.mubr.f32.mxu0 %v10349
    %10759 = vmatmul.mubr.f32.gmra.mxu0 %v10348
    %v10760 = vpop.f32.mrf.mxu0
    %v10761 = vadd.f32 %v10537, %v10760
    %v10762 = vpop.f32.mrf.mxu0
    %10763 = vmatprep.mubr.f32.mxu0 %v10351
    %10764 = vmatmul.mubr.f32.gmra.mxu0 %v10350
    %v10765 = vpop.f32.mrf.mxu0
    %v10766 = vadd.f32 %v10542, %v10765
    %v10767 = vpop.f32.mrf.mxu0
    %10768 = vdwg.mxu0
    %vm10769 = vcmp.gt.f32.partialorder %v10611, 0.0
    %vm10770 = vcmp.gt.f32.partialorder %v10616, 0.0
    %vm10771 = vcmp.gt.f32.partialorder %v10621, 0.0
    %vm10772 = vcmp.gt.f32.partialorder %v10626, 0.0
    %vm10773 = vcmp.gt.f32.partialorder %v10631, 0.0
    %vm10774 = vcmp.gt.f32.partialorder %v10636, 0.0
    %vm10775 = vcmp.gt.f32.partialorder %v10641, 0.0
    %vm10776 = vcmp.gt.f32.partialorder %v10646, 0.0
    %vm10777 = vcmp.gt.f32.partialorder %v10651, 0.0
    %vm10778 = vcmp.gt.f32.partialorder %v10656, 0.0
    %vm10779 = vcmp.gt.f32.partialorder %v10661, 0.0
    %vm10780 = vcmp.gt.f32.partialorder %v10666, 0.0
    %vm10781 = vcmp.gt.f32.partialorder %v10671, 0.0
    %vm10782 = vcmp.gt.f32.partialorder %v10676, 0.0
    %vm10783 = vcmp.gt.f32.partialorder %v10681, 0.0
    %vm10784 = vcmp.gt.f32.partialorder %v10686, 0.0
    %vm10785 = vcmp.gt.f32.partialorder %v10691, 0.0
    %vm10786 = vcmp.gt.f32.partialorder %v10696, 0.0
    %vm10787 = vcmp.gt.f32.partialorder %v10701, 0.0
    %vm10788 = vcmp.gt.f32.partialorder %v10706, 0.0
    %vm10789 = vcmp.gt.f32.partialorder %v10711, 0.0
    %vm10790 = vcmp.gt.f32.partialorder %v10716, 0.0
    %vm10791 = vcmp.gt.f32.partialorder %v10721, 0.0
    %vm10792 = vcmp.gt.f32.partialorder %v10726, 0.0
    %vm10793 = vcmp.gt.f32.partialorder %v10731, 0.0
    %vm10794 = vcmp.gt.f32.partialorder %v10736, 0.0
    %vm10795 = vcmp.gt.f32.partialorder %v10741, 0.0
    %vm10796 = vcmp.gt.f32.partialorder %v10746, 0.0
    %vm10797 = vcmp.gt.f32.partialorder %v10751, 0.0
    %vm10798 = vcmp.gt.f32.partialorder %v10756, 0.0
    %vm10799 = vcmp.gt.f32.partialorder %v10761, 0.0
    %vm10800 = vcmp.gt.f32.partialorder %v10766, 0.0
    %v10801 = vmin.f32 %v10611, 0.0
    %v10802 = vmin.f32 %v10616, 0.0
    %v10803 = vmin.f32 %v10621, 0.0
    %v10804 = vmin.f32 %v10626, 0.0
    %v10805 = vmin.f32 %v10631, 0.0
    %v10806 = vmin.f32 %v10636, 0.0
    %v10807 = vmin.f32 %v10641, 0.0
    %v10808 = vmin.f32 %v10646, 0.0
    %v10809 = vmin.f32 %v10651, 0.0
    %v10810 = vmin.f32 %v10656, 0.0
    %v10811 = vmin.f32 %v10661, 0.0
    %v10812 = vmin.f32 %v10666, 0.0
    %v10813 = vmin.f32 %v10671, 0.0
    %v10814 = vmin.f32 %v10676, 0.0
    %v10815 = vmin.f32 %v10681, 0.0
    %v10816 = vmin.f32 %v10686, 0.0
    %v10817 = vmin.f32 %v10691, 0.0
    %v10818 = vmin.f32 %v10696, 0.0
    %v10819 = vmin.f32 %v10701, 0.0
    %v10820 = vmin.f32 %v10706, 0.0
    %v10821 = vmin.f32 %v10711, 0.0
    %v10822 = vmin.f32 %v10716, 0.0
    %v10823 = vmin.f32 %v10721, 0.0
    %v10824 = vmin.f32 %v10726, 0.0
    %v10825 = vmin.f32 %v10731, 0.0
    %v10826 = vmin.f32 %v10736, 0.0
    %v10827 = vmin.f32 %v10741, 0.0
    %v10828 = vmin.f32 %v10746, 0.0
    %v10829 = vmin.f32 %v10751, 0.0
    %v10830 = vmin.f32 %v10756, 0.0
    %v10831 = vmin.f32 %v10761, 0.0
    %v10832 = vmin.f32 %v10766, 0.0
    %v10833 = vmul.f32 %v10801, 1.442695
    %v10834 = vpow.pop %v10833
    %v10835 = vmul.f32 %v10802, 1.442695
    %v10836 = vpow.pop %v10835
    %v10837 = vmul.f32 %v10803, 1.442695
    %v10838 = vpow.pop %v10837
    %v10839 = vmul.f32 %v10804, 1.442695
    %v10840 = vpow.pop %v10839
    %v10841 = vmul.f32 %v10805, 1.442695
    %v10842 = vpow.pop %v10841
    %v10843 = vmul.f32 %v10806, 1.442695
    %v10844 = vpow.pop %v10843
    %v10845 = vmul.f32 %v10807, 1.442695
    %v10846 = vpow.pop %v10845
    %v10847 = vmul.f32 %v10808, 1.442695
    %v10848 = vpow.pop %v10847
    %v10849 = vmul.f32 %v10809, 1.442695
    %v10850 = vpow.pop %v10849
    %v10851 = vmul.f32 %v10810, 1.442695
    %v10852 = vpow.pop %v10851
    %v10853 = vmul.f32 %v10811, 1.442695
    %v10854 = vpow.pop %v10853
    %v10855 = vmul.f32 %v10812, 1.442695
    %v10856 = vpow.pop %v10855
    %v10857 = vmul.f32 %v10813, 1.442695
    %v10858 = vpow.pop %v10857
    %v10859 = vmul.f32 %v10814, 1.442695
    %v10860 = vpow.pop %v10859
    %v10861 = vmul.f32 %v10815, 1.442695
    %v10862 = vpow.pop %v10861
    %v10863 = vmul.f32 %v10816, 1.442695
    %v10864 = vpow.pop %v10863
    %v10865 = vmul.f32 %v10817, 1.442695
    %v10866 = vpow.pop %v10865
    %v10867 = vmul.f32 %v10818, 1.442695
    %v10868 = vpow.pop %v10867
    %v10869 = vmul.f32 %v10819, 1.442695
    %v10870 = vpow.pop %v10869
    %v10871 = vmul.f32 %v10820, 1.442695
    %v10872 = vpow.pop %v10871
    %v10873 = vmul.f32 %v10821, 1.442695
    %v10874 = vpow.pop %v10873
    %v10875 = vmul.f32 %v10822, 1.442695
    %v10876 = vpow.pop %v10875
    %v10877 = vmul.f32 %v10823, 1.442695
    %v10878 = vpow.pop %v10877
    %v10879 = vmul.f32 %v10824, 1.442695
    %v10880 = vpow.pop %v10879
    %v10881 = vmul.f32 %v10825, 1.442695
    %v10882 = vpow.pop %v10881
    %v10883 = vmul.f32 %v10826, 1.442695
    %v10884 = vpow.pop %v10883
    %v10885 = vmul.f32 %v10827, 1.442695
    %v10886 = vpow.pop %v10885
    %v10887 = vmul.f32 %v10828, 1.442695
    %v10888 = vpow.pop %v10887
    %v10889 = vmul.f32 %v10829, 1.442695
    %v10890 = vpow.pop %v10889
    %v10891 = vmul.f32 %v10830, 1.442695
    %v10892 = vpow.pop %v10891
    %v10893 = vmul.f32 %v10831, 1.442695
    %v10894 = vpow.pop %v10893
    %v10895 = vmul.f32 %v10832, 1.442695
    %v10896 = vpow.pop %v10895
    %v10897 = vsub.f32 %v10834, 1.0
    %v10898 = vsub.f32 %v10836, 1.0
    %v10899 = vsub.f32 %v10838, 1.0
    %v10900 = vsub.f32 %v10840, 1.0
    %v10901 = vsub.f32 %v10842, 1.0
    %v10902 = vsub.f32 %v10844, 1.0
    %v10903 = vsub.f32 %v10846, 1.0
    %v10904 = vsub.f32 %v10848, 1.0
    %v10905 = vsub.f32 %v10850, 1.0
    %v10906 = vsub.f32 %v10852, 1.0
    %v10907 = vsub.f32 %v10854, 1.0
    %v10908 = vsub.f32 %v10856, 1.0
    %v10909 = vsub.f32 %v10858, 1.0
    %v10910 = vsub.f32 %v10860, 1.0
    %v10911 = vsub.f32 %v10862, 1.0
    %v10912 = vsub.f32 %v10864, 1.0
    %v10913 = vsub.f32 %v10866, 1.0
    %v10914 = vsub.f32 %v10868, 1.0
    %v10915 = vsub.f32 %v10870, 1.0
    %v10916 = vsub.f32 %v10872, 1.0
    %v10917 = vsub.f32 %v10874, 1.0
    %v10918 = vsub.f32 %v10876, 1.0
    %v10919 = vsub.f32 %v10878, 1.0
    %v10920 = vsub.f32 %v10880, 1.0
    %v10921 = vsub.f32 %v10882, 1.0
    %v10922 = vsub.f32 %v10884, 1.0
    %v10923 = vsub.f32 %v10886, 1.0
    %v10924 = vsub.f32 %v10888, 1.0
    %v10925 = vsub.f32 %v10890, 1.0
    %v10926 = vsub.f32 %v10892, 1.0
    %v10927 = vsub.f32 %v10894, 1.0
    %v10928 = vsub.f32 %v10896, 1.0
    %v10929 = vsel %vm10769, %v10611, %v10897
    %v10930 = vsel %vm10770, %v10616, %v10898
    %v10931 = vsel %vm10771, %v10621, %v10899
    %v10932 = vsel %vm10772, %v10626, %v10900
    %v10933 = vsel %vm10773, %v10631, %v10901
    %v10934 = vsel %vm10774, %v10636, %v10902
    %v10935 = vsel %vm10775, %v10641, %v10903
    %v10936 = vsel %vm10776, %v10646, %v10904
    %v10937 = vsel %vm10777, %v10651, %v10905
    %v10938 = vsel %vm10778, %v10656, %v10906
    %v10939 = vsel %vm10779, %v10661, %v10907
    %v10940 = vsel %vm10780, %v10666, %v10908
    %v10941 = vsel %vm10781, %v10671, %v10909
    %v10942 = vsel %vm10782, %v10676, %v10910
    %v10943 = vsel %vm10783, %v10681, %v10911
    %v10944 = vsel %vm10784, %v10686, %v10912
    %v10945 = vsel %vm10785, %v10691, %v10913
    %v10946 = vsel %vm10786, %v10696, %v10914
    %v10947 = vsel %vm10787, %v10701, %v10915
    %v10948 = vsel %vm10788, %v10706, %v10916
    %v10949 = vsel %vm10789, %v10711, %v10917
    %v10950 = vsel %vm10790, %v10716, %v10918
    %v10951 = vsel %vm10791, %v10721, %v10919
    %v10952 = vsel %vm10792, %v10726, %v10920
    %v10953 = vsel %vm10793, %v10731, %v10921
    %v10954 = vsel %vm10794, %v10736, %v10922
    %v10955 = vsel %vm10795, %v10741, %v10923
    %v10956 = vsel %vm10796, %v10746, %v10924
    %v10957 = vsel %vm10797, %v10751, %v10925
    %v10958 = vsel %vm10798, %v10756, %v10926
    %v10959 = vsel %vm10799, %v10761, %v10927
    %v10960 = vsel %vm10800, %v10766, %v10928
    %v10961 = vld [vmem:[#allocation22] sm:$0xff]
    %v10962 = vld [vmem:[#allocation22 + $0x8] sm:$0xff]
    %v10963 = vld [vmem:[#allocation22 + $0x10] sm:$0xff]
    %v10964 = vld [vmem:[#allocation22 + $0x18] sm:$0xff]
    %v10965 = vld [vmem:[#allocation22 + $0x20] sm:$0xff]
    %v10966 = vld [vmem:[#allocation22 + $0x28] sm:$0xff]
    %v10967 = vld [vmem:[#allocation22 + $0x30] sm:$0xff]
    %v10968 = vld [vmem:[#allocation22 + $0x38] sm:$0xff]
    %v10969 = vld [vmem:[#allocation22 + $0x40] sm:$0xff]
    %v10970 = vld [vmem:[#allocation22 + $0x48] sm:$0xff]
    %v10971 = vld [vmem:[#allocation22 + $0x50] sm:$0xff]
    %v10972 = vld [vmem:[#allocation22 + $0x58] sm:$0xff]
    %v10973 = vld [vmem:[#allocation22 + $0x60] sm:$0xff]
    %v10974 = vld [vmem:[#allocation22 + $0x68] sm:$0xff]
    %v10975 = vld [vmem:[#allocation22 + $0x70] sm:$0xff]
    %v10976 = vld [vmem:[#allocation22 + $0x78] sm:$0xff]
    %v10977 = vld [vmem:[#allocation22 + $0x80] sm:$0xff]
    %v10978 = vld [vmem:[#allocation22 + $0x88] sm:$0xff]
    %v10979 = vld [vmem:[#allocation22 + $0x90] sm:$0xff]
    %v10980 = vld [vmem:[#allocation22 + $0x98] sm:$0xff]
    %v10981 = vld [vmem:[#allocation22 + $0xa0] sm:$0xff]
    %v10982 = vld [vmem:[#allocation22 + $0xa8] sm:$0xff]
    %v10983 = vld [vmem:[#allocation22 + $0xb0] sm:$0xff]
    %v10984 = vld [vmem:[#allocation22 + $0xb8] sm:$0xff]
    %v10985 = vld [vmem:[#allocation22 + $0xc0] sm:$0xff]
    %v10986 = vld [vmem:[#allocation22 + $0xc8] sm:$0xff]
    %v10987 = vld [vmem:[#allocation22 + $0xd0] sm:$0xff]
    %v10988 = vld [vmem:[#allocation22 + $0xd8] sm:$0xff]
    %v10989 = vld [vmem:[#allocation22 + $0xe0] sm:$0xff]
    %v10990 = vld [vmem:[#allocation22 + $0xe8] sm:$0xff]
    %v10991 = vld [vmem:[#allocation22 + $0xf0] sm:$0xff]
    %v10992 = vld [vmem:[#allocation22 + $0xf8] sm:$0xff]
    %s10993 = scalar_lea.vmem [#allocation22], 256
    %v10994 = vld [vmem:[%s10993] sm:$0xff]
    %v10995 = vld [vmem:[%s10993 + $0x8] sm:$0xff]
    %v10996 = vld [vmem:[%s10993 + $0x10] sm:$0xff]
    %v10997 = vld [vmem:[%s10993 + $0x18] sm:$0xff]
    %v10998 = vld [vmem:[%s10993 + $0x20] sm:$0xff]
    %v10999 = vld [vmem:[%s10993 + $0x28] sm:$0xff]
    %v11000 = vld [vmem:[%s10993 + $0x30] sm:$0xff]
    %v11001 = vld [vmem:[%s10993 + $0x38] sm:$0xff]
    %v11002 = vld [vmem:[%s10993 + $0x40] sm:$0xff]
    %v11003 = vld [vmem:[%s10993 + $0x48] sm:$0xff]
    %v11004 = vld [vmem:[%s10993 + $0x50] sm:$0xff]
    %v11005 = vld [vmem:[%s10993 + $0x58] sm:$0xff]
    %v11006 = vld [vmem:[%s10993 + $0x60] sm:$0xff]
    %v11007 = vld [vmem:[%s10993 + $0x68] sm:$0xff]
    %v11008 = vld [vmem:[%s10993 + $0x70] sm:$0xff]
    %v11009 = vld [vmem:[%s10993 + $0x78] sm:$0xff]
    %v11010 = vld [vmem:[%s10993 + $0x80] sm:$0xff]
    %v11011 = vld [vmem:[%s10993 + $0x88] sm:$0xff]
    %v11012 = vld [vmem:[%s10993 + $0x90] sm:$0xff]
    %v11013 = vld [vmem:[%s10993 + $0x98] sm:$0xff]
    %v11014 = vld [vmem:[%s10993 + $0xa0] sm:$0xff]
    %v11015 = vld [vmem:[%s10993 + $0xa8] sm:$0xff]
    %v11016 = vld [vmem:[%s10993 + $0xb0] sm:$0xff]
    %v11017 = vld [vmem:[%s10993 + $0xb8] sm:$0xff]
    %v11018 = vld [vmem:[%s10993 + $0xc0] sm:$0xff]
    %v11019 = vld [vmem:[%s10993 + $0xc8] sm:$0xff]
    %v11020 = vld [vmem:[%s10993 + $0xd0] sm:$0xff]
    %v11021 = vld [vmem:[%s10993 + $0xd8] sm:$0xff]
    %v11022 = vld [vmem:[%s10993 + $0xe0] sm:$0xff]
    %v11023 = vld [vmem:[%s10993 + $0xe8] sm:$0xff]
    %v11024 = vld [vmem:[%s10993 + $0xf0] sm:$0xff]
    %v11025 = vld [vmem:[%s10993 + $0xf8] sm:$0xff]
    %11026 = vmatprep.subr.mxu0 %v11025
    %11027 = vmatpush1.msra.mxu0 %v11024
    %11028 = vmatprep.subr.mxu0 %v11023
    %11029 = vmatpush1.msra.mxu0 %v11022
    %11030 = vmatprep.subr.mxu0 %v11021
    %11031 = vmatpush1.msra.mxu0 %v11020
    %11032 = vmatprep.subr.mxu0 %v11019
    %11033 = vmatpush1.msra.mxu0 %v11018
    %11034 = vmatprep.subr.mxu0 %v11017
    %11035 = vmatpush1.msra.mxu0 %v11016
    %11036 = vmatprep.subr.mxu0 %v11015
    %11037 = vmatpush1.msra.mxu0 %v11014
    %11038 = vmatprep.subr.mxu0 %v11013
    %11039 = vmatpush1.msra.mxu0 %v11012
    %11040 = vmatprep.subr.mxu0 %v11011
    %11041 = vmatpush1.msra.mxu0 %v11010
    %11042 = vmatprep.subr.mxu0 %v11009
    %11043 = vmatpush1.msra.mxu0 %v11008
    %11044 = vmatprep.subr.mxu0 %v11007
    %11045 = vmatpush1.msra.mxu0 %v11006
    %11046 = vmatprep.subr.mxu0 %v11005
    %11047 = vmatpush1.msra.mxu0 %v11004
    %11048 = vmatprep.subr.mxu0 %v11003
    %11049 = vmatpush1.msra.mxu0 %v11002
    %11050 = vmatprep.subr.mxu0 %v11001
    %11051 = vmatpush1.msra.mxu0 %v11000
    %11052 = vmatprep.subr.mxu0 %v10999
    %11053 = vmatpush1.msra.mxu0 %v10998
    %11054 = vmatprep.subr.mxu0 %v10997
    %11055 = vmatpush1.msra.mxu0 %v10996
    %11056 = vmatprep.subr.mxu0 %v10995
    %11057 = vmatpush1.msra.mxu0 %v10994
    %11058 = vmatprep.subr.mxu0 0.0
    %11059 = vmatpush2.msra.mxu0 0.0
    %11060 = vmatprep.subr.mxu0 0.0
    %11061 = vmatpush2.msra.mxu0 0.0
    %11062 = vmatprep.subr.mxu0 0.0
    %11063 = vmatpush2.msra.mxu0 0.0
    %11064 = vmatprep.subr.mxu0 0.0
    %11065 = vmatpush2.msra.mxu0 0.0
    %11066 = vmatprep.subr.mxu0 0.0
    %11067 = vmatpush2.msra.mxu0 0.0
    %11068 = vmatprep.subr.mxu0 0.0
    %11069 = vmatpush2.msra.mxu0 0.0
    %11070 = vmatprep.subr.mxu0 0.0
    %11071 = vmatpush2.msra.mxu0 0.0
    %11072 = vmatprep.subr.mxu0 0.0
    %11073 = vmatpush2.msra.mxu0 0.0
    %11074 = vmatprep.subr.mxu0 0.0
    %11075 = vmatpush2.msra.mxu0 0.0
    %11076 = vmatprep.subr.mxu0 0.0
    %11077 = vmatpush2.msra.mxu0 0.0
    %11078 = vmatprep.subr.mxu0 0.0
    %11079 = vmatpush2.msra.mxu0 0.0
    %11080 = vmatprep.subr.mxu0 0.0
    %11081 = vmatpush2.msra.mxu0 0.0
    %11082 = vmatprep.subr.mxu0 0.0
    %11083 = vmatpush2.msra.mxu0 0.0
    %11084 = vmatprep.subr.mxu0 0.0
    %11085 = vmatpush2.msra.mxu0 0.0
    %11086 = vmatprep.subr.mxu0 0.0
    %11087 = vmatpush2.msra.mxu0 0.0
    %11088 = vmatprep.subr.mxu0 0.0
    %11089 = vmatpush2.msra.mxu0 0.0
    %11090 = vmatprep.mubr.f32.mxu0 0.0
    %11091 = vmatmul.mubr.f32.gmra.mxu0 %v10945
    %v11092 = vpop.f32.mrf.mxu0
    %v11093 = vadd.f32 0.0, %v11092
    %v11094 = vpop.f32.mrf.mxu0
    %v11095 = vadd.f32 0.0, %v11094
    %11096 = vmatprep.mubr.f32.mxu0 0.0
    %11097 = vmatmul.mubr.f32.gmra.mxu0 %v10946
    %v11098 = vpop.f32.mrf.mxu0
    %v11099 = vadd.f32 0.0, %v11098
    %v11100 = vpop.f32.mrf.mxu0
    %v11101 = vadd.f32 0.0, %v11100
    %11102 = vmatprep.mubr.f32.mxu0 0.0
    %11103 = vmatmul.mubr.f32.gmra.mxu0 %v10947
    %v11104 = vpop.f32.mrf.mxu0
    %v11105 = vadd.f32 0.0, %v11104
    %v11106 = vpop.f32.mrf.mxu0
    %v11107 = vadd.f32 0.0, %v11106
    %11108 = vmatprep.mubr.f32.mxu0 0.0
    %11109 = vmatmul.mubr.f32.gmra.mxu0 %v10948
    %v11110 = vpop.f32.mrf.mxu0
    %v11111 = vadd.f32 0.0, %v11110
    %v11112 = vpop.f32.mrf.mxu0
    %v11113 = vadd.f32 0.0, %v11112
    %11114 = vmatprep.mubr.f32.mxu0 0.0
    %11115 = vmatmul.mubr.f32.gmra.mxu0 %v10949
    %v11116 = vpop.f32.mrf.mxu0
    %v11117 = vadd.f32 0.0, %v11116
    %v11118 = vpop.f32.mrf.mxu0
    %v11119 = vadd.f32 0.0, %v11118
    %11120 = vmatprep.mubr.f32.mxu0 0.0
    %11121 = vmatmul.mubr.f32.gmra.mxu0 %v10950
    %v11122 = vpop.f32.mrf.mxu0
    %v11123 = vadd.f32 0.0, %v11122
    %v11124 = vpop.f32.mrf.mxu0
    %v11125 = vadd.f32 0.0, %v11124
    %11126 = vmatprep.mubr.f32.mxu0 0.0
    %11127 = vmatmul.mubr.f32.gmra.mxu0 %v10951
    %v11128 = vpop.f32.mrf.mxu0
    %v11129 = vadd.f32 0.0, %v11128
    %v11130 = vpop.f32.mrf.mxu0
    %v11131 = vadd.f32 0.0, %v11130
    %11132 = vmatprep.mubr.f32.mxu0 0.0
    %11133 = vmatmul.mubr.f32.gmra.mxu0 %v10952
    %v11134 = vpop.f32.mrf.mxu0
    %v11135 = vadd.f32 0.0, %v11134
    %v11136 = vpop.f32.mrf.mxu0
    %v11137 = vadd.f32 0.0, %v11136
    %11138 = vmatprep.mubr.f32.mxu0 0.0
    %11139 = vmatmul.mubr.f32.gmra.mxu0 %v10953
    %v11140 = vpop.f32.mrf.mxu0
    %v11141 = vadd.f32 0.0, %v11140
    %v11142 = vpop.f32.mrf.mxu0
    %v11143 = vadd.f32 0.0, %v11142
    %11144 = vmatprep.mubr.f32.mxu0 0.0
    %11145 = vmatmul.mubr.f32.gmra.mxu0 %v10954
    %v11146 = vpop.f32.mrf.mxu0
    %v11147 = vadd.f32 0.0, %v11146
    %v11148 = vpop.f32.mrf.mxu0
    %v11149 = vadd.f32 0.0, %v11148
    %11150 = vmatprep.mubr.f32.mxu0 0.0
    %11151 = vmatmul.mubr.f32.gmra.mxu0 %v10955
    %v11152 = vpop.f32.mrf.mxu0
    %v11153 = vadd.f32 0.0, %v11152
    %v11154 = vpop.f32.mrf.mxu0
    %v11155 = vadd.f32 0.0, %v11154
    %11156 = vmatprep.mubr.f32.mxu0 0.0
    %11157 = vmatmul.mubr.f32.gmra.mxu0 %v10956
    %v11158 = vpop.f32.mrf.mxu0
    %v11159 = vadd.f32 0.0, %v11158
    %v11160 = vpop.f32.mrf.mxu0
    %v11161 = vadd.f32 0.0, %v11160
    %11162 = vmatprep.mubr.f32.mxu0 0.0
    %11163 = vmatmul.mubr.f32.gmra.mxu0 %v10957
    %v11164 = vpop.f32.mrf.mxu0
    %v11165 = vadd.f32 0.0, %v11164
    %v11166 = vpop.f32.mrf.mxu0
    %v11167 = vadd.f32 0.0, %v11166
    %11168 = vmatprep.mubr.f32.mxu0 0.0
    %11169 = vmatmul.mubr.f32.gmra.mxu0 %v10958
    %v11170 = vpop.f32.mrf.mxu0
    %v11171 = vadd.f32 0.0, %v11170
    %v11172 = vpop.f32.mrf.mxu0
    %v11173 = vadd.f32 0.0, %v11172
    %11174 = vmatprep.mubr.f32.mxu0 0.0
    %11175 = vmatmul.mubr.f32.gmra.mxu0 %v10959
    %v11176 = vpop.f32.mrf.mxu0
    %v11177 = vadd.f32 0.0, %v11176
    %v11178 = vpop.f32.mrf.mxu0
    %v11179 = vadd.f32 0.0, %v11178
    %11180 = vmatprep.mubr.f32.mxu0 0.0
    %11181 = vmatmul.mubr.f32.gmra.mxu0 %v10960
    %v11182 = vpop.f32.mrf.mxu0
    %v11183 = vadd.f32 0.0, %v11182
    %v11184 = vpop.f32.mrf.mxu0
    %v11185 = vadd.f32 0.0, %v11184
    %11186 = vdwg.mxu0
    %11187 = vmatprep.subr.mxu0 %v10992
    %11188 = vmatpush1.msra.mxu0 %v10991
    %11189 = vmatprep.subr.mxu0 %v10990
    %11190 = vmatpush1.msra.mxu0 %v10989
    %11191 = vmatprep.subr.mxu0 %v10988
    %11192 = vmatpush1.msra.mxu0 %v10987
    %11193 = vmatprep.subr.mxu0 %v10986
    %11194 = vmatpush1.msra.mxu0 %v10985
    %11195 = vmatprep.subr.mxu0 %v10984
    %11196 = vmatpush1.msra.mxu0 %v10983
    %11197 = vmatprep.subr.mxu0 %v10982
    %11198 = vmatpush1.msra.mxu0 %v10981
    %11199 = vmatprep.subr.mxu0 %v10980
    %11200 = vmatpush1.msra.mxu0 %v10979
    %11201 = vmatprep.subr.mxu0 %v10978
    %11202 = vmatpush1.msra.mxu0 %v10977
    %11203 = vmatprep.subr.mxu0 %v10976
    %11204 = vmatpush1.msra.mxu0 %v10975
    %11205 = vmatprep.subr.mxu0 %v10974
    %11206 = vmatpush1.msra.mxu0 %v10973
    %11207 = vmatprep.subr.mxu0 %v10972
    %11208 = vmatpush1.msra.mxu0 %v10971
    %11209 = vmatprep.subr.mxu0 %v10970
    %11210 = vmatpush1.msra.mxu0 %v10969
    %11211 = vmatprep.subr.mxu0 %v10968
    %11212 = vmatpush1.msra.mxu0 %v10967
    %11213 = vmatprep.subr.mxu0 %v10966
    %11214 = vmatpush1.msra.mxu0 %v10965
    %11215 = vmatprep.subr.mxu0 %v10964
    %11216 = vmatpush1.msra.mxu0 %v10963
    %11217 = vmatprep.subr.mxu0 %v10962
    %11218 = vmatpush1.msra.mxu0 %v10961
    %11219 = vmatprep.subr.mxu0 0.0
    %11220 = vmatpush2.msra.mxu0 0.0
    %11221 = vmatprep.subr.mxu0 0.0
    %11222 = vmatpush2.msra.mxu0 0.0
    %11223 = vmatprep.subr.mxu0 0.0
    %11224 = vmatpush2.msra.mxu0 0.0
    %11225 = vmatprep.subr.mxu0 0.0
    %11226 = vmatpush2.msra.mxu0 0.0
    %11227 = vmatprep.subr.mxu0 0.0
    %11228 = vmatpush2.msra.mxu0 0.0
    %11229 = vmatprep.subr.mxu0 0.0
    %11230 = vmatpush2.msra.mxu0 0.0
    %11231 = vmatprep.subr.mxu0 0.0
    %11232 = vmatpush2.msra.mxu0 0.0
    %11233 = vmatprep.subr.mxu0 0.0
    %11234 = vmatpush2.msra.mxu0 0.0
    %11235 = vmatprep.subr.mxu0 0.0
    %11236 = vmatpush2.msra.mxu0 0.0
    %11237 = vmatprep.subr.mxu0 0.0
    %11238 = vmatpush2.msra.mxu0 0.0
    %11239 = vmatprep.subr.mxu0 0.0
    %11240 = vmatpush2.msra.mxu0 0.0
    %11241 = vmatprep.subr.mxu0 0.0
    %11242 = vmatpush2.msra.mxu0 0.0
    %11243 = vmatprep.subr.mxu0 0.0
    %11244 = vmatpush2.msra.mxu0 0.0
    %11245 = vmatprep.subr.mxu0 0.0
    %11246 = vmatpush2.msra.mxu0 0.0
    %11247 = vmatprep.subr.mxu0 0.0
    %11248 = vmatpush2.msra.mxu0 0.0
    %11249 = vmatprep.subr.mxu0 0.0
    %11250 = vmatpush2.msra.mxu0 0.0
    %11251 = vmatprep.mubr.f32.mxu0 0.0
    %11252 = vmatmul.mubr.f32.gmra.mxu0 %v10929
    %v11253 = vpop.f32.mrf.mxu0
    %v11254 = vadd.f32 %v11093, %v11253
    %v11255 = vpop.f32.mrf.mxu0
    %v11256 = vadd.f32 %v11095, %v11255
    %11257 = vmatprep.mubr.f32.mxu0 0.0
    %11258 = vmatmul.mubr.f32.gmra.mxu0 %v10930
    %v11259 = vpop.f32.mrf.mxu0
    %v11260 = vadd.f32 %v11099, %v11259
    %v11261 = vpop.f32.mrf.mxu0
    %v11262 = vadd.f32 %v11101, %v11261
    %11263 = vmatprep.mubr.f32.mxu0 0.0
    %11264 = vmatmul.mubr.f32.gmra.mxu0 %v10931
    %v11265 = vpop.f32.mrf.mxu0
    %v11266 = vadd.f32 %v11105, %v11265
    %v11267 = vpop.f32.mrf.mxu0
    %v11268 = vadd.f32 %v11107, %v11267
    %11269 = vmatprep.mubr.f32.mxu0 0.0
    %11270 = vmatmul.mubr.f32.gmra.mxu0 %v10932
    %v11271 = vpop.f32.mrf.mxu0
    %v11272 = vadd.f32 %v11111, %v11271
    %v11273 = vpop.f32.mrf.mxu0
    %v11274 = vadd.f32 %v11113, %v11273
    %11275 = vmatprep.mubr.f32.mxu0 0.0
    %11276 = vmatmul.mubr.f32.gmra.mxu0 %v10933
    %v11277 = vpop.f32.mrf.mxu0
    %v11278 = vadd.f32 %v11117, %v11277
    %v11279 = vpop.f32.mrf.mxu0
    %v11280 = vadd.f32 %v11119, %v11279
    %11281 = vmatprep.mubr.f32.mxu0 0.0
    %11282 = vmatmul.mubr.f32.gmra.mxu0 %v10934
    %v11283 = vpop.f32.mrf.mxu0
    %v11284 = vadd.f32 %v11123, %v11283
    %v11285 = vpop.f32.mrf.mxu0
    %v11286 = vadd.f32 %v11125, %v11285
    %11287 = vmatprep.mubr.f32.mxu0 0.0
    %11288 = vmatmul.mubr.f32.gmra.mxu0 %v10935
    %v11289 = vpop.f32.mrf.mxu0
    %v11290 = vadd.f32 %v11129, %v11289
    %v11291 = vpop.f32.mrf.mxu0
    %v11292 = vadd.f32 %v11131, %v11291
    %11293 = vmatprep.mubr.f32.mxu0 0.0
    %11294 = vmatmul.mubr.f32.gmra.mxu0 %v10936
    %v11295 = vpop.f32.mrf.mxu0
    %v11296 = vadd.f32 %v11135, %v11295
    %v11297 = vpop.f32.mrf.mxu0
    %v11298 = vadd.f32 %v11137, %v11297
    %11299 = vmatprep.mubr.f32.mxu0 0.0
    %11300 = vmatmul.mubr.f32.gmra.mxu0 %v10937
    %v11301 = vpop.f32.mrf.mxu0
    %v11302 = vadd.f32 %v11141, %v11301
    %v11303 = vpop.f32.mrf.mxu0
    %v11304 = vadd.f32 %v11143, %v11303
    %11305 = vmatprep.mubr.f32.mxu0 0.0
    %11306 = vmatmul.mubr.f32.gmra.mxu0 %v10938
    %v11307 = vpop.f32.mrf.mxu0
    %v11308 = vadd.f32 %v11147, %v11307
    %v11309 = vpop.f32.mrf.mxu0
    %v11310 = vadd.f32 %v11149, %v11309
    %11311 = vmatprep.mubr.f32.mxu0 0.0
    %11312 = vmatmul.mubr.f32.gmra.mxu0 %v10939
    %v11313 = vpop.f32.mrf.mxu0
    %v11314 = vadd.f32 %v11153, %v11313
    %v11315 = vpop.f32.mrf.mxu0
    %v11316 = vadd.f32 %v11155, %v11315
    %11317 = vmatprep.mubr.f32.mxu0 0.0
    %11318 = vmatmul.mubr.f32.gmra.mxu0 %v10940
    %v11319 = vpop.f32.mrf.mxu0
    %v11320 = vadd.f32 %v11159, %v11319
    %v11321 = vpop.f32.mrf.mxu0
    %v11322 = vadd.f32 %v11161, %v11321
    %11323 = vmatprep.mubr.f32.mxu0 0.0
    %11324 = vmatmul.mubr.f32.gmra.mxu0 %v10941
    %v11325 = vpop.f32.mrf.mxu0
    %v11326 = vadd.f32 %v11165, %v11325
    %v11327 = vpop.f32.mrf.mxu0
    %v11328 = vadd.f32 %v11167, %v11327
    %11329 = vmatprep.mubr.f32.mxu0 0.0
    %11330 = vmatmul.mubr.f32.gmra.mxu0 %v10942
    %v11331 = vpop.f32.mrf.mxu0
    %v11332 = vadd.f32 %v11171, %v11331
    %v11333 = vpop.f32.mrf.mxu0
    %v11334 = vadd.f32 %v11173, %v11333
    %11335 = vmatprep.mubr.f32.mxu0 0.0
    %11336 = vmatmul.mubr.f32.gmra.mxu0 %v10943
    %v11337 = vpop.f32.mrf.mxu0
    %v11338 = vadd.f32 %v11177, %v11337
    %v11339 = vpop.f32.mrf.mxu0
    %v11340 = vadd.f32 %v11179, %v11339
    %11341 = vmatprep.mubr.f32.mxu0 0.0
    %11342 = vmatmul.mubr.f32.gmra.mxu0 %v10944
    %v11343 = vpop.f32.mrf.mxu0
    %v11344 = vadd.f32 %v11183, %v11343
    %v11345 = vpop.f32.mrf.mxu0
    %v11346 = vadd.f32 %v11185, %v11345
    %11347 = vdwg.mxu0
    %11348 = vst [vmem:[#allocation24] sm:$0xff] %v11254
    %11349 = vst [vmem:[#allocation24 + $0x8] sm:$0xff] %v11260
    %11350 = vst [vmem:[#allocation24 + $0x10] sm:$0xff] %v11266
    %11351 = vst [vmem:[#allocation24 + $0x18] sm:$0xff] %v11272
    %11352 = vst [vmem:[#allocation24 + $0x20] sm:$0xff] %v11278
    %11353 = vst [vmem:[#allocation24 + $0x28] sm:$0xff] %v11284
    %11354 = vst [vmem:[#allocation24 + $0x30] sm:$0xff] %v11290
    %11355 = vst [vmem:[#allocation24 + $0x38] sm:$0xff] %v11296
    %11356 = vst [vmem:[#allocation24 + $0x40] sm:$0xff] %v11302
    %11357 = vst [vmem:[#allocation24 + $0x48] sm:$0xff] %v11308
    %11358 = vst [vmem:[#allocation24 + $0x50] sm:$0xff] %v11314
    %11359 = vst [vmem:[#allocation24 + $0x58] sm:$0xff] %v11320
    %11360 = vst [vmem:[#allocation24 + $0x60] sm:$0xff] %v11326
    %11361 = vst [vmem:[#allocation24 + $0x68] sm:$0xff] %v11332
    %11362 = vst [vmem:[#allocation24 + $0x70] sm:$0xff] %v11338
    %11363 = vst [vmem:[#allocation24 + $0x78] sm:$0xff] %v11344
    %s11364 = scalar_lea.vmem [#allocation24], 128
    %11365 = vst [vmem:[%s11364] sm:$0xff] %v11256
    %11366 = vst [vmem:[%s11364 + $0x8] sm:$0xff] %v11262
    %11367 = vst [vmem:[%s11364 + $0x10] sm:$0xff] %v11268
    %11368 = vst [vmem:[%s11364 + $0x18] sm:$0xff] %v11274
    %11369 = vst [vmem:[%s11364 + $0x20] sm:$0xff] %v11280
    %11370 = vst [vmem:[%s11364 + $0x28] sm:$0xff] %v11286
    %11371 = vst [vmem:[%s11364 + $0x30] sm:$0xff] %v11292
    %11372 = vst [vmem:[%s11364 + $0x38] sm:$0xff] %v11298
    %11373 = vst [vmem:[%s11364 + $0x40] sm:$0xff] %v11304
    %11374 = vst [vmem:[%s11364 + $0x48] sm:$0xff] %v11310
    %11375 = vst [vmem:[%s11364 + $0x50] sm:$0xff] %v11316
    %11376 = vst [vmem:[%s11364 + $0x58] sm:$0xff] %v11322
    %11377 = vst [vmem:[%s11364 + $0x60] sm:$0xff] %v11328
    %11378 = vst [vmem:[%s11364 + $0x68] sm:$0xff] %v11334
    %11379 = vst [vmem:[%s11364 + $0x70] sm:$0xff] %v11340
    %11380 = vst [vmem:[%s11364 + $0x78] sm:$0xff] %v11346
    // Predicated region
    $region114: #{_lambda_.1} parent=1 // pred_check
      _
    $region115: #{_lambda_.1} parent=1 // pred_check_branch
      %11382 = sbr.rel (0) target = $region117
    $region116: #{_lambda_.1} parent=1 // pred_region
      %s11384 = ssub.s32 4096, 4096
      %11385 = vsyncadd [#allocation6], %s11384
      %s11386 = sshll.u32 [#allocation24], 4
      %s11387 = int_to_ptr.vmem [resolvable:$true] %s11386
      %11392 = dma.vmem_to_hbm [thread:$0]  %s11387, 4096, %s16, [#allocation6], 128, 128, 8
    $region117: #{_lambda_.1} parent=1 // pred_fallthru
      _
    // Predicated region
    $region118: #{_lambda_.1} parent=1 // pred_check
      _
    $region119: #{_lambda_.1} parent=1 // pred_check_branch
      %11394 = sbr.rel (0) target = $region121
    $region120: #{_lambda_.1} parent=1 // pred_region
      %11395 = dma.done [#allocation6], 4096
    $region121: #{_lambda_.1} parent=1 // pred_fallthru
      _
    %11396 = vsyncpa [#allocation5], 1
    %11397 = vsyncpa [#allocation8], 1
    %11398 = vsyncpa [#allocation11], 1
    %11399 = vsyncpa [#allocation14], 1
    %11400 = vsyncpa [#allocation17], 1
    %11401 = vsyncpa [#allocation20], 1
    %11402 = vsyncpa [#allocation23], 1
    %11403 = vsyncpa [#allocation6], 1

</llo_original>
